<compile_context>
chip_gen: v6e
topology: v6e:2x2x1
jax: 0.10.0
libtpu: 0.0.40
codegen_flags: <defaults>
</compile_context>

<pallas_src>
import math

import jax
import jax.numpy as jnp
from jax.experimental import pallas as pl
from jax.experimental.pallas import tpu as pltpu


# ----------------------------------------------------------------------------
# Fused Pallas kernel (whole forward pass, single launch, everything in VMEM)
# ----------------------------------------------------------------------------
def make_fused_kernel(num_layers, T, B, H, threshold=1.0):
    n_lstm_refs = 4 * num_layers  # per layer: w_cat_fwd, b_fwd, w_cat_bwd, b_bwd

    def kernel(*refs):
        x_ref = refs[0]                                      # (B, T, D)
        lstm_refs = refs[1:1 + n_lstm_refs]
        wfc1_ref, bfc1_ref, wout_ref, bout_ref = refs[1 + n_lstm_refs:5 + n_lstm_refs]
        spks_ref, spk2_ref, mem2_ref = refs[5 + n_lstm_refs:8 + n_lstm_refs]
        scr_refs = refs[8 + n_lstm_refs:]                    # per layer: fwd_scr, bwd_scr

        def lstm_cell(lhs, c, w_ref, b_ref):
            # Single fused matmul: lhs = [x_t, h] (B, Din+H), w = [Wih; Whh] (Din+H, 4H)
            gates = jnp.dot(lhs, w_ref[...],
                            preferred_element_type=jnp.float32) + b_ref[...]
            sg = jax.nn.sigmoid(gates)                       # one full-vreg sigmoid
            g = jnp.tanh(gates[:, 2 * H:3 * H])              # tanh only on g slice
            i = sg[:, 0 * H:1 * H]
            f = sg[:, 1 * H:2 * H]
            o = sg[:, 3 * H:4 * H]
            c_new = f * c + i * g
            h_new = o * jnp.tanh(c_new)
            return h_new, c_new

        zeros_bh = jnp.zeros((B, H), jnp.float32)

        for layer in range(num_layers):
            wf_ref, bf_ref, wb_ref, bb_ref = lstm_refs[4 * layer:4 * layer + 4]
            f_scr = scr_refs[2 * layer]
            b_scr = scr_refs[2 * layer + 1]

            def layer_in(t, _layer=layer):
                if _layer == 0:
                    return (x_ref[:, t, :],)
                pf = scr_refs[2 * (_layer - 1)]
                pb = scr_refs[2 * (_layer - 1) + 1]
                return (pf[:, t, :], pb[:, t, :])

            h_f = c_f = h_b = c_b = zeros_bh
            # Fully-unrolled time loop; fwd step t and bwd step T-1-t interleaved
            # (two independent EUP/MXU chains -> ILP on a single TensorCore).
            for t in range(T):
                lhs_f = jnp.concatenate(layer_in(t) + (h_f,), axis=-1)
                lhs_b = jnp.concatenate(layer_in(T - 1 - t) + (h_b,), axis=-1)
                h_f, c_f = lstm_cell(lhs_f, c_f, wf_ref, bf_ref)
                h_b, c_b = lstm_cell(lhs_b, c_b, wb_ref, bb_ref)
                f_scr[:, t, :] = h_f
                b_scr[:, T - 1 - t, :] = h_b

        # ---- fc_1 + lif1 (zero-init Leaky: mem = fc_1(out), spk = mem > thr) ----
        f_last = scr_refs[2 * (num_layers - 1)]
        b_last = scr_refs[2 * (num_layers - 1) + 1]
        hcat = jnp.concatenate([f_last[...], b_last[...]], axis=-1)   # (B, T, 2H)
        F1 = wfc1_ref.shape[1]
        y1 = (jnp.dot(hcat.reshape(B * T, 2 * H), wfc1_ref[...],
                      preferred_element_type=jnp.float32) + bfc1_ref[...])
        spk1 = (y1 > threshold).astype(jnp.float32).reshape(B, T, F1)
        spks_ref[...] = spk1

        # ---- output_fc on last time step + lif2 (output=True) ----
        last = spk1[:, T - 1, :]                                       # (B, F1)
        y2 = (jnp.dot(last, wout_ref[...],
                      preferred_element_type=jnp.float32) + bout_ref[...])
        mem2_ref[...] = y2
        spk2_ref[...] = (y2 > threshold).astype(jnp.float32)

    return kernel


# ----------------------------------------------------------------------------
# Wrapper (single pallas_call, no grid: everything resident in VMEM)
# ----------------------------------------------------------------------------
@jax.jit
def snn_bilstm_forward(x, params):
    """x: (B, T, input_size) float32, batch_first like PyTorch."""
    x = x.astype(jnp.float32)
    B, T, _ = x.shape
    num_layers = len(params["lstm"])
    H = params["lstm"][0]["fwd"]["b"].shape[1] // 4
    F1 = params["fc1"]["w_t"].shape[1]
    L = params["out"]["w_t"].shape[1]

    args = [x]
    for layer in params["lstm"]:
        args += [layer["fwd"]["w_cat"], layer["fwd"]["b"],
                 layer["bwd"]["w_cat"], layer["bwd"]["b"]]
    args += [params["fc1"]["w_t"], params["fc1"]["b"],
             params["out"]["w_t"], params["out"]["b"]]

    vmem = pl.BlockSpec(memory_space=pltpu.MemorySpace.VMEM)
    kernel = make_fused_kernel(num_layers, T, B, H)
    spks, spk2, mem2 = pl.pallas_call(
        kernel,
        out_shape=(
            jax.ShapeDtypeStruct((B, T, F1), jnp.float32),
            jax.ShapeDtypeStruct((B, L), jnp.float32),
            jax.ShapeDtypeStruct((B, L), jnp.float32),
        ),
        in_specs=[vmem] * len(args),
        out_specs=(vmem, vmem, vmem),
        scratch_shapes=[pltpu.VMEM((B, T, H), jnp.float32)
                        for _ in range(2 * num_layers)],
    )(*args)
    return spks, spk2, mem2


# ----------------------------------------------------------------------------
# Deterministic parameter init (shapes follow nn.LSTM / nn.Linear, weights fused)
# ----------------------------------------------------------------------------
def init_params(key, *, input_size, hidden, num_layers, fc1_num, label_num):
    params = {"lstm": []}
    H = hidden
    k_lstm = 1.0 / math.sqrt(H)

    def uni(k, shape, bound):
        return jax.random.uniform(k, shape, jnp.float32, -bound, bound)

    for layer in range(num_layers):
        d_in = input_size if layer == 0 else 2 * H
        layer_p = {}
        for dname in ("fwd", "bwd"):
            key, k1, k2, k3, k4 = jax.random.split(key, 5)
            wih = uni(k1, (4 * H, d_in), k_lstm)   # PyTorch weight_ih_l{k}
            whh = uni(k2, (4 * H, H), k_lstm)      # PyTorch weight_hh_l{k}
            bih = uni(k3, (4 * H,), k_lstm)
            bhh = uni(k4, (4 * H,), k_lstm)
            layer_p[dname] = {
                # fused [Wih; Whh]^T -> (d_in + H, 4H): one MXU push per LSTM cell
                "w_cat": jnp.concatenate([wih.T, whh.T], axis=0),
                "b": (bih + bhh).reshape(1, 4 * H),
            }
        params["lstm"].append(layer_p)

    key, k1, k2 = jax.random.split(key, 3)
    k_fc1 = 1.0 / math.sqrt(2 * H)
    w1 = uni(k1, (fc1_num, 2 * H), k_fc1)
    b1 = uni(k2, (fc1_num,), k_fc1)
    params["fc1"] = {"w_t": w1.T, "b": b1.reshape(1, fc1_num)}

    key, k1, k2 = jax.random.split(key, 3)
    k_out = 1.0 / math.sqrt(fc1_num)
    w2 = uni(k1, (label_num, fc1_num), k_out)
    b2 = uni(k2, (label_num,), k_out)
    params["out"] = {"w_t": w2.T, "b": b2.reshape(1, label_num)}
    return params


# ----------------------------------------------------------------------------
if __name__ == "__main__":
    # args: hidden_dim=16, lstm_hidden_size=32, lstm_layers_num=2,
    #       bidirectional=True, lstm_fc1_num=32, label_num=4, beta=0.9
    B, T, D = 2, 8, 16
    H, LAYERS, F1, L = 32, 2, 32, 4

    key = jax.random.PRNGKey(0)
    key, kx, kp = jax.random.split(key, 3)
    x = jax.random.normal(kx, (B, T, D), dtype=jnp.float32)
    params = init_params(kp, input_size=D, hidden=H, num_layers=LAYERS,
                         fc1_num=F1, label_num=L)

    spks, spk2, mem2 = snn_bilstm_forward(x, params)
    jax.block_until_ready((spks, spk2, mem2))

    assert spks.shape == (B, T, F1)
    assert spk2.shape == (B, L)
    assert mem2.shape == (B, L)
    print("KERNEL_OK")
</pallas_src>

<mosaic_0001>
module attributes {stable_mosaic.version = 11 : i64} {
  func.func @kernel(%arg0: memref<2x8x16xf32, #tpu.memory_space<vmem>>, %arg1: memref<48x128xf32, #tpu.memory_space<vmem>>, %arg2: memref<1x128xf32, #tpu.memory_space<vmem>>, %arg3: memref<48x128xf32, #tpu.memory_space<vmem>>, %arg4: memref<1x128xf32, #tpu.memory_space<vmem>>, %arg5: memref<96x128xf32, #tpu.memory_space<vmem>>, %arg6: memref<1x128xf32, #tpu.memory_space<vmem>>, %arg7: memref<96x128xf32, #tpu.memory_space<vmem>>, %arg8: memref<1x128xf32, #tpu.memory_space<vmem>>, %arg9: memref<64x32xf32, #tpu.memory_space<vmem>>, %arg10: memref<1x32xf32, #tpu.memory_space<vmem>>, %arg11: memref<32x4xf32, #tpu.memory_space<vmem>>, %arg12: memref<1x4xf32, #tpu.memory_space<vmem>>, %arg13: memref<2x8x32xf32, #tpu.memory_space<vmem>>, %arg14: memref<2x4xf32, #tpu.memory_space<vmem>>, %arg15: memref<2x4xf32, #tpu.memory_space<vmem>>, %arg16: memref<2x8x32xf32, #tpu.memory_space<vmem>>, %arg17: memref<2x8x32xf32, #tpu.memory_space<vmem>>, %arg18: memref<2x8x32xf32, #tpu.memory_space<vmem>>, %arg19: memref<2x8x32xf32, #tpu.memory_space<vmem>>) attributes {dimension_semantics = [], scalar_prefetch = 0 : i64, scratch_operands = 4 : i64, tpu.core_type = #tpu.core_type<tc>} {
    %cst = arith.constant 0.000000e+00 : f32
    %0 = vector.broadcast %cst : f32 to vector<2x32xf32>
    %c0 = arith.constant 0 : index
    %c0_0 = arith.constant 0 : index
    %c0_1 = arith.constant 0 : index
    %1 = vector.load %arg0[%c0, %c0_0, %c0_1] : memref<2x8x16xf32, #tpu.memory_space<vmem>>, vector<2x1x16xf32>
    %2 = vector.shape_cast %1 : vector<2x1x16xf32> to vector<2x16xf32>
    %3 = tpu.concatenate %2, %0 in 1 : vector<2x16xf32>, vector<2x32xf32> -> vector<2x48xf32>
    %c0_2 = arith.constant 0 : index
    %c7 = arith.constant 7 : index
    %c0_3 = arith.constant 0 : index
    %4 = vector.load %arg0[%c0_2, %c7, %c0_3] : memref<2x8x16xf32, #tpu.memory_space<vmem>>, vector<2x1x16xf32>
    %5 = vector.shape_cast %4 : vector<2x1x16xf32> to vector<2x16xf32>
    %6 = tpu.concatenate %5, %0 in 1 : vector<2x16xf32>, vector<2x32xf32> -> vector<2x48xf32>
    %c0_4 = arith.constant 0 : index
    %c0_5 = arith.constant 0 : index
    %7 = vector.load %arg1[%c0_4, %c0_5] : memref<48x128xf32, #tpu.memory_space<vmem>>, vector<48x128xf32>
    %cst_6 = arith.constant dense<0.000000e+00> : vector<2x128xf32>
    %8 = tpu.matmul %3, %7, %cst_6 {dimension_numbers = #tpu.dot_dimension_numbers<[1], [0], [0], [1], [0, 0, 1, 1], [], []>} : vector<2x48xf32>, vector<48x128xf32>, vector<2x128xf32> -> vector<2x128xf32>
    %c0_7 = arith.constant 0 : index
    %c0_8 = arith.constant 0 : index
    %9 = vector.load %arg2[%c0_7, %c0_8] : memref<1x128xf32, #tpu.memory_space<vmem>>, vector<1x128xf32>
    %10 = vector.broadcast %9 : vector<1x128xf32> to vector<2x128xf32>
    %11 = arith.addf %8, %10 : vector<2x128xf32>
    %12 = arith.negf %11 : vector<2x128xf32>
    %13 = math.exp %12 : vector<2x128xf32>
    %cst_9 = arith.constant 1.000000e+00 : f32
    %14 = vector.broadcast %cst_9 : f32 to vector<2x128xf32>
    %15 = arith.addf %14, %13 : vector<2x128xf32>
    %16 = arith.divf %14, %15 : vector<2x128xf32>
    %17 = vector.extract_strided_slice %11 {offsets = [0, 64], sizes = [2, 32], strides = [1, 1]} : vector<2x128xf32> to vector<2x32xf32>
    %18 = math.tanh %17 : vector<2x32xf32>
    %19 = vector.extract_strided_slice %16 {offsets = [0, 0], sizes = [2, 32], strides = [1, 1]} : vector<2x128xf32> to vector<2x32xf32>
    %20 = vector.extract_strided_slice %16 {offsets = [0, 32], sizes = [2, 32], strides = [1, 1]} : vector<2x128xf32> to vector<2x32xf32>
    %21 = vector.extract_strided_slice %16 {offsets = [0, 96], sizes = [2, 32], strides = [1, 1]} : vector<2x128xf32> to vector<2x32xf32>
    %22 = arith.mulf %20, %0 : vector<2x32xf32>
    %23 = arith.mulf %19, %18 : vector<2x32xf32>
    %24 = arith.addf %22, %23 : vector<2x32xf32>
    %25 = math.tanh %24 : vector<2x32xf32>
    %26 = arith.mulf %21, %25 : vector<2x32xf32>
    %c0_10 = arith.constant 0 : index
    %c0_11 = arith.constant 0 : index
    %27 = vector.load %arg3[%c0_10, %c0_11] : memref<48x128xf32, #tpu.memory_space<vmem>>, vector<48x128xf32>
    %cst_12 = arith.constant dense<0.000000e+00> : vector<2x128xf32>
    %28 = tpu.matmul %6, %27, %cst_12 {dimension_numbers = #tpu.dot_dimension_numbers<[1], [0], [0], [1], [0, 0, 1, 1], [], []>} : vector<2x48xf32>, vector<48x128xf32>, vector<2x128xf32> -> vector<2x128xf32>
    %c0_13 = arith.constant 0 : index
    %c0_14 = arith.constant 0 : index
    %29 = vector.load %arg4[%c0_13, %c0_14] : memref<1x128xf32, #tpu.memory_space<vmem>>, vector<1x128xf32>
    %30 = vector.broadcast %29 : vector<1x128xf32> to vector<2x128xf32>
    %31 = arith.addf %28, %30 : vector<2x128xf32>
    %32 = arith.negf %31 : vector<2x128xf32>
    %33 = math.exp %32 : vector<2x128xf32>
    %cst_15 = arith.constant 1.000000e+00 : f32
    %34 = vector.broadcast %cst_15 : f32 to vector<2x128xf32>
    %35 = arith.addf %34, %33 : vector<2x128xf32>
    %36 = arith.divf %34, %35 : vector<2x128xf32>
    %37 = vector.extract_strided_slice %31 {offsets = [0, 64], sizes = [2, 32], strides = [1, 1]} : vector<2x128xf32> to vector<2x32xf32>
    %38 = math.tanh %37 : vector<2x32xf32>
    %39 = vector.extract_strided_slice %36 {offsets = [0, 0], sizes = [2, 32], strides = [1, 1]} : vector<2x128xf32> to vector<2x32xf32>
    %40 = vector.extract_strided_slice %36 {offsets = [0, 32], sizes = [2, 32], strides = [1, 1]} : vector<2x128xf32> to vector<2x32xf32>
    %41 = vector.extract_strided_slice %36 {offsets = [0, 96], sizes = [2, 32], strides = [1, 1]} : vector<2x128xf32> to vector<2x32xf32>
    %42 = arith.mulf %40, %0 : vector<2x32xf32>
    %43 = arith.mulf %39, %38 : vector<2x32xf32>
    %44 = arith.addf %42, %43 : vector<2x32xf32>
    %45 = math.tanh %44 : vector<2x32xf32>
    %46 = arith.mulf %41, %45 : vector<2x32xf32>
    %c0_16 = arith.constant 0 : index
    %c0_17 = arith.constant 0 : index
    %c0_18 = arith.constant 0 : index
    %47 = vector.load %arg16[%c0_16, %c0_17, %c0_18] : memref<2x8x32xf32, #tpu.memory_space<vmem>>, vector<2x1x32xf32>
    %48 = vector.shape_cast %47 : vector<2x1x32xf32> to vector<2x32xf32>
    %49 = vector.shape_cast %26 : vector<2x32xf32> to vector<2x1x32xf32>
    tpu.vector_store %arg16[%c0_16, %c0_17, %c0_18], %49 {strides = array<i32>} : memref<2x8x32xf32, #tpu.memory_space<vmem>>, vector<2x1x32xf32>,
    %c0_19 = arith.constant 0 : index
    %c7_20 = arith.constant 7 : index
    %c0_21 = arith.constant 0 : index
    %50 = vector.load %arg17[%c0_19, %c7_20, %c0_21] : memref<2x8x32xf32, #tpu.memory_space<vmem>>, vector<2x1x32xf32>
    %51 = vector.shape_cast %50 : vector<2x1x32xf32> to vector<2x32xf32>
    %52 = vector.shape_cast %46 : vector<2x32xf32> to vector<2x1x32xf32>
    tpu.vector_store %arg17[%c0_19, %c7_20, %c0_21], %52 {strides = array<i32>} : memref<2x8x32xf32, #tpu.memory_space<vmem>>, vector<2x1x32xf32>,
    %c0_22 = arith.constant 0 : index
    %c1 = arith.constant 1 : index
    %c0_23 = arith.constant 0 : index
    %53 = vector.load %arg0[%c0_22, %c1, %c0_23] : memref<2x8x16xf32, #tpu.memory_space<vmem>>, vector<2x1x16xf32>
    %54 = vector.shape_cast %53 : vector<2x1x16xf32> to vector<2x16xf32>
    %55 = tpu.concatenate %54, %26 in 1 : vector<2x16xf32>, vector<2x32xf32> -> vector<2x48xf32>
    %c0_24 = arith.constant 0 : index
    %c6 = arith.constant 6 : index
    %c0_25 = arith.constant 0 : index
    %56 = vector.load %arg0[%c0_24, %c6, %c0_25] : memref<2x8x16xf32, #tpu.memory_space<vmem>>, vector<2x1x16xf32>
    %57 = vector.shape_cast %56 : vector<2x1x16xf32> to vector<2x16xf32>
    %58 = tpu.concatenate %57, %46 in 1 : vector<2x16xf32>, vector<2x32xf32> -> vector<2x48xf32>
    %c0_26 = arith.constant 0 : index
    %c0_27 = arith.constant 0 : index
    %59 = vector.load %arg1[%c0_26, %c0_27] : memref<48x128xf32, #tpu.memory_space<vmem>>, vector<48x128xf32>
    %cst_28 = arith.constant dense<0.000000e+00> : vector<2x128xf32>
    %60 = tpu.matmul %55, %59, %cst_28 {dimension_numbers = #tpu.dot_dimension_numbers<[1], [0], [0], [1], [0, 0, 1, 1], [], []>} : vector<2x48xf32>, vector<48x128xf32>, vector<2x128xf32> -> vector<2x128xf32>
    %c0_29 = arith.constant 0 : index
    %c0_30 = arith.constant 0 : index
    %61 = vector.load %arg2[%c0_29, %c0_30] : memref<1x128xf32, #tpu.memory_space<vmem>>, vector<1x128xf32>
    %62 = vector.broadcast %61 : vector<1x128xf32> to vector<2x128xf32>
    %63 = arith.addf %60, %62 : vector<2x128xf32>
    %64 = arith.negf %63 : vector<2x128xf32>
    %65 = math.exp %64 : vector<2x128xf32>
    %cst_31 = arith.constant 1.000000e+00 : f32
    %66 = vector.broadcast %cst_31 : f32 to vector<2x128xf32>
    %67 = arith.addf %66, %65 : vector<2x128xf32>
    %68 = arith.divf %66, %67 : vector<2x128xf32>
    %69 = vector.extract_strided_slice %63 {offsets = [0, 64], sizes = [2, 32], strides = [1, 1]} : vector<2x128xf32> to vector<2x32xf32>
    %70 = math.tanh %69 : vector<2x32xf32>
    %71 = vector.extract_strided_slice %68 {offsets = [0, 0], sizes = [2, 32], strides = [1, 1]} : vector<2x128xf32> to vector<2x32xf32>
    %72 = vector.extract_strided_slice %68 {offsets = [0, 32], sizes = [2, 32], strides = [1, 1]} : vector<2x128xf32> to vector<2x32xf32>
    %73 = vector.extract_strided_slice %68 {offsets = [0, 96], sizes = [2, 32], strides = [1, 1]} : vector<2x128xf32> to vector<2x32xf32>
    %74 = arith.mulf %72, %24 : vector<2x32xf32>
    %75 = arith.mulf %71, %70 : vector<2x32xf32>
    %76 = arith.addf %74, %75 : vector<2x32xf32>
    %77 = math.tanh %76 : vector<2x32xf32>
    %78 = arith.mulf %73, %77 : vector<2x32xf32>
    %c0_32 = arith.constant 0 : index
    %c0_33 = arith.constant 0 : index
    %79 = vector.load %arg3[%c0_32, %c0_33] : memref<48x128xf32, #tpu.memory_space<vmem>>, vector<48x128xf32>
    %cst_34 = arith.constant dense<0.000000e+00> : vector<2x128xf32>
    %80 = tpu.matmul %58, %79, %cst_34 {dimension_numbers = #tpu.dot_dimension_numbers<[1], [0], [0], [1], [0, 0, 1, 1], [], []>} : vector<2x48xf32>, vector<48x128xf32>, vector<2x128xf32> -> vector<2x128xf32>
    %c0_35 = arith.constant 0 : index
    %c0_36 = arith.constant 0 : index
    %81 = vector.load %arg4[%c0_35, %c0_36] : memref<1x128xf32, #tpu.memory_space<vmem>>, vector<1x128xf32>
    %82 = vector.broadcast %81 : vector<1x128xf32> to vector<2x128xf32>
    %83 = arith.addf %80, %82 : vector<2x128xf32>
    %84 = arith.negf %83 : vector<2x128xf32>
    %85 = math.exp %84 : vector<2x128xf32>
    %cst_37 = arith.constant 1.000000e+00 : f32
    %86 = vector.broadcast %cst_37 : f32 to vector<2x128xf32>
    %87 = arith.addf %86, %85 : vector<2x128xf32>
    %88 = arith.divf %86, %87 : vector<2x128xf32>
    %89 = vector.extract_strided_slice %83 {offsets = [0, 64], sizes = [2, 32], strides = [1, 1]} : vector<2x128xf32> to vector<2x32xf32>
    %90 = math.tanh %89 : vector<2x32xf32>
    %91 = vector.extract_strided_slice %88 {offsets = [0, 0], sizes = [2, 32], strides = [1, 1]} : vector<2x128xf32> to vector<2x32xf32>
    %92 = vector.extract_strided_slice %88 {offsets = [0, 32], sizes = [2, 32], strides = [1, 1]} : vector<2x128xf32> to vector<2x32xf32>
    %93 = vector.extract_strided_slice %88 {offsets = [0, 96], sizes = [2, 32], strides = [1, 1]} : vector<2x128xf32> to vector<2x32xf32>
    %94 = arith.mulf %92, %44 : vector<2x32xf32>
    %95 = arith.mulf %91, %90 : vector<2x32xf32>
    %96 = arith.addf %94, %95 : vector<2x32xf32>
    %97 = math.tanh %96 : vector<2x32xf32>
    %98 = arith.mulf %93, %97 : vector<2x32xf32>
    %c0_38 = arith.constant 0 : index
    %c1_39 = arith.constant 1 : index
    %c0_40 = arith.constant 0 : index
    %99 = vector.load %arg16[%c0_38, %c1_39, %c0_40] : memref<2x8x32xf32, #tpu.memory_space<vmem>>, vector<2x1x32xf32>
    %100 = vector.shape_cast %99 : vector<2x1x32xf32> to vector<2x32xf32>
    %101 = vector.shape_cast %78 : vector<2x32xf32> to vector<2x1x32xf32>
    tpu.vector_store %arg16[%c0_38, %c1_39, %c0_40], %101 {strides = array<i32>} : memref<2x8x32xf32, #tpu.memory_space<vmem>>, vector<2x1x32xf32>,
    %c0_41 = arith.constant 0 : index
    %c6_42 = arith.constant 6 : index
    %c0_43 = arith.constant 0 : index
    %102 = vector.load %arg17[%c0_41, %c6_42, %c0_43] : memref<2x8x32xf32, #tpu.memory_space<vmem>>, vector<2x1x32xf32>
    %103 = vector.shape_cast %102 : vector<2x1x32xf32> to vector<2x32xf32>
    %104 = vector.shape_cast %98 : vector<2x32xf32> to vector<2x1x32xf32>
    tpu.vector_store %arg17[%c0_41, %c6_42, %c0_43], %104 {strides = array<i32>} : memref<2x8x32xf32, #tpu.memory_space<vmem>>, vector<2x1x32xf32>,
    %c0_44 = arith.constant 0 : index
    %c2 = arith.constant 2 : index
    %c0_45 = arith.constant 0 : index
    %105 = vector.load %arg0[%c0_44, %c2, %c0_45] : memref<2x8x16xf32, #tpu.memory_space<vmem>>, vector<2x1x16xf32>
    %106 = vector.shape_cast %105 : vector<2x1x16xf32> to vector<2x16xf32>
    %107 = tpu.concatenate %106, %78 in 1 : vector<2x16xf32>, vector<2x32xf32> -> vector<2x48xf32>
    %c0_46 = arith.constant 0 : index
    %c5 = arith.constant 5 : index
    %c0_47 = arith.constant 0 : index
    %108 = vector.load %arg0[%c0_46, %c5, %c0_47] : memref<2x8x16xf32, #tpu.memory_space<vmem>>, vector<2x1x16xf32>
    %109 = vector.shape_cast %108 : vector<2x1x16xf32> to vector<2x16xf32>
    %110 = tpu.concatenate %109, %98 in 1 : vector<2x16xf32>, vector<2x32xf32> -> vector<2x48xf32>
    %c0_48 = arith.constant 0 : index
    %c0_49 = arith.constant 0 : index
    %111 = vector.load %arg1[%c0_48, %c0_49] : memref<48x128xf32, #tpu.memory_space<vmem>>, vector<48x128xf32>
    %cst_50 = arith.constant dense<0.000000e+00> : vector<2x128xf32>
    %112 = tpu.matmul %107, %111, %cst_50 {dimension_numbers = #tpu.dot_dimension_numbers<[1], [0], [0], [1], [0, 0, 1, 1], [], []>} : vector<2x48xf32>, vector<48x128xf32>, vector<2x128xf32> -> vector<2x128xf32>
    %c0_51 = arith.constant 0 : index
    %c0_52 = arith.constant 0 : index
    %113 = vector.load %arg2[%c0_51, %c0_52] : memref<1x128xf32, #tpu.memory_space<vmem>>, vector<1x128xf32>
    %114 = vector.broadcast %113 : vector<1x128xf32> to vector<2x128xf32>
    %115 = arith.addf %112, %114 : vector<2x128xf32>
    %116 = arith.negf %115 : vector<2x128xf32>
    %117 = math.exp %116 : vector<2x128xf32>
    %cst_53 = arith.constant 1.000000e+00 : f32
    %118 = vector.broadcast %cst_53 : f32 to vector<2x128xf32>
    %119 = arith.addf %118, %117 : vector<2x128xf32>
    %120 = arith.divf %118, %119 : vector<2x128xf32>
    %121 = vector.extract_strided_slice %115 {offsets = [0, 64], sizes = [2, 32], strides = [1, 1]} : vector<2x128xf32> to vector<2x32xf32>
    %122 = math.tanh %121 : vector<2x32xf32>
    %123 = vector.extract_strided_slice %120 {offsets = [0, 0], sizes = [2, 32], strides = [1, 1]} : vector<2x128xf32> to vector<2x32xf32>
    %124 = vector.extract_strided_slice %120 {offsets = [0, 32], sizes = [2, 32], strides = [1, 1]} : vector<2x128xf32> to vector<2x32xf32>
    %125 = vector.extract_strided_slice %120 {offsets = [0, 96], sizes = [2, 32], strides = [1, 1]} : vector<2x128xf32> to vector<2x32xf32>
    %126 = arith.mulf %124, %76 : vector<2x32xf32>
    %127 = arith.mulf %123, %122 : vector<2x32xf32>
    %128 = arith.addf %126, %127 : vector<2x32xf32>
    %129 = math.tanh %128 : vector<2x32xf32>
    %130 = arith.mulf %125, %129 : vector<2x32xf32>
    %c0_54 = arith.constant 0 : index
    %c0_55 = arith.constant 0 : index
    %131 = vector.load %arg3[%c0_54, %c0_55] : memref<48x128xf32, #tpu.memory_space<vmem>>, vector<48x128xf32>
    %cst_56 = arith.constant dense<0.000000e+00> : vector<2x128xf32>
    %132 = tpu.matmul %110, %131, %cst_56 {dimension_numbers = #tpu.dot_dimension_numbers<[1], [0], [0], [1], [0, 0, 1, 1], [], []>} : vector<2x48xf32>, vector<48x128xf32>, vector<2x128xf32> -> vector<2x128xf32>
    %c0_57 = arith.constant 0 : index
    %c0_58 = arith.constant 0 : index
    %133 = vector.load %arg4[%c0_57, %c0_58] : memref<1x128xf32, #tpu.memory_space<vmem>>, vector<1x128xf32>
    %134 = vector.broadcast %133 : vector<1x128xf32> to vector<2x128xf32>
    %135 = arith.addf %132, %134 : vector<2x128xf32>
    %136 = arith.negf %135 : vector<2x128xf32>
    %137 = math.exp %136 : vector<2x128xf32>
    %cst_59 = arith.constant 1.000000e+00 : f32
    %138 = vector.broadcast %cst_59 : f32 to vector<2x128xf32>
    %139 = arith.addf %138, %137 : vector<2x128xf32>
    %140 = arith.divf %138, %139 : vector<2x128xf32>
    %141 = vector.extract_strided_slice %135 {offsets = [0, 64], sizes = [2, 32], strides = [1, 1]} : vector<2x128xf32> to vector<2x32xf32>
    %142 = math.tanh %141 : vector<2x32xf32>
    %143 = vector.extract_strided_slice %140 {offsets = [0, 0], sizes = [2, 32], strides = [1, 1]} : vector<2x128xf32> to vector<2x32xf32>
    %144 = vector.extract_strided_slice %140 {offsets = [0, 32], sizes = [2, 32], strides = [1, 1]} : vector<2x128xf32> to vector<2x32xf32>
    %145 = vector.extract_strided_slice %140 {offsets = [0, 96], sizes = [2, 32], strides = [1, 1]} : vector<2x128xf32> to vector<2x32xf32>
    %146 = arith.mulf %144, %96 : vector<2x32xf32>
    %147 = arith.mulf %143, %142 : vector<2x32xf32>
    %148 = arith.addf %146, %147 : vector<2x32xf32>
    %149 = math.tanh %148 : vector<2x32xf32>
    %150 = arith.mulf %145, %149 : vector<2x32xf32>
    %c0_60 = arith.constant 0 : index
    %c2_61 = arith.constant 2 : index
    %c0_62 = arith.constant 0 : index
    %151 = vector.load %arg16[%c0_60, %c2_61, %c0_62] : memref<2x8x32xf32, #tpu.memory_space<vmem>>, vector<2x1x32xf32>
    %152 = vector.shape_cast %151 : vector<2x1x32xf32> to vector<2x32xf32>
    %153 = vector.shape_cast %130 : vector<2x32xf32> to vector<2x1x32xf32>
    tpu.vector_store %arg16[%c0_60, %c2_61, %c0_62], %153 {strides = array<i32>} : memref<2x8x32xf32, #tpu.memory_space<vmem>>, vector<2x1x32xf32>,
    %c0_63 = arith.constant 0 : index
    %c5_64 = arith.constant 5 : index
    %c0_65 = arith.constant 0 : index
    %154 = vector.load %arg17[%c0_63, %c5_64, %c0_65] : memref<2x8x32xf32, #tpu.memory_space<vmem>>, vector<2x1x32xf32>
    %155 = vector.shape_cast %154 : vector<2x1x32xf32> to vector<2x32xf32>
    %156 = vector.shape_cast %150 : vector<2x32xf32> to vector<2x1x32xf32>
    tpu.vector_store %arg17[%c0_63, %c5_64, %c0_65], %156 {strides = array<i32>} : memref<2x8x32xf32, #tpu.memory_space<vmem>>, vector<2x1x32xf32>,
    %c0_66 = arith.constant 0 : index
    %c3 = arith.constant 3 : index
    %c0_67 = arith.constant 0 : index
    %157 = vector.load %arg0[%c0_66, %c3, %c0_67] : memref<2x8x16xf32, #tpu.memory_space<vmem>>, vector<2x1x16xf32>
    %158 = vector.shape_cast %157 : vector<2x1x16xf32> to vector<2x16xf32>
    %159 = tpu.concatenate %158, %130 in 1 : vector<2x16xf32>, vector<2x32xf32> -> vector<2x48xf32>
    %c0_68 = arith.constant 0 : index
    %c4 = arith.constant 4 : index
    %c0_69 = arith.constant 0 : index
    %160 = vector.load %arg0[%c0_68, %c4, %c0_69] : memref<2x8x16xf32, #tpu.memory_space<vmem>>, vector<2x1x16xf32>
    %161 = vector.shape_cast %160 : vector<2x1x16xf32> to vector<2x16xf32>
    %162 = tpu.concatenate %161, %150 in 1 : vector<2x16xf32>, vector<2x32xf32> -> vector<2x48xf32>
    %c0_70 = arith.constant 0 : index
    %c0_71 = arith.constant 0 : index
    %163 = vector.load %arg1[%c0_70, %c0_71] : memref<48x128xf32, #tpu.memory_space<vmem>>, vector<48x128xf32>
    %cst_72 = arith.constant dense<0.000000e+00> : vector<2x128xf32>
    %164 = tpu.matmul %159, %163, %cst_72 {dimension_numbers = #tpu.dot_dimension_numbers<[1], [0], [0], [1], [0, 0, 1, 1], [], []>} : vector<2x48xf32>, vector<48x128xf32>, vector<2x128xf32> -> vector<2x128xf32>
    %c0_73 = arith.constant 0 : index
    %c0_74 = arith.constant 0 : index
    %165 = vector.load %arg2[%c0_73, %c0_74] : memref<1x128xf32, #tpu.memory_space<vmem>>, vector<1x128xf32>
    %166 = vector.broadcast %165 : vector<1x128xf32> to vector<2x128xf32>
    %167 = arith.addf %164, %166 : vector<2x128xf32>
    %168 = arith.negf %167 : vector<2x128xf32>
    %169 = math.exp %168 : vector<2x128xf32>
    %cst_75 = arith.constant 1.000000e+00 : f32
    %170 = vector.broadcast %cst_75 : f32 to vector<2x128xf32>
    %171 = arith.addf %170, %169 : vector<2x128xf32>
    %172 = arith.divf %170, %171 : vector<2x128xf32>
    %173 = vector.extract_strided_slice %167 {offsets = [0, 64], sizes = [2, 32], strides = [1, 1]} : vector<2x128xf32> to vector<2x32xf32>
    %174 = math.tanh %173 : vector<2x32xf32>
    %175 = vector.extract_strided_slice %172 {offsets = [0, 0], sizes = [2, 32], strides = [1, 1]} : vector<2x128xf32> to vector<2x32xf32>
    %176 = vector.extract_strided_slice %172 {offsets = [0, 32], sizes = [2, 32], strides = [1, 1]} : vector<2x128xf32> to vector<2x32xf32>
    %177 = vector.extract_strided_slice %172 {offsets = [0, 96], sizes = [2, 32], strides = [1, 1]} : vector<2x128xf32> to vector<2x32xf32>
    %178 = arith.mulf %176, %128 : vector<2x32xf32>
    %179 = arith.mulf %175, %174 : vector<2x32xf32>
    %180 = arith.addf %178, %179 : vector<2x32xf32>
    %181 = math.tanh %180 : vector<2x32xf32>
    %182 = arith.mulf %177, %181 : vector<2x32xf32>
    %c0_76 = arith.constant 0 : index
    %c0_77 = arith.constant 0 : index
    %183 = vector.load %arg3[%c0_76, %c0_77] : memref<48x128xf32, #tpu.memory_space<vmem>>, vector<48x128xf32>
    %cst_78 = arith.constant dense<0.000000e+00> : vector<2x128xf32>
    %184 = tpu.matmul %162, %183, %cst_78 {dimension_numbers = #tpu.dot_dimension_numbers<[1], [0], [0], [1], [0, 0, 1, 1], [], []>} : vector<2x48xf32>, vector<48x128xf32>, vector<2x128xf32> -> vector<2x128xf32>
    %c0_79 = arith.constant 0 : index
    %c0_80 = arith.constant 0 : index
    %185 = vector.load %arg4[%c0_79, %c0_80] : memref<1x128xf32, #tpu.memory_space<vmem>>, vector<1x128xf32>
    %186 = vector.broadcast %185 : vector<1x128xf32> to vector<2x128xf32>
    %187 = arith.addf %184, %186 : vector<2x128xf32>
    %188 = arith.negf %187 : vector<2x128xf32>
    %189 = math.exp %188 : vector<2x128xf32>
    %cst_81 = arith.constant 1.000000e+00 : f32
    %190 = vector.broadcast %cst_81 : f32 to vector<2x128xf32>
    %191 = arith.addf %190, %189 : vector<2x128xf32>
    %192 = arith.divf %190, %191 : vector<2x128xf32>
    %193 = vector.extract_strided_slice %187 {offsets = [0, 64], sizes = [2, 32], strides = [1, 1]} : vector<2x128xf32> to vector<2x32xf32>
    %194 = math.tanh %193 : vector<2x32xf32>
    %195 = vector.extract_strided_slice %192 {offsets = [0, 0], sizes = [2, 32], strides = [1, 1]} : vector<2x128xf32> to vector<2x32xf32>
    %196 = vector.extract_strided_slice %192 {offsets = [0, 32], sizes = [2, 32], strides = [1, 1]} : vector<2x128xf32> to vector<2x32xf32>
    %197 = vector.extract_strided_slice %192 {offsets = [0, 96], sizes = [2, 32], strides = [1, 1]} : vector<2x128xf32> to vector<2x32xf32>
    %198 = arith.mulf %196, %148 : vector<2x32xf32>
    %199 = arith.mulf %195, %194 : vector<2x32xf32>
    %200 = arith.addf %198, %199 : vector<2x32xf32>
    %201 = math.tanh %200 : vector<2x32xf32>
    %202 = arith.mulf %197, %201 : vector<2x32xf32>
    %c0_82 = arith.constant 0 : index
    %c3_83 = arith.constant 3 : index
    %c0_84 = arith.constant 0 : index
    %203 = vector.load %arg16[%c0_82, %c3_83, %c0_84] : memref<2x8x32xf32, #tpu.memory_space<vmem>>, vector<2x1x32xf32>
    %204 = vector.shape_cast %203 : vector<2x1x32xf32> to vector<2x32xf32>
    %205 = vector.shape_cast %182 : vector<2x32xf32> to vector<2x1x32xf32>
    tpu.vector_store %arg16[%c0_82, %c3_83, %c0_84], %205 {strides = array<i32>} : memref<2x8x32xf32, #tpu.memory_space<vmem>>, vector<2x1x32xf32>,
    %c0_85 = arith.constant 0 : index
    %c4_86 = arith.constant 4 : index
    %c0_87 = arith.constant 0 : index
    %206 = vector.load %arg17[%c0_85, %c4_86, %c0_87] : memref<2x8x32xf32, #tpu.memory_space<vmem>>, vector<2x1x32xf32>
    %207 = vector.shape_cast %206 : vector<2x1x32xf32> to vector<2x32xf32>
    %208 = vector.shape_cast %202 : vector<2x32xf32> to vector<2x1x32xf32>
    tpu.vector_store %arg17[%c0_85, %c4_86, %c0_87], %208 {strides = array<i32>} : memref<2x8x32xf32, #tpu.memory_space<vmem>>, vector<2x1x32xf32>,
    %c0_88 = arith.constant 0 : index
    %c4_89 = arith.constant 4 : index
    %c0_90 = arith.constant 0 : index
    %209 = vector.load %arg0[%c0_88, %c4_89, %c0_90] : memref<2x8x16xf32, #tpu.memory_space<vmem>>, vector<2x1x16xf32>
    %210 = vector.shape_cast %209 : vector<2x1x16xf32> to vector<2x16xf32>
    %211 = tpu.concatenate %210, %182 in 1 : vector<2x16xf32>, vector<2x32xf32> -> vector<2x48xf32>
    %c0_91 = arith.constant 0 : index
    %c3_92 = arith.constant 3 : index
    %c0_93 = arith.constant 0 : index
    %212 = vector.load %arg0[%c0_91, %c3_92, %c0_93] : memref<2x8x16xf32, #tpu.memory_space<vmem>>, vector<2x1x16xf32>
    %213 = vector.shape_cast %212 : vector<2x1x16xf32> to vector<2x16xf32>
    %214 = tpu.concatenate %213, %202 in 1 : vector<2x16xf32>, vector<2x32xf32> -> vector<2x48xf32>
    %c0_94 = arith.constant 0 : index
    %c0_95 = arith.constant 0 : index
    %215 = vector.load %arg1[%c0_94, %c0_95] : memref<48x128xf32, #tpu.memory_space<vmem>>, vector<48x128xf32>
    %cst_96 = arith.constant dense<0.000000e+00> : vector<2x128xf32>
    %216 = tpu.matmul %211, %215, %cst_96 {dimension_numbers = #tpu.dot_dimension_numbers<[1], [0], [0], [1], [0, 0, 1, 1], [], []>} : vector<2x48xf32>, vector<48x128xf32>, vector<2x128xf32> -> vector<2x128xf32>
    %c0_97 = arith.constant 0 : index
    %c0_98 = arith.constant 0 : index
    %217 = vector.load %arg2[%c0_97, %c0_98] : memref<1x128xf32, #tpu.memory_space<vmem>>, vector<1x128xf32>
    %218 = vector.broadcast %217 : vector<1x128xf32> to vector<2x128xf32>
    %219 = arith.addf %216, %218 : vector<2x128xf32>
    %220 = arith.negf %219 : vector<2x128xf32>
    %221 = math.exp %220 : vector<2x128xf32>
    %cst_99 = arith.constant 1.000000e+00 : f32
    %222 = vector.broadcast %cst_99 : f32 to vector<2x128xf32>
    %223 = arith.addf %222, %221 : vector<2x128xf32>
    %224 = arith.divf %222, %223 : vector<2x128xf32>
    %225 = vector.extract_strided_slice %219 {offsets = [0, 64], sizes = [2, 32], strides = [1, 1]} : vector<2x128xf32> to vector<2x32xf32>
    %226 = math.tanh %225 : vector<2x32xf32>
    %227 = vector.extract_strided_slice %224 {offsets = [0, 0], sizes = [2, 32], strides = [1, 1]} : vector<2x128xf32> to vector<2x32xf32>
    %228 = vector.extract_strided_slice %224 {offsets = [0, 32], sizes = [2, 32], strides = [1, 1]} : vector<2x128xf32> to vector<2x32xf32>
    %229 = vector.extract_strided_slice %224 {offsets = [0, 96], sizes = [2, 32], strides = [1, 1]} : vector<2x128xf32> to vector<2x32xf32>
    %230 = arith.mulf %228, %180 : vector<2x32xf32>
    %231 = arith.mulf %227, %226 : vector<2x32xf32>
    %232 = arith.addf %230, %231 : vector<2x32xf32>
    %233 = math.tanh %232 : vector<2x32xf32>
    %234 = arith.mulf %229, %233 : vector<2x32xf32>
    %c0_100 = arith.constant 0 : index
    %c0_101 = arith.constant 0 : index
    %235 = vector.load %arg3[%c0_100, %c0_101] : memref<48x128xf32, #tpu.memory_space<vmem>>, vector<48x128xf32>
    %cst_102 = arith.constant dense<0.000000e+00> : vector<2x128xf32>
    %236 = tpu.matmul %214, %235, %cst_102 {dimension_numbers = #tpu.dot_dimension_numbers<[1], [0], [0], [1], [0, 0, 1, 1], [], []>} : vector<2x48xf32>, vector<48x128xf32>, vector<2x128xf32> -> vector<2x128xf32>
    %c0_103 = arith.constant 0 : index
    %c0_104 = arith.constant 0 : index
    %237 = vector.load %arg4[%c0_103, %c0_104] : memref<1x128xf32, #tpu.memory_space<vmem>>, vector<1x128xf32>
    %238 = vector.broadcast %237 : vector<1x128xf32> to vector<2x128xf32>
    %239 = arith.addf %236, %238 : vector<2x128xf32>
    %240 = arith.negf %239 : vector<2x128xf32>
    %241 = math.exp %240 : vector<2x128xf32>
    %cst_105 = arith.constant 1.000000e+00 : f32
    %242 = vector.broadcast %cst_105 : f32 to vector<2x128xf32>
    %243 = arith.addf %242, %241 : vector<2x128xf32>
    %244 = arith.divf %242, %243 : vector<2x128xf32>
    %245 = vector.extract_strided_slice %239 {offsets = [0, 64], sizes = [2, 32], strides = [1, 1]} : vector<2x128xf32> to vector<2x32xf32>
    %246 = math.tanh %245 : vector<2x32xf32>
    %247 = vector.extract_strided_slice %244 {offsets = [0, 0], sizes = [2, 32], strides = [1, 1]} : vector<2x128xf32> to vector<2x32xf32>
    %248 = vector.extract_strided_slice %244 {offsets = [0, 32], sizes = [2, 32], strides = [1, 1]} : vector<2x128xf32> to vector<2x32xf32>
    %249 = vector.extract_strided_slice %244 {offsets = [0, 96], sizes = [2, 32], strides = [1, 1]} : vector<2x128xf32> to vector<2x32xf32>
    %250 = arith.mulf %248, %200 : vector<2x32xf32>
    %251 = arith.mulf %247, %246 : vector<2x32xf32>
    %252 = arith.addf %250, %251 : vector<2x32xf32>
    %253 = math.tanh %252 : vector<2x32xf32>
    %254 = arith.mulf %249, %253 : vector<2x32xf32>
    %c0_106 = arith.constant 0 : index
    %c4_107 = arith.constant 4 : index
    %c0_108 = arith.constant 0 : index
    %255 = vector.load %arg16[%c0_106, %c4_107, %c0_108] : memref<2x8x32xf32, #tpu.memory_space<vmem>>, vector<2x1x32xf32>
    %256 = vector.shape_cast %255 : vector<2x1x32xf32> to vector<2x32xf32>
    %257 = vector.shape_cast %234 : vector<2x32xf32> to vector<2x1x32xf32>
    tpu.vector_store %arg16[%c0_106, %c4_107, %c0_108], %257 {strides = array<i32>} : memref<2x8x32xf32, #tpu.memory_space<vmem>>, vector<2x1x32xf32>,
    %c0_109 = arith.constant 0 : index
    %c3_110 = arith.constant 3 : index
    %c0_111 = arith.constant 0 : index
    %258 = vector.load %arg17[%c0_109, %c3_110, %c0_111] : memref<2x8x32xf32, #tpu.memory_space<vmem>>, vector<2x1x32xf32>
    %259 = vector.shape_cast %258 : vector<2x1x32xf32> to vector<2x32xf32>
    %260 = vector.shape_cast %254 : vector<2x32xf32> to vector<2x1x32xf32>
    tpu.vector_store %arg17[%c0_109, %c3_110, %c0_111], %260 {strides = array<i32>} : memref<2x8x32xf32, #tpu.memory_space<vmem>>, vector<2x1x32xf32>,
    %c0_112 = arith.constant 0 : index
    %c5_113 = arith.constant 5 : index
    %c0_114 = arith.constant 0 : index
    %261 = vector.load %arg0[%c0_112, %c5_113, %c0_114] : memref<2x8x16xf32, #tpu.memory_space<vmem>>, vector<2x1x16xf32>
    %262 = vector.shape_cast %261 : vector<2x1x16xf32> to vector<2x16xf32>
    %263 = tpu.concatenate %262, %234 in 1 : vector<2x16xf32>, vector<2x32xf32> -> vector<2x48xf32>
    %c0_115 = arith.constant 0 : index
    %c2_116 = arith.constant 2 : index
    %c0_117 = arith.constant 0 : index
    %264 = vector.load %arg0[%c0_115, %c2_116, %c0_117] : memref<2x8x16xf32, #tpu.memory_space<vmem>>, vector<2x1x16xf32>
    %265 = vector.shape_cast %264 : vector<2x1x16xf32> to vector<2x16xf32>
    %266 = tpu.concatenate %265, %254 in 1 : vector<2x16xf32>, vector<2x32xf32> -> vector<2x48xf32>
    %c0_118 = arith.constant 0 : index
    %c0_119 = arith.constant 0 : index
    %267 = vector.load %arg1[%c0_118, %c0_119] : memref<48x128xf32, #tpu.memory_space<vmem>>, vector<48x128xf32>
    %cst_120 = arith.constant dense<0.000000e+00> : vector<2x128xf32>
    %268 = tpu.matmul %263, %267, %cst_120 {dimension_numbers = #tpu.dot_dimension_numbers<[1], [0], [0], [1], [0, 0, 1, 1], [], []>} : vector<2x48xf32>, vector<48x128xf32>, vector<2x128xf32> -> vector<2x128xf32>
    %c0_121 = arith.constant 0 : index
    %c0_122 = arith.constant 0 : index
    %269 = vector.load %arg2[%c0_121, %c0_122] : memref<1x128xf32, #tpu.memory_space<vmem>>, vector<1x128xf32>
    %270 = vector.broadcast %269 : vector<1x128xf32> to vector<2x128xf32>
    %271 = arith.addf %268, %270 : vector<2x128xf32>
    %272 = arith.negf %271 : vector<2x128xf32>
    %273 = math.exp %272 : vector<2x128xf32>
    %cst_123 = arith.constant 1.000000e+00 : f32
    %274 = vector.broadcast %cst_123 : f32 to vector<2x128xf32>
    %275 = arith.addf %274, %273 : vector<2x128xf32>
    %276 = arith.divf %274, %275 : vector<2x128xf32>
    %277 = vector.extract_strided_slice %271 {offsets = [0, 64], sizes = [2, 32], strides = [1, 1]} : vector<2x128xf32> to vector<2x32xf32>
    %278 = math.tanh %277 : vector<2x32xf32>
    %279 = vector.extract_strided_slice %276 {offsets = [0, 0], sizes = [2, 32], strides = [1, 1]} : vector<2x128xf32> to vector<2x32xf32>
    %280 = vector.extract_strided_slice %276 {offsets = [0, 32], sizes = [2, 32], strides = [1, 1]} : vector<2x128xf32> to vector<2x32xf32>
    %281 = vector.extract_strided_slice %276 {offsets = [0, 96], sizes = [2, 32], strides = [1, 1]} : vector<2x128xf32> to vector<2x32xf32>
    %282 = arith.mulf %280, %232 : vector<2x32xf32>
    %283 = arith.mulf %279, %278 : vector<2x32xf32>
    %284 = arith.addf %282, %283 : vector<2x32xf32>
    %285 = math.tanh %284 : vector<2x32xf32>
    %286 = arith.mulf %281, %285 : vector<2x32xf32>
    %c0_124 = arith.constant 0 : index
    %c0_125 = arith.constant 0 : index
    %287 = vector.load %arg3[%c0_124, %c0_125] : memref<48x128xf32, #tpu.memory_space<vmem>>, vector<48x128xf32>
    %cst_126 = arith.constant dense<0.000000e+00> : vector<2x128xf32>
    %288 = tpu.matmul %266, %287, %cst_126 {dimension_numbers = #tpu.dot_dimension_numbers<[1], [0], [0], [1], [0, 0, 1, 1], [], []>} : vector<2x48xf32>, vector<48x128xf32>, vector<2x128xf32> -> vector<2x128xf32>
    %c0_127 = arith.constant 0 : index
    %c0_128 = arith.constant 0 : index
    %289 = vector.load %arg4[%c0_127, %c0_128] : memref<1x128xf32, #tpu.memory_space<vmem>>, vector<1x128xf32>
    %290 = vector.broadcast %289 : vector<1x128xf32> to vector<2x128xf32>
    %291 = arith.addf %288, %290 : vector<2x128xf32>
    %292 = arith.negf %291 : vector<2x128xf32>
    %293 = math.exp %292 : vector<2x128xf32>
    %cst_129 = arith.constant 1.000000e+00 : f32
    %294 = vector.broadcast %cst_129 : f32 to vector<2x128xf32>
    %295 = arith.addf %294, %293 : vector<2x128xf32>
    %296 = arith.divf %294, %295 : vector<2x128xf32>
    %297 = vector.extract_strided_slice %291 {offsets = [0, 64], sizes = [2, 32], strides = [1, 1]} : vector<2x128xf32> to vector<2x32xf32>
    %298 = math.tanh %297 : vector<2x32xf32>
    %299 = vector.extract_strided_slice %296 {offsets = [0, 0], sizes = [2, 32], strides = [1, 1]} : vector<2x128xf32> to vector<2x32xf32>
    %300 = vector.extract_strided_slice %296 {offsets = [0, 32], sizes = [2, 32], strides = [1, 1]} : vector<2x128xf32> to vector<2x32xf32>
    %301 = vector.extract_strided_slice %296 {offsets = [0, 96], sizes = [2, 32], strides = [1, 1]} : vector<2x128xf32> to vector<2x32xf32>
    %302 = arith.mulf %300, %252 : vector<2x32xf32>
    %303 = arith.mulf %299, %298 : vector<2x32xf32>
    %304 = arith.addf %302, %303 : vector<2x32xf32>
    %305 = math.tanh %304 : vector<2x32xf32>
    %306 = arith.mulf %301, %305 : vector<2x32xf32>
    %c0_130 = arith.constant 0 : index
    %c5_131 = arith.constant 5 : index
    %c0_132 = arith.constant 0 : index
    %307 = vector.load %arg16[%c0_130, %c5_131, %c0_132] : memref<2x8x32xf32, #tpu.memory_space<vmem>>, vector<2x1x32xf32>
    %308 = vector.shape_cast %307 : vector<2x1x32xf32> to vector<2x32xf32>
    %309 = vector.shape_cast %286 : vector<2x32xf32> to vector<2x1x32xf32>
    tpu.vector_store %arg16[%c0_130, %c5_131, %c0_132], %309 {strides = array<i32>} : memref<2x8x32xf32, #tpu.memory_space<vmem>>, vector<2x1x32xf32>,
    %c0_133 = arith.constant 0 : index
    %c2_134 = arith.constant 2 : index
    %c0_135 = arith.constant 0 : index
    %310 = vector.load %arg17[%c0_133, %c2_134, %c0_135] : memref<2x8x32xf32, #tpu.memory_space<vmem>>, vector<2x1x32xf32>
    %311 = vector.shape_cast %310 : vector<2x1x32xf32> to vector<2x32xf32>
    %312 = vector.shape_cast %306 : vector<2x32xf32> to vector<2x1x32xf32>
    tpu.vector_store %arg17[%c0_133, %c2_134, %c0_135], %312 {strides = array<i32>} : memref<2x8x32xf32, #tpu.memory_space<vmem>>, vector<2x1x32xf32>,
    %c0_136 = arith.constant 0 : index
    %c6_137 = arith.constant 6 : index
    %c0_138 = arith.constant 0 : index
    %313 = vector.load %arg0[%c0_136, %c6_137, %c0_138] : memref<2x8x16xf32, #tpu.memory_space<vmem>>, vector<2x1x16xf32>
    %314 = vector.shape_cast %313 : vector<2x1x16xf32> to vector<2x16xf32>
    %315 = tpu.concatenate %314, %286 in 1 : vector<2x16xf32>, vector<2x32xf32> -> vector<2x48xf32>
    %c0_139 = arith.constant 0 : index
    %c1_140 = arith.constant 1 : index
    %c0_141 = arith.constant 0 : index
    %316 = vector.load %arg0[%c0_139, %c1_140, %c0_141] : memref<2x8x16xf32, #tpu.memory_space<vmem>>, vector<2x1x16xf32>
    %317 = vector.shape_cast %316 : vector<2x1x16xf32> to vector<2x16xf32>
    %318 = tpu.concatenate %317, %306 in 1 : vector<2x16xf32>, vector<2x32xf32> -> vector<2x48xf32>
    %c0_142 = arith.constant 0 : index
    %c0_143 = arith.constant 0 : index
    %319 = vector.load %arg1[%c0_142, %c0_143] : memref<48x128xf32, #tpu.memory_space<vmem>>, vector<48x128xf32>
    %cst_144 = arith.constant dense<0.000000e+00> : vector<2x128xf32>
    %320 = tpu.matmul %315, %319, %cst_144 {dimension_numbers = #tpu.dot_dimension_numbers<[1], [0], [0], [1], [0, 0, 1, 1], [], []>} : vector<2x48xf32>, vector<48x128xf32>, vector<2x128xf32> -> vector<2x128xf32>
    %c0_145 = arith.constant 0 : index
    %c0_146 = arith.constant 0 : index
    %321 = vector.load %arg2[%c0_145, %c0_146] : memref<1x128xf32, #tpu.memory_space<vmem>>, vector<1x128xf32>
    %322 = vector.broadcast %321 : vector<1x128xf32> to vector<2x128xf32>
    %323 = arith.addf %320, %322 : vector<2x128xf32>
    %324 = arith.negf %323 : vector<2x128xf32>
    %325 = math.exp %324 : vector<2x128xf32>
    %cst_147 = arith.constant 1.000000e+00 : f32
    %326 = vector.broadcast %cst_147 : f32 to vector<2x128xf32>
    %327 = arith.addf %326, %325 : vector<2x128xf32>
    %328 = arith.divf %326, %327 : vector<2x128xf32>
    %329 = vector.extract_strided_slice %323 {offsets = [0, 64], sizes = [2, 32], strides = [1, 1]} : vector<2x128xf32> to vector<2x32xf32>
    %330 = math.tanh %329 : vector<2x32xf32>
    %331 = vector.extract_strided_slice %328 {offsets = [0, 0], sizes = [2, 32], strides = [1, 1]} : vector<2x128xf32> to vector<2x32xf32>
    %332 = vector.extract_strided_slice %328 {offsets = [0, 32], sizes = [2, 32], strides = [1, 1]} : vector<2x128xf32> to vector<2x32xf32>
    %333 = vector.extract_strided_slice %328 {offsets = [0, 96], sizes = [2, 32], strides = [1, 1]} : vector<2x128xf32> to vector<2x32xf32>
    %334 = arith.mulf %332, %284 : vector<2x32xf32>
    %335 = arith.mulf %331, %330 : vector<2x32xf32>
    %336 = arith.addf %334, %335 : vector<2x32xf32>
    %337 = math.tanh %336 : vector<2x32xf32>
    %338 = arith.mulf %333, %337 : vector<2x32xf32>
    %c0_148 = arith.constant 0 : index
    %c0_149 = arith.constant 0 : index
    %339 = vector.load %arg3[%c0_148, %c0_149] : memref<48x128xf32, #tpu.memory_space<vmem>>, vector<48x128xf32>
    %cst_150 = arith.constant dense<0.000000e+00> : vector<2x128xf32>
    %340 = tpu.matmul %318, %339, %cst_150 {dimension_numbers = #tpu.dot_dimension_numbers<[1], [0], [0], [1], [0, 0, 1, 1], [], []>} : vector<2x48xf32>, vector<48x128xf32>, vector<2x128xf32> -> vector<2x128xf32>
    %c0_151 = arith.constant 0 : index
    %c0_152 = arith.constant 0 : index
    %341 = vector.load %arg4[%c0_151, %c0_152] : memref<1x128xf32, #tpu.memory_space<vmem>>, vector<1x128xf32>
    %342 = vector.broadcast %341 : vector<1x128xf32> to vector<2x128xf32>
    %343 = arith.addf %340, %342 : vector<2x128xf32>
    %344 = arith.negf %343 : vector<2x128xf32>
    %345 = math.exp %344 : vector<2x128xf32>
    %cst_153 = arith.constant 1.000000e+00 : f32
    %346 = vector.broadcast %cst_153 : f32 to vector<2x128xf32>
    %347 = arith.addf %346, %345 : vector<2x128xf32>
    %348 = arith.divf %346, %347 : vector<2x128xf32>
    %349 = vector.extract_strided_slice %343 {offsets = [0, 64], sizes = [2, 32], strides = [1, 1]} : vector<2x128xf32> to vector<2x32xf32>
    %350 = math.tanh %349 : vector<2x32xf32>
    %351 = vector.extract_strided_slice %348 {offsets = [0, 0], sizes = [2, 32], strides = [1, 1]} : vector<2x128xf32> to vector<2x32xf32>
    %352 = vector.extract_strided_slice %348 {offsets = [0, 32], sizes = [2, 32], strides = [1, 1]} : vector<2x128xf32> to vector<2x32xf32>
    %353 = vector.extract_strided_slice %348 {offsets = [0, 96], sizes = [2, 32], strides = [1, 1]} : vector<2x128xf32> to vector<2x32xf32>
    %354 = arith.mulf %352, %304 : vector<2x32xf32>
    %355 = arith.mulf %351, %350 : vector<2x32xf32>
    %356 = arith.addf %354, %355 : vector<2x32xf32>
    %357 = math.tanh %356 : vector<2x32xf32>
    %358 = arith.mulf %353, %357 : vector<2x32xf32>
    %c0_154 = arith.constant 0 : index
    %c6_155 = arith.constant 6 : index
    %c0_156 = arith.constant 0 : index
    %359 = vector.load %arg16[%c0_154, %c6_155, %c0_156] : memref<2x8x32xf32, #tpu.memory_space<vmem>>, vector<2x1x32xf32>
    %360 = vector.shape_cast %359 : vector<2x1x32xf32> to vector<2x32xf32>
    %361 = vector.shape_cast %338 : vector<2x32xf32> to vector<2x1x32xf32>
    tpu.vector_store %arg16[%c0_154, %c6_155, %c0_156], %361 {strides = array<i32>} : memref<2x8x32xf32, #tpu.memory_space<vmem>>, vector<2x1x32xf32>,
    %c0_157 = arith.constant 0 : index
    %c1_158 = arith.constant 1 : index
    %c0_159 = arith.constant 0 : index
    %362 = vector.load %arg17[%c0_157, %c1_158, %c0_159] : memref<2x8x32xf32, #tpu.memory_space<vmem>>, vector<2x1x32xf32>
    %363 = vector.shape_cast %362 : vector<2x1x32xf32> to vector<2x32xf32>
    %364 = vector.shape_cast %358 : vector<2x32xf32> to vector<2x1x32xf32>
    tpu.vector_store %arg17[%c0_157, %c1_158, %c0_159], %364 {strides = array<i32>} : memref<2x8x32xf32, #tpu.memory_space<vmem>>, vector<2x1x32xf32>,
    %c0_160 = arith.constant 0 : index
    %c7_161 = arith.constant 7 : index
    %c0_162 = arith.constant 0 : index
    %365 = vector.load %arg0[%c0_160, %c7_161, %c0_162] : memref<2x8x16xf32, #tpu.memory_space<vmem>>, vector<2x1x16xf32>
    %366 = vector.shape_cast %365 : vector<2x1x16xf32> to vector<2x16xf32>
    %367 = tpu.concatenate %366, %338 in 1 : vector<2x16xf32>, vector<2x32xf32> -> vector<2x48xf32>
    %c0_163 = arith.constant 0 : index
    %c0_164 = arith.constant 0 : index
    %c0_165 = arith.constant 0 : index
    %368 = vector.load %arg0[%c0_163, %c0_164, %c0_165] : memref<2x8x16xf32, #tpu.memory_space<vmem>>, vector<2x1x16xf32>
    %369 = vector.shape_cast %368 : vector<2x1x16xf32> to vector<2x16xf32>
    %370 = tpu.concatenate %369, %358 in 1 : vector<2x16xf32>, vector<2x32xf32> -> vector<2x48xf32>
    %c0_166 = arith.constant 0 : index
    %c0_167 = arith.constant 0 : index
    %371 = vector.load %arg1[%c0_166, %c0_167] : memref<48x128xf32, #tpu.memory_space<vmem>>, vector<48x128xf32>
    %cst_168 = arith.constant dense<0.000000e+00> : vector<2x128xf32>
    %372 = tpu.matmul %367, %371, %cst_168 {dimension_numbers = #tpu.dot_dimension_numbers<[1], [0], [0], [1], [0, 0, 1, 1], [], []>} : vector<2x48xf32>, vector<48x128xf32>, vector<2x128xf32> -> vector<2x128xf32>
    %c0_169 = arith.constant 0 : index
    %c0_170 = arith.constant 0 : index
    %373 = vector.load %arg2[%c0_169, %c0_170] : memref<1x128xf32, #tpu.memory_space<vmem>>, vector<1x128xf32>
    %374 = vector.broadcast %373 : vector<1x128xf32> to vector<2x128xf32>
    %375 = arith.addf %372, %374 : vector<2x128xf32>
    %376 = arith.negf %375 : vector<2x128xf32>
    %377 = math.exp %376 : vector<2x128xf32>
    %cst_171 = arith.constant 1.000000e+00 : f32
    %378 = vector.broadcast %cst_171 : f32 to vector<2x128xf32>
    %379 = arith.addf %378, %377 : vector<2x128xf32>
    %380 = arith.divf %378, %379 : vector<2x128xf32>
    %381 = vector.extract_strided_slice %375 {offsets = [0, 64], sizes = [2, 32], strides = [1, 1]} : vector<2x128xf32> to vector<2x32xf32>
    %382 = math.tanh %381 : vector<2x32xf32>
    %383 = vector.extract_strided_slice %380 {offsets = [0, 0], sizes = [2, 32], strides = [1, 1]} : vector<2x128xf32> to vector<2x32xf32>
    %384 = vector.extract_strided_slice %380 {offsets = [0, 32], sizes = [2, 32], strides = [1, 1]} : vector<2x128xf32> to vector<2x32xf32>
    %385 = vector.extract_strided_slice %380 {offsets = [0, 96], sizes = [2, 32], strides = [1, 1]} : vector<2x128xf32> to vector<2x32xf32>
    %386 = arith.mulf %384, %336 : vector<2x32xf32>
    %387 = arith.mulf %383, %382 : vector<2x32xf32>
    %388 = arith.addf %386, %387 : vector<2x32xf32>
    %389 = math.tanh %388 : vector<2x32xf32>
    %390 = arith.mulf %385, %389 : vector<2x32xf32>
    %c0_172 = arith.constant 0 : index
    %c0_173 = arith.constant 0 : index
    %391 = vector.load %arg3[%c0_172, %c0_173] : memref<48x128xf32, #tpu.memory_space<vmem>>, vector<48x128xf32>
    %cst_174 = arith.constant dense<0.000000e+00> : vector<2x128xf32>
    %392 = tpu.matmul %370, %391, %cst_174 {dimension_numbers = #tpu.dot_dimension_numbers<[1], [0], [0], [1], [0, 0, 1, 1], [], []>} : vector<2x48xf32>, vector<48x128xf32>, vector<2x128xf32> -> vector<2x128xf32>
    %c0_175 = arith.constant 0 : index
    %c0_176 = arith.constant 0 : index
    %393 = vector.load %arg4[%c0_175, %c0_176] : memref<1x128xf32, #tpu.memory_space<vmem>>, vector<1x128xf32>
    %394 = vector.broadcast %393 : vector<1x128xf32> to vector<2x128xf32>
    %395 = arith.addf %392, %394 : vector<2x128xf32>
    %396 = arith.negf %395 : vector<2x128xf32>
    %397 = math.exp %396 : vector<2x128xf32>
    %cst_177 = arith.constant 1.000000e+00 : f32
    %398 = vector.broadcast %cst_177 : f32 to vector<2x128xf32>
    %399 = arith.addf %398, %397 : vector<2x128xf32>
    %400 = arith.divf %398, %399 : vector<2x128xf32>
    %401 = vector.extract_strided_slice %395 {offsets = [0, 64], sizes = [2, 32], strides = [1, 1]} : vector<2x128xf32> to vector<2x32xf32>
    %402 = math.tanh %401 : vector<2x32xf32>
    %403 = vector.extract_strided_slice %400 {offsets = [0, 0], sizes = [2, 32], strides = [1, 1]} : vector<2x128xf32> to vector<2x32xf32>
    %404 = vector.extract_strided_slice %400 {offsets = [0, 32], sizes = [2, 32], strides = [1, 1]} : vector<2x128xf32> to vector<2x32xf32>
    %405 = vector.extract_strided_slice %400 {offsets = [0, 96], sizes = [2, 32], strides = [1, 1]} : vector<2x128xf32> to vector<2x32xf32>
    %406 = arith.mulf %404, %356 : vector<2x32xf32>
    %407 = arith.mulf %403, %402 : vector<2x32xf32>
    %408 = arith.addf %406, %407 : vector<2x32xf32>
    %409 = math.tanh %408 : vector<2x32xf32>
    %410 = arith.mulf %405, %409 : vector<2x32xf32>
    %c0_178 = arith.constant 0 : index
    %c7_179 = arith.constant 7 : index
    %c0_180 = arith.constant 0 : index
    %411 = vector.load %arg16[%c0_178, %c7_179, %c0_180] : memref<2x8x32xf32, #tpu.memory_space<vmem>>, vector<2x1x32xf32>
    %412 = vector.shape_cast %411 : vector<2x1x32xf32> to vector<2x32xf32>
    %413 = vector.shape_cast %390 : vector<2x32xf32> to vector<2x1x32xf32>
    tpu.vector_store %arg16[%c0_178, %c7_179, %c0_180], %413 {strides = array<i32>} : memref<2x8x32xf32, #tpu.memory_space<vmem>>, vector<2x1x32xf32>,
    %c0_181 = arith.constant 0 : index
    %c0_182 = arith.constant 0 : index
    %c0_183 = arith.constant 0 : index
    %414 = vector.load %arg17[%c0_181, %c0_182, %c0_183] : memref<2x8x32xf32, #tpu.memory_space<vmem>>, vector<2x1x32xf32>
    %415 = vector.shape_cast %414 : vector<2x1x32xf32> to vector<2x32xf32>
    %416 = vector.shape_cast %410 : vector<2x32xf32> to vector<2x1x32xf32>
    tpu.vector_store %arg17[%c0_181, %c0_182, %c0_183], %416 {strides = array<i32>} : memref<2x8x32xf32, #tpu.memory_space<vmem>>, vector<2x1x32xf32>,
    %c0_184 = arith.constant 0 : index
    %c0_185 = arith.constant 0 : index
    %c0_186 = arith.constant 0 : index
    %417 = vector.load %arg16[%c0_184, %c0_185, %c0_186] : memref<2x8x32xf32, #tpu.memory_space<vmem>>, vector<2x1x32xf32>
    %418 = vector.shape_cast %417 : vector<2x1x32xf32> to vector<2x32xf32>
    %c0_187 = arith.constant 0 : index
    %c0_188 = arith.constant 0 : index
    %c0_189 = arith.constant 0 : index
    %419 = vector.load %arg17[%c0_187, %c0_188, %c0_189] : memref<2x8x32xf32, #tpu.memory_space<vmem>>, vector<2x1x32xf32>
    %420 = vector.shape_cast %419 : vector<2x1x32xf32> to vector<2x32xf32>
    %421 = tpu.concatenate %418, %420, %0 in 1 : vector<2x32xf32>, vector<2x32xf32>, vector<2x32xf32> -> vector<2x96xf32>
    %c0_190 = arith.constant 0 : index
    %c7_191 = arith.constant 7 : index
    %c0_192 = arith.constant 0 : index
    %422 = vector.load %arg16[%c0_190, %c7_191, %c0_192] : memref<2x8x32xf32, #tpu.memory_space<vmem>>, vector<2x1x32xf32>
    %423 = vector.shape_cast %422 : vector<2x1x32xf32> to vector<2x32xf32>
    %c0_193 = arith.constant 0 : index
    %c7_194 = arith.constant 7 : index
    %c0_195 = arith.constant 0 : index
    %424 = vector.load %arg17[%c0_193, %c7_194, %c0_195] : memref<2x8x32xf32, #tpu.memory_space<vmem>>, vector<2x1x32xf32>
    %425 = vector.shape_cast %424 : vector<2x1x32xf32> to vector<2x32xf32>
    %426 = tpu.concatenate %423, %425, %0 in 1 : vector<2x32xf32>, vector<2x32xf32>, vector<2x32xf32> -> vector<2x96xf32>
    %c0_196 = arith.constant 0 : index
    %c0_197 = arith.constant 0 : index
    %427 = vector.load %arg5[%c0_196, %c0_197] : memref<96x128xf32, #tpu.memory_space<vmem>>, vector<96x128xf32>
    %cst_198 = arith.constant dense<0.000000e+00> : vector<2x128xf32>
    %428 = tpu.matmul %421, %427, %cst_198 {dimension_numbers = #tpu.dot_dimension_numbers<[1], [0], [0], [1], [0, 0, 1, 1], [], []>} : vector<2x96xf32>, vector<96x128xf32>, vector<2x128xf32> -> vector<2x128xf32>
    %c0_199 = arith.constant 0 : index
    %c0_200 = arith.constant 0 : index
    %429 = vector.load %arg6[%c0_199, %c0_200] : memref<1x128xf32, #tpu.memory_space<vmem>>, vector<1x128xf32>
    %430 = vector.broadcast %429 : vector<1x128xf32> to vector<2x128xf32>
    %431 = arith.addf %428, %430 : vector<2x128xf32>
    %432 = arith.negf %431 : vector<2x128xf32>
    %433 = math.exp %432 : vector<2x128xf32>
    %cst_201 = arith.constant 1.000000e+00 : f32
    %434 = vector.broadcast %cst_201 : f32 to vector<2x128xf32>
    %435 = arith.addf %434, %433 : vector<2x128xf32>
    %436 = arith.divf %434, %435 : vector<2x128xf32>
    %437 = vector.extract_strided_slice %431 {offsets = [0, 64], sizes = [2, 32], strides = [1, 1]} : vector<2x128xf32> to vector<2x32xf32>
    %438 = math.tanh %437 : vector<2x32xf32>
    %439 = vector.extract_strided_slice %436 {offsets = [0, 0], sizes = [2, 32], strides = [1, 1]} : vector<2x128xf32> to vector<2x32xf32>
    %440 = vector.extract_strided_slice %436 {offsets = [0, 32], sizes = [2, 32], strides = [1, 1]} : vector<2x128xf32> to vector<2x32xf32>
    %441 = vector.extract_strided_slice %436 {offsets = [0, 96], sizes = [2, 32], strides = [1, 1]} : vector<2x128xf32> to vector<2x32xf32>
    %442 = arith.mulf %440, %0 : vector<2x32xf32>
    %443 = arith.mulf %439, %438 : vector<2x32xf32>
    %444 = arith.addf %442, %443 : vector<2x32xf32>
    %445 = math.tanh %444 : vector<2x32xf32>
    %446 = arith.mulf %441, %445 : vector<2x32xf32>
    %c0_202 = arith.constant 0 : index
    %c0_203 = arith.constant 0 : index
    %447 = vector.load %arg7[%c0_202, %c0_203] : memref<96x128xf32, #tpu.memory_space<vmem>>, vector<96x128xf32>
    %cst_204 = arith.constant dense<0.000000e+00> : vector<2x128xf32>
    %448 = tpu.matmul %426, %447, %cst_204 {dimension_numbers = #tpu.dot_dimension_numbers<[1], [0], [0], [1], [0, 0, 1, 1], [], []>} : vector<2x96xf32>, vector<96x128xf32>, vector<2x128xf32> -> vector<2x128xf32>
    %c0_205 = arith.constant 0 : index
    %c0_206 = arith.constant 0 : index
    %449 = vector.load %arg8[%c0_205, %c0_206] : memref<1x128xf32, #tpu.memory_space<vmem>>, vector<1x128xf32>
    %450 = vector.broadcast %449 : vector<1x128xf32> to vector<2x128xf32>
    %451 = arith.addf %448, %450 : vector<2x128xf32>
    %452 = arith.negf %451 : vector<2x128xf32>
    %453 = math.exp %452 : vector<2x128xf32>
    %cst_207 = arith.constant 1.000000e+00 : f32
    %454 = vector.broadcast %cst_207 : f32 to vector<2x128xf32>
    %455 = arith.addf %454, %453 : vector<2x128xf32>
    %456 = arith.divf %454, %455 : vector<2x128xf32>
    %457 = vector.extract_strided_slice %451 {offsets = [0, 64], sizes = [2, 32], strides = [1, 1]} : vector<2x128xf32> to vector<2x32xf32>
    %458 = math.tanh %457 : vector<2x32xf32>
    %459 = vector.extract_strided_slice %456 {offsets = [0, 0], sizes = [2, 32], strides = [1, 1]} : vector<2x128xf32> to vector<2x32xf32>
    %460 = vector.extract_strided_slice %456 {offsets = [0, 32], sizes = [2, 32], strides = [1, 1]} : vector<2x128xf32> to vector<2x32xf32>
    %461 = vector.extract_strided_slice %456 {offsets = [0, 96], sizes = [2, 32], strides = [1, 1]} : vector<2x128xf32> to vector<2x32xf32>
    %462 = arith.mulf %460, %0 : vector<2x32xf32>
    %463 = arith.mulf %459, %458 : vector<2x32xf32>
    %464 = arith.addf %462, %463 : vector<2x32xf32>
    %465 = math.tanh %464 : vector<2x32xf32>
    %466 = arith.mulf %461, %465 : vector<2x32xf32>
    %c0_208 = arith.constant 0 : index
    %c0_209 = arith.constant 0 : index
    %c0_210 = arith.constant 0 : index
    %467 = vector.load %arg18[%c0_208, %c0_209, %c0_210] : memref<2x8x32xf32, #tpu.memory_space<vmem>>, vector<2x1x32xf32>
    %468 = vector.shape_cast %467 : vector<2x1x32xf32> to vector<2x32xf32>
    %469 = vector.shape_cast %446 : vector<2x32xf32> to vector<2x1x32xf32>
    tpu.vector_store %arg18[%c0_208, %c0_209, %c0_210], %469 {strides = array<i32>} : memref<2x8x32xf32, #tpu.memory_space<vmem>>, vector<2x1x32xf32>,
    %c0_211 = arith.constant 0 : index
    %c7_212 = arith.constant 7 : index
    %c0_213 = arith.constant 0 : index
    %470 = vector.load %arg19[%c0_211, %c7_212, %c0_213] : memref<2x8x32xf32, #tpu.memory_space<vmem>>, vector<2x1x32xf32>
    %471 = vector.shape_cast %470 : vector<2x1x32xf32> to vector<2x32xf32>
    %472 = vector.shape_cast %466 : vector<2x32xf32> to vector<2x1x32xf32>
    tpu.vector_store %arg19[%c0_211, %c7_212, %c0_213], %472 {strides = array<i32>} : memref<2x8x32xf32, #tpu.memory_space<vmem>>, vector<2x1x32xf32>,
    %c0_214 = arith.constant 0 : index
    %c1_215 = arith.constant 1 : index
    %c0_216 = arith.constant 0 : index
    %473 = vector.load %arg16[%c0_214, %c1_215, %c0_216] : memref<2x8x32xf32, #tpu.memory_space<vmem>>, vector<2x1x32xf32>
    %474 = vector.shape_cast %473 : vector<2x1x32xf32> to vector<2x32xf32>
    %c0_217 = arith.constant 0 : index
    %c1_218 = arith.constant 1 : index
    %c0_219 = arith.constant 0 : index
    %475 = vector.load %arg17[%c0_217, %c1_218, %c0_219] : memref<2x8x32xf32, #tpu.memory_space<vmem>>, vector<2x1x32xf32>
    %476 = vector.shape_cast %475 : vector<2x1x32xf32> to vector<2x32xf32>
    %477 = tpu.concatenate %474, %476, %446 in 1 : vector<2x32xf32>, vector<2x32xf32>, vector<2x32xf32> -> vector<2x96xf32>
    %c0_220 = arith.constant 0 : index
    %c6_221 = arith.constant 6 : index
    %c0_222 = arith.constant 0 : index
    %478 = vector.load %arg16[%c0_220, %c6_221, %c0_222] : memref<2x8x32xf32, #tpu.memory_space<vmem>>, vector<2x1x32xf32>
    %479 = vector.shape_cast %478 : vector<2x1x32xf32> to vector<2x32xf32>
    %c0_223 = arith.constant 0 : index
    %c6_224 = arith.constant 6 : index
    %c0_225 = arith.constant 0 : index
    %480 = vector.load %arg17[%c0_223, %c6_224, %c0_225] : memref<2x8x32xf32, #tpu.memory_space<vmem>>, vector<2x1x32xf32>
    %481 = vector.shape_cast %480 : vector<2x1x32xf32> to vector<2x32xf32>
    %482 = tpu.concatenate %479, %481, %466 in 1 : vector<2x32xf32>, vector<2x32xf32>, vector<2x32xf32> -> vector<2x96xf32>
    %c0_226 = arith.constant 0 : index
    %c0_227 = arith.constant 0 : index
    %483 = vector.load %arg5[%c0_226, %c0_227] : memref<96x128xf32, #tpu.memory_space<vmem>>, vector<96x128xf32>
    %cst_228 = arith.constant dense<0.000000e+00> : vector<2x128xf32>
    %484 = tpu.matmul %477, %483, %cst_228 {dimension_numbers = #tpu.dot_dimension_numbers<[1], [0], [0], [1], [0, 0, 1, 1], [], []>} : vector<2x96xf32>, vector<96x128xf32>, vector<2x128xf32> -> vector<2x128xf32>
    %c0_229 = arith.constant 0 : index
    %c0_230 = arith.constant 0 : index
    %485 = vector.load %arg6[%c0_229, %c0_230] : memref<1x128xf32, #tpu.memory_space<vmem>>, vector<1x128xf32>
    %486 = vector.broadcast %485 : vector<1x128xf32> to vector<2x128xf32>
    %487 = arith.addf %484, %486 : vector<2x128xf32>
    %488 = arith.negf %487 : vector<2x128xf32>
    %489 = math.exp %488 : vector<2x128xf32>
    %cst_231 = arith.constant 1.000000e+00 : f32
    %490 = vector.broadcast %cst_231 : f32 to vector<2x128xf32>
    %491 = arith.addf %490, %489 : vector<2x128xf32>
    %492 = arith.divf %490, %491 : vector<2x128xf32>
    %493 = vector.extract_strided_slice %487 {offsets = [0, 64], sizes = [2, 32], strides = [1, 1]} : vector<2x128xf32> to vector<2x32xf32>
    %494 = math.tanh %493 : vector<2x32xf32>
    %495 = vector.extract_strided_slice %492 {offsets = [0, 0], sizes = [2, 32], strides = [1, 1]} : vector<2x128xf32> to vector<2x32xf32>
    %496 = vector.extract_strided_slice %492 {offsets = [0, 32], sizes = [2, 32], strides = [1, 1]} : vector<2x128xf32> to vector<2x32xf32>
    %497 = vector.extract_strided_slice %492 {offsets = [0, 96], sizes = [2, 32], strides = [1, 1]} : vector<2x128xf32> to vector<2x32xf32>
    %498 = arith.mulf %496, %444 : vector<2x32xf32>
    %499 = arith.mulf %495, %494 : vector<2x32xf32>
    %500 = arith.addf %498, %499 : vector<2x32xf32>
    %501 = math.tanh %500 : vector<2x32xf32>
    %502 = arith.mulf %497, %501 : vector<2x32xf32>
    %c0_232 = arith.constant 0 : index
    %c0_233 = arith.constant 0 : index
    %503 = vector.load %arg7[%c0_232, %c0_233] : memref<96x128xf32, #tpu.memory_space<vmem>>, vector<96x128xf32>
    %cst_234 = arith.constant dense<0.000000e+00> : vector<2x128xf32>
    %504 = tpu.matmul %482, %503, %cst_234 {dimension_numbers = #tpu.dot_dimension_numbers<[1], [0], [0], [1], [0, 0, 1, 1], [], []>} : vector<2x96xf32>, vector<96x128xf32>, vector<2x128xf32> -> vector<2x128xf32>
    %c0_235 = arith.constant 0 : index
    %c0_236 = arith.constant 0 : index
    %505 = vector.load %arg8[%c0_235, %c0_236] : memref<1x128xf32, #tpu.memory_space<vmem>>, vector<1x128xf32>
    %506 = vector.broadcast %505 : vector<1x128xf32> to vector<2x128xf32>
    %507 = arith.addf %504, %506 : vector<2x128xf32>
    %508 = arith.negf %507 : vector<2x128xf32>
    %509 = math.exp %508 : vector<2x128xf32>
    %cst_237 = arith.constant 1.000000e+00 : f32
    %510 = vector.broadcast %cst_237 : f32 to vector<2x128xf32>
    %511 = arith.addf %510, %509 : vector<2x128xf32>
    %512 = arith.divf %510, %511 : vector<2x128xf32>
    %513 = vector.extract_strided_slice %507 {offsets = [0, 64], sizes = [2, 32], strides = [1, 1]} : vector<2x128xf32> to vector<2x32xf32>
    %514 = math.tanh %513 : vector<2x32xf32>
    %515 = vector.extract_strided_slice %512 {offsets = [0, 0], sizes = [2, 32], strides = [1, 1]} : vector<2x128xf32> to vector<2x32xf32>
    %516 = vector.extract_strided_slice %512 {offsets = [0, 32], sizes = [2, 32], strides = [1, 1]} : vector<2x128xf32> to vector<2x32xf32>
    %517 = vector.extract_strided_slice %512 {offsets = [0, 96], sizes = [2, 32], strides = [1, 1]} : vector<2x128xf32> to vector<2x32xf32>
    %518 = arith.mulf %516, %464 : vector<2x32xf32>
    %519 = arith.mulf %515, %514 : vector<2x32xf32>
    %520 = arith.addf %518, %519 : vector<2x32xf32>
    %521 = math.tanh %520 : vector<2x32xf32>
    %522 = arith.mulf %517, %521 : vector<2x32xf32>
    %c0_238 = arith.constant 0 : index
    %c1_239 = arith.constant 1 : index
    %c0_240 = arith.constant 0 : index
    %523 = vector.load %arg18[%c0_238, %c1_239, %c0_240] : memref<2x8x32xf32, #tpu.memory_space<vmem>>, vector<2x1x32xf32>
    %524 = vector.shape_cast %523 : vector<2x1x32xf32> to vector<2x32xf32>
    %525 = vector.shape_cast %502 : vector<2x32xf32> to vector<2x1x32xf32>
    tpu.vector_store %arg18[%c0_238, %c1_239, %c0_240], %525 {strides = array<i32>} : memref<2x8x32xf32, #tpu.memory_space<vmem>>, vector<2x1x32xf32>,
    %c0_241 = arith.constant 0 : index
    %c6_242 = arith.constant 6 : index
    %c0_243 = arith.constant 0 : index
    %526 = vector.load %arg19[%c0_241, %c6_242, %c0_243] : memref<2x8x32xf32, #tpu.memory_space<vmem>>, vector<2x1x32xf32>
    %527 = vector.shape_cast %526 : vector<2x1x32xf32> to vector<2x32xf32>
    %528 = vector.shape_cast %522 : vector<2x32xf32> to vector<2x1x32xf32>
    tpu.vector_store %arg19[%c0_241, %c6_242, %c0_243], %528 {strides = array<i32>} : memref<2x8x32xf32, #tpu.memory_space<vmem>>, vector<2x1x32xf32>,
    %c0_244 = arith.constant 0 : index
    %c2_245 = arith.constant 2 : index
    %c0_246 = arith.constant 0 : index
    %529 = vector.load %arg16[%c0_244, %c2_245, %c0_246] : memref<2x8x32xf32, #tpu.memory_space<vmem>>, vector<2x1x32xf32>
    %530 = vector.shape_cast %529 : vector<2x1x32xf32> to vector<2x32xf32>
    %c0_247 = arith.constant 0 : index
    %c2_248 = arith.constant 2 : index
    %c0_249 = arith.constant 0 : index
    %531 = vector.load %arg17[%c0_247, %c2_248, %c0_249] : memref<2x8x32xf32, #tpu.memory_space<vmem>>, vector<2x1x32xf32>
    %532 = vector.shape_cast %531 : vector<2x1x32xf32> to vector<2x32xf32>
    %533 = tpu.concatenate %530, %532, %502 in 1 : vector<2x32xf32>, vector<2x32xf32>, vector<2x32xf32> -> vector<2x96xf32>
    %c0_250 = arith.constant 0 : index
    %c5_251 = arith.constant 5 : index
    %c0_252 = arith.constant 0 : index
    %534 = vector.load %arg16[%c0_250, %c5_251, %c0_252] : memref<2x8x32xf32, #tpu.memory_space<vmem>>, vector<2x1x32xf32>
    %535 = vector.shape_cast %534 : vector<2x1x32xf32> to vector<2x32xf32>
    %c0_253 = arith.constant 0 : index
    %c5_254 = arith.constant 5 : index
    %c0_255 = arith.constant 0 : index
    %536 = vector.load %arg17[%c0_253, %c5_254, %c0_255] : memref<2x8x32xf32, #tpu.memory_space<vmem>>, vector<2x1x32xf32>
    %537 = vector.shape_cast %536 : vector<2x1x32xf32> to vector<2x32xf32>
    %538 = tpu.concatenate %535, %537, %522 in 1 : vector<2x32xf32>, vector<2x32xf32>, vector<2x32xf32> -> vector<2x96xf32>
    %c0_256 = arith.constant 0 : index
    %c0_257 = arith.constant 0 : index
    %539 = vector.load %arg5[%c0_256, %c0_257] : memref<96x128xf32, #tpu.memory_space<vmem>>, vector<96x128xf32>
    %cst_258 = arith.constant dense<0.000000e+00> : vector<2x128xf32>
    %540 = tpu.matmul %533, %539, %cst_258 {dimension_numbers = #tpu.dot_dimension_numbers<[1], [0], [0], [1], [0, 0, 1, 1], [], []>} : vector<2x96xf32>, vector<96x128xf32>, vector<2x128xf32> -> vector<2x128xf32>
    %c0_259 = arith.constant 0 : index
    %c0_260 = arith.constant 0 : index
    %541 = vector.load %arg6[%c0_259, %c0_260] : memref<1x128xf32, #tpu.memory_space<vmem>>, vector<1x128xf32>
    %542 = vector.broadcast %541 : vector<1x128xf32> to vector<2x128xf32>
    %543 = arith.addf %540, %542 : vector<2x128xf32>
    %544 = arith.negf %543 : vector<2x128xf32>
    %545 = math.exp %544 : vector<2x128xf32>
    %cst_261 = arith.constant 1.000000e+00 : f32
    %546 = vector.broadcast %cst_261 : f32 to vector<2x128xf32>
    %547 = arith.addf %546, %545 : vector<2x128xf32>
    %548 = arith.divf %546, %547 : vector<2x128xf32>
    %549 = vector.extract_strided_slice %543 {offsets = [0, 64], sizes = [2, 32], strides = [1, 1]} : vector<2x128xf32> to vector<2x32xf32>
    %550 = math.tanh %549 : vector<2x32xf32>
    %551 = vector.extract_strided_slice %548 {offsets = [0, 0], sizes = [2, 32], strides = [1, 1]} : vector<2x128xf32> to vector<2x32xf32>
    %552 = vector.extract_strided_slice %548 {offsets = [0, 32], sizes = [2, 32], strides = [1, 1]} : vector<2x128xf32> to vector<2x32xf32>
    %553 = vector.extract_strided_slice %548 {offsets = [0, 96], sizes = [2, 32], strides = [1, 1]} : vector<2x128xf32> to vector<2x32xf32>
    %554 = arith.mulf %552, %500 : vector<2x32xf32>
    %555 = arith.mulf %551, %550 : vector<2x32xf32>
    %556 = arith.addf %554, %555 : vector<2x32xf32>
    %557 = math.tanh %556 : vector<2x32xf32>
    %558 = arith.mulf %553, %557 : vector<2x32xf32>
    %c0_262 = arith.constant 0 : index
    %c0_263 = arith.constant 0 : index
    %559 = vector.load %arg7[%c0_262, %c0_263] : memref<96x128xf32, #tpu.memory_space<vmem>>, vector<96x128xf32>
    %cst_264 = arith.constant dense<0.000000e+00> : vector<2x128xf32>
    %560 = tpu.matmul %538, %559, %cst_264 {dimension_numbers = #tpu.dot_dimension_numbers<[1], [0], [0], [1], [0, 0, 1, 1], [], []>} : vector<2x96xf32>, vector<96x128xf32>, vector<2x128xf32> -> vector<2x128xf32>
    %c0_265 = arith.constant 0 : index
    %c0_266 = arith.constant 0 : index
    %561 = vector.load %arg8[%c0_265, %c0_266] : memref<1x128xf32, #tpu.memory_space<vmem>>, vector<1x128xf32>
    %562 = vector.broadcast %561 : vector<1x128xf32> to vector<2x128xf32>
    %563 = arith.addf %560, %562 : vector<2x128xf32>
    %564 = arith.negf %563 : vector<2x128xf32>
    %565 = math.exp %564 : vector<2x128xf32>
    %cst_267 = arith.constant 1.000000e+00 : f32
    %566 = vector.broadcast %cst_267 : f32 to vector<2x128xf32>
    %567 = arith.addf %566, %565 : vector<2x128xf32>
    %568 = arith.divf %566, %567 : vector<2x128xf32>
    %569 = vector.extract_strided_slice %563 {offsets = [0, 64], sizes = [2, 32], strides = [1, 1]} : vector<2x128xf32> to vector<2x32xf32>
    %570 = math.tanh %569 : vector<2x32xf32>
    %571 = vector.extract_strided_slice %568 {offsets = [0, 0], sizes = [2, 32], strides = [1, 1]} : vector<2x128xf32> to vector<2x32xf32>
    %572 = vector.extract_strided_slice %568 {offsets = [0, 32], sizes = [2, 32], strides = [1, 1]} : vector<2x128xf32> to vector<2x32xf32>
    %573 = vector.extract_strided_slice %568 {offsets = [0, 96], sizes = [2, 32], strides = [1, 1]} : vector<2x128xf32> to vector<2x32xf32>
    %574 = arith.mulf %572, %520 : vector<2x32xf32>
    %575 = arith.mulf %571, %570 : vector<2x32xf32>
    %576 = arith.addf %574, %575 : vector<2x32xf32>
    %577 = math.tanh %576 : vector<2x32xf32>
    %578 = arith.mulf %573, %577 : vector<2x32xf32>
    %c0_268 = arith.constant 0 : index
    %c2_269 = arith.constant 2 : index
    %c0_270 = arith.constant 0 : index
    %579 = vector.load %arg18[%c0_268, %c2_269, %c0_270] : memref<2x8x32xf32, #tpu.memory_space<vmem>>, vector<2x1x32xf32>
    %580 = vector.shape_cast %579 : vector<2x1x32xf32> to vector<2x32xf32>
    %581 = vector.shape_cast %558 : vector<2x32xf32> to vector<2x1x32xf32>
    tpu.vector_store %arg18[%c0_268, %c2_269, %c0_270], %581 {strides = array<i32>} : memref<2x8x32xf32, #tpu.memory_space<vmem>>, vector<2x1x32xf32>,
    %c0_271 = arith.constant 0 : index
    %c5_272 = arith.constant 5 : index
    %c0_273 = arith.constant 0 : index
    %582 = vector.load %arg19[%c0_271, %c5_272, %c0_273] : memref<2x8x32xf32, #tpu.memory_space<vmem>>, vector<2x1x32xf32>
    %583 = vector.shape_cast %582 : vector<2x1x32xf32> to vector<2x32xf32>
    %584 = vector.shape_cast %578 : vector<2x32xf32> to vector<2x1x32xf32>
    tpu.vector_store %arg19[%c0_271, %c5_272, %c0_273], %584 {strides = array<i32>} : memref<2x8x32xf32, #tpu.memory_space<vmem>>, vector<2x1x32xf32>,
    %c0_274 = arith.constant 0 : index
    %c3_275 = arith.constant 3 : index
    %c0_276 = arith.constant 0 : index
    %585 = vector.load %arg16[%c0_274, %c3_275, %c0_276] : memref<2x8x32xf32, #tpu.memory_space<vmem>>, vector<2x1x32xf32>
    %586 = vector.shape_cast %585 : vector<2x1x32xf32> to vector<2x32xf32>
    %c0_277 = arith.constant 0 : index
    %c3_278 = arith.constant 3 : index
    %c0_279 = arith.constant 0 : index
    %587 = vector.load %arg17[%c0_277, %c3_278, %c0_279] : memref<2x8x32xf32, #tpu.memory_space<vmem>>, vector<2x1x32xf32>
    %588 = vector.shape_cast %587 : vector<2x1x32xf32> to vector<2x32xf32>
    %589 = tpu.concatenate %586, %588, %558 in 1 : vector<2x32xf32>, vector<2x32xf32>, vector<2x32xf32> -> vector<2x96xf32>
    %c0_280 = arith.constant 0 : index
    %c4_281 = arith.constant 4 : index
    %c0_282 = arith.constant 0 : index
    %590 = vector.load %arg16[%c0_280, %c4_281, %c0_282] : memref<2x8x32xf32, #tpu.memory_space<vmem>>, vector<2x1x32xf32>
    %591 = vector.shape_cast %590 : vector<2x1x32xf32> to vector<2x32xf32>
    %c0_283 = arith.constant 0 : index
    %c4_284 = arith.constant 4 : index
    %c0_285 = arith.constant 0 : index
    %592 = vector.load %arg17[%c0_283, %c4_284, %c0_285] : memref<2x8x32xf32, #tpu.memory_space<vmem>>, vector<2x1x32xf32>
    %593 = vector.shape_cast %592 : vector<2x1x32xf32> to vector<2x32xf32>
    %594 = tpu.concatenate %591, %593, %578 in 1 : vector<2x32xf32>, vector<2x32xf32>, vector<2x32xf32> -> vector<2x96xf32>
    %c0_286 = arith.constant 0 : index
    %c0_287 = arith.constant 0 : index
    %595 = vector.load %arg5[%c0_286, %c0_287] : memref<96x128xf32, #tpu.memory_space<vmem>>, vector<96x128xf32>
    %cst_288 = arith.constant dense<0.000000e+00> : vector<2x128xf32>
    %596 = tpu.matmul %589, %595, %cst_288 {dimension_numbers = #tpu.dot_dimension_numbers<[1], [0], [0], [1], [0, 0, 1, 1], [], []>} : vector<2x96xf32>, vector<96x128xf32>, vector<2x128xf32> -> vector<2x128xf32>
    %c0_289 = arith.constant 0 : index
    %c0_290 = arith.constant 0 : index
    %597 = vector.load %arg6[%c0_289, %c0_290] : memref<1x128xf32, #tpu.memory_space<vmem>>, vector<1x128xf32>
    %598 = vector.broadcast %597 : vector<1x128xf32> to vector<2x128xf32>
    %599 = arith.addf %596, %598 : vector<2x128xf32>
    %600 = arith.negf %599 : vector<2x128xf32>
    %601 = math.exp %600 : vector<2x128xf32>
    %cst_291 = arith.constant 1.000000e+00 : f32
    %602 = vector.broadcast %cst_291 : f32 to vector<2x128xf32>
    %603 = arith.addf %602, %601 : vector<2x128xf32>
    %604 = arith.divf %602, %603 : vector<2x128xf32>
    %605 = vector.extract_strided_slice %599 {offsets = [0, 64], sizes = [2, 32], strides = [1, 1]} : vector<2x128xf32> to vector<2x32xf32>
    %606 = math.tanh %605 : vector<2x32xf32>
    %607 = vector.extract_strided_slice %604 {offsets = [0, 0], sizes = [2, 32], strides = [1, 1]} : vector<2x128xf32> to vector<2x32xf32>
    %608 = vector.extract_strided_slice %604 {offsets = [0, 32], sizes = [2, 32], strides = [1, 1]} : vector<2x128xf32> to vector<2x32xf32>
    %609 = vector.extract_strided_slice %604 {offsets = [0, 96], sizes = [2, 32], strides = [1, 1]} : vector<2x128xf32> to vector<2x32xf32>
    %610 = arith.mulf %608, %556 : vector<2x32xf32>
    %611 = arith.mulf %607, %606 : vector<2x32xf32>
    %612 = arith.addf %610, %611 : vector<2x32xf32>
    %613 = math.tanh %612 : vector<2x32xf32>
    %614 = arith.mulf %609, %613 : vector<2x32xf32>
    %c0_292 = arith.constant 0 : index
    %c0_293 = arith.constant 0 : index
    %615 = vector.load %arg7[%c0_292, %c0_293] : memref<96x128xf32, #tpu.memory_space<vmem>>, vector<96x128xf32>
    %cst_294 = arith.constant dense<0.000000e+00> : vector<2x128xf32>
    %616 = tpu.matmul %594, %615, %cst_294 {dimension_numbers = #tpu.dot_dimension_numbers<[1], [0], [0], [1], [0, 0, 1, 1], [], []>} : vector<2x96xf32>, vector<96x128xf32>, vector<2x128xf32> -> vector<2x128xf32>
    %c0_295 = arith.constant 0 : index
    %c0_296 = arith.constant 0 : index
    %617 = vector.load %arg8[%c0_295, %c0_296] : memref<1x128xf32, #tpu.memory_space<vmem>>, vector<1x128xf32>
    %618 = vector.broadcast %617 : vector<1x128xf32> to vector<2x128xf32>
    %619 = arith.addf %616, %618 : vector<2x128xf32>
    %620 = arith.negf %619 : vector<2x128xf32>
    %621 = math.exp %620 : vector<2x128xf32>
    %cst_297 = arith.constant 1.000000e+00 : f32
    %622 = vector.broadcast %cst_297 : f32 to vector<2x128xf32>
    %623 = arith.addf %622, %621 : vector<2x128xf32>
    %624 = arith.divf %622, %623 : vector<2x128xf32>
    %625 = vector.extract_strided_slice %619 {offsets = [0, 64], sizes = [2, 32], strides = [1, 1]} : vector<2x128xf32> to vector<2x32xf32>
    %626 = math.tanh %625 : vector<2x32xf32>
    %627 = vector.extract_strided_slice %624 {offsets = [0, 0], sizes = [2, 32], strides = [1, 1]} : vector<2x128xf32> to vector<2x32xf32>
    %628 = vector.extract_strided_slice %624 {offsets = [0, 32], sizes = [2, 32], strides = [1, 1]} : vector<2x128xf32> to vector<2x32xf32>
    %629 = vector.extract_strided_slice %624 {offsets = [0, 96], sizes = [2, 32], strides = [1, 1]} : vector<2x128xf32> to vector<2x32xf32>
    %630 = arith.mulf %628, %576 : vector<2x32xf32>
    %631 = arith.mulf %627, %626 : vector<2x32xf32>
    %632 = arith.addf %630, %631 : vector<2x32xf32>
    %633 = math.tanh %632 : vector<2x32xf32>
    %634 = arith.mulf %629, %633 : vector<2x32xf32>
    %c0_298 = arith.constant 0 : index
    %c3_299 = arith.constant 3 : index
    %c0_300 = arith.constant 0 : index
    %635 = vector.load %arg18[%c0_298, %c3_299, %c0_300] : memref<2x8x32xf32, #tpu.memory_space<vmem>>, vector<2x1x32xf32>
    %636 = vector.shape_cast %635 : vector<2x1x32xf32> to vector<2x32xf32>
    %637 = vector.shape_cast %614 : vector<2x32xf32> to vector<2x1x32xf32>
    tpu.vector_store %arg18[%c0_298, %c3_299, %c0_300], %637 {strides = array<i32>} : memref<2x8x32xf32, #tpu.memory_space<vmem>>, vector<2x1x32xf32>,
    %c0_301 = arith.constant 0 : index
    %c4_302 = arith.constant 4 : index
    %c0_303 = arith.constant 0 : index
    %638 = vector.load %arg19[%c0_301, %c4_302, %c0_303] : memref<2x8x32xf32, #tpu.memory_space<vmem>>, vector<2x1x32xf32>
    %639 = vector.shape_cast %638 : vector<2x1x32xf32> to vector<2x32xf32>
    %640 = vector.shape_cast %634 : vector<2x32xf32> to vector<2x1x32xf32>
    tpu.vector_store %arg19[%c0_301, %c4_302, %c0_303], %640 {strides = array<i32>} : memref<2x8x32xf32, #tpu.memory_space<vmem>>, vector<2x1x32xf32>,
    %c0_304 = arith.constant 0 : index
    %c4_305 = arith.constant 4 : index
    %c0_306 = arith.constant 0 : index
    %641 = vector.load %arg16[%c0_304, %c4_305, %c0_306] : memref<2x8x32xf32, #tpu.memory_space<vmem>>, vector<2x1x32xf32>
    %642 = vector.shape_cast %641 : vector<2x1x32xf32> to vector<2x32xf32>
    %c0_307 = arith.constant 0 : index
    %c4_308 = arith.constant 4 : index
    %c0_309 = arith.constant 0 : index
    %643 = vector.load %arg17[%c0_307, %c4_308, %c0_309] : memref<2x8x32xf32, #tpu.memory_space<vmem>>, vector<2x1x32xf32>
    %644 = vector.shape_cast %643 : vector<2x1x32xf32> to vector<2x32xf32>
    %645 = tpu.concatenate %642, %644, %614 in 1 : vector<2x32xf32>, vector<2x32xf32>, vector<2x32xf32> -> vector<2x96xf32>
    %c0_310 = arith.constant 0 : index
    %c3_311 = arith.constant 3 : index
    %c0_312 = arith.constant 0 : index
    %646 = vector.load %arg16[%c0_310, %c3_311, %c0_312] : memref<2x8x32xf32, #tpu.memory_space<vmem>>, vector<2x1x32xf32>
    %647 = vector.shape_cast %646 : vector<2x1x32xf32> to vector<2x32xf32>
    %c0_313 = arith.constant 0 : index
    %c3_314 = arith.constant 3 : index
    %c0_315 = arith.constant 0 : index
    %648 = vector.load %arg17[%c0_313, %c3_314, %c0_315] : memref<2x8x32xf32, #tpu.memory_space<vmem>>, vector<2x1x32xf32>
    %649 = vector.shape_cast %648 : vector<2x1x32xf32> to vector<2x32xf32>
    %650 = tpu.concatenate %647, %649, %634 in 1 : vector<2x32xf32>, vector<2x32xf32>, vector<2x32xf32> -> vector<2x96xf32>
    %c0_316 = arith.constant 0 : index
    %c0_317 = arith.constant 0 : index
    %651 = vector.load %arg5[%c0_316, %c0_317] : memref<96x128xf32, #tpu.memory_space<vmem>>, vector<96x128xf32>
    %cst_318 = arith.constant dense<0.000000e+00> : vector<2x128xf32>
    %652 = tpu.matmul %645, %651, %cst_318 {dimension_numbers = #tpu.dot_dimension_numbers<[1], [0], [0], [1], [0, 0, 1, 1], [], []>} : vector<2x96xf32>, vector<96x128xf32>, vector<2x128xf32> -> vector<2x128xf32>
    %c0_319 = arith.constant 0 : index
    %c0_320 = arith.constant 0 : index
    %653 = vector.load %arg6[%c0_319, %c0_320] : memref<1x128xf32, #tpu.memory_space<vmem>>, vector<1x128xf32>
    %654 = vector.broadcast %653 : vector<1x128xf32> to vector<2x128xf32>
    %655 = arith.addf %652, %654 : vector<2x128xf32>
    %656 = arith.negf %655 : vector<2x128xf32>
    %657 = math.exp %656 : vector<2x128xf32>
    %cst_321 = arith.constant 1.000000e+00 : f32
    %658 = vector.broadcast %cst_321 : f32 to vector<2x128xf32>
    %659 = arith.addf %658, %657 : vector<2x128xf32>
    %660 = arith.divf %658, %659 : vector<2x128xf32>
    %661 = vector.extract_strided_slice %655 {offsets = [0, 64], sizes = [2, 32], strides = [1, 1]} : vector<2x128xf32> to vector<2x32xf32>
    %662 = math.tanh %661 : vector<2x32xf32>
    %663 = vector.extract_strided_slice %660 {offsets = [0, 0], sizes = [2, 32], strides = [1, 1]} : vector<2x128xf32> to vector<2x32xf32>
    %664 = vector.extract_strided_slice %660 {offsets = [0, 32], sizes = [2, 32], strides = [1, 1]} : vector<2x128xf32> to vector<2x32xf32>
    %665 = vector.extract_strided_slice %660 {offsets = [0, 96], sizes = [2, 32], strides = [1, 1]} : vector<2x128xf32> to vector<2x32xf32>
    %666 = arith.mulf %664, %612 : vector<2x32xf32>
    %667 = arith.mulf %663, %662 : vector<2x32xf32>
    %668 = arith.addf %666, %667 : vector<2x32xf32>
    %669 = math.tanh %668 : vector<2x32xf32>
    %670 = arith.mulf %665, %669 : vector<2x32xf32>
    %c0_322 = arith.constant 0 : index
    %c0_323 = arith.constant 0 : index
    %671 = vector.load %arg7[%c0_322, %c0_323] : memref<96x128xf32, #tpu.memory_space<vmem>>, vector<96x128xf32>
    %cst_324 = arith.constant dense<0.000000e+00> : vector<2x128xf32>
    %672 = tpu.matmul %650, %671, %cst_324 {dimension_numbers = #tpu.dot_dimension_numbers<[1], [0], [0], [1], [0, 0, 1, 1], [], []>} : vector<2x96xf32>, vector<96x128xf32>, vector<2x128xf32> -> vector<2x128xf32>
    %c0_325 = arith.constant 0 : index
    %c0_326 = arith.constant 0 : index
    %673 = vector.load %arg8[%c0_325, %c0_326] : memref<1x128xf32, #tpu.memory_space<vmem>>, vector<1x128xf32>
    %674 = vector.broadcast %673 : vector<1x128xf32> to vector<2x128xf32>
    %675 = arith.addf %672, %674 : vector<2x128xf32>
    %676 = arith.negf %675 : vector<2x128xf32>
    %677 = math.exp %676 : vector<2x128xf32>
    %cst_327 = arith.constant 1.000000e+00 : f32
    %678 = vector.broadcast %cst_327 : f32 to vector<2x128xf32>
    %679 = arith.addf %678, %677 : vector<2x128xf32>
    %680 = arith.divf %678, %679 : vector<2x128xf32>
    %681 = vector.extract_strided_slice %675 {offsets = [0, 64], sizes = [2, 32], strides = [1, 1]} : vector<2x128xf32> to vector<2x32xf32>
    %682 = math.tanh %681 : vector<2x32xf32>
    %683 = vector.extract_strided_slice %680 {offsets = [0, 0], sizes = [2, 32], strides = [1, 1]} : vector<2x128xf32> to vector<2x32xf32>
    %684 = vector.extract_strided_slice %680 {offsets = [0, 32], sizes = [2, 32], strides = [1, 1]} : vector<2x128xf32> to vector<2x32xf32>
    %685 = vector.extract_strided_slice %680 {offsets = [0, 96], sizes = [2, 32], strides = [1, 1]} : vector<2x128xf32> to vector<2x32xf32>
    %686 = arith.mulf %684, %632 : vector<2x32xf32>
    %687 = arith.mulf %683, %682 : vector<2x32xf32>
    %688 = arith.addf %686, %687 : vector<2x32xf32>
    %689 = math.tanh %688 : vector<2x32xf32>
    %690 = arith.mulf %685, %689 : vector<2x32xf32>
    %c0_328 = arith.constant 0 : index
    %c4_329 = arith.constant 4 : index
    %c0_330 = arith.constant 0 : index
    %691 = vector.load %arg18[%c0_328, %c4_329, %c0_330] : memref<2x8x32xf32, #tpu.memory_space<vmem>>, vector<2x1x32xf32>
    %692 = vector.shape_cast %691 : vector<2x1x32xf32> to vector<2x32xf32>
    %693 = vector.shape_cast %670 : vector<2x32xf32> to vector<2x1x32xf32>
    tpu.vector_store %arg18[%c0_328, %c4_329, %c0_330], %693 {strides = array<i32>} : memref<2x8x32xf32, #tpu.memory_space<vmem>>, vector<2x1x32xf32>,
    %c0_331 = arith.constant 0 : index
    %c3_332 = arith.constant 3 : index
    %c0_333 = arith.constant 0 : index
    %694 = vector.load %arg19[%c0_331, %c3_332, %c0_333] : memref<2x8x32xf32, #tpu.memory_space<vmem>>, vector<2x1x32xf32>
    %695 = vector.shape_cast %694 : vector<2x1x32xf32> to vector<2x32xf32>
    %696 = vector.shape_cast %690 : vector<2x32xf32> to vector<2x1x32xf32>
    tpu.vector_store %arg19[%c0_331, %c3_332, %c0_333], %696 {strides = array<i32>} : memref<2x8x32xf32, #tpu.memory_space<vmem>>, vector<2x1x32xf32>,
    %c0_334 = arith.constant 0 : index
    %c5_335 = arith.constant 5 : index
    %c0_336 = arith.constant 0 : index
    %697 = vector.load %arg16[%c0_334, %c5_335, %c0_336] : memref<2x8x32xf32, #tpu.memory_space<vmem>>, vector<2x1x32xf32>
    %698 = vector.shape_cast %697 : vector<2x1x32xf32> to vector<2x32xf32>
    %c0_337 = arith.constant 0 : index
    %c5_338 = arith.constant 5 : index
    %c0_339 = arith.constant 0 : index
    %699 = vector.load %arg17[%c0_337, %c5_338, %c0_339] : memref<2x8x32xf32, #tpu.memory_space<vmem>>, vector<2x1x32xf32>
    %700 = vector.shape_cast %699 : vector<2x1x32xf32> to vector<2x32xf32>
    %701 = tpu.concatenate %698, %700, %670 in 1 : vector<2x32xf32>, vector<2x32xf32>, vector<2x32xf32> -> vector<2x96xf32>
    %c0_340 = arith.constant 0 : index
    %c2_341 = arith.constant 2 : index
    %c0_342 = arith.constant 0 : index
    %702 = vector.load %arg16[%c0_340, %c2_341, %c0_342] : memref<2x8x32xf32, #tpu.memory_space<vmem>>, vector<2x1x32xf32>
    %703 = vector.shape_cast %702 : vector<2x1x32xf32> to vector<2x32xf32>
    %c0_343 = arith.constant 0 : index
    %c2_344 = arith.constant 2 : index
    %c0_345 = arith.constant 0 : index
    %704 = vector.load %arg17[%c0_343, %c2_344, %c0_345] : memref<2x8x32xf32, #tpu.memory_space<vmem>>, vector<2x1x32xf32>
    %705 = vector.shape_cast %704 : vector<2x1x32xf32> to vector<2x32xf32>
    %706 = tpu.concatenate %703, %705, %690 in 1 : vector<2x32xf32>, vector<2x32xf32>, vector<2x32xf32> -> vector<2x96xf32>
    %c0_346 = arith.constant 0 : index
    %c0_347 = arith.constant 0 : index
    %707 = vector.load %arg5[%c0_346, %c0_347] : memref<96x128xf32, #tpu.memory_space<vmem>>, vector<96x128xf32>
    %cst_348 = arith.constant dense<0.000000e+00> : vector<2x128xf32>
    %708 = tpu.matmul %701, %707, %cst_348 {dimension_numbers = #tpu.dot_dimension_numbers<[1], [0], [0], [1], [0, 0, 1, 1], [], []>} : vector<2x96xf32>, vector<96x128xf32>, vector<2x128xf32> -> vector<2x128xf32>
    %c0_349 = arith.constant 0 : index
    %c0_350 = arith.constant 0 : index
    %709 = vector.load %arg6[%c0_349, %c0_350] : memref<1x128xf32, #tpu.memory_space<vmem>>, vector<1x128xf32>
    %710 = vector.broadcast %709 : vector<1x128xf32> to vector<2x128xf32>
    %711 = arith.addf %708, %710 : vector<2x128xf32>
    %712 = arith.negf %711 : vector<2x128xf32>
    %713 = math.exp %712 : vector<2x128xf32>
    %cst_351 = arith.constant 1.000000e+00 : f32
    %714 = vector.broadcast %cst_351 : f32 to vector<2x128xf32>
    %715 = arith.addf %714, %713 : vector<2x128xf32>
    %716 = arith.divf %714, %715 : vector<2x128xf32>
    %717 = vector.extract_strided_slice %711 {offsets = [0, 64], sizes = [2, 32], strides = [1, 1]} : vector<2x128xf32> to vector<2x32xf32>
    %718 = math.tanh %717 : vector<2x32xf32>
    %719 = vector.extract_strided_slice %716 {offsets = [0, 0], sizes = [2, 32], strides = [1, 1]} : vector<2x128xf32> to vector<2x32xf32>
    %720 = vector.extract_strided_slice %716 {offsets = [0, 32], sizes = [2, 32], strides = [1, 1]} : vector<2x128xf32> to vector<2x32xf32>
    %721 = vector.extract_strided_slice %716 {offsets = [0, 96], sizes = [2, 32], strides = [1, 1]} : vector<2x128xf32> to vector<2x32xf32>
    %722 = arith.mulf %720, %668 : vector<2x32xf32>
    %723 = arith.mulf %719, %718 : vector<2x32xf32>
    %724 = arith.addf %722, %723 : vector<2x32xf32>
    %725 = math.tanh %724 : vector<2x32xf32>
    %726 = arith.mulf %721, %725 : vector<2x32xf32>
    %c0_352 = arith.constant 0 : index
    %c0_353 = arith.constant 0 : index
    %727 = vector.load %arg7[%c0_352, %c0_353] : memref<96x128xf32, #tpu.memory_space<vmem>>, vector<96x128xf32>
    %cst_354 = arith.constant dense<0.000000e+00> : vector<2x128xf32>
    %728 = tpu.matmul %706, %727, %cst_354 {dimension_numbers = #tpu.dot_dimension_numbers<[1], [0], [0], [1], [0, 0, 1, 1], [], []>} : vector<2x96xf32>, vector<96x128xf32>, vector<2x128xf32> -> vector<2x128xf32>
    %c0_355 = arith.constant 0 : index
    %c0_356 = arith.constant 0 : index
    %729 = vector.load %arg8[%c0_355, %c0_356] : memref<1x128xf32, #tpu.memory_space<vmem>>, vector<1x128xf32>
    %730 = vector.broadcast %729 : vector<1x128xf32> to vector<2x128xf32>
    %731 = arith.addf %728, %730 : vector<2x128xf32>
    %732 = arith.negf %731 : vector<2x128xf32>
    %733 = math.exp %732 : vector<2x128xf32>
    %cst_357 = arith.constant 1.000000e+00 : f32
    %734 = vector.broadcast %cst_357 : f32 to vector<2x128xf32>
    %735 = arith.addf %734, %733 : vector<2x128xf32>
    %736 = arith.divf %734, %735 : vector<2x128xf32>
    %737 = vector.extract_strided_slice %731 {offsets = [0, 64], sizes = [2, 32], strides = [1, 1]} : vector<2x128xf32> to vector<2x32xf32>
    %738 = math.tanh %737 : vector<2x32xf32>
    %739 = vector.extract_strided_slice %736 {offsets = [0, 0], sizes = [2, 32], strides = [1, 1]} : vector<2x128xf32> to vector<2x32xf32>
    %740 = vector.extract_strided_slice %736 {offsets = [0, 32], sizes = [2, 32], strides = [1, 1]} : vector<2x128xf32> to vector<2x32xf32>
    %741 = vector.extract_strided_slice %736 {offsets = [0, 96], sizes = [2, 32], strides = [1, 1]} : vector<2x128xf32> to vector<2x32xf32>
    %742 = arith.mulf %740, %688 : vector<2x32xf32>
    %743 = arith.mulf %739, %738 : vector<2x32xf32>
    %744 = arith.addf %742, %743 : vector<2x32xf32>
    %745 = math.tanh %744 : vector<2x32xf32>
    %746 = arith.mulf %741, %745 : vector<2x32xf32>
    %c0_358 = arith.constant 0 : index
    %c5_359 = arith.constant 5 : index
    %c0_360 = arith.constant 0 : index
    %747 = vector.load %arg18[%c0_358, %c5_359, %c0_360] : memref<2x8x32xf32, #tpu.memory_space<vmem>>, vector<2x1x32xf32>
    %748 = vector.shape_cast %747 : vector<2x1x32xf32> to vector<2x32xf32>
    %749 = vector.shape_cast %726 : vector<2x32xf32> to vector<2x1x32xf32>
    tpu.vector_store %arg18[%c0_358, %c5_359, %c0_360], %749 {strides = array<i32>} : memref<2x8x32xf32, #tpu.memory_space<vmem>>, vector<2x1x32xf32>,
    %c0_361 = arith.constant 0 : index
    %c2_362 = arith.constant 2 : index
    %c0_363 = arith.constant 0 : index
    %750 = vector.load %arg19[%c0_361, %c2_362, %c0_363] : memref<2x8x32xf32, #tpu.memory_space<vmem>>, vector<2x1x32xf32>
    %751 = vector.shape_cast %750 : vector<2x1x32xf32> to vector<2x32xf32>
    %752 = vector.shape_cast %746 : vector<2x32xf32> to vector<2x1x32xf32>
    tpu.vector_store %arg19[%c0_361, %c2_362, %c0_363], %752 {strides = array<i32>} : memref<2x8x32xf32, #tpu.memory_space<vmem>>, vector<2x1x32xf32>,
    %c0_364 = arith.constant 0 : index
    %c6_365 = arith.constant 6 : index
    %c0_366 = arith.constant 0 : index
    %753 = vector.load %arg16[%c0_364, %c6_365, %c0_366] : memref<2x8x32xf32, #tpu.memory_space<vmem>>, vector<2x1x32xf32>
    %754 = vector.shape_cast %753 : vector<2x1x32xf32> to vector<2x32xf32>
    %c0_367 = arith.constant 0 : index
    %c6_368 = arith.constant 6 : index
    %c0_369 = arith.constant 0 : index
    %755 = vector.load %arg17[%c0_367, %c6_368, %c0_369] : memref<2x8x32xf32, #tpu.memory_space<vmem>>, vector<2x1x32xf32>
    %756 = vector.shape_cast %755 : vector<2x1x32xf32> to vector<2x32xf32>
    %757 = tpu.concatenate %754, %756, %726 in 1 : vector<2x32xf32>, vector<2x32xf32>, vector<2x32xf32> -> vector<2x96xf32>
    %c0_370 = arith.constant 0 : index
    %c1_371 = arith.constant 1 : index
    %c0_372 = arith.constant 0 : index
    %758 = vector.load %arg16[%c0_370, %c1_371, %c0_372] : memref<2x8x32xf32, #tpu.memory_space<vmem>>, vector<2x1x32xf32>
    %759 = vector.shape_cast %758 : vector<2x1x32xf32> to vector<2x32xf32>
    %c0_373 = arith.constant 0 : index
    %c1_374 = arith.constant 1 : index
    %c0_375 = arith.constant 0 : index
    %760 = vector.load %arg17[%c0_373, %c1_374, %c0_375] : memref<2x8x32xf32, #tpu.memory_space<vmem>>, vector<2x1x32xf32>
    %761 = vector.shape_cast %760 : vector<2x1x32xf32> to vector<2x32xf32>
    %762 = tpu.concatenate %759, %761, %746 in 1 : vector<2x32xf32>, vector<2x32xf32>, vector<2x32xf32> -> vector<2x96xf32>
    %c0_376 = arith.constant 0 : index
    %c0_377 = arith.constant 0 : index
    %763 = vector.load %arg5[%c0_376, %c0_377] : memref<96x128xf32, #tpu.memory_space<vmem>>, vector<96x128xf32>
    %cst_378 = arith.constant dense<0.000000e+00> : vector<2x128xf32>
    %764 = tpu.matmul %757, %763, %cst_378 {dimension_numbers = #tpu.dot_dimension_numbers<[1], [0], [0], [1], [0, 0, 1, 1], [], []>} : vector<2x96xf32>, vector<96x128xf32>, vector<2x128xf32> -> vector<2x128xf32>
    %c0_379 = arith.constant 0 : index
    %c0_380 = arith.constant 0 : index
    %765 = vector.load %arg6[%c0_379, %c0_380] : memref<1x128xf32, #tpu.memory_space<vmem>>, vector<1x128xf32>
    %766 = vector.broadcast %765 : vector<1x128xf32> to vector<2x128xf32>
    %767 = arith.addf %764, %766 : vector<2x128xf32>
    %768 = arith.negf %767 : vector<2x128xf32>
    %769 = math.exp %768 : vector<2x128xf32>
    %cst_381 = arith.constant 1.000000e+00 : f32
    %770 = vector.broadcast %cst_381 : f32 to vector<2x128xf32>
    %771 = arith.addf %770, %769 : vector<2x128xf32>
    %772 = arith.divf %770, %771 : vector<2x128xf32>
    %773 = vector.extract_strided_slice %767 {offsets = [0, 64], sizes = [2, 32], strides = [1, 1]} : vector<2x128xf32> to vector<2x32xf32>
    %774 = math.tanh %773 : vector<2x32xf32>
    %775 = vector.extract_strided_slice %772 {offsets = [0, 0], sizes = [2, 32], strides = [1, 1]} : vector<2x128xf32> to vector<2x32xf32>
    %776 = vector.extract_strided_slice %772 {offsets = [0, 32], sizes = [2, 32], strides = [1, 1]} : vector<2x128xf32> to vector<2x32xf32>
    %777 = vector.extract_strided_slice %772 {offsets = [0, 96], sizes = [2, 32], strides = [1, 1]} : vector<2x128xf32> to vector<2x32xf32>
    %778 = arith.mulf %776, %724 : vector<2x32xf32>
    %779 = arith.mulf %775, %774 : vector<2x32xf32>
    %780 = arith.addf %778, %779 : vector<2x32xf32>
    %781 = math.tanh %780 : vector<2x32xf32>
    %782 = arith.mulf %777, %781 : vector<2x32xf32>
    %c0_382 = arith.constant 0 : index
    %c0_383 = arith.constant 0 : index
    %783 = vector.load %arg7[%c0_382, %c0_383] : memref<96x128xf32, #tpu.memory_space<vmem>>, vector<96x128xf32>
    %cst_384 = arith.constant dense<0.000000e+00> : vector<2x128xf32>
    %784 = tpu.matmul %762, %783, %cst_384 {dimension_numbers = #tpu.dot_dimension_numbers<[1], [0], [0], [1], [0, 0, 1, 1], [], []>} : vector<2x96xf32>, vector<96x128xf32>, vector<2x128xf32> -> vector<2x128xf32>
    %c0_385 = arith.constant 0 : index
    %c0_386 = arith.constant 0 : index
    %785 = vector.load %arg8[%c0_385, %c0_386] : memref<1x128xf32, #tpu.memory_space<vmem>>, vector<1x128xf32>
    %786 = vector.broadcast %785 : vector<1x128xf32> to vector<2x128xf32>
    %787 = arith.addf %784, %786 : vector<2x128xf32>
    %788 = arith.negf %787 : vector<2x128xf32>
    %789 = math.exp %788 : vector<2x128xf32>
    %cst_387 = arith.constant 1.000000e+00 : f32
    %790 = vector.broadcast %cst_387 : f32 to vector<2x128xf32>
    %791 = arith.addf %790, %789 : vector<2x128xf32>
    %792 = arith.divf %790, %791 : vector<2x128xf32>
    %793 = vector.extract_strided_slice %787 {offsets = [0, 64], sizes = [2, 32], strides = [1, 1]} : vector<2x128xf32> to vector<2x32xf32>
    %794 = math.tanh %793 : vector<2x32xf32>
    %795 = vector.extract_strided_slice %792 {offsets = [0, 0], sizes = [2, 32], strides = [1, 1]} : vector<2x128xf32> to vector<2x32xf32>
    %796 = vector.extract_strided_slice %792 {offsets = [0, 32], sizes = [2, 32], strides = [1, 1]} : vector<2x128xf32> to vector<2x32xf32>
    %797 = vector.extract_strided_slice %792 {offsets = [0, 96], sizes = [2, 32], strides = [1, 1]} : vector<2x128xf32> to vector<2x32xf32>
    %798 = arith.mulf %796, %744 : vector<2x32xf32>
    %799 = arith.mulf %795, %794 : vector<2x32xf32>
    %800 = arith.addf %798, %799 : vector<2x32xf32>
    %801 = math.tanh %800 : vector<2x32xf32>
    %802 = arith.mulf %797, %801 : vector<2x32xf32>
    %c0_388 = arith.constant 0 : index
    %c6_389 = arith.constant 6 : index
    %c0_390 = arith.constant 0 : index
    %803 = vector.load %arg18[%c0_388, %c6_389, %c0_390] : memref<2x8x32xf32, #tpu.memory_space<vmem>>, vector<2x1x32xf32>
    %804 = vector.shape_cast %803 : vector<2x1x32xf32> to vector<2x32xf32>
    %805 = vector.shape_cast %782 : vector<2x32xf32> to vector<2x1x32xf32>
    tpu.vector_store %arg18[%c0_388, %c6_389, %c0_390], %805 {strides = array<i32>} : memref<2x8x32xf32, #tpu.memory_space<vmem>>, vector<2x1x32xf32>,
    %c0_391 = arith.constant 0 : index
    %c1_392 = arith.constant 1 : index
    %c0_393 = arith.constant 0 : index
    %806 = vector.load %arg19[%c0_391, %c1_392, %c0_393] : memref<2x8x32xf32, #tpu.memory_space<vmem>>, vector<2x1x32xf32>
    %807 = vector.shape_cast %806 : vector<2x1x32xf32> to vector<2x32xf32>
    %808 = vector.shape_cast %802 : vector<2x32xf32> to vector<2x1x32xf32>
    tpu.vector_store %arg19[%c0_391, %c1_392, %c0_393], %808 {strides = array<i32>} : memref<2x8x32xf32, #tpu.memory_space<vmem>>, vector<2x1x32xf32>,
    %c0_394 = arith.constant 0 : index
    %c7_395 = arith.constant 7 : index
    %c0_396 = arith.constant 0 : index
    %809 = vector.load %arg16[%c0_394, %c7_395, %c0_396] : memref<2x8x32xf32, #tpu.memory_space<vmem>>, vector<2x1x32xf32>
    %810 = vector.shape_cast %809 : vector<2x1x32xf32> to vector<2x32xf32>
    %c0_397 = arith.constant 0 : index
    %c7_398 = arith.constant 7 : index
    %c0_399 = arith.constant 0 : index
    %811 = vector.load %arg17[%c0_397, %c7_398, %c0_399] : memref<2x8x32xf32, #tpu.memory_space<vmem>>, vector<2x1x32xf32>
    %812 = vector.shape_cast %811 : vector<2x1x32xf32> to vector<2x32xf32>
    %813 = tpu.concatenate %810, %812, %782 in 1 : vector<2x32xf32>, vector<2x32xf32>, vector<2x32xf32> -> vector<2x96xf32>
    %c0_400 = arith.constant 0 : index
    %c0_401 = arith.constant 0 : index
    %c0_402 = arith.constant 0 : index
    %814 = vector.load %arg16[%c0_400, %c0_401, %c0_402] : memref<2x8x32xf32, #tpu.memory_space<vmem>>, vector<2x1x32xf32>
    %815 = vector.shape_cast %814 : vector<2x1x32xf32> to vector<2x32xf32>
    %c0_403 = arith.constant 0 : index
    %c0_404 = arith.constant 0 : index
    %c0_405 = arith.constant 0 : index
    %816 = vector.load %arg17[%c0_403, %c0_404, %c0_405] : memref<2x8x32xf32, #tpu.memory_space<vmem>>, vector<2x1x32xf32>
    %817 = vector.shape_cast %816 : vector<2x1x32xf32> to vector<2x32xf32>
    %818 = tpu.concatenate %815, %817, %802 in 1 : vector<2x32xf32>, vector<2x32xf32>, vector<2x32xf32> -> vector<2x96xf32>
    %c0_406 = arith.constant 0 : index
    %c0_407 = arith.constant 0 : index
    %819 = vector.load %arg5[%c0_406, %c0_407] : memref<96x128xf32, #tpu.memory_space<vmem>>, vector<96x128xf32>
    %cst_408 = arith.constant dense<0.000000e+00> : vector<2x128xf32>
    %820 = tpu.matmul %813, %819, %cst_408 {dimension_numbers = #tpu.dot_dimension_numbers<[1], [0], [0], [1], [0, 0, 1, 1], [], []>} : vector<2x96xf32>, vector<96x128xf32>, vector<2x128xf32> -> vector<2x128xf32>
    %c0_409 = arith.constant 0 : index
    %c0_410 = arith.constant 0 : index
    %821 = vector.load %arg6[%c0_409, %c0_410] : memref<1x128xf32, #tpu.memory_space<vmem>>, vector<1x128xf32>
    %822 = vector.broadcast %821 : vector<1x128xf32> to vector<2x128xf32>
    %823 = arith.addf %820, %822 : vector<2x128xf32>
    %824 = arith.negf %823 : vector<2x128xf32>
    %825 = math.exp %824 : vector<2x128xf32>
    %cst_411 = arith.constant 1.000000e+00 : f32
    %826 = vector.broadcast %cst_411 : f32 to vector<2x128xf32>
    %827 = arith.addf %826, %825 : vector<2x128xf32>
    %828 = arith.divf %826, %827 : vector<2x128xf32>
    %829 = vector.extract_strided_slice %823 {offsets = [0, 64], sizes = [2, 32], strides = [1, 1]} : vector<2x128xf32> to vector<2x32xf32>
    %830 = math.tanh %829 : vector<2x32xf32>
    %831 = vector.extract_strided_slice %828 {offsets = [0, 0], sizes = [2, 32], strides = [1, 1]} : vector<2x128xf32> to vector<2x32xf32>
    %832 = vector.extract_strided_slice %828 {offsets = [0, 32], sizes = [2, 32], strides = [1, 1]} : vector<2x128xf32> to vector<2x32xf32>
    %833 = vector.extract_strided_slice %828 {offsets = [0, 96], sizes = [2, 32], strides = [1, 1]} : vector<2x128xf32> to vector<2x32xf32>
    %834 = arith.mulf %832, %780 : vector<2x32xf32>
    %835 = arith.mulf %831, %830 : vector<2x32xf32>
    %836 = arith.addf %834, %835 : vector<2x32xf32>
    %837 = math.tanh %836 : vector<2x32xf32>
    %838 = arith.mulf %833, %837 : vector<2x32xf32>
    %c0_412 = arith.constant 0 : index
    %c0_413 = arith.constant 0 : index
    %839 = vector.load %arg7[%c0_412, %c0_413] : memref<96x128xf32, #tpu.memory_space<vmem>>, vector<96x128xf32>
    %cst_414 = arith.constant dense<0.000000e+00> : vector<2x128xf32>
    %840 = tpu.matmul %818, %839, %cst_414 {dimension_numbers = #tpu.dot_dimension_numbers<[1], [0], [0], [1], [0, 0, 1, 1], [], []>} : vector<2x96xf32>, vector<96x128xf32>, vector<2x128xf32> -> vector<2x128xf32>
    %c0_415 = arith.constant 0 : index
    %c0_416 = arith.constant 0 : index
    %841 = vector.load %arg8[%c0_415, %c0_416] : memref<1x128xf32, #tpu.memory_space<vmem>>, vector<1x128xf32>
    %842 = vector.broadcast %841 : vector<1x128xf32> to vector<2x128xf32>
    %843 = arith.addf %840, %842 : vector<2x128xf32>
    %844 = arith.negf %843 : vector<2x128xf32>
    %845 = math.exp %844 : vector<2x128xf32>
    %cst_417 = arith.constant 1.000000e+00 : f32
    %846 = vector.broadcast %cst_417 : f32 to vector<2x128xf32>
    %847 = arith.addf %846, %845 : vector<2x128xf32>
    %848 = arith.divf %846, %847 : vector<2x128xf32>
    %849 = vector.extract_strided_slice %843 {offsets = [0, 64], sizes = [2, 32], strides = [1, 1]} : vector<2x128xf32> to vector<2x32xf32>
    %850 = math.tanh %849 : vector<2x32xf32>
    %851 = vector.extract_strided_slice %848 {offsets = [0, 0], sizes = [2, 32], strides = [1, 1]} : vector<2x128xf32> to vector<2x32xf32>
    %852 = vector.extract_strided_slice %848 {offsets = [0, 32], sizes = [2, 32], strides = [1, 1]} : vector<2x128xf32> to vector<2x32xf32>
    %853 = vector.extract_strided_slice %848 {offsets = [0, 96], sizes = [2, 32], strides = [1, 1]} : vector<2x128xf32> to vector<2x32xf32>
    %854 = arith.mulf %852, %800 : vector<2x32xf32>
    %855 = arith.mulf %851, %850 : vector<2x32xf32>
    %856 = arith.addf %854, %855 : vector<2x32xf32>
    %857 = math.tanh %856 : vector<2x32xf32>
    %858 = arith.mulf %853, %857 : vector<2x32xf32>
    %c0_418 = arith.constant 0 : index
    %c7_419 = arith.constant 7 : index
    %c0_420 = arith.constant 0 : index
    %859 = vector.load %arg18[%c0_418, %c7_419, %c0_420] : memref<2x8x32xf32, #tpu.memory_space<vmem>>, vector<2x1x32xf32>
    %860 = vector.shape_cast %859 : vector<2x1x32xf32> to vector<2x32xf32>
    %861 = vector.shape_cast %838 : vector<2x32xf32> to vector<2x1x32xf32>
    tpu.vector_store %arg18[%c0_418, %c7_419, %c0_420], %861 {strides = array<i32>} : memref<2x8x32xf32, #tpu.memory_space<vmem>>, vector<2x1x32xf32>,
    %c0_421 = arith.constant 0 : index
    %c0_422 = arith.constant 0 : index
    %c0_423 = arith.constant 0 : index
    %862 = vector.load %arg19[%c0_421, %c0_422, %c0_423] : memref<2x8x32xf32, #tpu.memory_space<vmem>>, vector<2x1x32xf32>
    %863 = vector.shape_cast %862 : vector<2x1x32xf32> to vector<2x32xf32>
    %864 = vector.shape_cast %858 : vector<2x32xf32> to vector<2x1x32xf32>
    tpu.vector_store %arg19[%c0_421, %c0_422, %c0_423], %864 {strides = array<i32>} : memref<2x8x32xf32, #tpu.memory_space<vmem>>, vector<2x1x32xf32>,
    %c0_424 = arith.constant 0 : index
    %c0_425 = arith.constant 0 : index
    %c0_426 = arith.constant 0 : index
    %865 = vector.load %arg18[%c0_424, %c0_425, %c0_426] : memref<2x8x32xf32, #tpu.memory_space<vmem>>, vector<2x8x32xf32>
    %c0_427 = arith.constant 0 : index
    %c0_428 = arith.constant 0 : index
    %c0_429 = arith.constant 0 : index
    %866 = vector.load %arg19[%c0_427, %c0_428, %c0_429] : memref<2x8x32xf32, #tpu.memory_space<vmem>>, vector<2x8x32xf32>
    %867 = tpu.concatenate %865, %866 in 2 : vector<2x8x32xf32>, vector<2x8x32xf32> -> vector<2x8x64xf32>
    %868 = vector.shape_cast %867 : vector<2x8x64xf32> to vector<16x64xf32>
    %c0_430 = arith.constant 0 : index
    %c0_431 = arith.constant 0 : index
    %869 = vector.load %arg9[%c0_430, %c0_431] : memref<64x32xf32, #tpu.memory_space<vmem>>, vector<64x32xf32>
    %cst_432 = arith.constant dense<0.000000e+00> : vector<16x32xf32>
    %870 = tpu.matmul %868, %869, %cst_432 {dimension_numbers = #tpu.dot_dimension_numbers<[1], [0], [0], [1], [0, 0, 1, 1], [], []>} : vector<16x64xf32>, vector<64x32xf32>, vector<16x32xf32> -> vector<16x32xf32>
    %c0_433 = arith.constant 0 : index
    %c0_434 = arith.constant 0 : index
    %871 = vector.load %arg10[%c0_433, %c0_434] : memref<1x32xf32, #tpu.memory_space<vmem>>, vector<1x32xf32>
    %872 = vector.broadcast %871 : vector<1x32xf32> to vector<16x32xf32>
    %873 = arith.addf %870, %872 : vector<16x32xf32>
    %cst_435 = arith.constant 1.000000e+00 : f32
    %874 = vector.broadcast %cst_435 : f32 to vector<16x32xf32>
    %875 = arith.cmpf ogt, %873, %874 : vector<16x32xf32>
    %876 = arith.extui %875 : vector<16x32xi1> to vector<16x32xi32>
    %877 = arith.sitofp %876 : vector<16x32xi32> to vector<16x32xf32>
    %878 = vector.shape_cast %877 : vector<16x32xf32> to vector<2x8x32xf32>
    %c0_436 = arith.constant 0 : index
    %c0_437 = arith.constant 0 : index
    %c0_438 = arith.constant 0 : index
    %879 = vector.load %arg13[%c0_436, %c0_437, %c0_438] : memref<2x8x32xf32, #tpu.memory_space<vmem>>, vector<2x8x32xf32>
    tpu.vector_store %arg13[%c0_436, %c0_437, %c0_438], %878 {strides = array<i32>} : memref<2x8x32xf32, #tpu.memory_space<vmem>>, vector<2x8x32xf32>,
    %880 = vector.extract_strided_slice %878 {offsets = [0, 7, 0], sizes = [2, 1, 32], strides = [1, 1, 1]} : vector<2x8x32xf32> to vector<2x1x32xf32>
    %881 = vector.shape_cast %880 : vector<2x1x32xf32> to vector<2x32xf32>
    %c0_439 = arith.constant 0 : index
    %c0_440 = arith.constant 0 : index
    %882 = vector.load %arg11[%c0_439, %c0_440] : memref<32x4xf32, #tpu.memory_space<vmem>>, vector<32x4xf32>
    %cst_441 = arith.constant dense<0.000000e+00> : vector<2x4xf32>
    %883 = tpu.matmul %881, %882, %cst_441 {dimension_numbers = #tpu.dot_dimension_numbers<[1], [0], [0], [1], [0, 0, 1, 1], [], []>} : vector<2x32xf32>, vector<32x4xf32>, vector<2x4xf32> -> vector<2x4xf32>
    %c0_442 = arith.constant 0 : index
    %c0_443 = arith.constant 0 : index
    %884 = vector.load %arg12[%c0_442, %c0_443] : memref<1x4xf32, #tpu.memory_space<vmem>>, vector<1x4xf32>
    %885 = vector.broadcast %884 : vector<1x4xf32> to vector<2x4xf32>
    %886 = arith.addf %883, %885 : vector<2x4xf32>
    %c0_444 = arith.constant 0 : index
    %c0_445 = arith.constant 0 : index
    %887 = vector.load %arg15[%c0_444, %c0_445] : memref<2x4xf32, #tpu.memory_space<vmem>>, vector<2x4xf32>
    tpu.vector_store %arg15[%c0_444, %c0_445], %886 {strides = array<i32>} : memref<2x4xf32, #tpu.memory_space<vmem>>, vector<2x4xf32>,
    %cst_446 = arith.constant 1.000000e+00 : f32
    %888 = vector.broadcast %cst_446 : f32 to vector<2x4xf32>
    %889 = arith.cmpf ogt, %886, %888 : vector<2x4xf32>
    %890 = arith.extui %889 : vector<2x4xi1> to vector<2x4xi32>
    %891 = arith.sitofp %890 : vector<2x4xi32> to vector<2x4xf32>
    %c0_447 = arith.constant 0 : index
    %c0_448 = arith.constant 0 : index
    %892 = vector.load %arg14[%c0_447, %c0_448] : memref<2x4xf32, #tpu.memory_space<vmem>>, vector<2x4xf32>
    tpu.vector_store %arg14[%c0_447, %c0_448], %891 {strides = array<i32>} : memref<2x4xf32, #tpu.memory_space<vmem>>, vector<2x4xf32>,
    return
  }
}

</mosaic_0001>

<llo_original>
// kernel: snn_bilstm_forward.1
$region0: #{snn_bilstm_forward.1}
  #allocation0 [shape = 'u32[]', space=smem, size = 0x4, offset = 0x4, fixed_abs, tag = 'smem constant byte address 0x4 - core index']
  #allocation1 [shape = 'u32[144,128]{1,0:T(1,128)}', space=vmem, size = 0x12000, scoped, tag = 'internal scratch']
  #allocation2 [shape = 'f32[2,8,32]{2,1,0:T(8,128)}', space=vmem, size = 0x2000, scoped, tag = 'scratch operand']
  #allocation3 [shape = 'f32[2,8,32]{2,1,0:T(8,128)}', space=vmem, size = 0x2000, scoped, tag = 'scratch operand']
  #allocation4 [shape = 'f32[2,8,32]{2,1,0:T(8,128)}', space=vmem, size = 0x2000, scoped, tag = 'scratch operand']
  #allocation5 [shape = 'f32[2,8,32]{2,1,0:T(8,128)}', space=vmem, size = 0x2000, scoped, tag = 'scratch operand']
  %s0 = inlined_call_operand.hbm [shape: f32[2,8,16], index: 0, kind: input, shape index: {}]
  %s1 = inlined_call_operand.vmem [shape: f32[48,128], index: 1, kind: input, shape index: {}]
  %s2 = inlined_call_operand.vmem [shape: f32[1,128], index: 2, kind: input, shape index: {}]
  %s3 = inlined_call_operand.hbm [shape: f32[48,128], index: 3, kind: input, shape index: {}]
  %s4 = inlined_call_operand.vmem [shape: f32[1,128], index: 4, kind: input, shape index: {}]
  %s5 = inlined_call_operand.vmem [shape: f32[96,128], index: 5, kind: input, shape index: {}]
  %s6 = inlined_call_operand.vmem [shape: f32[1,128], index: 6, kind: input, shape index: {}]
  %s7 = inlined_call_operand.hbm [shape: f32[96,128], index: 7, kind: input, shape index: {}]
  %s8 = inlined_call_operand.vmem [shape: f32[1,128], index: 8, kind: input, shape index: {}]
  %s9 = inlined_call_operand.vmem [shape: f32[64,32], index: 9, kind: input, shape index: {}]
  %s10 = inlined_call_operand.hbm [shape: f32[1,32], index: 10, kind: input, shape index: {}]
  %s11 = inlined_call_operand.vmem [shape: f32[32,4], index: 11, kind: input, shape index: {}]
  %s12 = inlined_call_operand.hbm [shape: f32[1,4], index: 12, kind: input, shape index: {}]
  %s13 = inlined_call_operand.hbm [shape: f32[2,8,32], index: 13, kind: output, shape index: {0}]
  %s14 = inlined_call_operand.hbm [shape: f32[2,4], index: 14, kind: output, shape index: {1}]
  %s15 = inlined_call_operand.hbm [shape: f32[2,4], index: 15, kind: output, shape index: {2}]
  %16 = xla_tuple %s13, %s14, %s15
  %s17 = sld [smem:[#allocation0]]
  $region98: #{snn_bilstm_forward.1} parent=0
    _
  %s19 = ssub.s32 1, %s17
  %s20 = scalar_select 0, %s19, %s17
  $region1: #{snn_bilstm_forward.1} parent=0
    #allocation6 [shape = 'u8[8192]{0}', space=vmem, size = 0x2000, scoped, tag = 'input window, operand 0, single buffered']
    #allocation7 [shape = 's32[1]{0}', space=sflag, size = 0x4, scoped, tag = 'scoped memory for snn_bilstm_forward.1']
    #allocation8 [shape = 's32[1]{0}', space=sflag, size = 0x4, scoped, tag = 'scoped memory for snn_bilstm_forward.1']
    #allocation9 [shape = 'u8[24576]{0}', space=vmem, size = 0x6000, scoped, tag = 'input window, operand 3, single buffered']
    #allocation10 [shape = 's32[1]{0}', space=sflag, size = 0x4, scoped, tag = 'scoped memory for snn_bilstm_forward.1']
    #allocation11 [shape = 'u8[49152]{0}', space=vmem, size = 0xc000, scoped, tag = 'input window, operand 7, single buffered']
    #allocation12 [shape = 'u8[512]{0}', space=vmem, size = 0x400, scoped, tag = 'input window, operand 10, single buffered']
    #allocation13 [shape = 's32[1]{0}', space=sflag, size = 0x4, scoped, tag = 'scoped memory for snn_bilstm_forward.1']
    #allocation14 [shape = 'u8[512]{0}', space=vmem, size = 0x400, scoped, tag = 'input window, operand 12, single buffered']
    #allocation15 [shape = 'u8[8192]{0}', space=vmem, size = 0x2000, scoped, tag = 'output window, operand 0, single buffered']
    #allocation16 [shape = 'u8[1024]{0}', space=vmem, size = 0x400, scoped, tag = 'output window, operand 1, single buffered']
    #allocation17 [shape = 's32[1]{0}', space=sflag, size = 0x4, scoped, tag = 'scoped memory for snn_bilstm_forward.1']
    #allocation18 [shape = 'u8[1024]{0}', space=vmem, size = 0x400, scoped, tag = 'output window, operand 2, single buffered']
    %21 = vsyncpa [#allocation7], 0
    %22 = vsyncpa [#allocation10], 0
    %23 = vsyncpa [#allocation13], 0
    %24 = vsyncpa [#allocation8], 0
    %25 = vsyncpa [#allocation17], 0
    // Predicated region
    $region2: #{snn_bilstm_forward.1} parent=1 // pred_check
      _
    $region3: #{snn_bilstm_forward.1} parent=1 // pred_check_branch
      %27 = sbr.rel (0) target = $region5
    $region4: #{snn_bilstm_forward.1} parent=1 // pred_region
      %s29 = ssub.s32 256, 256
      %30 = vsyncadd [#allocation7], %s29
      %s31 = sshll.u32 [#allocation6], 4
      %s32 = int_to_ptr.vmem [resolvable:$true] %s31
      %37 = dma.hbm_to_vmem [thread:$0]  %s0, 256, %s32, [#allocation7], 128, 128, 8
    $region5: #{snn_bilstm_forward.1} parent=1 // pred_fallthru
      _
    // Predicated region
    $region6: #{snn_bilstm_forward.1} parent=1 // pred_check
      _
    $region7: #{snn_bilstm_forward.1} parent=1 // pred_check_branch
      %39 = sbr.rel (0) target = $region9
    $region8: #{snn_bilstm_forward.1} parent=1 // pred_region
      _
    $region9: #{snn_bilstm_forward.1} parent=1 // pred_fallthru
      _
    // Predicated region
    $region10: #{snn_bilstm_forward.1} parent=1 // pred_check
      _
    $region11: #{snn_bilstm_forward.1} parent=1 // pred_check_branch
      %41 = sbr.rel (0) target = $region13
    $region12: #{snn_bilstm_forward.1} parent=1 // pred_region
      _
    $region13: #{snn_bilstm_forward.1} parent=1 // pred_fallthru
      _
    // Predicated region
    $region14: #{snn_bilstm_forward.1} parent=1 // pred_check
      _
    $region15: #{snn_bilstm_forward.1} parent=1 // pred_check_branch
      %43 = sbr.rel (0) target = $region17
    $region16: #{snn_bilstm_forward.1} parent=1 // pred_region
      %s45 = ssub.s32 768, 768
      %46 = vsyncadd [#allocation10], %s45
      %s47 = sshll.u32 [#allocation9], 4
      %s48 = int_to_ptr.vmem [resolvable:$true] %s47
      %53 = dma.hbm_to_vmem [thread:$0]  %s3, 768, %s48, [#allocation10], 128, 128, 8
    $region17: #{snn_bilstm_forward.1} parent=1 // pred_fallthru
      _
    // Predicated region
    $region18: #{snn_bilstm_forward.1} parent=1 // pred_check
      _
    $region19: #{snn_bilstm_forward.1} parent=1 // pred_check_branch
      %55 = sbr.rel (0) target = $region21
    $region20: #{snn_bilstm_forward.1} parent=1 // pred_region
      _
    $region21: #{snn_bilstm_forward.1} parent=1 // pred_fallthru
      _
    // Predicated region
    $region22: #{snn_bilstm_forward.1} parent=1 // pred_check
      _
    $region23: #{snn_bilstm_forward.1} parent=1 // pred_check_branch
      %57 = sbr.rel (0) target = $region25
    $region24: #{snn_bilstm_forward.1} parent=1 // pred_region
      _
    $region25: #{snn_bilstm_forward.1} parent=1 // pred_fallthru
      _
    // Predicated region
    $region26: #{snn_bilstm_forward.1} parent=1 // pred_check
      _
    $region27: #{snn_bilstm_forward.1} parent=1 // pred_check_branch
      %59 = sbr.rel (0) target = $region29
    $region28: #{snn_bilstm_forward.1} parent=1 // pred_region
      _
    $region29: #{snn_bilstm_forward.1} parent=1 // pred_fallthru
      _
    // Predicated region
    $region30: #{snn_bilstm_forward.1} parent=1 // pred_check
      _
    $region31: #{snn_bilstm_forward.1} parent=1 // pred_check_branch
      %61 = sbr.rel (0) target = $region33
    $region32: #{snn_bilstm_forward.1} parent=1 // pred_region
      %s63 = ssub.s32 1536, 1536
      %64 = vsyncadd [#allocation10], %s63
      %s65 = sshll.u32 [#allocation11], 4
      %s66 = int_to_ptr.vmem [resolvable:$true] %s65
      %71 = dma.hbm_to_vmem [thread:$0]  %s7, 1536, %s66, [#allocation10], 128, 128, 8
    $region33: #{snn_bilstm_forward.1} parent=1 // pred_fallthru
      _
    // Predicated region
    $region34: #{snn_bilstm_forward.1} parent=1 // pred_check
      _
    $region35: #{snn_bilstm_forward.1} parent=1 // pred_check_branch
      %73 = sbr.rel (0) target = $region37
    $region36: #{snn_bilstm_forward.1} parent=1 // pred_region
      _
    $region37: #{snn_bilstm_forward.1} parent=1 // pred_fallthru
      _
    // Predicated region
    $region38: #{snn_bilstm_forward.1} parent=1 // pred_check
      _
    $region39: #{snn_bilstm_forward.1} parent=1 // pred_check_branch
      %75 = sbr.rel (0) target = $region41
    $region40: #{snn_bilstm_forward.1} parent=1 // pred_region
      _
    $region41: #{snn_bilstm_forward.1} parent=1 // pred_fallthru
      _
    // Predicated region
    $region42: #{snn_bilstm_forward.1} parent=1 // pred_check
      _
    $region43: #{snn_bilstm_forward.1} parent=1 // pred_check_branch
      %77 = sbr.rel (0) target = $region45
    $region44: #{snn_bilstm_forward.1} parent=1 // pred_region
      %s79 = ssub.s32 16, 16
      %80 = vsyncadd [#allocation13], %s79
      %s82 = sshll.u32 [#allocation12], 4
      %s83 = int_to_ptr.vmem [resolvable:$true] %s82
      %85 = dma.hbm_to_vmem [thread:$0]  %s10, 16, %s83, [#allocation13]
    $region45: #{snn_bilstm_forward.1} parent=1 // pred_fallthru
      _
    // Predicated region
    $region46: #{snn_bilstm_forward.1} parent=1 // pred_check
      _
    $region47: #{snn_bilstm_forward.1} parent=1 // pred_check_branch
      %87 = sbr.rel (0) target = $region49
    $region48: #{snn_bilstm_forward.1} parent=1 // pred_region
      _
    $region49: #{snn_bilstm_forward.1} parent=1 // pred_fallthru
      _
    // Predicated region
    $region50: #{snn_bilstm_forward.1} parent=1 // pred_check
      _
    $region51: #{snn_bilstm_forward.1} parent=1 // pred_check_branch
      %89 = sbr.rel (0) target = $region53
    $region52: #{snn_bilstm_forward.1} parent=1 // pred_region
      %s91 = ssub.s32 16, 16
      %92 = vsyncadd [#allocation13], %s91
      %s94 = sshll.u32 [#allocation14], 4
      %s95 = int_to_ptr.vmem [resolvable:$true] %s94
      %97 = dma.hbm_to_vmem [thread:$0]  %s12, 16, %s95, [#allocation13]
    $region53: #{snn_bilstm_forward.1} parent=1 // pred_fallthru
      _
    // Predicated region
    $region54: #{snn_bilstm_forward.1} parent=1 // pred_check
      _
    $region55: #{snn_bilstm_forward.1} parent=1 // pred_check_branch
      %99 = sbr.rel (0) target = $region57
    $region56: #{snn_bilstm_forward.1} parent=1 // pred_region
      %100 = dma.done [#allocation7], 256
    $region57: #{snn_bilstm_forward.1} parent=1 // pred_fallthru
      _
    // Predicated region
    $region58: #{snn_bilstm_forward.1} parent=1 // pred_check
      _
    $region59: #{snn_bilstm_forward.1} parent=1 // pred_check_branch
      %102 = sbr.rel (0) target = $region61
    $region60: #{snn_bilstm_forward.1} parent=1 // pred_region
      %103 = dma.done [#allocation10], 768
    $region61: #{snn_bilstm_forward.1} parent=1 // pred_fallthru
      _
    // Predicated region
    $region62: #{snn_bilstm_forward.1} parent=1 // pred_check
      _
    $region63: #{snn_bilstm_forward.1} parent=1 // pred_check_branch
      %105 = sbr.rel (0) target = $region65
    $region64: #{snn_bilstm_forward.1} parent=1 // pred_region
      %106 = dma.done [#allocation10], 1536
    $region65: #{snn_bilstm_forward.1} parent=1 // pred_fallthru
      _
    // Predicated region
    $region66: #{snn_bilstm_forward.1} parent=1 // pred_check
      _
    $region67: #{snn_bilstm_forward.1} parent=1 // pred_check_branch
      %108 = sbr.rel (0) target = $region69
    $region68: #{snn_bilstm_forward.1} parent=1 // pred_region
      %109 = dma.done [#allocation13], 16
    $region69: #{snn_bilstm_forward.1} parent=1 // pred_fallthru
      _
    // Predicated region
    $region70: #{snn_bilstm_forward.1} parent=1 // pred_check
      _
    $region71: #{snn_bilstm_forward.1} parent=1 // pred_check_branch
      %111 = sbr.rel (0) target = $region73
    $region72: #{snn_bilstm_forward.1} parent=1 // pred_region
      %112 = dma.done [#allocation13], 16
    $region73: #{snn_bilstm_forward.1} parent=1 // pred_fallthru
      _
    %v113 = vld [vmem:[#allocation6] sm:$0x1]
    %v114 = vld [vmem:[#allocation6 + $0x8] sm:$0x1]
    %v117 = vrot.slane %v114, 7
    %vm118 = vcmask 1041409
    %v119 = vsel %vm118, %v117, %v113
    %vm121 = vcmask 130048
    %v122 = vsel %vm121, %v119, 0.0
    %v123 = vld [vmem:[#allocation6 + $0x7] sm:$0x1]
    %v124 = vld [vmem:[#allocation6 + $0xf] sm:$0x1]
    %v127 = vrot.slane %v124, 7
    %v128 = vsel %vm118, %v127, %v123
    %v130 = vsel %vm121, %v128, 0.0
    %v131 = vld [vmem:[%s1] sm:$0xff]
    %v132 = vld [vmem:[%s1 + $0x8] sm:$0xff]
    %v133 = vld [vmem:[%s1 + $0x10] sm:$0xff]
    %v134 = vld [vmem:[%s1 + $0x18] sm:$0xff]
    %v135 = vld [vmem:[%s1 + $0x20] sm:$0xff]
    %v136 = vld [vmem:[%s1 + $0x28] sm:$0xff]
    %v137 = vld [vmem:[%s2] sm:$0x1]
    %v139 = vlaneseq
    %v140 = vshrl.u32 %v139, 7
    %v141 = vsub.s32 0, %v140
    %v142 = vrot.slane %v137, %v141
    %vm144 = vcmask 392192
    %v146 = vsel %vm144, %v122, 0
    %148 = vmatprep.subr.mxu0 0.0
    %149 = vmatpush1.msra.mxu0 0.0
    %150 = vmatprep.subr.mxu0 0.0
    %151 = vmatpush1.msra.mxu0 0.0
    %152 = vmatprep.subr.mxu0 0.0
    %153 = vmatpush1.msra.mxu0 0.0
    %154 = vmatprep.subr.mxu0 0.0
    %155 = vmatpush1.msra.mxu0 0.0
    %156 = vmatprep.subr.mxu0 0.0
    %157 = vmatpush1.msra.mxu0 0.0
    %158 = vmatprep.subr.mxu0 0.0
    %159 = vmatpush1.msra.mxu0 0.0
    %160 = vmatprep.subr.mxu0 0.0
    %161 = vmatpush1.msra.mxu0 0.0
    %162 = vmatprep.subr.mxu0 0.0
    %163 = vmatpush1.msra.mxu0 0.0
    %164 = vmatprep.subr.mxu0 0.0
    %165 = vmatpush1.msra.mxu0 0.0
    %166 = vmatprep.subr.mxu0 0.0
    %167 = vmatpush1.msra.mxu0 0.0
    %168 = vmatprep.subr.mxu0 0.0
    %169 = vmatpush1.msra.mxu0 %v136
    %170 = vmatprep.subr.mxu0 0.0
    %171 = vmatpush1.msra.mxu0 %v135
    %172 = vmatprep.subr.mxu0 0.0
    %173 = vmatpush1.msra.mxu0 %v134
    %174 = vmatprep.subr.mxu0 0.0
    %175 = vmatpush1.msra.mxu0 %v133
    %176 = vmatprep.subr.mxu0 0.0
    %177 = vmatpush1.msra.mxu0 %v132
    %178 = vmatprep.subr.mxu0 0.0
    %179 = vmatpush1.msra.mxu0 %v131
    %180 = vmatprep.subr.mxu0 0.0
    %181 = vmatpush2.msra.mxu0 0.0
    %182 = vmatprep.subr.mxu0 0.0
    %183 = vmatpush2.msra.mxu0 0.0
    %184 = vmatprep.subr.mxu0 0.0
    %185 = vmatpush2.msra.mxu0 0.0
    %186 = vmatprep.subr.mxu0 0.0
    %187 = vmatpush2.msra.mxu0 0.0
    %188 = vmatprep.subr.mxu0 0.0
    %189 = vmatpush2.msra.mxu0 0.0
    %190 = vmatprep.subr.mxu0 0.0
    %191 = vmatpush2.msra.mxu0 0.0
    %192 = vmatprep.subr.mxu0 0.0
    %193 = vmatpush2.msra.mxu0 0.0
    %194 = vmatprep.subr.mxu0 0.0
    %195 = vmatpush2.msra.mxu0 0.0
    %196 = vmatprep.subr.mxu0 0.0
    %197 = vmatpush2.msra.mxu0 0.0
    %198 = vmatprep.subr.mxu0 0.0
    %199 = vmatpush2.msra.mxu0 0.0
    %200 = vmatprep.subr.mxu0 0.0
    %201 = vmatpush2.msra.mxu0 0.0
    %202 = vmatprep.subr.mxu0 0.0
    %203 = vmatpush2.msra.mxu0 0.0
    %204 = vmatprep.subr.mxu0 0.0
    %205 = vmatpush2.msra.mxu0 0.0
    %206 = vmatprep.subr.mxu0 0.0
    %207 = vmatpush2.msra.mxu0 0.0
    %208 = vmatprep.subr.mxu0 0.0
    %209 = vmatpush2.msra.mxu0 0.0
    %210 = vmatprep.subr.mxu0 0.0
    %211 = vmatpush2.msra.mxu0 0.0
    %212 = vmatprep.mubr.f32.mxu0 0.0
    %213 = vmatmul.mubr.f32.gmra.mxu0 %v146
    %v214 = vpop.f32.mrf.mxu0
    %v215 = vadd.f32 %v142, %v214
    %v216 = vpop.f32.mrf.mxu0
    %217 = vdwg.mxu0
    %v218 = vxor.u32 %v215, 2147483648
    %v219 = vmul.f32 %v218, 1.442695
    %v220 = vpow.pop %v219
    %v221 = vadd.f32 %v220, 1.0
    %v222 = vrcp.pop %v221
    %v223 = vmul.f32 1.0, %v222
    %v224 = vtanh.pop %v215
    %v225 = vmul.f32 %v223, 0.0
    %227 = vrot.lane.b32.xlu0 %v224, 64
    %v228 = vpop.permute.xlu0 %227
    %v230 = vmul.f32 %v223, %v228
    %232 = vrot.lane.b32.xlu0 %v230, 32
    %v233 = vpop.permute.xlu0 %232
    %v235 = vadd.f32 %v225, %v233
    %v236 = vtanh.pop %v235
    %238 = vrot.lane.b32.xlu0 %v236, 64
    %v239 = vpop.permute.xlu0 %238
    %v241 = vmul.f32 %v223, %v239
    %v242 = vld [vmem:[#allocation9] sm:$0xff]
    %v243 = vld [vmem:[#allocation9 + $0x8] sm:$0xff]
    %v244 = vld [vmem:[#allocation9 + $0x10] sm:$0xff]
    %v245 = vld [vmem:[#allocation9 + $0x18] sm:$0xff]
    %v246 = vld [vmem:[#allocation9 + $0x20] sm:$0xff]
    %v247 = vld [vmem:[#allocation9 + $0x28] sm:$0xff]
    %v248 = vld [vmem:[%s4] sm:$0x1]
    %v250 = vlaneseq
    %v251 = vshrl.u32 %v250, 7
    %v252 = vsub.s32 0, %v251
    %v253 = vrot.slane %v248, %v252
    %v256 = vsel %vm144, %v130, 0
    %258 = vmatprep.subr.mxu0 0.0
    %259 = vmatpush1.msra.mxu0 0.0
    %260 = vmatprep.subr.mxu0 0.0
    %261 = vmatpush1.msra.mxu0 0.0
    %262 = vmatprep.subr.mxu0 0.0
    %263 = vmatpush1.msra.mxu0 0.0
    %264 = vmatprep.subr.mxu0 0.0
    %265 = vmatpush1.msra.mxu0 0.0
    %266 = vmatprep.subr.mxu0 0.0
    %267 = vmatpush1.msra.mxu0 0.0
    %268 = vmatprep.subr.mxu0 0.0
    %269 = vmatpush1.msra.mxu0 0.0
    %270 = vmatprep.subr.mxu0 0.0
    %271 = vmatpush1.msra.mxu0 0.0
    %272 = vmatprep.subr.mxu0 0.0
    %273 = vmatpush1.msra.mxu0 0.0
    %274 = vmatprep.subr.mxu0 0.0
    %275 = vmatpush1.msra.mxu0 0.0
    %276 = vmatprep.subr.mxu0 0.0
    %277 = vmatpush1.msra.mxu0 0.0
    %278 = vmatprep.subr.mxu0 0.0
    %279 = vmatpush1.msra.mxu0 %v247
    %280 = vmatprep.subr.mxu0 0.0
    %281 = vmatpush1.msra.mxu0 %v246
    %282 = vmatprep.subr.mxu0 0.0
    %283 = vmatpush1.msra.mxu0 %v245
    %284 = vmatprep.subr.mxu0 0.0
    %285 = vmatpush1.msra.mxu0 %v244
    %286 = vmatprep.subr.mxu0 0.0
    %287 = vmatpush1.msra.mxu0 %v243
    %288 = vmatprep.subr.mxu0 0.0
    %289 = vmatpush1.msra.mxu0 %v242
    %290 = vmatprep.subr.mxu0 0.0
    %291 = vmatpush2.msra.mxu0 0.0
    %292 = vmatprep.subr.mxu0 0.0
    %293 = vmatpush2.msra.mxu0 0.0
    %294 = vmatprep.subr.mxu0 0.0
    %295 = vmatpush2.msra.mxu0 0.0
    %296 = vmatprep.subr.mxu0 0.0
    %297 = vmatpush2.msra.mxu0 0.0
    %298 = vmatprep.subr.mxu0 0.0
    %299 = vmatpush2.msra.mxu0 0.0
    %300 = vmatprep.subr.mxu0 0.0
    %301 = vmatpush2.msra.mxu0 0.0
    %302 = vmatprep.subr.mxu0 0.0
    %303 = vmatpush2.msra.mxu0 0.0
    %304 = vmatprep.subr.mxu0 0.0
    %305 = vmatpush2.msra.mxu0 0.0
    %306 = vmatprep.subr.mxu0 0.0
    %307 = vmatpush2.msra.mxu0 0.0
    %308 = vmatprep.subr.mxu0 0.0
    %309 = vmatpush2.msra.mxu0 0.0
    %310 = vmatprep.subr.mxu0 0.0
    %311 = vmatpush2.msra.mxu0 0.0
    %312 = vmatprep.subr.mxu0 0.0
    %313 = vmatpush2.msra.mxu0 0.0
    %314 = vmatprep.subr.mxu0 0.0
    %315 = vmatpush2.msra.mxu0 0.0
    %316 = vmatprep.subr.mxu0 0.0
    %317 = vmatpush2.msra.mxu0 0.0
    %318 = vmatprep.subr.mxu0 0.0
    %319 = vmatpush2.msra.mxu0 0.0
    %320 = vmatprep.subr.mxu0 0.0
    %321 = vmatpush2.msra.mxu0 0.0
    %322 = vmatprep.mubr.f32.mxu0 0.0
    %323 = vmatmul.mubr.f32.gmra.mxu0 %v256
    %v324 = vpop.f32.mrf.mxu0
    %v325 = vadd.f32 %v253, %v324
    %v326 = vpop.f32.mrf.mxu0
    %327 = vdwg.mxu0
    %v328 = vxor.u32 %v325, 2147483648
    %v329 = vmul.f32 %v328, 1.442695
    %v330 = vpow.pop %v329
    %v331 = vadd.f32 %v330, 1.0
    %v332 = vrcp.pop %v331
    %v333 = vmul.f32 1.0, %v332
    %v334 = vtanh.pop %v325
    %v335 = vmul.f32 %v333, 0.0
    %337 = vrot.lane.b32.xlu0 %v334, 64
    %v338 = vpop.permute.xlu0 %337
    %v340 = vmul.f32 %v333, %v338
    %342 = vrot.lane.b32.xlu0 %v340, 32
    %v343 = vpop.permute.xlu0 %342
    %v345 = vadd.f32 %v335, %v343
    %v346 = vtanh.pop %v345
    %348 = vrot.lane.b32.xlu0 %v346, 64
    %v349 = vpop.permute.xlu0 %348
    %v351 = vmul.f32 %v333, %v349
    %v354 = vunpack.c.l.s4 1966171168
    %v355 = vunpack.c.0.s8 %v354
    %v356 = vlaneseq
    %v357 = vshrl.u32 %v356, 7
    %v358 = vsub.s32 %v355, %v357
    %v359 = vrot.slane %v241, %v358
    %v360 = vcombine.high %v359, %v359
    %v362 = vunpack.c.l.s4 1966171168
    %v363 = vunpack.c.0.s8 %v362
    %v364 = vlaneseq
    %v365 = vshrl.u32 %v364, 7
    %v366 = vsub.s32 %v363, %v365
    %v367 = vrot.slane %v359, %v366
    %v369 = vunpack.c.l.s4 1966171168
    %v370 = vunpack.c.0.s8 %v369
    %v371 = vlaneseq
    %v372 = vshrl.u32 %v371, 7
    %v373 = vsub.s32 %v370, %v372
    %v374 = vrot.slane %v360, %v373
    %v375 = vlaneseq
    %v376 = vshrl.u32 %v375, 7
    %v377 = vsub.s32 0, %v376
    %v378 = vrot.slane %v367, %v377
    %v379 = vlaneseq
    %v380 = vshrl.u32 %v379, 7
    %v381 = vsub.s32 0, %v380
    %v382 = vrot.slane %v374, %v381
    %383 = vrot.lane.b32.xlu0 %v378, 32
    %v384 = vpop.permute.xlu0 %383
    %385 = vrot.lane.b32.xlu0 %v382, 32
    %v386 = vpop.permute.xlu0 %385
    %vm389 = vcmask 253952
    %390 = vst.msk [vmem:[#allocation2] sm:$0x1] %vm389, %v384
    %391 = vst.msk [vmem:[#allocation2 + $0x8] sm:$0x1] %vm389, %v386
    %v394 = vunpack.c.l.s4 1966171168
    %v395 = vunpack.c.0.s8 %v394
    %v396 = vlaneseq
    %v397 = vshrl.u32 %v396, 7
    %v398 = vsub.s32 %v395, %v397
    %v399 = vrot.slane %v351, %v398
    %v400 = vcombine.high %v399, %v399
    %v402 = vunpack.c.l.s4 1966171168
    %v403 = vunpack.c.0.s8 %v402
    %v404 = vlaneseq
    %v405 = vshrl.u32 %v404, 7
    %v406 = vsub.s32 %v403, %v405
    %v407 = vrot.slane %v399, %v406
    %v409 = vunpack.c.l.s4 1966171168
    %v410 = vunpack.c.0.s8 %v409
    %v411 = vlaneseq
    %v412 = vshrl.u32 %v411, 7
    %v413 = vsub.s32 %v410, %v412
    %v414 = vrot.slane %v400, %v413
    %v415 = vlaneseq
    %v416 = vshrl.u32 %v415, 7
    %v417 = vsub.s32 0, %v416
    %v418 = vrot.slane %v407, %v417
    %v419 = vlaneseq
    %v420 = vshrl.u32 %v419, 7
    %v421 = vsub.s32 0, %v420
    %v422 = vrot.slane %v414, %v421
    %423 = vrot.lane.b32.xlu0 %v418, 32
    %v424 = vpop.permute.xlu0 %423
    %425 = vrot.lane.b32.xlu0 %v422, 32
    %v426 = vpop.permute.xlu0 %425
    %429 = vst.msk [vmem:[#allocation3 + $0x7] sm:$0x1] %vm389, %v424
    %430 = vst.msk [vmem:[#allocation3 + $0xf] sm:$0x1] %vm389, %v426
    %v431 = vld [vmem:[#allocation6 + $0x1] sm:$0x1]
    %v432 = vld [vmem:[#allocation6 + $0x9] sm:$0x1]
    %v435 = vrot.slane %v432, 7
    %v436 = vsel %vm118, %v435, %v431
    %438 = vrot.lane.b32.xlu0 %v241, 48
    %v439 = vpop.permute.xlu0 %438
    %v441 = vsel %vm121, %v436, %v439
    %v442 = vld [vmem:[#allocation6 + $0x6] sm:$0x1]
    %v443 = vld [vmem:[#allocation6 + $0xe] sm:$0x1]
    %v446 = vrot.slane %v443, 7
    %v447 = vsel %vm118, %v446, %v442
    %449 = vrot.lane.b32.xlu0 %v351, 48
    %v450 = vpop.permute.xlu0 %449
    %v452 = vsel %vm121, %v447, %v450
    %v453 = vld [vmem:[%s1] sm:$0xff]
    %v454 = vld [vmem:[%s1 + $0x8] sm:$0xff]
    %v455 = vld [vmem:[%s1 + $0x10] sm:$0xff]
    %v456 = vld [vmem:[%s1 + $0x18] sm:$0xff]
    %v457 = vld [vmem:[%s1 + $0x20] sm:$0xff]
    %v458 = vld [vmem:[%s1 + $0x28] sm:$0xff]
    %v459 = vld [vmem:[%s2] sm:$0x1]
    %v461 = vlaneseq
    %v462 = vshrl.u32 %v461, 7
    %v463 = vsub.s32 0, %v462
    %v464 = vrot.slane %v459, %v463
    %v467 = vsel %vm144, %v441, 0
    %469 = vmatprep.subr.mxu0 0.0
    %470 = vmatpush1.msra.mxu0 0.0
    %471 = vmatprep.subr.mxu0 0.0
    %472 = vmatpush1.msra.mxu0 0.0
    %473 = vmatprep.subr.mxu0 0.0
    %474 = vmatpush1.msra.mxu0 0.0
    %475 = vmatprep.subr.mxu0 0.0
    %476 = vmatpush1.msra.mxu0 0.0
    %477 = vmatprep.subr.mxu0 0.0
    %478 = vmatpush1.msra.mxu0 0.0
    %479 = vmatprep.subr.mxu0 0.0
    %480 = vmatpush1.msra.mxu0 0.0
    %481 = vmatprep.subr.mxu0 0.0
    %482 = vmatpush1.msra.mxu0 0.0
    %483 = vmatprep.subr.mxu0 0.0
    %484 = vmatpush1.msra.mxu0 0.0
    %485 = vmatprep.subr.mxu0 0.0
    %486 = vmatpush1.msra.mxu0 0.0
    %487 = vmatprep.subr.mxu0 0.0
    %488 = vmatpush1.msra.mxu0 0.0
    %489 = vmatprep.subr.mxu0 0.0
    %490 = vmatpush1.msra.mxu0 %v458
    %491 = vmatprep.subr.mxu0 0.0
    %492 = vmatpush1.msra.mxu0 %v457
    %493 = vmatprep.subr.mxu0 0.0
    %494 = vmatpush1.msra.mxu0 %v456
    %495 = vmatprep.subr.mxu0 0.0
    %496 = vmatpush1.msra.mxu0 %v455
    %497 = vmatprep.subr.mxu0 0.0
    %498 = vmatpush1.msra.mxu0 %v454
    %499 = vmatprep.subr.mxu0 0.0
    %500 = vmatpush1.msra.mxu0 %v453
    %501 = vmatprep.subr.mxu0 0.0
    %502 = vmatpush2.msra.mxu0 0.0
    %503 = vmatprep.subr.mxu0 0.0
    %504 = vmatpush2.msra.mxu0 0.0
    %505 = vmatprep.subr.mxu0 0.0
    %506 = vmatpush2.msra.mxu0 0.0
    %507 = vmatprep.subr.mxu0 0.0
    %508 = vmatpush2.msra.mxu0 0.0
    %509 = vmatprep.subr.mxu0 0.0
    %510 = vmatpush2.msra.mxu0 0.0
    %511 = vmatprep.subr.mxu0 0.0
    %512 = vmatpush2.msra.mxu0 0.0
    %513 = vmatprep.subr.mxu0 0.0
    %514 = vmatpush2.msra.mxu0 0.0
    %515 = vmatprep.subr.mxu0 0.0
    %516 = vmatpush2.msra.mxu0 0.0
    %517 = vmatprep.subr.mxu0 0.0
    %518 = vmatpush2.msra.mxu0 0.0
    %519 = vmatprep.subr.mxu0 0.0
    %520 = vmatpush2.msra.mxu0 0.0
    %521 = vmatprep.subr.mxu0 0.0
    %522 = vmatpush2.msra.mxu0 0.0
    %523 = vmatprep.subr.mxu0 0.0
    %524 = vmatpush2.msra.mxu0 0.0
    %525 = vmatprep.subr.mxu0 0.0
    %526 = vmatpush2.msra.mxu0 0.0
    %527 = vmatprep.subr.mxu0 0.0
    %528 = vmatpush2.msra.mxu0 0.0
    %529 = vmatprep.subr.mxu0 0.0
    %530 = vmatpush2.msra.mxu0 0.0
    %531 = vmatprep.subr.mxu0 0.0
    %532 = vmatpush2.msra.mxu0 0.0
    %533 = vmatprep.mubr.f32.mxu0 0.0
    %534 = vmatmul.mubr.f32.gmra.mxu0 %v467
    %v535 = vpop.f32.mrf.mxu0
    %v536 = vadd.f32 %v464, %v535
    %v537 = vpop.f32.mrf.mxu0
    %538 = vdwg.mxu0
    %v539 = vxor.u32 %v536, 2147483648
    %v540 = vmul.f32 %v539, 1.442695
    %v541 = vpow.pop %v540
    %v542 = vadd.f32 %v541, 1.0
    %v543 = vrcp.pop %v542
    %v544 = vmul.f32 1.0, %v543
    %v545 = vtanh.pop %v536
    %v546 = vmul.f32 %v544, %v235
    %548 = vrot.lane.b32.xlu0 %v545, 64
    %v549 = vpop.permute.xlu0 %548
    %v551 = vmul.f32 %v544, %v549
    %553 = vrot.lane.b32.xlu0 %v551, 32
    %v554 = vpop.permute.xlu0 %553
    %v556 = vadd.f32 %v546, %v554
    %v557 = vtanh.pop %v556
    %559 = vrot.lane.b32.xlu0 %v557, 64
    %v560 = vpop.permute.xlu0 %559
    %v562 = vmul.f32 %v544, %v560
    %v563 = vld [vmem:[#allocation9] sm:$0xff]
    %v564 = vld [vmem:[#allocation9 + $0x8] sm:$0xff]
    %v565 = vld [vmem:[#allocation9 + $0x10] sm:$0xff]
    %v566 = vld [vmem:[#allocation9 + $0x18] sm:$0xff]
    %v567 = vld [vmem:[#allocation9 + $0x20] sm:$0xff]
    %v568 = vld [vmem:[#allocation9 + $0x28] sm:$0xff]
    %v569 = vld [vmem:[%s4] sm:$0x1]
    %v571 = vlaneseq
    %v572 = vshrl.u32 %v571, 7
    %v573 = vsub.s32 0, %v572
    %v574 = vrot.slane %v569, %v573
    %v577 = vsel %vm144, %v452, 0
    %579 = vmatprep.subr.mxu0 0.0
    %580 = vmatpush1.msra.mxu0 0.0
    %581 = vmatprep.subr.mxu0 0.0
    %582 = vmatpush1.msra.mxu0 0.0
    %583 = vmatprep.subr.mxu0 0.0
    %584 = vmatpush1.msra.mxu0 0.0
    %585 = vmatprep.subr.mxu0 0.0
    %586 = vmatpush1.msra.mxu0 0.0
    %587 = vmatprep.subr.mxu0 0.0
    %588 = vmatpush1.msra.mxu0 0.0
    %589 = vmatprep.subr.mxu0 0.0
    %590 = vmatpush1.msra.mxu0 0.0
    %591 = vmatprep.subr.mxu0 0.0
    %592 = vmatpush1.msra.mxu0 0.0
    %593 = vmatprep.subr.mxu0 0.0
    %594 = vmatpush1.msra.mxu0 0.0
    %595 = vmatprep.subr.mxu0 0.0
    %596 = vmatpush1.msra.mxu0 0.0
    %597 = vmatprep.subr.mxu0 0.0
    %598 = vmatpush1.msra.mxu0 0.0
    %599 = vmatprep.subr.mxu0 0.0
    %600 = vmatpush1.msra.mxu0 %v568
    %601 = vmatprep.subr.mxu0 0.0
    %602 = vmatpush1.msra.mxu0 %v567
    %603 = vmatprep.subr.mxu0 0.0
    %604 = vmatpush1.msra.mxu0 %v566
    %605 = vmatprep.subr.mxu0 0.0
    %606 = vmatpush1.msra.mxu0 %v565
    %607 = vmatprep.subr.mxu0 0.0
    %608 = vmatpush1.msra.mxu0 %v564
    %609 = vmatprep.subr.mxu0 0.0
    %610 = vmatpush1.msra.mxu0 %v563
    %611 = vmatprep.subr.mxu0 0.0
    %612 = vmatpush2.msra.mxu0 0.0
    %613 = vmatprep.subr.mxu0 0.0
    %614 = vmatpush2.msra.mxu0 0.0
    %615 = vmatprep.subr.mxu0 0.0
    %616 = vmatpush2.msra.mxu0 0.0
    %617 = vmatprep.subr.mxu0 0.0
    %618 = vmatpush2.msra.mxu0 0.0
    %619 = vmatprep.subr.mxu0 0.0
    %620 = vmatpush2.msra.mxu0 0.0
    %621 = vmatprep.subr.mxu0 0.0
    %622 = vmatpush2.msra.mxu0 0.0
    %623 = vmatprep.subr.mxu0 0.0
    %624 = vmatpush2.msra.mxu0 0.0
    %625 = vmatprep.subr.mxu0 0.0
    %626 = vmatpush2.msra.mxu0 0.0
    %627 = vmatprep.subr.mxu0 0.0
    %628 = vmatpush2.msra.mxu0 0.0
    %629 = vmatprep.subr.mxu0 0.0
    %630 = vmatpush2.msra.mxu0 0.0
    %631 = vmatprep.subr.mxu0 0.0
    %632 = vmatpush2.msra.mxu0 0.0
    %633 = vmatprep.subr.mxu0 0.0
    %634 = vmatpush2.msra.mxu0 0.0
    %635 = vmatprep.subr.mxu0 0.0
    %636 = vmatpush2.msra.mxu0 0.0
    %637 = vmatprep.subr.mxu0 0.0
    %638 = vmatpush2.msra.mxu0 0.0
    %639 = vmatprep.subr.mxu0 0.0
    %640 = vmatpush2.msra.mxu0 0.0
    %641 = vmatprep.subr.mxu0 0.0
    %642 = vmatpush2.msra.mxu0 0.0
    %643 = vmatprep.mubr.f32.mxu0 0.0
    %644 = vmatmul.mubr.f32.gmra.mxu0 %v577
    %v645 = vpop.f32.mrf.mxu0
    %v646 = vadd.f32 %v574, %v645
    %v647 = vpop.f32.mrf.mxu0
    %648 = vdwg.mxu0
    %v649 = vxor.u32 %v646, 2147483648
    %v650 = vmul.f32 %v649, 1.442695
    %v651 = vpow.pop %v650
    %v652 = vadd.f32 %v651, 1.0
    %v653 = vrcp.pop %v652
    %v654 = vmul.f32 1.0, %v653
    %v655 = vtanh.pop %v646
    %v656 = vmul.f32 %v654, %v345
    %658 = vrot.lane.b32.xlu0 %v655, 64
    %v659 = vpop.permute.xlu0 %658
    %v661 = vmul.f32 %v654, %v659
    %663 = vrot.lane.b32.xlu0 %v661, 32
    %v664 = vpop.permute.xlu0 %663
    %v666 = vadd.f32 %v656, %v664
    %v667 = vtanh.pop %v666
    %669 = vrot.lane.b32.xlu0 %v667, 64
    %v670 = vpop.permute.xlu0 %669
    %v672 = vmul.f32 %v654, %v670
    %v675 = vunpack.c.l.s4 1966171168
    %v676 = vunpack.c.0.s8 %v675
    %v677 = vlaneseq
    %v678 = vshrl.u32 %v677, 7
    %v679 = vsub.s32 %v676, %v678
    %v680 = vrot.slane %v562, %v679
    %v681 = vcombine.high %v680, %v680
    %v683 = vunpack.c.l.s4 1966171168
    %v684 = vunpack.c.0.s8 %v683
    %v685 = vlaneseq
    %v686 = vshrl.u32 %v685, 7
    %v687 = vsub.s32 %v684, %v686
    %v688 = vrot.slane %v680, %v687
    %v690 = vunpack.c.l.s4 1966171168
    %v691 = vunpack.c.0.s8 %v690
    %v692 = vlaneseq
    %v693 = vshrl.u32 %v692, 7
    %v694 = vsub.s32 %v691, %v693
    %v695 = vrot.slane %v681, %v694
    %v696 = vlaneseq
    %v697 = vshrl.u32 %v696, 7
    %v698 = vsub.s32 0, %v697
    %v699 = vrot.slane %v688, %v698
    %v700 = vlaneseq
    %v701 = vshrl.u32 %v700, 7
    %v702 = vsub.s32 0, %v701
    %v703 = vrot.slane %v695, %v702
    %704 = vrot.lane.b32.xlu0 %v699, 32
    %v705 = vpop.permute.xlu0 %704
    %706 = vrot.lane.b32.xlu0 %v703, 32
    %v707 = vpop.permute.xlu0 %706
    %710 = vst.msk [vmem:[#allocation2 + $0x1] sm:$0x1] %vm389, %v705
    %711 = vst.msk [vmem:[#allocation2 + $0x9] sm:$0x1] %vm389, %v707
    %v714 = vunpack.c.l.s4 1966171168
    %v715 = vunpack.c.0.s8 %v714
    %v716 = vlaneseq
    %v717 = vshrl.u32 %v716, 7
    %v718 = vsub.s32 %v715, %v717
    %v719 = vrot.slane %v672, %v718
    %v720 = vcombine.high %v719, %v719
    %v722 = vunpack.c.l.s4 1966171168
    %v723 = vunpack.c.0.s8 %v722
    %v724 = vlaneseq
    %v725 = vshrl.u32 %v724, 7
    %v726 = vsub.s32 %v723, %v725
    %v727 = vrot.slane %v719, %v726
    %v729 = vunpack.c.l.s4 1966171168
    %v730 = vunpack.c.0.s8 %v729
    %v731 = vlaneseq
    %v732 = vshrl.u32 %v731, 7
    %v733 = vsub.s32 %v730, %v732
    %v734 = vrot.slane %v720, %v733
    %v735 = vlaneseq
    %v736 = vshrl.u32 %v735, 7
    %v737 = vsub.s32 0, %v736
    %v738 = vrot.slane %v727, %v737
    %v739 = vlaneseq
    %v740 = vshrl.u32 %v739, 7
    %v741 = vsub.s32 0, %v740
    %v742 = vrot.slane %v734, %v741
    %743 = vrot.lane.b32.xlu0 %v738, 32
    %v744 = vpop.permute.xlu0 %743
    %745 = vrot.lane.b32.xlu0 %v742, 32
    %v746 = vpop.permute.xlu0 %745
    %749 = vst.msk [vmem:[#allocation3 + $0x6] sm:$0x1] %vm389, %v744
    %750 = vst.msk [vmem:[#allocation3 + $0xe] sm:$0x1] %vm389, %v746
    %v751 = vld [vmem:[#allocation6 + $0x2] sm:$0x1]
    %v752 = vld [vmem:[#allocation6 + $0xa] sm:$0x1]
    %v755 = vrot.slane %v752, 7
    %v756 = vsel %vm118, %v755, %v751
    %758 = vrot.lane.b32.xlu0 %v562, 48
    %v759 = vpop.permute.xlu0 %758
    %v761 = vsel %vm121, %v756, %v759
    %v762 = vld [vmem:[#allocation6 + $0x5] sm:$0x1]
    %v763 = vld [vmem:[#allocation6 + $0xd] sm:$0x1]
    %v766 = vrot.slane %v763, 7
    %v767 = vsel %vm118, %v766, %v762
    %769 = vrot.lane.b32.xlu0 %v672, 48
    %v770 = vpop.permute.xlu0 %769
    %v772 = vsel %vm121, %v767, %v770
    %v773 = vld [vmem:[%s1] sm:$0xff]
    %v774 = vld [vmem:[%s1 + $0x8] sm:$0xff]
    %v775 = vld [vmem:[%s1 + $0x10] sm:$0xff]
    %v776 = vld [vmem:[%s1 + $0x18] sm:$0xff]
    %v777 = vld [vmem:[%s1 + $0x20] sm:$0xff]
    %v778 = vld [vmem:[%s1 + $0x28] sm:$0xff]
    %v779 = vld [vmem:[%s2] sm:$0x1]
    %v781 = vlaneseq
    %v782 = vshrl.u32 %v781, 7
    %v783 = vsub.s32 0, %v782
    %v784 = vrot.slane %v779, %v783
    %v787 = vsel %vm144, %v761, 0
    %789 = vmatprep.subr.mxu0 0.0
    %790 = vmatpush1.msra.mxu0 0.0
    %791 = vmatprep.subr.mxu0 0.0
    %792 = vmatpush1.msra.mxu0 0.0
    %793 = vmatprep.subr.mxu0 0.0
    %794 = vmatpush1.msra.mxu0 0.0
    %795 = vmatprep.subr.mxu0 0.0
    %796 = vmatpush1.msra.mxu0 0.0
    %797 = vmatprep.subr.mxu0 0.0
    %798 = vmatpush1.msra.mxu0 0.0
    %799 = vmatprep.subr.mxu0 0.0
    %800 = vmatpush1.msra.mxu0 0.0
    %801 = vmatprep.subr.mxu0 0.0
    %802 = vmatpush1.msra.mxu0 0.0
    %803 = vmatprep.subr.mxu0 0.0
    %804 = vmatpush1.msra.mxu0 0.0
    %805 = vmatprep.subr.mxu0 0.0
    %806 = vmatpush1.msra.mxu0 0.0
    %807 = vmatprep.subr.mxu0 0.0
    %808 = vmatpush1.msra.mxu0 0.0
    %809 = vmatprep.subr.mxu0 0.0
    %810 = vmatpush1.msra.mxu0 %v778
    %811 = vmatprep.subr.mxu0 0.0
    %812 = vmatpush1.msra.mxu0 %v777
    %813 = vmatprep.subr.mxu0 0.0
    %814 = vmatpush1.msra.mxu0 %v776
    %815 = vmatprep.subr.mxu0 0.0
    %816 = vmatpush1.msra.mxu0 %v775
    %817 = vmatprep.subr.mxu0 0.0
    %818 = vmatpush1.msra.mxu0 %v774
    %819 = vmatprep.subr.mxu0 0.0
    %820 = vmatpush1.msra.mxu0 %v773
    %821 = vmatprep.subr.mxu0 0.0
    %822 = vmatpush2.msra.mxu0 0.0
    %823 = vmatprep.subr.mxu0 0.0
    %824 = vmatpush2.msra.mxu0 0.0
    %825 = vmatprep.subr.mxu0 0.0
    %826 = vmatpush2.msra.mxu0 0.0
    %827 = vmatprep.subr.mxu0 0.0
    %828 = vmatpush2.msra.mxu0 0.0
    %829 = vmatprep.subr.mxu0 0.0
    %830 = vmatpush2.msra.mxu0 0.0
    %831 = vmatprep.subr.mxu0 0.0
    %832 = vmatpush2.msra.mxu0 0.0
    %833 = vmatprep.subr.mxu0 0.0
    %834 = vmatpush2.msra.mxu0 0.0
    %835 = vmatprep.subr.mxu0 0.0
    %836 = vmatpush2.msra.mxu0 0.0
    %837 = vmatprep.subr.mxu0 0.0
    %838 = vmatpush2.msra.mxu0 0.0
    %839 = vmatprep.subr.mxu0 0.0
    %840 = vmatpush2.msra.mxu0 0.0
    %841 = vmatprep.subr.mxu0 0.0
    %842 = vmatpush2.msra.mxu0 0.0
    %843 = vmatprep.subr.mxu0 0.0
    %844 = vmatpush2.msra.mxu0 0.0
    %845 = vmatprep.subr.mxu0 0.0
    %846 = vmatpush2.msra.mxu0 0.0
    %847 = vmatprep.subr.mxu0 0.0
    %848 = vmatpush2.msra.mxu0 0.0
    %849 = vmatprep.subr.mxu0 0.0
    %850 = vmatpush2.msra.mxu0 0.0
    %851 = vmatprep.subr.mxu0 0.0
    %852 = vmatpush2.msra.mxu0 0.0
    %853 = vmatprep.mubr.f32.mxu0 0.0
    %854 = vmatmul.mubr.f32.gmra.mxu0 %v787
    %v855 = vpop.f32.mrf.mxu0
    %v856 = vadd.f32 %v784, %v855
    %v857 = vpop.f32.mrf.mxu0
    %858 = vdwg.mxu0
    %v859 = vxor.u32 %v856, 2147483648
    %v860 = vmul.f32 %v859, 1.442695
    %v861 = vpow.pop %v860
    %v862 = vadd.f32 %v861, 1.0
    %v863 = vrcp.pop %v862
    %v864 = vmul.f32 1.0, %v863
    %v865 = vtanh.pop %v856
    %v866 = vmul.f32 %v864, %v556
    %868 = vrot.lane.b32.xlu0 %v865, 64
    %v869 = vpop.permute.xlu0 %868
    %v871 = vmul.f32 %v864, %v869
    %873 = vrot.lane.b32.xlu0 %v871, 32
    %v874 = vpop.permute.xlu0 %873
    %v876 = vadd.f32 %v866, %v874
    %v877 = vtanh.pop %v876
    %879 = vrot.lane.b32.xlu0 %v877, 64
    %v880 = vpop.permute.xlu0 %879
    %v882 = vmul.f32 %v864, %v880
    %v883 = vld [vmem:[#allocation9] sm:$0xff]
    %v884 = vld [vmem:[#allocation9 + $0x8] sm:$0xff]
    %v885 = vld [vmem:[#allocation9 + $0x10] sm:$0xff]
    %v886 = vld [vmem:[#allocation9 + $0x18] sm:$0xff]
    %v887 = vld [vmem:[#allocation9 + $0x20] sm:$0xff]
    %v888 = vld [vmem:[#allocation9 + $0x28] sm:$0xff]
    %v889 = vld [vmem:[%s4] sm:$0x1]
    %v891 = vlaneseq
    %v892 = vshrl.u32 %v891, 7
    %v893 = vsub.s32 0, %v892
    %v894 = vrot.slane %v889, %v893
    %v897 = vsel %vm144, %v772, 0
    %899 = vmatprep.subr.mxu0 0.0
    %900 = vmatpush1.msra.mxu0 0.0
    %901 = vmatprep.subr.mxu0 0.0
    %902 = vmatpush1.msra.mxu0 0.0
    %903 = vmatprep.subr.mxu0 0.0
    %904 = vmatpush1.msra.mxu0 0.0
    %905 = vmatprep.subr.mxu0 0.0
    %906 = vmatpush1.msra.mxu0 0.0
    %907 = vmatprep.subr.mxu0 0.0
    %908 = vmatpush1.msra.mxu0 0.0
    %909 = vmatprep.subr.mxu0 0.0
    %910 = vmatpush1.msra.mxu0 0.0
    %911 = vmatprep.subr.mxu0 0.0
    %912 = vmatpush1.msra.mxu0 0.0
    %913 = vmatprep.subr.mxu0 0.0
    %914 = vmatpush1.msra.mxu0 0.0
    %915 = vmatprep.subr.mxu0 0.0
    %916 = vmatpush1.msra.mxu0 0.0
    %917 = vmatprep.subr.mxu0 0.0
    %918 = vmatpush1.msra.mxu0 0.0
    %919 = vmatprep.subr.mxu0 0.0
    %920 = vmatpush1.msra.mxu0 %v888
    %921 = vmatprep.subr.mxu0 0.0
    %922 = vmatpush1.msra.mxu0 %v887
    %923 = vmatprep.subr.mxu0 0.0
    %924 = vmatpush1.msra.mxu0 %v886
    %925 = vmatprep.subr.mxu0 0.0
    %926 = vmatpush1.msra.mxu0 %v885
    %927 = vmatprep.subr.mxu0 0.0
    %928 = vmatpush1.msra.mxu0 %v884
    %929 = vmatprep.subr.mxu0 0.0
    %930 = vmatpush1.msra.mxu0 %v883
    %931 = vmatprep.subr.mxu0 0.0
    %932 = vmatpush2.msra.mxu0 0.0
    %933 = vmatprep.subr.mxu0 0.0
    %934 = vmatpush2.msra.mxu0 0.0
    %935 = vmatprep.subr.mxu0 0.0
    %936 = vmatpush2.msra.mxu0 0.0
    %937 = vmatprep.subr.mxu0 0.0
    %938 = vmatpush2.msra.mxu0 0.0
    %939 = vmatprep.subr.mxu0 0.0
    %940 = vmatpush2.msra.mxu0 0.0
    %941 = vmatprep.subr.mxu0 0.0
    %942 = vmatpush2.msra.mxu0 0.0
    %943 = vmatprep.subr.mxu0 0.0
    %944 = vmatpush2.msra.mxu0 0.0
    %945 = vmatprep.subr.mxu0 0.0
    %946 = vmatpush2.msra.mxu0 0.0
    %947 = vmatprep.subr.mxu0 0.0
    %948 = vmatpush2.msra.mxu0 0.0
    %949 = vmatprep.subr.mxu0 0.0
    %950 = vmatpush2.msra.mxu0 0.0
    %951 = vmatprep.subr.mxu0 0.0
    %952 = vmatpush2.msra.mxu0 0.0
    %953 = vmatprep.subr.mxu0 0.0
    %954 = vmatpush2.msra.mxu0 0.0
    %955 = vmatprep.subr.mxu0 0.0
    %956 = vmatpush2.msra.mxu0 0.0
    %957 = vmatprep.subr.mxu0 0.0
    %958 = vmatpush2.msra.mxu0 0.0
    %959 = vmatprep.subr.mxu0 0.0
    %960 = vmatpush2.msra.mxu0 0.0
    %961 = vmatprep.subr.mxu0 0.0
    %962 = vmatpush2.msra.mxu0 0.0
    %963 = vmatprep.mubr.f32.mxu0 0.0
    %964 = vmatmul.mubr.f32.gmra.mxu0 %v897
    %v965 = vpop.f32.mrf.mxu0
    %v966 = vadd.f32 %v894, %v965
    %v967 = vpop.f32.mrf.mxu0
    %968 = vdwg.mxu0
    %v969 = vxor.u32 %v966, 2147483648
    %v970 = vmul.f32 %v969, 1.442695
    %v971 = vpow.pop %v970
    %v972 = vadd.f32 %v971, 1.0
    %v973 = vrcp.pop %v972
    %v974 = vmul.f32 1.0, %v973
    %v975 = vtanh.pop %v966
    %v976 = vmul.f32 %v974, %v666
    %978 = vrot.lane.b32.xlu0 %v975, 64
    %v979 = vpop.permute.xlu0 %978
    %v981 = vmul.f32 %v974, %v979
    %983 = vrot.lane.b32.xlu0 %v981, 32
    %v984 = vpop.permute.xlu0 %983
    %v986 = vadd.f32 %v976, %v984
    %v987 = vtanh.pop %v986
    %989 = vrot.lane.b32.xlu0 %v987, 64
    %v990 = vpop.permute.xlu0 %989
    %v992 = vmul.f32 %v974, %v990
    %v995 = vunpack.c.l.s4 1966171168
    %v996 = vunpack.c.0.s8 %v995
    %v997 = vlaneseq
    %v998 = vshrl.u32 %v997, 7
    %v999 = vsub.s32 %v996, %v998
    %v1000 = vrot.slane %v882, %v999
    %v1001 = vcombine.high %v1000, %v1000
    %v1003 = vunpack.c.l.s4 1966171168
    %v1004 = vunpack.c.0.s8 %v1003
    %v1005 = vlaneseq
    %v1006 = vshrl.u32 %v1005, 7
    %v1007 = vsub.s32 %v1004, %v1006
    %v1008 = vrot.slane %v1000, %v1007
    %v1010 = vunpack.c.l.s4 1966171168
    %v1011 = vunpack.c.0.s8 %v1010
    %v1012 = vlaneseq
    %v1013 = vshrl.u32 %v1012, 7
    %v1014 = vsub.s32 %v1011, %v1013
    %v1015 = vrot.slane %v1001, %v1014
    %v1016 = vlaneseq
    %v1017 = vshrl.u32 %v1016, 7
    %v1018 = vsub.s32 0, %v1017
    %v1019 = vrot.slane %v1008, %v1018
    %v1020 = vlaneseq
    %v1021 = vshrl.u32 %v1020, 7
    %v1022 = vsub.s32 0, %v1021
    %v1023 = vrot.slane %v1015, %v1022
    %1024 = vrot.lane.b32.xlu0 %v1019, 32
    %v1025 = vpop.permute.xlu0 %1024
    %1026 = vrot.lane.b32.xlu0 %v1023, 32
    %v1027 = vpop.permute.xlu0 %1026
    %1030 = vst.msk [vmem:[#allocation2 + $0x2] sm:$0x1] %vm389, %v1025
    %1031 = vst.msk [vmem:[#allocation2 + $0xa] sm:$0x1] %vm389, %v1027
    %v1034 = vunpack.c.l.s4 1966171168
    %v1035 = vunpack.c.0.s8 %v1034
    %v1036 = vlaneseq
    %v1037 = vshrl.u32 %v1036, 7
    %v1038 = vsub.s32 %v1035, %v1037
    %v1039 = vrot.slane %v992, %v1038
    %v1040 = vcombine.high %v1039, %v1039
    %v1042 = vunpack.c.l.s4 1966171168
    %v1043 = vunpack.c.0.s8 %v1042
    %v1044 = vlaneseq
    %v1045 = vshrl.u32 %v1044, 7
    %v1046 = vsub.s32 %v1043, %v1045
    %v1047 = vrot.slane %v1039, %v1046
    %v1049 = vunpack.c.l.s4 1966171168
    %v1050 = vunpack.c.0.s8 %v1049
    %v1051 = vlaneseq
    %v1052 = vshrl.u32 %v1051, 7
    %v1053 = vsub.s32 %v1050, %v1052
    %v1054 = vrot.slane %v1040, %v1053
    %v1055 = vlaneseq
    %v1056 = vshrl.u32 %v1055, 7
    %v1057 = vsub.s32 0, %v1056
    %v1058 = vrot.slane %v1047, %v1057
    %v1059 = vlaneseq
    %v1060 = vshrl.u32 %v1059, 7
    %v1061 = vsub.s32 0, %v1060
    %v1062 = vrot.slane %v1054, %v1061
    %1063 = vrot.lane.b32.xlu0 %v1058, 32
    %v1064 = vpop.permute.xlu0 %1063
    %1065 = vrot.lane.b32.xlu0 %v1062, 32
    %v1066 = vpop.permute.xlu0 %1065
    %1069 = vst.msk [vmem:[#allocation3 + $0x5] sm:$0x1] %vm389, %v1064
    %1070 = vst.msk [vmem:[#allocation3 + $0xd] sm:$0x1] %vm389, %v1066
    %v1071 = vld [vmem:[#allocation6 + $0x3] sm:$0x1]
    %v1072 = vld [vmem:[#allocation6 + $0xb] sm:$0x1]
    %v1075 = vrot.slane %v1072, 7
    %v1076 = vsel %vm118, %v1075, %v1071
    %1078 = vrot.lane.b32.xlu0 %v882, 48
    %v1079 = vpop.permute.xlu0 %1078
    %v1081 = vsel %vm121, %v1076, %v1079
    %v1082 = vld [vmem:[#allocation6 + $0x4] sm:$0x1]
    %v1083 = vld [vmem:[#allocation6 + $0xc] sm:$0x1]
    %v1086 = vrot.slane %v1083, 7
    %v1087 = vsel %vm118, %v1086, %v1082
    %1089 = vrot.lane.b32.xlu0 %v992, 48
    %v1090 = vpop.permute.xlu0 %1089
    %v1092 = vsel %vm121, %v1087, %v1090
    %v1093 = vld [vmem:[%s1] sm:$0xff]
    %v1094 = vld [vmem:[%s1 + $0x8] sm:$0xff]
    %v1095 = vld [vmem:[%s1 + $0x10] sm:$0xff]
    %v1096 = vld [vmem:[%s1 + $0x18] sm:$0xff]
    %v1097 = vld [vmem:[%s1 + $0x20] sm:$0xff]
    %v1098 = vld [vmem:[%s1 + $0x28] sm:$0xff]
    %v1099 = vld [vmem:[%s2] sm:$0x1]
    %v1101 = vlaneseq
    %v1102 = vshrl.u32 %v1101, 7
    %v1103 = vsub.s32 0, %v1102
    %v1104 = vrot.slane %v1099, %v1103
    %v1107 = vsel %vm144, %v1081, 0
    %1109 = vmatprep.subr.mxu0 0.0
    %1110 = vmatpush1.msra.mxu0 0.0
    %1111 = vmatprep.subr.mxu0 0.0
    %1112 = vmatpush1.msra.mxu0 0.0
    %1113 = vmatprep.subr.mxu0 0.0
    %1114 = vmatpush1.msra.mxu0 0.0
    %1115 = vmatprep.subr.mxu0 0.0
    %1116 = vmatpush1.msra.mxu0 0.0
    %1117 = vmatprep.subr.mxu0 0.0
    %1118 = vmatpush1.msra.mxu0 0.0
    %1119 = vmatprep.subr.mxu0 0.0
    %1120 = vmatpush1.msra.mxu0 0.0
    %1121 = vmatprep.subr.mxu0 0.0
    %1122 = vmatpush1.msra.mxu0 0.0
    %1123 = vmatprep.subr.mxu0 0.0
    %1124 = vmatpush1.msra.mxu0 0.0
    %1125 = vmatprep.subr.mxu0 0.0
    %1126 = vmatpush1.msra.mxu0 0.0
    %1127 = vmatprep.subr.mxu0 0.0
    %1128 = vmatpush1.msra.mxu0 0.0
    %1129 = vmatprep.subr.mxu0 0.0
    %1130 = vmatpush1.msra.mxu0 %v1098
    %1131 = vmatprep.subr.mxu0 0.0
    %1132 = vmatpush1.msra.mxu0 %v1097
    %1133 = vmatprep.subr.mxu0 0.0
    %1134 = vmatpush1.msra.mxu0 %v1096
    %1135 = vmatprep.subr.mxu0 0.0
    %1136 = vmatpush1.msra.mxu0 %v1095
    %1137 = vmatprep.subr.mxu0 0.0
    %1138 = vmatpush1.msra.mxu0 %v1094
    %1139 = vmatprep.subr.mxu0 0.0
    %1140 = vmatpush1.msra.mxu0 %v1093
    %1141 = vmatprep.subr.mxu0 0.0
    %1142 = vmatpush2.msra.mxu0 0.0
    %1143 = vmatprep.subr.mxu0 0.0
    %1144 = vmatpush2.msra.mxu0 0.0
    %1145 = vmatprep.subr.mxu0 0.0
    %1146 = vmatpush2.msra.mxu0 0.0
    %1147 = vmatprep.subr.mxu0 0.0
    %1148 = vmatpush2.msra.mxu0 0.0
    %1149 = vmatprep.subr.mxu0 0.0
    %1150 = vmatpush2.msra.mxu0 0.0
    %1151 = vmatprep.subr.mxu0 0.0
    %1152 = vmatpush2.msra.mxu0 0.0
    %1153 = vmatprep.subr.mxu0 0.0
    %1154 = vmatpush2.msra.mxu0 0.0
    %1155 = vmatprep.subr.mxu0 0.0
    %1156 = vmatpush2.msra.mxu0 0.0
    %1157 = vmatprep.subr.mxu0 0.0
    %1158 = vmatpush2.msra.mxu0 0.0
    %1159 = vmatprep.subr.mxu0 0.0
    %1160 = vmatpush2.msra.mxu0 0.0
    %1161 = vmatprep.subr.mxu0 0.0
    %1162 = vmatpush2.msra.mxu0 0.0
    %1163 = vmatprep.subr.mxu0 0.0
    %1164 = vmatpush2.msra.mxu0 0.0
    %1165 = vmatprep.subr.mxu0 0.0
    %1166 = vmatpush2.msra.mxu0 0.0
    %1167 = vmatprep.subr.mxu0 0.0
    %1168 = vmatpush2.msra.mxu0 0.0
    %1169 = vmatprep.subr.mxu0 0.0
    %1170 = vmatpush2.msra.mxu0 0.0
    %1171 = vmatprep.subr.mxu0 0.0
    %1172 = vmatpush2.msra.mxu0 0.0
    %1173 = vmatprep.mubr.f32.mxu0 0.0
    %1174 = vmatmul.mubr.f32.gmra.mxu0 %v1107
    %v1175 = vpop.f32.mrf.mxu0
    %v1176 = vadd.f32 %v1104, %v1175
    %v1177 = vpop.f32.mrf.mxu0
    %1178 = vdwg.mxu0
    %v1179 = vxor.u32 %v1176, 2147483648
    %v1180 = vmul.f32 %v1179, 1.442695
    %v1181 = vpow.pop %v1180
    %v1182 = vadd.f32 %v1181, 1.0
    %v1183 = vrcp.pop %v1182
    %v1184 = vmul.f32 1.0, %v1183
    %v1185 = vtanh.pop %v1176
    %v1186 = vmul.f32 %v1184, %v876
    %1188 = vrot.lane.b32.xlu0 %v1185, 64
    %v1189 = vpop.permute.xlu0 %1188
    %v1191 = vmul.f32 %v1184, %v1189
    %1193 = vrot.lane.b32.xlu0 %v1191, 32
    %v1194 = vpop.permute.xlu0 %1193
    %v1196 = vadd.f32 %v1186, %v1194
    %v1197 = vtanh.pop %v1196
    %1199 = vrot.lane.b32.xlu0 %v1197, 64
    %v1200 = vpop.permute.xlu0 %1199
    %v1202 = vmul.f32 %v1184, %v1200
    %v1203 = vld [vmem:[#allocation9] sm:$0xff]
    %v1204 = vld [vmem:[#allocation9 + $0x8] sm:$0xff]
    %v1205 = vld [vmem:[#allocation9 + $0x10] sm:$0xff]
    %v1206 = vld [vmem:[#allocation9 + $0x18] sm:$0xff]
    %v1207 = vld [vmem:[#allocation9 + $0x20] sm:$0xff]
    %v1208 = vld [vmem:[#allocation9 + $0x28] sm:$0xff]
    %v1209 = vld [vmem:[%s4] sm:$0x1]
    %v1211 = vlaneseq
    %v1212 = vshrl.u32 %v1211, 7
    %v1213 = vsub.s32 0, %v1212
    %v1214 = vrot.slane %v1209, %v1213
    %v1217 = vsel %vm144, %v1092, 0
    %1219 = vmatprep.subr.mxu0 0.0
    %1220 = vmatpush1.msra.mxu0 0.0
    %1221 = vmatprep.subr.mxu0 0.0
    %1222 = vmatpush1.msra.mxu0 0.0
    %1223 = vmatprep.subr.mxu0 0.0
    %1224 = vmatpush1.msra.mxu0 0.0
    %1225 = vmatprep.subr.mxu0 0.0
    %1226 = vmatpush1.msra.mxu0 0.0
    %1227 = vmatprep.subr.mxu0 0.0
    %1228 = vmatpush1.msra.mxu0 0.0
    %1229 = vmatprep.subr.mxu0 0.0
    %1230 = vmatpush1.msra.mxu0 0.0
    %1231 = vmatprep.subr.mxu0 0.0
    %1232 = vmatpush1.msra.mxu0 0.0
    %1233 = vmatprep.subr.mxu0 0.0
    %1234 = vmatpush1.msra.mxu0 0.0
    %1235 = vmatprep.subr.mxu0 0.0
    %1236 = vmatpush1.msra.mxu0 0.0
    %1237 = vmatprep.subr.mxu0 0.0
    %1238 = vmatpush1.msra.mxu0 0.0
    %1239 = vmatprep.subr.mxu0 0.0
    %1240 = vmatpush1.msra.mxu0 %v1208
    %1241 = vmatprep.subr.mxu0 0.0
    %1242 = vmatpush1.msra.mxu0 %v1207
    %1243 = vmatprep.subr.mxu0 0.0
    %1244 = vmatpush1.msra.mxu0 %v1206
    %1245 = vmatprep.subr.mxu0 0.0
    %1246 = vmatpush1.msra.mxu0 %v1205
    %1247 = vmatprep.subr.mxu0 0.0
    %1248 = vmatpush1.msra.mxu0 %v1204
    %1249 = vmatprep.subr.mxu0 0.0
    %1250 = vmatpush1.msra.mxu0 %v1203
    %1251 = vmatprep.subr.mxu0 0.0
    %1252 = vmatpush2.msra.mxu0 0.0
    %1253 = vmatprep.subr.mxu0 0.0
    %1254 = vmatpush2.msra.mxu0 0.0
    %1255 = vmatprep.subr.mxu0 0.0
    %1256 = vmatpush2.msra.mxu0 0.0
    %1257 = vmatprep.subr.mxu0 0.0
    %1258 = vmatpush2.msra.mxu0 0.0
    %1259 = vmatprep.subr.mxu0 0.0
    %1260 = vmatpush2.msra.mxu0 0.0
    %1261 = vmatprep.subr.mxu0 0.0
    %1262 = vmatpush2.msra.mxu0 0.0
    %1263 = vmatprep.subr.mxu0 0.0
    %1264 = vmatpush2.msra.mxu0 0.0
    %1265 = vmatprep.subr.mxu0 0.0
    %1266 = vmatpush2.msra.mxu0 0.0
    %1267 = vmatprep.subr.mxu0 0.0
    %1268 = vmatpush2.msra.mxu0 0.0
    %1269 = vmatprep.subr.mxu0 0.0
    %1270 = vmatpush2.msra.mxu0 0.0
    %1271 = vmatprep.subr.mxu0 0.0
    %1272 = vmatpush2.msra.mxu0 0.0
    %1273 = vmatprep.subr.mxu0 0.0
    %1274 = vmatpush2.msra.mxu0 0.0
    %1275 = vmatprep.subr.mxu0 0.0
    %1276 = vmatpush2.msra.mxu0 0.0
    %1277 = vmatprep.subr.mxu0 0.0
    %1278 = vmatpush2.msra.mxu0 0.0
    %1279 = vmatprep.subr.mxu0 0.0
    %1280 = vmatpush2.msra.mxu0 0.0
    %1281 = vmatprep.subr.mxu0 0.0
    %1282 = vmatpush2.msra.mxu0 0.0
    %1283 = vmatprep.mubr.f32.mxu0 0.0
    %1284 = vmatmul.mubr.f32.gmra.mxu0 %v1217
    %v1285 = vpop.f32.mrf.mxu0
    %v1286 = vadd.f32 %v1214, %v1285
    %v1287 = vpop.f32.mrf.mxu0
    %1288 = vdwg.mxu0
    %v1289 = vxor.u32 %v1286, 2147483648
    %v1290 = vmul.f32 %v1289, 1.442695
    %v1291 = vpow.pop %v1290
    %v1292 = vadd.f32 %v1291, 1.0
    %v1293 = vrcp.pop %v1292
    %v1294 = vmul.f32 1.0, %v1293
    %v1295 = vtanh.pop %v1286
    %v1296 = vmul.f32 %v1294, %v986
    %1298 = vrot.lane.b32.xlu0 %v1295, 64
    %v1299 = vpop.permute.xlu0 %1298
    %v1301 = vmul.f32 %v1294, %v1299
    %1303 = vrot.lane.b32.xlu0 %v1301, 32
    %v1304 = vpop.permute.xlu0 %1303
    %v1306 = vadd.f32 %v1296, %v1304
    %v1307 = vtanh.pop %v1306
    %1309 = vrot.lane.b32.xlu0 %v1307, 64
    %v1310 = vpop.permute.xlu0 %1309
    %v1312 = vmul.f32 %v1294, %v1310
    %v1315 = vunpack.c.l.s4 1966171168
    %v1316 = vunpack.c.0.s8 %v1315
    %v1317 = vlaneseq
    %v1318 = vshrl.u32 %v1317, 7
    %v1319 = vsub.s32 %v1316, %v1318
    %v1320 = vrot.slane %v1202, %v1319
    %v1321 = vcombine.high %v1320, %v1320
    %v1323 = vunpack.c.l.s4 1966171168
    %v1324 = vunpack.c.0.s8 %v1323
    %v1325 = vlaneseq
    %v1326 = vshrl.u32 %v1325, 7
    %v1327 = vsub.s32 %v1324, %v1326
    %v1328 = vrot.slane %v1320, %v1327
    %v1330 = vunpack.c.l.s4 1966171168
    %v1331 = vunpack.c.0.s8 %v1330
    %v1332 = vlaneseq
    %v1333 = vshrl.u32 %v1332, 7
    %v1334 = vsub.s32 %v1331, %v1333
    %v1335 = vrot.slane %v1321, %v1334
    %v1336 = vlaneseq
    %v1337 = vshrl.u32 %v1336, 7
    %v1338 = vsub.s32 0, %v1337
    %v1339 = vrot.slane %v1328, %v1338
    %v1340 = vlaneseq
    %v1341 = vshrl.u32 %v1340, 7
    %v1342 = vsub.s32 0, %v1341
    %v1343 = vrot.slane %v1335, %v1342
    %1344 = vrot.lane.b32.xlu0 %v1339, 32
    %v1345 = vpop.permute.xlu0 %1344
    %1346 = vrot.lane.b32.xlu0 %v1343, 32
    %v1347 = vpop.permute.xlu0 %1346
    %1350 = vst.msk [vmem:[#allocation2 + $0x3] sm:$0x1] %vm389, %v1345
    %1351 = vst.msk [vmem:[#allocation2 + $0xb] sm:$0x1] %vm389, %v1347
    %v1354 = vunpack.c.l.s4 1966171168
    %v1355 = vunpack.c.0.s8 %v1354
    %v1356 = vlaneseq
    %v1357 = vshrl.u32 %v1356, 7
    %v1358 = vsub.s32 %v1355, %v1357
    %v1359 = vrot.slane %v1312, %v1358
    %v1360 = vcombine.high %v1359, %v1359
    %v1362 = vunpack.c.l.s4 1966171168
    %v1363 = vunpack.c.0.s8 %v1362
    %v1364 = vlaneseq
    %v1365 = vshrl.u32 %v1364, 7
    %v1366 = vsub.s32 %v1363, %v1365
    %v1367 = vrot.slane %v1359, %v1366
    %v1369 = vunpack.c.l.s4 1966171168
    %v1370 = vunpack.c.0.s8 %v1369
    %v1371 = vlaneseq
    %v1372 = vshrl.u32 %v1371, 7
    %v1373 = vsub.s32 %v1370, %v1372
    %v1374 = vrot.slane %v1360, %v1373
    %v1375 = vlaneseq
    %v1376 = vshrl.u32 %v1375, 7
    %v1377 = vsub.s32 0, %v1376
    %v1378 = vrot.slane %v1367, %v1377
    %v1379 = vlaneseq
    %v1380 = vshrl.u32 %v1379, 7
    %v1381 = vsub.s32 0, %v1380
    %v1382 = vrot.slane %v1374, %v1381
    %1383 = vrot.lane.b32.xlu0 %v1378, 32
    %v1384 = vpop.permute.xlu0 %1383
    %1385 = vrot.lane.b32.xlu0 %v1382, 32
    %v1386 = vpop.permute.xlu0 %1385
    %1389 = vst.msk [vmem:[#allocation3 + $0x4] sm:$0x1] %vm389, %v1384
    %1390 = vst.msk [vmem:[#allocation3 + $0xc] sm:$0x1] %vm389, %v1386
    %v1391 = vld [vmem:[#allocation6 + $0x4] sm:$0x1]
    %v1392 = vld [vmem:[#allocation6 + $0xc] sm:$0x1]
    %v1395 = vrot.slane %v1392, 7
    %v1396 = vsel %vm118, %v1395, %v1391
    %1398 = vrot.lane.b32.xlu0 %v1202, 48
    %v1399 = vpop.permute.xlu0 %1398
    %v1401 = vsel %vm121, %v1396, %v1399
    %v1402 = vld [vmem:[#allocation6 + $0x3] sm:$0x1]
    %v1403 = vld [vmem:[#allocation6 + $0xb] sm:$0x1]
    %v1406 = vrot.slane %v1403, 7
    %v1407 = vsel %vm118, %v1406, %v1402
    %1409 = vrot.lane.b32.xlu0 %v1312, 48
    %v1410 = vpop.permute.xlu0 %1409
    %v1412 = vsel %vm121, %v1407, %v1410
    %v1413 = vld [vmem:[%s1] sm:$0xff]
    %v1414 = vld [vmem:[%s1 + $0x8] sm:$0xff]
    %v1415 = vld [vmem:[%s1 + $0x10] sm:$0xff]
    %v1416 = vld [vmem:[%s1 + $0x18] sm:$0xff]
    %v1417 = vld [vmem:[%s1 + $0x20] sm:$0xff]
    %v1418 = vld [vmem:[%s1 + $0x28] sm:$0xff]
    %v1419 = vld [vmem:[%s2] sm:$0x1]
    %v1421 = vlaneseq
    %v1422 = vshrl.u32 %v1421, 7
    %v1423 = vsub.s32 0, %v1422
    %v1424 = vrot.slane %v1419, %v1423
    %v1427 = vsel %vm144, %v1401, 0
    %1429 = vmatprep.subr.mxu0 0.0
    %1430 = vmatpush1.msra.mxu0 0.0
    %1431 = vmatprep.subr.mxu0 0.0
    %1432 = vmatpush1.msra.mxu0 0.0
    %1433 = vmatprep.subr.mxu0 0.0
    %1434 = vmatpush1.msra.mxu0 0.0
    %1435 = vmatprep.subr.mxu0 0.0
    %1436 = vmatpush1.msra.mxu0 0.0
    %1437 = vmatprep.subr.mxu0 0.0
    %1438 = vmatpush1.msra.mxu0 0.0
    %1439 = vmatprep.subr.mxu0 0.0
    %1440 = vmatpush1.msra.mxu0 0.0
    %1441 = vmatprep.subr.mxu0 0.0
    %1442 = vmatpush1.msra.mxu0 0.0
    %1443 = vmatprep.subr.mxu0 0.0
    %1444 = vmatpush1.msra.mxu0 0.0
    %1445 = vmatprep.subr.mxu0 0.0
    %1446 = vmatpush1.msra.mxu0 0.0
    %1447 = vmatprep.subr.mxu0 0.0
    %1448 = vmatpush1.msra.mxu0 0.0
    %1449 = vmatprep.subr.mxu0 0.0
    %1450 = vmatpush1.msra.mxu0 %v1418
    %1451 = vmatprep.subr.mxu0 0.0
    %1452 = vmatpush1.msra.mxu0 %v1417
    %1453 = vmatprep.subr.mxu0 0.0
    %1454 = vmatpush1.msra.mxu0 %v1416
    %1455 = vmatprep.subr.mxu0 0.0
    %1456 = vmatpush1.msra.mxu0 %v1415
    %1457 = vmatprep.subr.mxu0 0.0
    %1458 = vmatpush1.msra.mxu0 %v1414
    %1459 = vmatprep.subr.mxu0 0.0
    %1460 = vmatpush1.msra.mxu0 %v1413
    %1461 = vmatprep.subr.mxu0 0.0
    %1462 = vmatpush2.msra.mxu0 0.0
    %1463 = vmatprep.subr.mxu0 0.0
    %1464 = vmatpush2.msra.mxu0 0.0
    %1465 = vmatprep.subr.mxu0 0.0
    %1466 = vmatpush2.msra.mxu0 0.0
    %1467 = vmatprep.subr.mxu0 0.0
    %1468 = vmatpush2.msra.mxu0 0.0
    %1469 = vmatprep.subr.mxu0 0.0
    %1470 = vmatpush2.msra.mxu0 0.0
    %1471 = vmatprep.subr.mxu0 0.0
    %1472 = vmatpush2.msra.mxu0 0.0
    %1473 = vmatprep.subr.mxu0 0.0
    %1474 = vmatpush2.msra.mxu0 0.0
    %1475 = vmatprep.subr.mxu0 0.0
    %1476 = vmatpush2.msra.mxu0 0.0
    %1477 = vmatprep.subr.mxu0 0.0
    %1478 = vmatpush2.msra.mxu0 0.0
    %1479 = vmatprep.subr.mxu0 0.0
    %1480 = vmatpush2.msra.mxu0 0.0
    %1481 = vmatprep.subr.mxu0 0.0
    %1482 = vmatpush2.msra.mxu0 0.0
    %1483 = vmatprep.subr.mxu0 0.0
    %1484 = vmatpush2.msra.mxu0 0.0
    %1485 = vmatprep.subr.mxu0 0.0
    %1486 = vmatpush2.msra.mxu0 0.0
    %1487 = vmatprep.subr.mxu0 0.0
    %1488 = vmatpush2.msra.mxu0 0.0
    %1489 = vmatprep.subr.mxu0 0.0
    %1490 = vmatpush2.msra.mxu0 0.0
    %1491 = vmatprep.subr.mxu0 0.0
    %1492 = vmatpush2.msra.mxu0 0.0
    %1493 = vmatprep.mubr.f32.mxu0 0.0
    %1494 = vmatmul.mubr.f32.gmra.mxu0 %v1427
    %v1495 = vpop.f32.mrf.mxu0
    %v1496 = vadd.f32 %v1424, %v1495
    %v1497 = vpop.f32.mrf.mxu0
    %1498 = vdwg.mxu0
    %v1499 = vxor.u32 %v1496, 2147483648
    %v1500 = vmul.f32 %v1499, 1.442695
    %v1501 = vpow.pop %v1500
    %v1502 = vadd.f32 %v1501, 1.0
    %v1503 = vrcp.pop %v1502
    %v1504 = vmul.f32 1.0, %v1503
    %v1505 = vtanh.pop %v1496
    %v1506 = vmul.f32 %v1504, %v1196
    %1508 = vrot.lane.b32.xlu0 %v1505, 64
    %v1509 = vpop.permute.xlu0 %1508
    %v1511 = vmul.f32 %v1504, %v1509
    %1513 = vrot.lane.b32.xlu0 %v1511, 32
    %v1514 = vpop.permute.xlu0 %1513
    %v1516 = vadd.f32 %v1506, %v1514
    %v1517 = vtanh.pop %v1516
    %1519 = vrot.lane.b32.xlu0 %v1517, 64
    %v1520 = vpop.permute.xlu0 %1519
    %v1522 = vmul.f32 %v1504, %v1520
    %v1523 = vld [vmem:[#allocation9] sm:$0xff]
    %v1524 = vld [vmem:[#allocation9 + $0x8] sm:$0xff]
    %v1525 = vld [vmem:[#allocation9 + $0x10] sm:$0xff]
    %v1526 = vld [vmem:[#allocation9 + $0x18] sm:$0xff]
    %v1527 = vld [vmem:[#allocation9 + $0x20] sm:$0xff]
    %v1528 = vld [vmem:[#allocation9 + $0x28] sm:$0xff]
    %v1529 = vld [vmem:[%s4] sm:$0x1]
    %v1531 = vlaneseq
    %v1532 = vshrl.u32 %v1531, 7
    %v1533 = vsub.s32 0, %v1532
    %v1534 = vrot.slane %v1529, %v1533
    %v1537 = vsel %vm144, %v1412, 0
    %1539 = vmatprep.subr.mxu0 0.0
    %1540 = vmatpush1.msra.mxu0 0.0
    %1541 = vmatprep.subr.mxu0 0.0
    %1542 = vmatpush1.msra.mxu0 0.0
    %1543 = vmatprep.subr.mxu0 0.0
    %1544 = vmatpush1.msra.mxu0 0.0
    %1545 = vmatprep.subr.mxu0 0.0
    %1546 = vmatpush1.msra.mxu0 0.0
    %1547 = vmatprep.subr.mxu0 0.0
    %1548 = vmatpush1.msra.mxu0 0.0
    %1549 = vmatprep.subr.mxu0 0.0
    %1550 = vmatpush1.msra.mxu0 0.0
    %1551 = vmatprep.subr.mxu0 0.0
    %1552 = vmatpush1.msra.mxu0 0.0
    %1553 = vmatprep.subr.mxu0 0.0
    %1554 = vmatpush1.msra.mxu0 0.0
    %1555 = vmatprep.subr.mxu0 0.0
    %1556 = vmatpush1.msra.mxu0 0.0
    %1557 = vmatprep.subr.mxu0 0.0
    %1558 = vmatpush1.msra.mxu0 0.0
    %1559 = vmatprep.subr.mxu0 0.0
    %1560 = vmatpush1.msra.mxu0 %v1528
    %1561 = vmatprep.subr.mxu0 0.0
    %1562 = vmatpush1.msra.mxu0 %v1527
    %1563 = vmatprep.subr.mxu0 0.0
    %1564 = vmatpush1.msra.mxu0 %v1526
    %1565 = vmatprep.subr.mxu0 0.0
    %1566 = vmatpush1.msra.mxu0 %v1525
    %1567 = vmatprep.subr.mxu0 0.0
    %1568 = vmatpush1.msra.mxu0 %v1524
    %1569 = vmatprep.subr.mxu0 0.0
    %1570 = vmatpush1.msra.mxu0 %v1523
    %1571 = vmatprep.subr.mxu0 0.0
    %1572 = vmatpush2.msra.mxu0 0.0
    %1573 = vmatprep.subr.mxu0 0.0
    %1574 = vmatpush2.msra.mxu0 0.0
    %1575 = vmatprep.subr.mxu0 0.0
    %1576 = vmatpush2.msra.mxu0 0.0
    %1577 = vmatprep.subr.mxu0 0.0
    %1578 = vmatpush2.msra.mxu0 0.0
    %1579 = vmatprep.subr.mxu0 0.0
    %1580 = vmatpush2.msra.mxu0 0.0
    %1581 = vmatprep.subr.mxu0 0.0
    %1582 = vmatpush2.msra.mxu0 0.0
    %1583 = vmatprep.subr.mxu0 0.0
    %1584 = vmatpush2.msra.mxu0 0.0
    %1585 = vmatprep.subr.mxu0 0.0
    %1586 = vmatpush2.msra.mxu0 0.0
    %1587 = vmatprep.subr.mxu0 0.0
    %1588 = vmatpush2.msra.mxu0 0.0
    %1589 = vmatprep.subr.mxu0 0.0
    %1590 = vmatpush2.msra.mxu0 0.0
    %1591 = vmatprep.subr.mxu0 0.0
    %1592 = vmatpush2.msra.mxu0 0.0
    %1593 = vmatprep.subr.mxu0 0.0
    %1594 = vmatpush2.msra.mxu0 0.0
    %1595 = vmatprep.subr.mxu0 0.0
    %1596 = vmatpush2.msra.mxu0 0.0
    %1597 = vmatprep.subr.mxu0 0.0
    %1598 = vmatpush2.msra.mxu0 0.0
    %1599 = vmatprep.subr.mxu0 0.0
    %1600 = vmatpush2.msra.mxu0 0.0
    %1601 = vmatprep.subr.mxu0 0.0
    %1602 = vmatpush2.msra.mxu0 0.0
    %1603 = vmatprep.mubr.f32.mxu0 0.0
    %1604 = vmatmul.mubr.f32.gmra.mxu0 %v1537
    %v1605 = vpop.f32.mrf.mxu0
    %v1606 = vadd.f32 %v1534, %v1605
    %v1607 = vpop.f32.mrf.mxu0
    %1608 = vdwg.mxu0
    %v1609 = vxor.u32 %v1606, 2147483648
    %v1610 = vmul.f32 %v1609, 1.442695
    %v1611 = vpow.pop %v1610
    %v1612 = vadd.f32 %v1611, 1.0
    %v1613 = vrcp.pop %v1612
    %v1614 = vmul.f32 1.0, %v1613
    %v1615 = vtanh.pop %v1606
    %v1616 = vmul.f32 %v1614, %v1306
    %1618 = vrot.lane.b32.xlu0 %v1615, 64
    %v1619 = vpop.permute.xlu0 %1618
    %v1621 = vmul.f32 %v1614, %v1619
    %1623 = vrot.lane.b32.xlu0 %v1621, 32
    %v1624 = vpop.permute.xlu0 %1623
    %v1626 = vadd.f32 %v1616, %v1624
    %v1627 = vtanh.pop %v1626
    %1629 = vrot.lane.b32.xlu0 %v1627, 64
    %v1630 = vpop.permute.xlu0 %1629
    %v1632 = vmul.f32 %v1614, %v1630
    %v1635 = vunpack.c.l.s4 1966171168
    %v1636 = vunpack.c.0.s8 %v1635
    %v1637 = vlaneseq
    %v1638 = vshrl.u32 %v1637, 7
    %v1639 = vsub.s32 %v1636, %v1638
    %v1640 = vrot.slane %v1522, %v1639
    %v1641 = vcombine.high %v1640, %v1640
    %v1643 = vunpack.c.l.s4 1966171168
    %v1644 = vunpack.c.0.s8 %v1643
    %v1645 = vlaneseq
    %v1646 = vshrl.u32 %v1645, 7
    %v1647 = vsub.s32 %v1644, %v1646
    %v1648 = vrot.slane %v1640, %v1647
    %v1650 = vunpack.c.l.s4 1966171168
    %v1651 = vunpack.c.0.s8 %v1650
    %v1652 = vlaneseq
    %v1653 = vshrl.u32 %v1652, 7
    %v1654 = vsub.s32 %v1651, %v1653
    %v1655 = vrot.slane %v1641, %v1654
    %v1656 = vlaneseq
    %v1657 = vshrl.u32 %v1656, 7
    %v1658 = vsub.s32 0, %v1657
    %v1659 = vrot.slane %v1648, %v1658
    %v1660 = vlaneseq
    %v1661 = vshrl.u32 %v1660, 7
    %v1662 = vsub.s32 0, %v1661
    %v1663 = vrot.slane %v1655, %v1662
    %1664 = vrot.lane.b32.xlu0 %v1659, 32
    %v1665 = vpop.permute.xlu0 %1664
    %1666 = vrot.lane.b32.xlu0 %v1663, 32
    %v1667 = vpop.permute.xlu0 %1666
    %1670 = vst.msk [vmem:[#allocation2 + $0x4] sm:$0x1] %vm389, %v1665
    %1671 = vst.msk [vmem:[#allocation2 + $0xc] sm:$0x1] %vm389, %v1667
    %v1674 = vunpack.c.l.s4 1966171168
    %v1675 = vunpack.c.0.s8 %v1674
    %v1676 = vlaneseq
    %v1677 = vshrl.u32 %v1676, 7
    %v1678 = vsub.s32 %v1675, %v1677
    %v1679 = vrot.slane %v1632, %v1678
    %v1680 = vcombine.high %v1679, %v1679
    %v1682 = vunpack.c.l.s4 1966171168
    %v1683 = vunpack.c.0.s8 %v1682
    %v1684 = vlaneseq
    %v1685 = vshrl.u32 %v1684, 7
    %v1686 = vsub.s32 %v1683, %v1685
    %v1687 = vrot.slane %v1679, %v1686
    %v1689 = vunpack.c.l.s4 1966171168
    %v1690 = vunpack.c.0.s8 %v1689
    %v1691 = vlaneseq
    %v1692 = vshrl.u32 %v1691, 7
    %v1693 = vsub.s32 %v1690, %v1692
    %v1694 = vrot.slane %v1680, %v1693
    %v1695 = vlaneseq
    %v1696 = vshrl.u32 %v1695, 7
    %v1697 = vsub.s32 0, %v1696
    %v1698 = vrot.slane %v1687, %v1697
    %v1699 = vlaneseq
    %v1700 = vshrl.u32 %v1699, 7
    %v1701 = vsub.s32 0, %v1700
    %v1702 = vrot.slane %v1694, %v1701
    %1703 = vrot.lane.b32.xlu0 %v1698, 32
    %v1704 = vpop.permute.xlu0 %1703
    %1705 = vrot.lane.b32.xlu0 %v1702, 32
    %v1706 = vpop.permute.xlu0 %1705
    %1709 = vst.msk [vmem:[#allocation3 + $0x3] sm:$0x1] %vm389, %v1704
    %1710 = vst.msk [vmem:[#allocation3 + $0xb] sm:$0x1] %vm389, %v1706
    %v1711 = vld [vmem:[#allocation6 + $0x5] sm:$0x1]
    %v1712 = vld [vmem:[#allocation6 + $0xd] sm:$0x1]
    %v1715 = vrot.slane %v1712, 7
    %v1716 = vsel %vm118, %v1715, %v1711
    %1718 = vrot.lane.b32.xlu0 %v1522, 48
    %v1719 = vpop.permute.xlu0 %1718
    %v1721 = vsel %vm121, %v1716, %v1719
    %v1722 = vld [vmem:[#allocation6 + $0x2] sm:$0x1]
    %v1723 = vld [vmem:[#allocation6 + $0xa] sm:$0x1]
    %v1726 = vrot.slane %v1723, 7
    %v1727 = vsel %vm118, %v1726, %v1722
    %1729 = vrot.lane.b32.xlu0 %v1632, 48
    %v1730 = vpop.permute.xlu0 %1729
    %v1732 = vsel %vm121, %v1727, %v1730
    %v1733 = vld [vmem:[%s1] sm:$0xff]
    %v1734 = vld [vmem:[%s1 + $0x8] sm:$0xff]
    %v1735 = vld [vmem:[%s1 + $0x10] sm:$0xff]
    %v1736 = vld [vmem:[%s1 + $0x18] sm:$0xff]
    %v1737 = vld [vmem:[%s1 + $0x20] sm:$0xff]
    %v1738 = vld [vmem:[%s1 + $0x28] sm:$0xff]
    %v1739 = vld [vmem:[%s2] sm:$0x1]
    %v1741 = vlaneseq
    %v1742 = vshrl.u32 %v1741, 7
    %v1743 = vsub.s32 0, %v1742
    %v1744 = vrot.slane %v1739, %v1743
    %v1747 = vsel %vm144, %v1721, 0
    %1749 = vmatprep.subr.mxu0 0.0
    %1750 = vmatpush1.msra.mxu0 0.0
    %1751 = vmatprep.subr.mxu0 0.0
    %1752 = vmatpush1.msra.mxu0 0.0
    %1753 = vmatprep.subr.mxu0 0.0
    %1754 = vmatpush1.msra.mxu0 0.0
    %1755 = vmatprep.subr.mxu0 0.0
    %1756 = vmatpush1.msra.mxu0 0.0
    %1757 = vmatprep.subr.mxu0 0.0
    %1758 = vmatpush1.msra.mxu0 0.0
    %1759 = vmatprep.subr.mxu0 0.0
    %1760 = vmatpush1.msra.mxu0 0.0
    %1761 = vmatprep.subr.mxu0 0.0
    %1762 = vmatpush1.msra.mxu0 0.0
    %1763 = vmatprep.subr.mxu0 0.0
    %1764 = vmatpush1.msra.mxu0 0.0
    %1765 = vmatprep.subr.mxu0 0.0
    %1766 = vmatpush1.msra.mxu0 0.0
    %1767 = vmatprep.subr.mxu0 0.0
    %1768 = vmatpush1.msra.mxu0 0.0
    %1769 = vmatprep.subr.mxu0 0.0
    %1770 = vmatpush1.msra.mxu0 %v1738
    %1771 = vmatprep.subr.mxu0 0.0
    %1772 = vmatpush1.msra.mxu0 %v1737
    %1773 = vmatprep.subr.mxu0 0.0
    %1774 = vmatpush1.msra.mxu0 %v1736
    %1775 = vmatprep.subr.mxu0 0.0
    %1776 = vmatpush1.msra.mxu0 %v1735
    %1777 = vmatprep.subr.mxu0 0.0
    %1778 = vmatpush1.msra.mxu0 %v1734
    %1779 = vmatprep.subr.mxu0 0.0
    %1780 = vmatpush1.msra.mxu0 %v1733
    %1781 = vmatprep.subr.mxu0 0.0
    %1782 = vmatpush2.msra.mxu0 0.0
    %1783 = vmatprep.subr.mxu0 0.0
    %1784 = vmatpush2.msra.mxu0 0.0
    %1785 = vmatprep.subr.mxu0 0.0
    %1786 = vmatpush2.msra.mxu0 0.0
    %1787 = vmatprep.subr.mxu0 0.0
    %1788 = vmatpush2.msra.mxu0 0.0
    %1789 = vmatprep.subr.mxu0 0.0
    %1790 = vmatpush2.msra.mxu0 0.0
    %1791 = vmatprep.subr.mxu0 0.0
    %1792 = vmatpush2.msra.mxu0 0.0
    %1793 = vmatprep.subr.mxu0 0.0
    %1794 = vmatpush2.msra.mxu0 0.0
    %1795 = vmatprep.subr.mxu0 0.0
    %1796 = vmatpush2.msra.mxu0 0.0
    %1797 = vmatprep.subr.mxu0 0.0
    %1798 = vmatpush2.msra.mxu0 0.0
    %1799 = vmatprep.subr.mxu0 0.0
    %1800 = vmatpush2.msra.mxu0 0.0
    %1801 = vmatprep.subr.mxu0 0.0
    %1802 = vmatpush2.msra.mxu0 0.0
    %1803 = vmatprep.subr.mxu0 0.0
    %1804 = vmatpush2.msra.mxu0 0.0
    %1805 = vmatprep.subr.mxu0 0.0
    %1806 = vmatpush2.msra.mxu0 0.0
    %1807 = vmatprep.subr.mxu0 0.0
    %1808 = vmatpush2.msra.mxu0 0.0
    %1809 = vmatprep.subr.mxu0 0.0
    %1810 = vmatpush2.msra.mxu0 0.0
    %1811 = vmatprep.subr.mxu0 0.0
    %1812 = vmatpush2.msra.mxu0 0.0
    %1813 = vmatprep.mubr.f32.mxu0 0.0
    %1814 = vmatmul.mubr.f32.gmra.mxu0 %v1747
    %v1815 = vpop.f32.mrf.mxu0
    %v1816 = vadd.f32 %v1744, %v1815
    %v1817 = vpop.f32.mrf.mxu0
    %1818 = vdwg.mxu0
    %v1819 = vxor.u32 %v1816, 2147483648
    %v1820 = vmul.f32 %v1819, 1.442695
    %v1821 = vpow.pop %v1820
    %v1822 = vadd.f32 %v1821, 1.0
    %v1823 = vrcp.pop %v1822
    %v1824 = vmul.f32 1.0, %v1823
    %v1825 = vtanh.pop %v1816
    %v1826 = vmul.f32 %v1824, %v1516
    %1828 = vrot.lane.b32.xlu0 %v1825, 64
    %v1829 = vpop.permute.xlu0 %1828
    %v1831 = vmul.f32 %v1824, %v1829
    %1833 = vrot.lane.b32.xlu0 %v1831, 32
    %v1834 = vpop.permute.xlu0 %1833
    %v1836 = vadd.f32 %v1826, %v1834
    %v1837 = vtanh.pop %v1836
    %1839 = vrot.lane.b32.xlu0 %v1837, 64
    %v1840 = vpop.permute.xlu0 %1839
    %v1842 = vmul.f32 %v1824, %v1840
    %v1843 = vld [vmem:[#allocation9] sm:$0xff]
    %v1844 = vld [vmem:[#allocation9 + $0x8] sm:$0xff]
    %v1845 = vld [vmem:[#allocation9 + $0x10] sm:$0xff]
    %v1846 = vld [vmem:[#allocation9 + $0x18] sm:$0xff]
    %v1847 = vld [vmem:[#allocation9 + $0x20] sm:$0xff]
    %v1848 = vld [vmem:[#allocation9 + $0x28] sm:$0xff]
    %v1849 = vld [vmem:[%s4] sm:$0x1]
    %v1851 = vlaneseq
    %v1852 = vshrl.u32 %v1851, 7
    %v1853 = vsub.s32 0, %v1852
    %v1854 = vrot.slane %v1849, %v1853
    %v1857 = vsel %vm144, %v1732, 0
    %1859 = vmatprep.subr.mxu0 0.0
    %1860 = vmatpush1.msra.mxu0 0.0
    %1861 = vmatprep.subr.mxu0 0.0
    %1862 = vmatpush1.msra.mxu0 0.0
    %1863 = vmatprep.subr.mxu0 0.0
    %1864 = vmatpush1.msra.mxu0 0.0
    %1865 = vmatprep.subr.mxu0 0.0
    %1866 = vmatpush1.msra.mxu0 0.0
    %1867 = vmatprep.subr.mxu0 0.0
    %1868 = vmatpush1.msra.mxu0 0.0
    %1869 = vmatprep.subr.mxu0 0.0
    %1870 = vmatpush1.msra.mxu0 0.0
    %1871 = vmatprep.subr.mxu0 0.0
    %1872 = vmatpush1.msra.mxu0 0.0
    %1873 = vmatprep.subr.mxu0 0.0
    %1874 = vmatpush1.msra.mxu0 0.0
    %1875 = vmatprep.subr.mxu0 0.0
    %1876 = vmatpush1.msra.mxu0 0.0
    %1877 = vmatprep.subr.mxu0 0.0
    %1878 = vmatpush1.msra.mxu0 0.0
    %1879 = vmatprep.subr.mxu0 0.0
    %1880 = vmatpush1.msra.mxu0 %v1848
    %1881 = vmatprep.subr.mxu0 0.0
    %1882 = vmatpush1.msra.mxu0 %v1847
    %1883 = vmatprep.subr.mxu0 0.0
    %1884 = vmatpush1.msra.mxu0 %v1846
    %1885 = vmatprep.subr.mxu0 0.0
    %1886 = vmatpush1.msra.mxu0 %v1845
    %1887 = vmatprep.subr.mxu0 0.0
    %1888 = vmatpush1.msra.mxu0 %v1844
    %1889 = vmatprep.subr.mxu0 0.0
    %1890 = vmatpush1.msra.mxu0 %v1843
    %1891 = vmatprep.subr.mxu0 0.0
    %1892 = vmatpush2.msra.mxu0 0.0
    %1893 = vmatprep.subr.mxu0 0.0
    %1894 = vmatpush2.msra.mxu0 0.0
    %1895 = vmatprep.subr.mxu0 0.0
    %1896 = vmatpush2.msra.mxu0 0.0
    %1897 = vmatprep.subr.mxu0 0.0
    %1898 = vmatpush2.msra.mxu0 0.0
    %1899 = vmatprep.subr.mxu0 0.0
    %1900 = vmatpush2.msra.mxu0 0.0
    %1901 = vmatprep.subr.mxu0 0.0
    %1902 = vmatpush2.msra.mxu0 0.0
    %1903 = vmatprep.subr.mxu0 0.0
    %1904 = vmatpush2.msra.mxu0 0.0
    %1905 = vmatprep.subr.mxu0 0.0
    %1906 = vmatpush2.msra.mxu0 0.0
    %1907 = vmatprep.subr.mxu0 0.0
    %1908 = vmatpush2.msra.mxu0 0.0
    %1909 = vmatprep.subr.mxu0 0.0
    %1910 = vmatpush2.msra.mxu0 0.0
    %1911 = vmatprep.subr.mxu0 0.0
    %1912 = vmatpush2.msra.mxu0 0.0
    %1913 = vmatprep.subr.mxu0 0.0
    %1914 = vmatpush2.msra.mxu0 0.0
    %1915 = vmatprep.subr.mxu0 0.0
    %1916 = vmatpush2.msra.mxu0 0.0
    %1917 = vmatprep.subr.mxu0 0.0
    %1918 = vmatpush2.msra.mxu0 0.0
    %1919 = vmatprep.subr.mxu0 0.0
    %1920 = vmatpush2.msra.mxu0 0.0
    %1921 = vmatprep.subr.mxu0 0.0
    %1922 = vmatpush2.msra.mxu0 0.0
    %1923 = vmatprep.mubr.f32.mxu0 0.0
    %1924 = vmatmul.mubr.f32.gmra.mxu0 %v1857
    %v1925 = vpop.f32.mrf.mxu0
    %v1926 = vadd.f32 %v1854, %v1925
    %v1927 = vpop.f32.mrf.mxu0
    %1928 = vdwg.mxu0
    %v1929 = vxor.u32 %v1926, 2147483648
    %v1930 = vmul.f32 %v1929, 1.442695
    %v1931 = vpow.pop %v1930
    %v1932 = vadd.f32 %v1931, 1.0
    %v1933 = vrcp.pop %v1932
    %v1934 = vmul.f32 1.0, %v1933
    %v1935 = vtanh.pop %v1926
    %v1936 = vmul.f32 %v1934, %v1626
    %1938 = vrot.lane.b32.xlu0 %v1935, 64
    %v1939 = vpop.permute.xlu0 %1938
    %v1941 = vmul.f32 %v1934, %v1939
    %1943 = vrot.lane.b32.xlu0 %v1941, 32
    %v1944 = vpop.permute.xlu0 %1943
    %v1946 = vadd.f32 %v1936, %v1944
    %v1947 = vtanh.pop %v1946
    %1949 = vrot.lane.b32.xlu0 %v1947, 64
    %v1950 = vpop.permute.xlu0 %1949
    %v1952 = vmul.f32 %v1934, %v1950
    %v1955 = vunpack.c.l.s4 1966171168
    %v1956 = vunpack.c.0.s8 %v1955
    %v1957 = vlaneseq
    %v1958 = vshrl.u32 %v1957, 7
    %v1959 = vsub.s32 %v1956, %v1958
    %v1960 = vrot.slane %v1842, %v1959
    %v1961 = vcombine.high %v1960, %v1960
    %v1963 = vunpack.c.l.s4 1966171168
    %v1964 = vunpack.c.0.s8 %v1963
    %v1965 = vlaneseq
    %v1966 = vshrl.u32 %v1965, 7
    %v1967 = vsub.s32 %v1964, %v1966
    %v1968 = vrot.slane %v1960, %v1967
    %v1970 = vunpack.c.l.s4 1966171168
    %v1971 = vunpack.c.0.s8 %v1970
    %v1972 = vlaneseq
    %v1973 = vshrl.u32 %v1972, 7
    %v1974 = vsub.s32 %v1971, %v1973
    %v1975 = vrot.slane %v1961, %v1974
    %v1976 = vlaneseq
    %v1977 = vshrl.u32 %v1976, 7
    %v1978 = vsub.s32 0, %v1977
    %v1979 = vrot.slane %v1968, %v1978
    %v1980 = vlaneseq
    %v1981 = vshrl.u32 %v1980, 7
    %v1982 = vsub.s32 0, %v1981
    %v1983 = vrot.slane %v1975, %v1982
    %1984 = vrot.lane.b32.xlu0 %v1979, 32
    %v1985 = vpop.permute.xlu0 %1984
    %1986 = vrot.lane.b32.xlu0 %v1983, 32
    %v1987 = vpop.permute.xlu0 %1986
    %1990 = vst.msk [vmem:[#allocation2 + $0x5] sm:$0x1] %vm389, %v1985
    %1991 = vst.msk [vmem:[#allocation2 + $0xd] sm:$0x1] %vm389, %v1987
    %v1994 = vunpack.c.l.s4 1966171168
    %v1995 = vunpack.c.0.s8 %v1994
    %v1996 = vlaneseq
    %v1997 = vshrl.u32 %v1996, 7
    %v1998 = vsub.s32 %v1995, %v1997
    %v1999 = vrot.slane %v1952, %v1998
    %v2000 = vcombine.high %v1999, %v1999
    %v2002 = vunpack.c.l.s4 1966171168
    %v2003 = vunpack.c.0.s8 %v2002
    %v2004 = vlaneseq
    %v2005 = vshrl.u32 %v2004, 7
    %v2006 = vsub.s32 %v2003, %v2005
    %v2007 = vrot.slane %v1999, %v2006
    %v2009 = vunpack.c.l.s4 1966171168
    %v2010 = vunpack.c.0.s8 %v2009
    %v2011 = vlaneseq
    %v2012 = vshrl.u32 %v2011, 7
    %v2013 = vsub.s32 %v2010, %v2012
    %v2014 = vrot.slane %v2000, %v2013
    %v2015 = vlaneseq
    %v2016 = vshrl.u32 %v2015, 7
    %v2017 = vsub.s32 0, %v2016
    %v2018 = vrot.slane %v2007, %v2017
    %v2019 = vlaneseq
    %v2020 = vshrl.u32 %v2019, 7
    %v2021 = vsub.s32 0, %v2020
    %v2022 = vrot.slane %v2014, %v2021
    %2023 = vrot.lane.b32.xlu0 %v2018, 32
    %v2024 = vpop.permute.xlu0 %2023
    %2025 = vrot.lane.b32.xlu0 %v2022, 32
    %v2026 = vpop.permute.xlu0 %2025
    %2029 = vst.msk [vmem:[#allocation3 + $0x2] sm:$0x1] %vm389, %v2024
    %2030 = vst.msk [vmem:[#allocation3 + $0xa] sm:$0x1] %vm389, %v2026
    %v2031 = vld [vmem:[#allocation6 + $0x6] sm:$0x1]
    %v2032 = vld [vmem:[#allocation6 + $0xe] sm:$0x1]
    %v2035 = vrot.slane %v2032, 7
    %v2036 = vsel %vm118, %v2035, %v2031
    %2038 = vrot.lane.b32.xlu0 %v1842, 48
    %v2039 = vpop.permute.xlu0 %2038
    %v2041 = vsel %vm121, %v2036, %v2039
    %v2042 = vld [vmem:[#allocation6 + $0x1] sm:$0x1]
    %v2043 = vld [vmem:[#allocation6 + $0x9] sm:$0x1]
    %v2046 = vrot.slane %v2043, 7
    %v2047 = vsel %vm118, %v2046, %v2042
    %2049 = vrot.lane.b32.xlu0 %v1952, 48
    %v2050 = vpop.permute.xlu0 %2049
    %v2052 = vsel %vm121, %v2047, %v2050
    %v2053 = vld [vmem:[%s1] sm:$0xff]
    %v2054 = vld [vmem:[%s1 + $0x8] sm:$0xff]
    %v2055 = vld [vmem:[%s1 + $0x10] sm:$0xff]
    %v2056 = vld [vmem:[%s1 + $0x18] sm:$0xff]
    %v2057 = vld [vmem:[%s1 + $0x20] sm:$0xff]
    %v2058 = vld [vmem:[%s1 + $0x28] sm:$0xff]
    %v2059 = vld [vmem:[%s2] sm:$0x1]
    %v2061 = vlaneseq
    %v2062 = vshrl.u32 %v2061, 7
    %v2063 = vsub.s32 0, %v2062
    %v2064 = vrot.slane %v2059, %v2063
    %v2067 = vsel %vm144, %v2041, 0
    %2069 = vmatprep.subr.mxu0 0.0
    %2070 = vmatpush1.msra.mxu0 0.0
    %2071 = vmatprep.subr.mxu0 0.0
    %2072 = vmatpush1.msra.mxu0 0.0
    %2073 = vmatprep.subr.mxu0 0.0
    %2074 = vmatpush1.msra.mxu0 0.0
    %2075 = vmatprep.subr.mxu0 0.0
    %2076 = vmatpush1.msra.mxu0 0.0
    %2077 = vmatprep.subr.mxu0 0.0
    %2078 = vmatpush1.msra.mxu0 0.0
    %2079 = vmatprep.subr.mxu0 0.0
    %2080 = vmatpush1.msra.mxu0 0.0
    %2081 = vmatprep.subr.mxu0 0.0
    %2082 = vmatpush1.msra.mxu0 0.0
    %2083 = vmatprep.subr.mxu0 0.0
    %2084 = vmatpush1.msra.mxu0 0.0
    %2085 = vmatprep.subr.mxu0 0.0
    %2086 = vmatpush1.msra.mxu0 0.0
    %2087 = vmatprep.subr.mxu0 0.0
    %2088 = vmatpush1.msra.mxu0 0.0
    %2089 = vmatprep.subr.mxu0 0.0
    %2090 = vmatpush1.msra.mxu0 %v2058
    %2091 = vmatprep.subr.mxu0 0.0
    %2092 = vmatpush1.msra.mxu0 %v2057
    %2093 = vmatprep.subr.mxu0 0.0
    %2094 = vmatpush1.msra.mxu0 %v2056
    %2095 = vmatprep.subr.mxu0 0.0
    %2096 = vmatpush1.msra.mxu0 %v2055
    %2097 = vmatprep.subr.mxu0 0.0
    %2098 = vmatpush1.msra.mxu0 %v2054
    %2099 = vmatprep.subr.mxu0 0.0
    %2100 = vmatpush1.msra.mxu0 %v2053
    %2101 = vmatprep.subr.mxu0 0.0
    %2102 = vmatpush2.msra.mxu0 0.0
    %2103 = vmatprep.subr.mxu0 0.0
    %2104 = vmatpush2.msra.mxu0 0.0
    %2105 = vmatprep.subr.mxu0 0.0
    %2106 = vmatpush2.msra.mxu0 0.0
    %2107 = vmatprep.subr.mxu0 0.0
    %2108 = vmatpush2.msra.mxu0 0.0
    %2109 = vmatprep.subr.mxu0 0.0
    %2110 = vmatpush2.msra.mxu0 0.0
    %2111 = vmatprep.subr.mxu0 0.0
    %2112 = vmatpush2.msra.mxu0 0.0
    %2113 = vmatprep.subr.mxu0 0.0
    %2114 = vmatpush2.msra.mxu0 0.0
    %2115 = vmatprep.subr.mxu0 0.0
    %2116 = vmatpush2.msra.mxu0 0.0
    %2117 = vmatprep.subr.mxu0 0.0
    %2118 = vmatpush2.msra.mxu0 0.0
    %2119 = vmatprep.subr.mxu0 0.0
    %2120 = vmatpush2.msra.mxu0 0.0
    %2121 = vmatprep.subr.mxu0 0.0
    %2122 = vmatpush2.msra.mxu0 0.0
    %2123 = vmatprep.subr.mxu0 0.0
    %2124 = vmatpush2.msra.mxu0 0.0
    %2125 = vmatprep.subr.mxu0 0.0
    %2126 = vmatpush2.msra.mxu0 0.0
    %2127 = vmatprep.subr.mxu0 0.0
    %2128 = vmatpush2.msra.mxu0 0.0
    %2129 = vmatprep.subr.mxu0 0.0
    %2130 = vmatpush2.msra.mxu0 0.0
    %2131 = vmatprep.subr.mxu0 0.0
    %2132 = vmatpush2.msra.mxu0 0.0
    %2133 = vmatprep.mubr.f32.mxu0 0.0
    %2134 = vmatmul.mubr.f32.gmra.mxu0 %v2067
    %v2135 = vpop.f32.mrf.mxu0
    %v2136 = vadd.f32 %v2064, %v2135
    %v2137 = vpop.f32.mrf.mxu0
    %2138 = vdwg.mxu0
    %v2139 = vxor.u32 %v2136, 2147483648
    %v2140 = vmul.f32 %v2139, 1.442695
    %v2141 = vpow.pop %v2140
    %v2142 = vadd.f32 %v2141, 1.0
    %v2143 = vrcp.pop %v2142
    %v2144 = vmul.f32 1.0, %v2143
    %v2145 = vtanh.pop %v2136
    %v2146 = vmul.f32 %v2144, %v1836
    %2148 = vrot.lane.b32.xlu0 %v2145, 64
    %v2149 = vpop.permute.xlu0 %2148
    %v2151 = vmul.f32 %v2144, %v2149
    %2153 = vrot.lane.b32.xlu0 %v2151, 32
    %v2154 = vpop.permute.xlu0 %2153
    %v2156 = vadd.f32 %v2146, %v2154
    %v2157 = vtanh.pop %v2156
    %2159 = vrot.lane.b32.xlu0 %v2157, 64
    %v2160 = vpop.permute.xlu0 %2159
    %v2162 = vmul.f32 %v2144, %v2160
    %v2163 = vld [vmem:[#allocation9] sm:$0xff]
    %v2164 = vld [vmem:[#allocation9 + $0x8] sm:$0xff]
    %v2165 = vld [vmem:[#allocation9 + $0x10] sm:$0xff]
    %v2166 = vld [vmem:[#allocation9 + $0x18] sm:$0xff]
    %v2167 = vld [vmem:[#allocation9 + $0x20] sm:$0xff]
    %v2168 = vld [vmem:[#allocation9 + $0x28] sm:$0xff]
    %v2169 = vld [vmem:[%s4] sm:$0x1]
    %v2171 = vlaneseq
    %v2172 = vshrl.u32 %v2171, 7
    %v2173 = vsub.s32 0, %v2172
    %v2174 = vrot.slane %v2169, %v2173
    %v2177 = vsel %vm144, %v2052, 0
    %2179 = vmatprep.subr.mxu0 0.0
    %2180 = vmatpush1.msra.mxu0 0.0
    %2181 = vmatprep.subr.mxu0 0.0
    %2182 = vmatpush1.msra.mxu0 0.0
    %2183 = vmatprep.subr.mxu0 0.0
    %2184 = vmatpush1.msra.mxu0 0.0
    %2185 = vmatprep.subr.mxu0 0.0
    %2186 = vmatpush1.msra.mxu0 0.0
    %2187 = vmatprep.subr.mxu0 0.0
    %2188 = vmatpush1.msra.mxu0 0.0
    %2189 = vmatprep.subr.mxu0 0.0
    %2190 = vmatpush1.msra.mxu0 0.0
    %2191 = vmatprep.subr.mxu0 0.0
    %2192 = vmatpush1.msra.mxu0 0.0
    %2193 = vmatprep.subr.mxu0 0.0
    %2194 = vmatpush1.msra.mxu0 0.0
    %2195 = vmatprep.subr.mxu0 0.0
    %2196 = vmatpush1.msra.mxu0 0.0
    %2197 = vmatprep.subr.mxu0 0.0
    %2198 = vmatpush1.msra.mxu0 0.0
    %2199 = vmatprep.subr.mxu0 0.0
    %2200 = vmatpush1.msra.mxu0 %v2168
    %2201 = vmatprep.subr.mxu0 0.0
    %2202 = vmatpush1.msra.mxu0 %v2167
    %2203 = vmatprep.subr.mxu0 0.0
    %2204 = vmatpush1.msra.mxu0 %v2166
    %2205 = vmatprep.subr.mxu0 0.0
    %2206 = vmatpush1.msra.mxu0 %v2165
    %2207 = vmatprep.subr.mxu0 0.0
    %2208 = vmatpush1.msra.mxu0 %v2164
    %2209 = vmatprep.subr.mxu0 0.0
    %2210 = vmatpush1.msra.mxu0 %v2163
    %2211 = vmatprep.subr.mxu0 0.0
    %2212 = vmatpush2.msra.mxu0 0.0
    %2213 = vmatprep.subr.mxu0 0.0
    %2214 = vmatpush2.msra.mxu0 0.0
    %2215 = vmatprep.subr.mxu0 0.0
    %2216 = vmatpush2.msra.mxu0 0.0
    %2217 = vmatprep.subr.mxu0 0.0
    %2218 = vmatpush2.msra.mxu0 0.0
    %2219 = vmatprep.subr.mxu0 0.0
    %2220 = vmatpush2.msra.mxu0 0.0
    %2221 = vmatprep.subr.mxu0 0.0
    %2222 = vmatpush2.msra.mxu0 0.0
    %2223 = vmatprep.subr.mxu0 0.0
    %2224 = vmatpush2.msra.mxu0 0.0
    %2225 = vmatprep.subr.mxu0 0.0
    %2226 = vmatpush2.msra.mxu0 0.0
    %2227 = vmatprep.subr.mxu0 0.0
    %2228 = vmatpush2.msra.mxu0 0.0
    %2229 = vmatprep.subr.mxu0 0.0
    %2230 = vmatpush2.msra.mxu0 0.0
    %2231 = vmatprep.subr.mxu0 0.0
    %2232 = vmatpush2.msra.mxu0 0.0
    %2233 = vmatprep.subr.mxu0 0.0
    %2234 = vmatpush2.msra.mxu0 0.0
    %2235 = vmatprep.subr.mxu0 0.0
    %2236 = vmatpush2.msra.mxu0 0.0
    %2237 = vmatprep.subr.mxu0 0.0
    %2238 = vmatpush2.msra.mxu0 0.0
    %2239 = vmatprep.subr.mxu0 0.0
    %2240 = vmatpush2.msra.mxu0 0.0
    %2241 = vmatprep.subr.mxu0 0.0
    %2242 = vmatpush2.msra.mxu0 0.0
    %2243 = vmatprep.mubr.f32.mxu0 0.0
    %2244 = vmatmul.mubr.f32.gmra.mxu0 %v2177
    %v2245 = vpop.f32.mrf.mxu0
    %v2246 = vadd.f32 %v2174, %v2245
    %v2247 = vpop.f32.mrf.mxu0
    %2248 = vdwg.mxu0
    %v2249 = vxor.u32 %v2246, 2147483648
    %v2250 = vmul.f32 %v2249, 1.442695
    %v2251 = vpow.pop %v2250
    %v2252 = vadd.f32 %v2251, 1.0
    %v2253 = vrcp.pop %v2252
    %v2254 = vmul.f32 1.0, %v2253
    %v2255 = vtanh.pop %v2246
    %v2256 = vmul.f32 %v2254, %v1946
    %2258 = vrot.lane.b32.xlu0 %v2255, 64
    %v2259 = vpop.permute.xlu0 %2258
    %v2261 = vmul.f32 %v2254, %v2259
    %2263 = vrot.lane.b32.xlu0 %v2261, 32
    %v2264 = vpop.permute.xlu0 %2263
    %v2266 = vadd.f32 %v2256, %v2264
    %v2267 = vtanh.pop %v2266
    %2269 = vrot.lane.b32.xlu0 %v2267, 64
    %v2270 = vpop.permute.xlu0 %2269
    %v2272 = vmul.f32 %v2254, %v2270
    %v2275 = vunpack.c.l.s4 1966171168
    %v2276 = vunpack.c.0.s8 %v2275
    %v2277 = vlaneseq
    %v2278 = vshrl.u32 %v2277, 7
    %v2279 = vsub.s32 %v2276, %v2278
    %v2280 = vrot.slane %v2162, %v2279
    %v2281 = vcombine.high %v2280, %v2280
    %v2283 = vunpack.c.l.s4 1966171168
    %v2284 = vunpack.c.0.s8 %v2283
    %v2285 = vlaneseq
    %v2286 = vshrl.u32 %v2285, 7
    %v2287 = vsub.s32 %v2284, %v2286
    %v2288 = vrot.slane %v2280, %v2287
    %v2290 = vunpack.c.l.s4 1966171168
    %v2291 = vunpack.c.0.s8 %v2290
    %v2292 = vlaneseq
    %v2293 = vshrl.u32 %v2292, 7
    %v2294 = vsub.s32 %v2291, %v2293
    %v2295 = vrot.slane %v2281, %v2294
    %v2296 = vlaneseq
    %v2297 = vshrl.u32 %v2296, 7
    %v2298 = vsub.s32 0, %v2297
    %v2299 = vrot.slane %v2288, %v2298
    %v2300 = vlaneseq
    %v2301 = vshrl.u32 %v2300, 7
    %v2302 = vsub.s32 0, %v2301
    %v2303 = vrot.slane %v2295, %v2302
    %2304 = vrot.lane.b32.xlu0 %v2299, 32
    %v2305 = vpop.permute.xlu0 %2304
    %2306 = vrot.lane.b32.xlu0 %v2303, 32
    %v2307 = vpop.permute.xlu0 %2306
    %2310 = vst.msk [vmem:[#allocation2 + $0x6] sm:$0x1] %vm389, %v2305
    %2311 = vst.msk [vmem:[#allocation2 + $0xe] sm:$0x1] %vm389, %v2307
    %v2314 = vunpack.c.l.s4 1966171168
    %v2315 = vunpack.c.0.s8 %v2314
    %v2316 = vlaneseq
    %v2317 = vshrl.u32 %v2316, 7
    %v2318 = vsub.s32 %v2315, %v2317
    %v2319 = vrot.slane %v2272, %v2318
    %v2320 = vcombine.high %v2319, %v2319
    %v2322 = vunpack.c.l.s4 1966171168
    %v2323 = vunpack.c.0.s8 %v2322
    %v2324 = vlaneseq
    %v2325 = vshrl.u32 %v2324, 7
    %v2326 = vsub.s32 %v2323, %v2325
    %v2327 = vrot.slane %v2319, %v2326
    %v2329 = vunpack.c.l.s4 1966171168
    %v2330 = vunpack.c.0.s8 %v2329
    %v2331 = vlaneseq
    %v2332 = vshrl.u32 %v2331, 7
    %v2333 = vsub.s32 %v2330, %v2332
    %v2334 = vrot.slane %v2320, %v2333
    %v2335 = vlaneseq
    %v2336 = vshrl.u32 %v2335, 7
    %v2337 = vsub.s32 0, %v2336
    %v2338 = vrot.slane %v2327, %v2337
    %v2339 = vlaneseq
    %v2340 = vshrl.u32 %v2339, 7
    %v2341 = vsub.s32 0, %v2340
    %v2342 = vrot.slane %v2334, %v2341
    %2343 = vrot.lane.b32.xlu0 %v2338, 32
    %v2344 = vpop.permute.xlu0 %2343
    %2345 = vrot.lane.b32.xlu0 %v2342, 32
    %v2346 = vpop.permute.xlu0 %2345
    %2349 = vst.msk [vmem:[#allocation3 + $0x1] sm:$0x1] %vm389, %v2344
    %2350 = vst.msk [vmem:[#allocation3 + $0x9] sm:$0x1] %vm389, %v2346
    %v2351 = vld [vmem:[#allocation6 + $0x7] sm:$0x1]
    %v2352 = vld [vmem:[#allocation6 + $0xf] sm:$0x1]
    %v2355 = vrot.slane %v2352, 7
    %v2356 = vsel %vm118, %v2355, %v2351
    %2358 = vrot.lane.b32.xlu0 %v2162, 48
    %v2359 = vpop.permute.xlu0 %2358
    %v2361 = vsel %vm121, %v2356, %v2359
    %v2362 = vld [vmem:[#allocation6] sm:$0x1]
    %v2363 = vld [vmem:[#allocation6 + $0x8] sm:$0x1]
    %v2366 = vrot.slane %v2363, 7
    %v2367 = vsel %vm118, %v2366, %v2362
    %2369 = vrot.lane.b32.xlu0 %v2272, 48
    %v2370 = vpop.permute.xlu0 %2369
    %v2372 = vsel %vm121, %v2367, %v2370
    %v2373 = vld [vmem:[%s1] sm:$0xff]
    %v2374 = vld [vmem:[%s1 + $0x8] sm:$0xff]
    %v2375 = vld [vmem:[%s1 + $0x10] sm:$0xff]
    %v2376 = vld [vmem:[%s1 + $0x18] sm:$0xff]
    %v2377 = vld [vmem:[%s1 + $0x20] sm:$0xff]
    %v2378 = vld [vmem:[%s1 + $0x28] sm:$0xff]
    %v2379 = vld [vmem:[%s2] sm:$0x1]
    %v2381 = vlaneseq
    %v2382 = vshrl.u32 %v2381, 7
    %v2383 = vsub.s32 0, %v2382
    %v2384 = vrot.slane %v2379, %v2383
    %v2387 = vsel %vm144, %v2361, 0
    %2389 = vmatprep.subr.mxu0 0.0
    %2390 = vmatpush1.msra.mxu0 0.0
    %2391 = vmatprep.subr.mxu0 0.0
    %2392 = vmatpush1.msra.mxu0 0.0
    %2393 = vmatprep.subr.mxu0 0.0
    %2394 = vmatpush1.msra.mxu0 0.0
    %2395 = vmatprep.subr.mxu0 0.0
    %2396 = vmatpush1.msra.mxu0 0.0
    %2397 = vmatprep.subr.mxu0 0.0
    %2398 = vmatpush1.msra.mxu0 0.0
    %2399 = vmatprep.subr.mxu0 0.0
    %2400 = vmatpush1.msra.mxu0 0.0
    %2401 = vmatprep.subr.mxu0 0.0
    %2402 = vmatpush1.msra.mxu0 0.0
    %2403 = vmatprep.subr.mxu0 0.0
    %2404 = vmatpush1.msra.mxu0 0.0
    %2405 = vmatprep.subr.mxu0 0.0
    %2406 = vmatpush1.msra.mxu0 0.0
    %2407 = vmatprep.subr.mxu0 0.0
    %2408 = vmatpush1.msra.mxu0 0.0
    %2409 = vmatprep.subr.mxu0 0.0
    %2410 = vmatpush1.msra.mxu0 %v2378
    %2411 = vmatprep.subr.mxu0 0.0
    %2412 = vmatpush1.msra.mxu0 %v2377
    %2413 = vmatprep.subr.mxu0 0.0
    %2414 = vmatpush1.msra.mxu0 %v2376
    %2415 = vmatprep.subr.mxu0 0.0
    %2416 = vmatpush1.msra.mxu0 %v2375
    %2417 = vmatprep.subr.mxu0 0.0
    %2418 = vmatpush1.msra.mxu0 %v2374
    %2419 = vmatprep.subr.mxu0 0.0
    %2420 = vmatpush1.msra.mxu0 %v2373
    %2421 = vmatprep.subr.mxu0 0.0
    %2422 = vmatpush2.msra.mxu0 0.0
    %2423 = vmatprep.subr.mxu0 0.0
    %2424 = vmatpush2.msra.mxu0 0.0
    %2425 = vmatprep.subr.mxu0 0.0
    %2426 = vmatpush2.msra.mxu0 0.0
    %2427 = vmatprep.subr.mxu0 0.0
    %2428 = vmatpush2.msra.mxu0 0.0
    %2429 = vmatprep.subr.mxu0 0.0
    %2430 = vmatpush2.msra.mxu0 0.0
    %2431 = vmatprep.subr.mxu0 0.0
    %2432 = vmatpush2.msra.mxu0 0.0
    %2433 = vmatprep.subr.mxu0 0.0
    %2434 = vmatpush2.msra.mxu0 0.0
    %2435 = vmatprep.subr.mxu0 0.0
    %2436 = vmatpush2.msra.mxu0 0.0
    %2437 = vmatprep.subr.mxu0 0.0
    %2438 = vmatpush2.msra.mxu0 0.0
    %2439 = vmatprep.subr.mxu0 0.0
    %2440 = vmatpush2.msra.mxu0 0.0
    %2441 = vmatprep.subr.mxu0 0.0
    %2442 = vmatpush2.msra.mxu0 0.0
    %2443 = vmatprep.subr.mxu0 0.0
    %2444 = vmatpush2.msra.mxu0 0.0
    %2445 = vmatprep.subr.mxu0 0.0
    %2446 = vmatpush2.msra.mxu0 0.0
    %2447 = vmatprep.subr.mxu0 0.0
    %2448 = vmatpush2.msra.mxu0 0.0
    %2449 = vmatprep.subr.mxu0 0.0
    %2450 = vmatpush2.msra.mxu0 0.0
    %2451 = vmatprep.subr.mxu0 0.0
    %2452 = vmatpush2.msra.mxu0 0.0
    %2453 = vmatprep.mubr.f32.mxu0 0.0
    %2454 = vmatmul.mubr.f32.gmra.mxu0 %v2387
    %v2455 = vpop.f32.mrf.mxu0
    %v2456 = vadd.f32 %v2384, %v2455
    %v2457 = vpop.f32.mrf.mxu0
    %2458 = vdwg.mxu0
    %v2459 = vxor.u32 %v2456, 2147483648
    %v2460 = vmul.f32 %v2459, 1.442695
    %v2461 = vpow.pop %v2460
    %v2462 = vadd.f32 %v2461, 1.0
    %v2463 = vrcp.pop %v2462
    %v2464 = vmul.f32 1.0, %v2463
    %v2465 = vtanh.pop %v2456
    %v2466 = vmul.f32 %v2464, %v2156
    %2468 = vrot.lane.b32.xlu0 %v2465, 64
    %v2469 = vpop.permute.xlu0 %2468
    %v2471 = vmul.f32 %v2464, %v2469
    %2473 = vrot.lane.b32.xlu0 %v2471, 32
    %v2474 = vpop.permute.xlu0 %2473
    %v2476 = vadd.f32 %v2466, %v2474
    %v2477 = vtanh.pop %v2476
    %2479 = vrot.lane.b32.xlu0 %v2477, 64
    %v2480 = vpop.permute.xlu0 %2479
    %v2482 = vmul.f32 %v2464, %v2480
    %v2483 = vld [vmem:[#allocation9] sm:$0xff]
    %v2484 = vld [vmem:[#allocation9 + $0x8] sm:$0xff]
    %v2485 = vld [vmem:[#allocation9 + $0x10] sm:$0xff]
    %v2486 = vld [vmem:[#allocation9 + $0x18] sm:$0xff]
    %v2487 = vld [vmem:[#allocation9 + $0x20] sm:$0xff]
    %v2488 = vld [vmem:[#allocation9 + $0x28] sm:$0xff]
    %v2489 = vld [vmem:[%s4] sm:$0x1]
    %v2491 = vlaneseq
    %v2492 = vshrl.u32 %v2491, 7
    %v2493 = vsub.s32 0, %v2492
    %v2494 = vrot.slane %v2489, %v2493
    %v2497 = vsel %vm144, %v2372, 0
    %2499 = vmatprep.subr.mxu0 0.0
    %2500 = vmatpush1.msra.mxu0 0.0
    %2501 = vmatprep.subr.mxu0 0.0
    %2502 = vmatpush1.msra.mxu0 0.0
    %2503 = vmatprep.subr.mxu0 0.0
    %2504 = vmatpush1.msra.mxu0 0.0
    %2505 = vmatprep.subr.mxu0 0.0
    %2506 = vmatpush1.msra.mxu0 0.0
    %2507 = vmatprep.subr.mxu0 0.0
    %2508 = vmatpush1.msra.mxu0 0.0
    %2509 = vmatprep.subr.mxu0 0.0
    %2510 = vmatpush1.msra.mxu0 0.0
    %2511 = vmatprep.subr.mxu0 0.0
    %2512 = vmatpush1.msra.mxu0 0.0
    %2513 = vmatprep.subr.mxu0 0.0
    %2514 = vmatpush1.msra.mxu0 0.0
    %2515 = vmatprep.subr.mxu0 0.0
    %2516 = vmatpush1.msra.mxu0 0.0
    %2517 = vmatprep.subr.mxu0 0.0
    %2518 = vmatpush1.msra.mxu0 0.0
    %2519 = vmatprep.subr.mxu0 0.0
    %2520 = vmatpush1.msra.mxu0 %v2488
    %2521 = vmatprep.subr.mxu0 0.0
    %2522 = vmatpush1.msra.mxu0 %v2487
    %2523 = vmatprep.subr.mxu0 0.0
    %2524 = vmatpush1.msra.mxu0 %v2486
    %2525 = vmatprep.subr.mxu0 0.0
    %2526 = vmatpush1.msra.mxu0 %v2485
    %2527 = vmatprep.subr.mxu0 0.0
    %2528 = vmatpush1.msra.mxu0 %v2484
    %2529 = vmatprep.subr.mxu0 0.0
    %2530 = vmatpush1.msra.mxu0 %v2483
    %2531 = vmatprep.subr.mxu0 0.0
    %2532 = vmatpush2.msra.mxu0 0.0
    %2533 = vmatprep.subr.mxu0 0.0
    %2534 = vmatpush2.msra.mxu0 0.0
    %2535 = vmatprep.subr.mxu0 0.0
    %2536 = vmatpush2.msra.mxu0 0.0
    %2537 = vmatprep.subr.mxu0 0.0
    %2538 = vmatpush2.msra.mxu0 0.0
    %2539 = vmatprep.subr.mxu0 0.0
    %2540 = vmatpush2.msra.mxu0 0.0
    %2541 = vmatprep.subr.mxu0 0.0
    %2542 = vmatpush2.msra.mxu0 0.0
    %2543 = vmatprep.subr.mxu0 0.0
    %2544 = vmatpush2.msra.mxu0 0.0
    %2545 = vmatprep.subr.mxu0 0.0
    %2546 = vmatpush2.msra.mxu0 0.0
    %2547 = vmatprep.subr.mxu0 0.0
    %2548 = vmatpush2.msra.mxu0 0.0
    %2549 = vmatprep.subr.mxu0 0.0
    %2550 = vmatpush2.msra.mxu0 0.0
    %2551 = vmatprep.subr.mxu0 0.0
    %2552 = vmatpush2.msra.mxu0 0.0
    %2553 = vmatprep.subr.mxu0 0.0
    %2554 = vmatpush2.msra.mxu0 0.0
    %2555 = vmatprep.subr.mxu0 0.0
    %2556 = vmatpush2.msra.mxu0 0.0
    %2557 = vmatprep.subr.mxu0 0.0
    %2558 = vmatpush2.msra.mxu0 0.0
    %2559 = vmatprep.subr.mxu0 0.0
    %2560 = vmatpush2.msra.mxu0 0.0
    %2561 = vmatprep.subr.mxu0 0.0
    %2562 = vmatpush2.msra.mxu0 0.0
    %2563 = vmatprep.mubr.f32.mxu0 0.0
    %2564 = vmatmul.mubr.f32.gmra.mxu0 %v2497
    %v2565 = vpop.f32.mrf.mxu0
    %v2566 = vadd.f32 %v2494, %v2565
    %v2567 = vpop.f32.mrf.mxu0
    %2568 = vdwg.mxu0
    %v2569 = vxor.u32 %v2566, 2147483648
    %v2570 = vmul.f32 %v2569, 1.442695
    %v2571 = vpow.pop %v2570
    %v2572 = vadd.f32 %v2571, 1.0
    %v2573 = vrcp.pop %v2572
    %v2574 = vmul.f32 1.0, %v2573
    %v2575 = vtanh.pop %v2566
    %v2576 = vmul.f32 %v2574, %v2266
    %2578 = vrot.lane.b32.xlu0 %v2575, 64
    %v2579 = vpop.permute.xlu0 %2578
    %v2581 = vmul.f32 %v2574, %v2579
    %2583 = vrot.lane.b32.xlu0 %v2581, 32
    %v2584 = vpop.permute.xlu0 %2583
    %v2586 = vadd.f32 %v2576, %v2584
    %v2587 = vtanh.pop %v2586
    %2589 = vrot.lane.b32.xlu0 %v2587, 64
    %v2590 = vpop.permute.xlu0 %2589
    %v2592 = vmul.f32 %v2574, %v2590
    %v2595 = vunpack.c.l.s4 1966171168
    %v2596 = vunpack.c.0.s8 %v2595
    %v2597 = vlaneseq
    %v2598 = vshrl.u32 %v2597, 7
    %v2599 = vsub.s32 %v2596, %v2598
    %v2600 = vrot.slane %v2482, %v2599
    %v2601 = vcombine.high %v2600, %v2600
    %v2603 = vunpack.c.l.s4 1966171168
    %v2604 = vunpack.c.0.s8 %v2603
    %v2605 = vlaneseq
    %v2606 = vshrl.u32 %v2605, 7
    %v2607 = vsub.s32 %v2604, %v2606
    %v2608 = vrot.slane %v2600, %v2607
    %v2610 = vunpack.c.l.s4 1966171168
    %v2611 = vunpack.c.0.s8 %v2610
    %v2612 = vlaneseq
    %v2613 = vshrl.u32 %v2612, 7
    %v2614 = vsub.s32 %v2611, %v2613
    %v2615 = vrot.slane %v2601, %v2614
    %v2616 = vlaneseq
    %v2617 = vshrl.u32 %v2616, 7
    %v2618 = vsub.s32 0, %v2617
    %v2619 = vrot.slane %v2608, %v2618
    %v2620 = vlaneseq
    %v2621 = vshrl.u32 %v2620, 7
    %v2622 = vsub.s32 0, %v2621
    %v2623 = vrot.slane %v2615, %v2622
    %2624 = vrot.lane.b32.xlu0 %v2619, 32
    %v2625 = vpop.permute.xlu0 %2624
    %2626 = vrot.lane.b32.xlu0 %v2623, 32
    %v2627 = vpop.permute.xlu0 %2626
    %2630 = vst.msk [vmem:[#allocation2 + $0x7] sm:$0x1] %vm389, %v2625
    %2631 = vst.msk [vmem:[#allocation2 + $0xf] sm:$0x1] %vm389, %v2627
    %v2634 = vunpack.c.l.s4 1966171168
    %v2635 = vunpack.c.0.s8 %v2634
    %v2636 = vlaneseq
    %v2637 = vshrl.u32 %v2636, 7
    %v2638 = vsub.s32 %v2635, %v2637
    %v2639 = vrot.slane %v2592, %v2638
    %v2640 = vcombine.high %v2639, %v2639
    %v2642 = vunpack.c.l.s4 1966171168
    %v2643 = vunpack.c.0.s8 %v2642
    %v2644 = vlaneseq
    %v2645 = vshrl.u32 %v2644, 7
    %v2646 = vsub.s32 %v2643, %v2645
    %v2647 = vrot.slane %v2639, %v2646
    %v2649 = vunpack.c.l.s4 1966171168
    %v2650 = vunpack.c.0.s8 %v2649
    %v2651 = vlaneseq
    %v2652 = vshrl.u32 %v2651, 7
    %v2653 = vsub.s32 %v2650, %v2652
    %v2654 = vrot.slane %v2640, %v2653
    %v2655 = vlaneseq
    %v2656 = vshrl.u32 %v2655, 7
    %v2657 = vsub.s32 0, %v2656
    %v2658 = vrot.slane %v2647, %v2657
    %v2659 = vlaneseq
    %v2660 = vshrl.u32 %v2659, 7
    %v2661 = vsub.s32 0, %v2660
    %v2662 = vrot.slane %v2654, %v2661
    %2663 = vrot.lane.b32.xlu0 %v2658, 32
    %v2664 = vpop.permute.xlu0 %2663
    %2665 = vrot.lane.b32.xlu0 %v2662, 32
    %v2666 = vpop.permute.xlu0 %2665
    %2669 = vst.msk [vmem:[#allocation3] sm:$0x1] %vm389, %v2664
    %2670 = vst.msk [vmem:[#allocation3 + $0x8] sm:$0x1] %vm389, %v2666
    %v2671 = vld [vmem:[#allocation2] sm:$0x1]
    %v2672 = vld [vmem:[#allocation2 + $0x8] sm:$0x1]
    %v2673 = vld [vmem:[#allocation3] sm:$0x1]
    %v2674 = vld [vmem:[#allocation3 + $0x8] sm:$0x1]
    %v2677 = vrot.slane %v2672, 7
    %v2678 = vsel %vm118, %v2677, %v2671
    %v2682 = vrot.slane %v2674, 7
    %v2683 = vsel %vm118, %v2682, %v2673
    %2684 = vrot.lane.b32.xlu0 %v2683, 32
    %v2685 = vpop.permute.xlu0 %2684
    %vm2687 = vcmask 261120
    %v2688 = vsel %vm2687, %v2678, %v2685
    %vm2689 = vcmask 523264
    %v2690 = vsel %vm2689, %v2688, 0.0
    %v2691 = vld [vmem:[#allocation2 + $0x7] sm:$0x1]
    %v2692 = vld [vmem:[#allocation2 + $0xf] sm:$0x1]
    %v2693 = vld [vmem:[#allocation3 + $0x7] sm:$0x1]
    %v2694 = vld [vmem:[#allocation3 + $0xf] sm:$0x1]
    %v2697 = vrot.slane %v2692, 7
    %v2698 = vsel %vm118, %v2697, %v2691
    %v2702 = vrot.slane %v2694, 7
    %v2703 = vsel %vm118, %v2702, %v2693
    %2704 = vrot.lane.b32.xlu0 %v2703, 32
    %v2705 = vpop.permute.xlu0 %2704
    %v2707 = vsel %vm2687, %v2698, %v2705
    %v2708 = vsel %vm2689, %v2707, 0.0
    %v2709 = vld [vmem:[%s5] sm:$0xff]
    %v2710 = vld [vmem:[%s5 + $0x8] sm:$0xff]
    %v2711 = vld [vmem:[%s5 + $0x10] sm:$0xff]
    %v2712 = vld [vmem:[%s5 + $0x18] sm:$0xff]
    %v2713 = vld [vmem:[%s5 + $0x20] sm:$0xff]
    %v2714 = vld [vmem:[%s5 + $0x28] sm:$0xff]
    %v2715 = vld [vmem:[%s5 + $0x30] sm:$0xff]
    %v2716 = vld [vmem:[%s5 + $0x38] sm:$0xff]
    %v2717 = vld [vmem:[%s5 + $0x40] sm:$0xff]
    %v2718 = vld [vmem:[%s5 + $0x48] sm:$0xff]
    %v2719 = vld [vmem:[%s5 + $0x50] sm:$0xff]
    %v2720 = vld [vmem:[%s5 + $0x58] sm:$0xff]
    %v2721 = vld [vmem:[%s6] sm:$0x1]
    %v2723 = vlaneseq
    %v2724 = vshrl.u32 %v2723, 7
    %v2725 = vsub.s32 0, %v2724
    %v2726 = vrot.slane %v2721, %v2725
    %vm2728 = vcmask 785408
    %v2730 = vsel %vm2728, %v2690, 0
    %2732 = vmatprep.subr.mxu0 0.0
    %2733 = vmatpush1.msra.mxu0 0.0
    %2734 = vmatprep.subr.mxu0 0.0
    %2735 = vmatpush1.msra.mxu0 0.0
    %2736 = vmatprep.subr.mxu0 0.0
    %2737 = vmatpush1.msra.mxu0 0.0
    %2738 = vmatprep.subr.mxu0 0.0
    %2739 = vmatpush1.msra.mxu0 0.0
    %2740 = vmatprep.subr.mxu0 0.0
    %2741 = vmatpush1.msra.mxu0 %v2720
    %2742 = vmatprep.subr.mxu0 0.0
    %2743 = vmatpush1.msra.mxu0 %v2719
    %2744 = vmatprep.subr.mxu0 0.0
    %2745 = vmatpush1.msra.mxu0 %v2718
    %2746 = vmatprep.subr.mxu0 0.0
    %2747 = vmatpush1.msra.mxu0 %v2717
    %2748 = vmatprep.subr.mxu0 0.0
    %2749 = vmatpush1.msra.mxu0 %v2716
    %2750 = vmatprep.subr.mxu0 0.0
    %2751 = vmatpush1.msra.mxu0 %v2715
    %2752 = vmatprep.subr.mxu0 0.0
    %2753 = vmatpush1.msra.mxu0 %v2714
    %2754 = vmatprep.subr.mxu0 0.0
    %2755 = vmatpush1.msra.mxu0 %v2713
    %2756 = vmatprep.subr.mxu0 0.0
    %2757 = vmatpush1.msra.mxu0 %v2712
    %2758 = vmatprep.subr.mxu0 0.0
    %2759 = vmatpush1.msra.mxu0 %v2711
    %2760 = vmatprep.subr.mxu0 0.0
    %2761 = vmatpush1.msra.mxu0 %v2710
    %2762 = vmatprep.subr.mxu0 0.0
    %2763 = vmatpush1.msra.mxu0 %v2709
    %2764 = vmatprep.subr.mxu0 0.0
    %2765 = vmatpush2.msra.mxu0 0.0
    %2766 = vmatprep.subr.mxu0 0.0
    %2767 = vmatpush2.msra.mxu0 0.0
    %2768 = vmatprep.subr.mxu0 0.0
    %2769 = vmatpush2.msra.mxu0 0.0
    %2770 = vmatprep.subr.mxu0 0.0
    %2771 = vmatpush2.msra.mxu0 0.0
    %2772 = vmatprep.subr.mxu0 0.0
    %2773 = vmatpush2.msra.mxu0 0.0
    %2774 = vmatprep.subr.mxu0 0.0
    %2775 = vmatpush2.msra.mxu0 0.0
    %2776 = vmatprep.subr.mxu0 0.0
    %2777 = vmatpush2.msra.mxu0 0.0
    %2778 = vmatprep.subr.mxu0 0.0
    %2779 = vmatpush2.msra.mxu0 0.0
    %2780 = vmatprep.subr.mxu0 0.0
    %2781 = vmatpush2.msra.mxu0 0.0
    %2782 = vmatprep.subr.mxu0 0.0
    %2783 = vmatpush2.msra.mxu0 0.0
    %2784 = vmatprep.subr.mxu0 0.0
    %2785 = vmatpush2.msra.mxu0 0.0
    %2786 = vmatprep.subr.mxu0 0.0
    %2787 = vmatpush2.msra.mxu0 0.0
    %2788 = vmatprep.subr.mxu0 0.0
    %2789 = vmatpush2.msra.mxu0 0.0
    %2790 = vmatprep.subr.mxu0 0.0
    %2791 = vmatpush2.msra.mxu0 0.0
    %2792 = vmatprep.subr.mxu0 0.0
    %2793 = vmatpush2.msra.mxu0 0.0
    %2794 = vmatprep.subr.mxu0 0.0
    %2795 = vmatpush2.msra.mxu0 0.0
    %2796 = vmatprep.mubr.f32.mxu0 0.0
    %2797 = vmatmul.mubr.f32.gmra.mxu0 %v2730
    %v2798 = vpop.f32.mrf.mxu0
    %v2799 = vadd.f32 %v2726, %v2798
    %v2800 = vpop.f32.mrf.mxu0
    %2801 = vdwg.mxu0
    %v2802 = vxor.u32 %v2799, 2147483648
    %v2803 = vmul.f32 %v2802, 1.442695
    %v2804 = vpow.pop %v2803
    %v2805 = vadd.f32 %v2804, 1.0
    %v2806 = vrcp.pop %v2805
    %v2807 = vmul.f32 1.0, %v2806
    %v2808 = vtanh.pop %v2799
    %v2809 = vmul.f32 %v2807, 0.0
    %2811 = vrot.lane.b32.xlu0 %v2808, 64
    %v2812 = vpop.permute.xlu0 %2811
    %v2814 = vmul.f32 %v2807, %v2812
    %2816 = vrot.lane.b32.xlu0 %v2814, 32
    %v2817 = vpop.permute.xlu0 %2816
    %v2819 = vadd.f32 %v2809, %v2817
    %v2820 = vtanh.pop %v2819
    %2822 = vrot.lane.b32.xlu0 %v2820, 64
    %v2823 = vpop.permute.xlu0 %2822
    %v2825 = vmul.f32 %v2807, %v2823
    %v2826 = vld [vmem:[#allocation11] sm:$0xff]
    %v2827 = vld [vmem:[#allocation11 + $0x8] sm:$0xff]
    %v2828 = vld [vmem:[#allocation11 + $0x10] sm:$0xff]
    %v2829 = vld [vmem:[#allocation11 + $0x18] sm:$0xff]
    %v2830 = vld [vmem:[#allocation11 + $0x20] sm:$0xff]
    %v2831 = vld [vmem:[#allocation11 + $0x28] sm:$0xff]
    %v2832 = vld [vmem:[#allocation11 + $0x30] sm:$0xff]
    %v2833 = vld [vmem:[#allocation11 + $0x38] sm:$0xff]
    %v2834 = vld [vmem:[#allocation11 + $0x40] sm:$0xff]
    %v2835 = vld [vmem:[#allocation11 + $0x48] sm:$0xff]
    %v2836 = vld [vmem:[#allocation11 + $0x50] sm:$0xff]
    %v2837 = vld [vmem:[#allocation11 + $0x58] sm:$0xff]
    %v2838 = vld [vmem:[%s8] sm:$0x1]
    %v2840 = vlaneseq
    %v2841 = vshrl.u32 %v2840, 7
    %v2842 = vsub.s32 0, %v2841
    %v2843 = vrot.slane %v2838, %v2842
    %v2846 = vsel %vm2728, %v2708, 0
    %2848 = vmatprep.subr.mxu0 0.0
    %2849 = vmatpush1.msra.mxu0 0.0
    %2850 = vmatprep.subr.mxu0 0.0
    %2851 = vmatpush1.msra.mxu0 0.0
    %2852 = vmatprep.subr.mxu0 0.0
    %2853 = vmatpush1.msra.mxu0 0.0
    %2854 = vmatprep.subr.mxu0 0.0
    %2855 = vmatpush1.msra.mxu0 0.0
    %2856 = vmatprep.subr.mxu0 0.0
    %2857 = vmatpush1.msra.mxu0 %v2837
    %2858 = vmatprep.subr.mxu0 0.0
    %2859 = vmatpush1.msra.mxu0 %v2836
    %2860 = vmatprep.subr.mxu0 0.0
    %2861 = vmatpush1.msra.mxu0 %v2835
    %2862 = vmatprep.subr.mxu0 0.0
    %2863 = vmatpush1.msra.mxu0 %v2834
    %2864 = vmatprep.subr.mxu0 0.0
    %2865 = vmatpush1.msra.mxu0 %v2833
    %2866 = vmatprep.subr.mxu0 0.0
    %2867 = vmatpush1.msra.mxu0 %v2832
    %2868 = vmatprep.subr.mxu0 0.0
    %2869 = vmatpush1.msra.mxu0 %v2831
    %2870 = vmatprep.subr.mxu0 0.0
    %2871 = vmatpush1.msra.mxu0 %v2830
    %2872 = vmatprep.subr.mxu0 0.0
    %2873 = vmatpush1.msra.mxu0 %v2829
    %2874 = vmatprep.subr.mxu0 0.0
    %2875 = vmatpush1.msra.mxu0 %v2828
    %2876 = vmatprep.subr.mxu0 0.0
    %2877 = vmatpush1.msra.mxu0 %v2827
    %2878 = vmatprep.subr.mxu0 0.0
    %2879 = vmatpush1.msra.mxu0 %v2826
    %2880 = vmatprep.subr.mxu0 0.0
    %2881 = vmatpush2.msra.mxu0 0.0
    %2882 = vmatprep.subr.mxu0 0.0
    %2883 = vmatpush2.msra.mxu0 0.0
    %2884 = vmatprep.subr.mxu0 0.0
    %2885 = vmatpush2.msra.mxu0 0.0
    %2886 = vmatprep.subr.mxu0 0.0
    %2887 = vmatpush2.msra.mxu0 0.0
    %2888 = vmatprep.subr.mxu0 0.0
    %2889 = vmatpush2.msra.mxu0 0.0
    %2890 = vmatprep.subr.mxu0 0.0
    %2891 = vmatpush2.msra.mxu0 0.0
    %2892 = vmatprep.subr.mxu0 0.0
    %2893 = vmatpush2.msra.mxu0 0.0
    %2894 = vmatprep.subr.mxu0 0.0
    %2895 = vmatpush2.msra.mxu0 0.0
    %2896 = vmatprep.subr.mxu0 0.0
    %2897 = vmatpush2.msra.mxu0 0.0
    %2898 = vmatprep.subr.mxu0 0.0
    %2899 = vmatpush2.msra.mxu0 0.0
    %2900 = vmatprep.subr.mxu0 0.0
    %2901 = vmatpush2.msra.mxu0 0.0
    %2902 = vmatprep.subr.mxu0 0.0
    %2903 = vmatpush2.msra.mxu0 0.0
    %2904 = vmatprep.subr.mxu0 0.0
    %2905 = vmatpush2.msra.mxu0 0.0
    %2906 = vmatprep.subr.mxu0 0.0
    %2907 = vmatpush2.msra.mxu0 0.0
    %2908 = vmatprep.subr.mxu0 0.0
    %2909 = vmatpush2.msra.mxu0 0.0
    %2910 = vmatprep.subr.mxu0 0.0
    %2911 = vmatpush2.msra.mxu0 0.0
    %2912 = vmatprep.mubr.f32.mxu0 0.0
    %2913 = vmatmul.mubr.f32.gmra.mxu0 %v2846
    %v2914 = vpop.f32.mrf.mxu0
    %v2915 = vadd.f32 %v2843, %v2914
    %v2916 = vpop.f32.mrf.mxu0
    %2917 = vdwg.mxu0
    %v2918 = vxor.u32 %v2915, 2147483648
    %v2919 = vmul.f32 %v2918, 1.442695
    %v2920 = vpow.pop %v2919
    %v2921 = vadd.f32 %v2920, 1.0
    %v2922 = vrcp.pop %v2921
    %v2923 = vmul.f32 1.0, %v2922
    %v2924 = vtanh.pop %v2915
    %v2925 = vmul.f32 %v2923, 0.0
    %2927 = vrot.lane.b32.xlu0 %v2924, 64
    %v2928 = vpop.permute.xlu0 %2927
    %v2930 = vmul.f32 %v2923, %v2928
    %2932 = vrot.lane.b32.xlu0 %v2930, 32
    %v2933 = vpop.permute.xlu0 %2932
    %v2935 = vadd.f32 %v2925, %v2933
    %v2936 = vtanh.pop %v2935
    %2938 = vrot.lane.b32.xlu0 %v2936, 64
    %v2939 = vpop.permute.xlu0 %2938
    %v2941 = vmul.f32 %v2923, %v2939
    %v2944 = vunpack.c.l.s4 1966171168
    %v2945 = vunpack.c.0.s8 %v2944
    %v2946 = vlaneseq
    %v2947 = vshrl.u32 %v2946, 7
    %v2948 = vsub.s32 %v2945, %v2947
    %v2949 = vrot.slane %v2825, %v2948
    %v2950 = vcombine.high %v2949, %v2949
    %v2952 = vunpack.c.l.s4 1966171168
    %v2953 = vunpack.c.0.s8 %v2952
    %v2954 = vlaneseq
    %v2955 = vshrl.u32 %v2954, 7
    %v2956 = vsub.s32 %v2953, %v2955
    %v2957 = vrot.slane %v2949, %v2956
    %v2959 = vunpack.c.l.s4 1966171168
    %v2960 = vunpack.c.0.s8 %v2959
    %v2961 = vlaneseq
    %v2962 = vshrl.u32 %v2961, 7
    %v2963 = vsub.s32 %v2960, %v2962
    %v2964 = vrot.slane %v2950, %v2963
    %v2965 = vlaneseq
    %v2966 = vshrl.u32 %v2965, 7
    %v2967 = vsub.s32 0, %v2966
    %v2968 = vrot.slane %v2957, %v2967
    %v2969 = vlaneseq
    %v2970 = vshrl.u32 %v2969, 7
    %v2971 = vsub.s32 0, %v2970
    %v2972 = vrot.slane %v2964, %v2971
    %2973 = vrot.lane.b32.xlu0 %v2968, 32
    %v2974 = vpop.permute.xlu0 %2973
    %2975 = vrot.lane.b32.xlu0 %v2972, 32
    %v2976 = vpop.permute.xlu0 %2975
    %2979 = vst.msk [vmem:[#allocation4] sm:$0x1] %vm389, %v2974
    %2980 = vst.msk [vmem:[#allocation4 + $0x8] sm:$0x1] %vm389, %v2976
    %v2983 = vunpack.c.l.s4 1966171168
    %v2984 = vunpack.c.0.s8 %v2983
    %v2985 = vlaneseq
    %v2986 = vshrl.u32 %v2985, 7
    %v2987 = vsub.s32 %v2984, %v2986
    %v2988 = vrot.slane %v2941, %v2987
    %v2989 = vcombine.high %v2988, %v2988
    %v2991 = vunpack.c.l.s4 1966171168
    %v2992 = vunpack.c.0.s8 %v2991
    %v2993 = vlaneseq
    %v2994 = vshrl.u32 %v2993, 7
    %v2995 = vsub.s32 %v2992, %v2994
    %v2996 = vrot.slane %v2988, %v2995
    %v2998 = vunpack.c.l.s4 1966171168
    %v2999 = vunpack.c.0.s8 %v2998
    %v3000 = vlaneseq
    %v3001 = vshrl.u32 %v3000, 7
    %v3002 = vsub.s32 %v2999, %v3001
    %v3003 = vrot.slane %v2989, %v3002
    %v3004 = vlaneseq
    %v3005 = vshrl.u32 %v3004, 7
    %v3006 = vsub.s32 0, %v3005
    %v3007 = vrot.slane %v2996, %v3006
    %v3008 = vlaneseq
    %v3009 = vshrl.u32 %v3008, 7
    %v3010 = vsub.s32 0, %v3009
    %v3011 = vrot.slane %v3003, %v3010
    %3012 = vrot.lane.b32.xlu0 %v3007, 32
    %v3013 = vpop.permute.xlu0 %3012
    %3014 = vrot.lane.b32.xlu0 %v3011, 32
    %v3015 = vpop.permute.xlu0 %3014
    %3018 = vst.msk [vmem:[#allocation5 + $0x7] sm:$0x1] %vm389, %v3013
    %3019 = vst.msk [vmem:[#allocation5 + $0xf] sm:$0x1] %vm389, %v3015
    %v3020 = vld [vmem:[#allocation2 + $0x1] sm:$0x1]
    %v3021 = vld [vmem:[#allocation2 + $0x9] sm:$0x1]
    %v3022 = vld [vmem:[#allocation3 + $0x1] sm:$0x1]
    %v3023 = vld [vmem:[#allocation3 + $0x9] sm:$0x1]
    %v3026 = vrot.slane %v3021, 7
    %v3027 = vsel %vm118, %v3026, %v3020
    %v3031 = vrot.slane %v3023, 7
    %v3032 = vsel %vm118, %v3031, %v3022
    %3033 = vrot.lane.b32.xlu0 %v3032, 32
    %v3034 = vpop.permute.xlu0 %3033
    %3036 = vrot.lane.b32.xlu0 %v2825, 96
    %v3037 = vpop.permute.xlu0 %3036
    %v3039 = vsel %vm2687, %v3027, %v3034
    %v3040 = vsel %vm2689, %v3039, %v3037
    %v3041 = vld [vmem:[#allocation2 + $0x6] sm:$0x1]
    %v3042 = vld [vmem:[#allocation2 + $0xe] sm:$0x1]
    %v3043 = vld [vmem:[#allocation3 + $0x6] sm:$0x1]
    %v3044 = vld [vmem:[#allocation3 + $0xe] sm:$0x1]
    %v3047 = vrot.slane %v3042, 7
    %v3048 = vsel %vm118, %v3047, %v3041
    %v3052 = vrot.slane %v3044, 7
    %v3053 = vsel %vm118, %v3052, %v3043
    %3054 = vrot.lane.b32.xlu0 %v3053, 32
    %v3055 = vpop.permute.xlu0 %3054
    %3057 = vrot.lane.b32.xlu0 %v2941, 96
    %v3058 = vpop.permute.xlu0 %3057
    %v3060 = vsel %vm2687, %v3048, %v3055
    %v3061 = vsel %vm2689, %v3060, %v3058
    %v3062 = vld [vmem:[%s5] sm:$0xff]
    %v3063 = vld [vmem:[%s5 + $0x8] sm:$0xff]
    %v3064 = vld [vmem:[%s5 + $0x10] sm:$0xff]
    %v3065 = vld [vmem:[%s5 + $0x18] sm:$0xff]
    %v3066 = vld [vmem:[%s5 + $0x20] sm:$0xff]
    %v3067 = vld [vmem:[%s5 + $0x28] sm:$0xff]
    %v3068 = vld [vmem:[%s5 + $0x30] sm:$0xff]
    %v3069 = vld [vmem:[%s5 + $0x38] sm:$0xff]
    %v3070 = vld [vmem:[%s5 + $0x40] sm:$0xff]
    %v3071 = vld [vmem:[%s5 + $0x48] sm:$0xff]
    %v3072 = vld [vmem:[%s5 + $0x50] sm:$0xff]
    %v3073 = vld [vmem:[%s5 + $0x58] sm:$0xff]
    %v3074 = vld [vmem:[%s6] sm:$0x1]
    %v3076 = vlaneseq
    %v3077 = vshrl.u32 %v3076, 7
    %v3078 = vsub.s32 0, %v3077
    %v3079 = vrot.slane %v3074, %v3078
    %v3082 = vsel %vm2728, %v3040, 0
    %3084 = vmatprep.subr.mxu0 0.0
    %3085 = vmatpush1.msra.mxu0 0.0
    %3086 = vmatprep.subr.mxu0 0.0
    %3087 = vmatpush1.msra.mxu0 0.0
    %3088 = vmatprep.subr.mxu0 0.0
    %3089 = vmatpush1.msra.mxu0 0.0
    %3090 = vmatprep.subr.mxu0 0.0
    %3091 = vmatpush1.msra.mxu0 0.0
    %3092 = vmatprep.subr.mxu0 0.0
    %3093 = vmatpush1.msra.mxu0 %v3073
    %3094 = vmatprep.subr.mxu0 0.0
    %3095 = vmatpush1.msra.mxu0 %v3072
    %3096 = vmatprep.subr.mxu0 0.0
    %3097 = vmatpush1.msra.mxu0 %v3071
    %3098 = vmatprep.subr.mxu0 0.0
    %3099 = vmatpush1.msra.mxu0 %v3070
    %3100 = vmatprep.subr.mxu0 0.0
    %3101 = vmatpush1.msra.mxu0 %v3069
    %3102 = vmatprep.subr.mxu0 0.0
    %3103 = vmatpush1.msra.mxu0 %v3068
    %3104 = vmatprep.subr.mxu0 0.0
    %3105 = vmatpush1.msra.mxu0 %v3067
    %3106 = vmatprep.subr.mxu0 0.0
    %3107 = vmatpush1.msra.mxu0 %v3066
    %3108 = vmatprep.subr.mxu0 0.0
    %3109 = vmatpush1.msra.mxu0 %v3065
    %3110 = vmatprep.subr.mxu0 0.0
    %3111 = vmatpush1.msra.mxu0 %v3064
    %3112 = vmatprep.subr.mxu0 0.0
    %3113 = vmatpush1.msra.mxu0 %v3063
    %3114 = vmatprep.subr.mxu0 0.0
    %3115 = vmatpush1.msra.mxu0 %v3062
    %3116 = vmatprep.subr.mxu0 0.0
    %3117 = vmatpush2.msra.mxu0 0.0
    %3118 = vmatprep.subr.mxu0 0.0
    %3119 = vmatpush2.msra.mxu0 0.0
    %3120 = vmatprep.subr.mxu0 0.0
    %3121 = vmatpush2.msra.mxu0 0.0
    %3122 = vmatprep.subr.mxu0 0.0
    %3123 = vmatpush2.msra.mxu0 0.0
    %3124 = vmatprep.subr.mxu0 0.0
    %3125 = vmatpush2.msra.mxu0 0.0
    %3126 = vmatprep.subr.mxu0 0.0
    %3127 = vmatpush2.msra.mxu0 0.0
    %3128 = vmatprep.subr.mxu0 0.0
    %3129 = vmatpush2.msra.mxu0 0.0
    %3130 = vmatprep.subr.mxu0 0.0
    %3131 = vmatpush2.msra.mxu0 0.0
    %3132 = vmatprep.subr.mxu0 0.0
    %3133 = vmatpush2.msra.mxu0 0.0
    %3134 = vmatprep.subr.mxu0 0.0
    %3135 = vmatpush2.msra.mxu0 0.0
    %3136 = vmatprep.subr.mxu0 0.0
    %3137 = vmatpush2.msra.mxu0 0.0
    %3138 = vmatprep.subr.mxu0 0.0
    %3139 = vmatpush2.msra.mxu0 0.0
    %3140 = vmatprep.subr.mxu0 0.0
    %3141 = vmatpush2.msra.mxu0 0.0
    %3142 = vmatprep.subr.mxu0 0.0
    %3143 = vmatpush2.msra.mxu0 0.0
    %3144 = vmatprep.subr.mxu0 0.0
    %3145 = vmatpush2.msra.mxu0 0.0
    %3146 = vmatprep.subr.mxu0 0.0
    %3147 = vmatpush2.msra.mxu0 0.0
    %3148 = vmatprep.mubr.f32.mxu0 0.0
    %3149 = vmatmul.mubr.f32.gmra.mxu0 %v3082
    %v3150 = vpop.f32.mrf.mxu0
    %v3151 = vadd.f32 %v3079, %v3150
    %v3152 = vpop.f32.mrf.mxu0
    %3153 = vdwg.mxu0
    %v3154 = vxor.u32 %v3151, 2147483648
    %v3155 = vmul.f32 %v3154, 1.442695
    %v3156 = vpow.pop %v3155
    %v3157 = vadd.f32 %v3156, 1.0
    %v3158 = vrcp.pop %v3157
    %v3159 = vmul.f32 1.0, %v3158
    %v3160 = vtanh.pop %v3151
    %v3161 = vmul.f32 %v3159, %v2819
    %3163 = vrot.lane.b32.xlu0 %v3160, 64
    %v3164 = vpop.permute.xlu0 %3163
    %v3166 = vmul.f32 %v3159, %v3164
    %3168 = vrot.lane.b32.xlu0 %v3166, 32
    %v3169 = vpop.permute.xlu0 %3168
    %v3171 = vadd.f32 %v3161, %v3169
    %v3172 = vtanh.pop %v3171
    %3174 = vrot.lane.b32.xlu0 %v3172, 64
    %v3175 = vpop.permute.xlu0 %3174
    %v3177 = vmul.f32 %v3159, %v3175
    %v3178 = vld [vmem:[#allocation11] sm:$0xff]
    %v3179 = vld [vmem:[#allocation11 + $0x8] sm:$0xff]
    %v3180 = vld [vmem:[#allocation11 + $0x10] sm:$0xff]
    %v3181 = vld [vmem:[#allocation11 + $0x18] sm:$0xff]
    %v3182 = vld [vmem:[#allocation11 + $0x20] sm:$0xff]
    %v3183 = vld [vmem:[#allocation11 + $0x28] sm:$0xff]
    %v3184 = vld [vmem:[#allocation11 + $0x30] sm:$0xff]
    %v3185 = vld [vmem:[#allocation11 + $0x38] sm:$0xff]
    %v3186 = vld [vmem:[#allocation11 + $0x40] sm:$0xff]
    %v3187 = vld [vmem:[#allocation11 + $0x48] sm:$0xff]
    %v3188 = vld [vmem:[#allocation11 + $0x50] sm:$0xff]
    %v3189 = vld [vmem:[#allocation11 + $0x58] sm:$0xff]
    %v3190 = vld [vmem:[%s8] sm:$0x1]
    %v3192 = vlaneseq
    %v3193 = vshrl.u32 %v3192, 7
    %v3194 = vsub.s32 0, %v3193
    %v3195 = vrot.slane %v3190, %v3194
    %v3198 = vsel %vm2728, %v3061, 0
    %3200 = vmatprep.subr.mxu0 0.0
    %3201 = vmatpush1.msra.mxu0 0.0
    %3202 = vmatprep.subr.mxu0 0.0
    %3203 = vmatpush1.msra.mxu0 0.0
    %3204 = vmatprep.subr.mxu0 0.0
    %3205 = vmatpush1.msra.mxu0 0.0
    %3206 = vmatprep.subr.mxu0 0.0
    %3207 = vmatpush1.msra.mxu0 0.0
    %3208 = vmatprep.subr.mxu0 0.0
    %3209 = vmatpush1.msra.mxu0 %v3189
    %3210 = vmatprep.subr.mxu0 0.0
    %3211 = vmatpush1.msra.mxu0 %v3188
    %3212 = vmatprep.subr.mxu0 0.0
    %3213 = vmatpush1.msra.mxu0 %v3187
    %3214 = vmatprep.subr.mxu0 0.0
    %3215 = vmatpush1.msra.mxu0 %v3186
    %3216 = vmatprep.subr.mxu0 0.0
    %3217 = vmatpush1.msra.mxu0 %v3185
    %3218 = vmatprep.subr.mxu0 0.0
    %3219 = vmatpush1.msra.mxu0 %v3184
    %3220 = vmatprep.subr.mxu0 0.0
    %3221 = vmatpush1.msra.mxu0 %v3183
    %3222 = vmatprep.subr.mxu0 0.0
    %3223 = vmatpush1.msra.mxu0 %v3182
    %3224 = vmatprep.subr.mxu0 0.0
    %3225 = vmatpush1.msra.mxu0 %v3181
    %3226 = vmatprep.subr.mxu0 0.0
    %3227 = vmatpush1.msra.mxu0 %v3180
    %3228 = vmatprep.subr.mxu0 0.0
    %3229 = vmatpush1.msra.mxu0 %v3179
    %3230 = vmatprep.subr.mxu0 0.0
    %3231 = vmatpush1.msra.mxu0 %v3178
    %3232 = vmatprep.subr.mxu0 0.0
    %3233 = vmatpush2.msra.mxu0 0.0
    %3234 = vmatprep.subr.mxu0 0.0
    %3235 = vmatpush2.msra.mxu0 0.0
    %3236 = vmatprep.subr.mxu0 0.0
    %3237 = vmatpush2.msra.mxu0 0.0
    %3238 = vmatprep.subr.mxu0 0.0
    %3239 = vmatpush2.msra.mxu0 0.0
    %3240 = vmatprep.subr.mxu0 0.0
    %3241 = vmatpush2.msra.mxu0 0.0
    %3242 = vmatprep.subr.mxu0 0.0
    %3243 = vmatpush2.msra.mxu0 0.0
    %3244 = vmatprep.subr.mxu0 0.0
    %3245 = vmatpush2.msra.mxu0 0.0
    %3246 = vmatprep.subr.mxu0 0.0
    %3247 = vmatpush2.msra.mxu0 0.0
    %3248 = vmatprep.subr.mxu0 0.0
    %3249 = vmatpush2.msra.mxu0 0.0
    %3250 = vmatprep.subr.mxu0 0.0
    %3251 = vmatpush2.msra.mxu0 0.0
    %3252 = vmatprep.subr.mxu0 0.0
    %3253 = vmatpush2.msra.mxu0 0.0
    %3254 = vmatprep.subr.mxu0 0.0
    %3255 = vmatpush2.msra.mxu0 0.0
    %3256 = vmatprep.subr.mxu0 0.0
    %3257 = vmatpush2.msra.mxu0 0.0
    %3258 = vmatprep.subr.mxu0 0.0
    %3259 = vmatpush2.msra.mxu0 0.0
    %3260 = vmatprep.subr.mxu0 0.0
    %3261 = vmatpush2.msra.mxu0 0.0
    %3262 = vmatprep.subr.mxu0 0.0
    %3263 = vmatpush2.msra.mxu0 0.0
    %3264 = vmatprep.mubr.f32.mxu0 0.0
    %3265 = vmatmul.mubr.f32.gmra.mxu0 %v3198
    %v3266 = vpop.f32.mrf.mxu0
    %v3267 = vadd.f32 %v3195, %v3266
    %v3268 = vpop.f32.mrf.mxu0
    %3269 = vdwg.mxu0
    %v3270 = vxor.u32 %v3267, 2147483648
    %v3271 = vmul.f32 %v3270, 1.442695
    %v3272 = vpow.pop %v3271
    %v3273 = vadd.f32 %v3272, 1.0
    %v3274 = vrcp.pop %v3273
    %v3275 = vmul.f32 1.0, %v3274
    %v3276 = vtanh.pop %v3267
    %v3277 = vmul.f32 %v3275, %v2935
    %3279 = vrot.lane.b32.xlu0 %v3276, 64
    %v3280 = vpop.permute.xlu0 %3279
    %v3282 = vmul.f32 %v3275, %v3280
    %3284 = vrot.lane.b32.xlu0 %v3282, 32
    %v3285 = vpop.permute.xlu0 %3284
    %v3287 = vadd.f32 %v3277, %v3285
    %v3288 = vtanh.pop %v3287
    %3290 = vrot.lane.b32.xlu0 %v3288, 64
    %v3291 = vpop.permute.xlu0 %3290
    %v3293 = vmul.f32 %v3275, %v3291
    %v3296 = vunpack.c.l.s4 1966171168
    %v3297 = vunpack.c.0.s8 %v3296
    %v3298 = vlaneseq
    %v3299 = vshrl.u32 %v3298, 7
    %v3300 = vsub.s32 %v3297, %v3299
    %v3301 = vrot.slane %v3177, %v3300
    %v3302 = vcombine.high %v3301, %v3301
    %v3304 = vunpack.c.l.s4 1966171168
    %v3305 = vunpack.c.0.s8 %v3304
    %v3306 = vlaneseq
    %v3307 = vshrl.u32 %v3306, 7
    %v3308 = vsub.s32 %v3305, %v3307
    %v3309 = vrot.slane %v3301, %v3308
    %v3311 = vunpack.c.l.s4 1966171168
    %v3312 = vunpack.c.0.s8 %v3311
    %v3313 = vlaneseq
    %v3314 = vshrl.u32 %v3313, 7
    %v3315 = vsub.s32 %v3312, %v3314
    %v3316 = vrot.slane %v3302, %v3315
    %v3317 = vlaneseq
    %v3318 = vshrl.u32 %v3317, 7
    %v3319 = vsub.s32 0, %v3318
    %v3320 = vrot.slane %v3309, %v3319
    %v3321 = vlaneseq
    %v3322 = vshrl.u32 %v3321, 7
    %v3323 = vsub.s32 0, %v3322
    %v3324 = vrot.slane %v3316, %v3323
    %3325 = vrot.lane.b32.xlu0 %v3320, 32
    %v3326 = vpop.permute.xlu0 %3325
    %3327 = vrot.lane.b32.xlu0 %v3324, 32
    %v3328 = vpop.permute.xlu0 %3327
    %3331 = vst.msk [vmem:[#allocation4 + $0x1] sm:$0x1] %vm389, %v3326
    %3332 = vst.msk [vmem:[#allocation4 + $0x9] sm:$0x1] %vm389, %v3328
    %v3335 = vunpack.c.l.s4 1966171168
    %v3336 = vunpack.c.0.s8 %v3335
    %v3337 = vlaneseq
    %v3338 = vshrl.u32 %v3337, 7
    %v3339 = vsub.s32 %v3336, %v3338
    %v3340 = vrot.slane %v3293, %v3339
    %v3341 = vcombine.high %v3340, %v3340
    %v3343 = vunpack.c.l.s4 1966171168
    %v3344 = vunpack.c.0.s8 %v3343
    %v3345 = vlaneseq
    %v3346 = vshrl.u32 %v3345, 7
    %v3347 = vsub.s32 %v3344, %v3346
    %v3348 = vrot.slane %v3340, %v3347
    %v3350 = vunpack.c.l.s4 1966171168
    %v3351 = vunpack.c.0.s8 %v3350
    %v3352 = vlaneseq
    %v3353 = vshrl.u32 %v3352, 7
    %v3354 = vsub.s32 %v3351, %v3353
    %v3355 = vrot.slane %v3341, %v3354
    %v3356 = vlaneseq
    %v3357 = vshrl.u32 %v3356, 7
    %v3358 = vsub.s32 0, %v3357
    %v3359 = vrot.slane %v3348, %v3358
    %v3360 = vlaneseq
    %v3361 = vshrl.u32 %v3360, 7
    %v3362 = vsub.s32 0, %v3361
    %v3363 = vrot.slane %v3355, %v3362
    %3364 = vrot.lane.b32.xlu0 %v3359, 32
    %v3365 = vpop.permute.xlu0 %3364
    %3366 = vrot.lane.b32.xlu0 %v3363, 32
    %v3367 = vpop.permute.xlu0 %3366
    %3370 = vst.msk [vmem:[#allocation5 + $0x6] sm:$0x1] %vm389, %v3365
    %3371 = vst.msk [vmem:[#allocation5 + $0xe] sm:$0x1] %vm389, %v3367
    %v3372 = vld [vmem:[#allocation2 + $0x2] sm:$0x1]
    %v3373 = vld [vmem:[#allocation2 + $0xa] sm:$0x1]
    %v3374 = vld [vmem:[#allocation3 + $0x2] sm:$0x1]
    %v3375 = vld [vmem:[#allocation3 + $0xa] sm:$0x1]
    %v3378 = vrot.slane %v3373, 7
    %v3379 = vsel %vm118, %v3378, %v3372
    %v3383 = vrot.slane %v3375, 7
    %v3384 = vsel %vm118, %v3383, %v3374
    %3385 = vrot.lane.b32.xlu0 %v3384, 32
    %v3386 = vpop.permute.xlu0 %3385
    %3388 = vrot.lane.b32.xlu0 %v3177, 96
    %v3389 = vpop.permute.xlu0 %3388
    %v3391 = vsel %vm2687, %v3379, %v3386
    %v3392 = vsel %vm2689, %v3391, %v3389
    %v3393 = vld [vmem:[#allocation2 + $0x5] sm:$0x1]
    %v3394 = vld [vmem:[#allocation2 + $0xd] sm:$0x1]
    %v3395 = vld [vmem:[#allocation3 + $0x5] sm:$0x1]
    %v3396 = vld [vmem:[#allocation3 + $0xd] sm:$0x1]
    %v3399 = vrot.slane %v3394, 7
    %v3400 = vsel %vm118, %v3399, %v3393
    %v3404 = vrot.slane %v3396, 7
    %v3405 = vsel %vm118, %v3404, %v3395
    %3406 = vrot.lane.b32.xlu0 %v3405, 32
    %v3407 = vpop.permute.xlu0 %3406
    %3409 = vrot.lane.b32.xlu0 %v3293, 96
    %v3410 = vpop.permute.xlu0 %3409
    %v3412 = vsel %vm2687, %v3400, %v3407
    %v3413 = vsel %vm2689, %v3412, %v3410
    %v3414 = vld [vmem:[%s5] sm:$0xff]
    %v3415 = vld [vmem:[%s5 + $0x8] sm:$0xff]
    %v3416 = vld [vmem:[%s5 + $0x10] sm:$0xff]
    %v3417 = vld [vmem:[%s5 + $0x18] sm:$0xff]
    %v3418 = vld [vmem:[%s5 + $0x20] sm:$0xff]
    %v3419 = vld [vmem:[%s5 + $0x28] sm:$0xff]
    %v3420 = vld [vmem:[%s5 + $0x30] sm:$0xff]
    %v3421 = vld [vmem:[%s5 + $0x38] sm:$0xff]
    %v3422 = vld [vmem:[%s5 + $0x40] sm:$0xff]
    %v3423 = vld [vmem:[%s5 + $0x48] sm:$0xff]
    %v3424 = vld [vmem:[%s5 + $0x50] sm:$0xff]
    %v3425 = vld [vmem:[%s5 + $0x58] sm:$0xff]
    %v3426 = vld [vmem:[%s6] sm:$0x1]
    %v3428 = vlaneseq
    %v3429 = vshrl.u32 %v3428, 7
    %v3430 = vsub.s32 0, %v3429
    %v3431 = vrot.slane %v3426, %v3430
    %v3434 = vsel %vm2728, %v3392, 0
    %3436 = vmatprep.subr.mxu0 0.0
    %3437 = vmatpush1.msra.mxu0 0.0
    %3438 = vmatprep.subr.mxu0 0.0
    %3439 = vmatpush1.msra.mxu0 0.0
    %3440 = vmatprep.subr.mxu0 0.0
    %3441 = vmatpush1.msra.mxu0 0.0
    %3442 = vmatprep.subr.mxu0 0.0
    %3443 = vmatpush1.msra.mxu0 0.0
    %3444 = vmatprep.subr.mxu0 0.0
    %3445 = vmatpush1.msra.mxu0 %v3425
    %3446 = vmatprep.subr.mxu0 0.0
    %3447 = vmatpush1.msra.mxu0 %v3424
    %3448 = vmatprep.subr.mxu0 0.0
    %3449 = vmatpush1.msra.mxu0 %v3423
    %3450 = vmatprep.subr.mxu0 0.0
    %3451 = vmatpush1.msra.mxu0 %v3422
    %3452 = vmatprep.subr.mxu0 0.0
    %3453 = vmatpush1.msra.mxu0 %v3421
    %3454 = vmatprep.subr.mxu0 0.0
    %3455 = vmatpush1.msra.mxu0 %v3420
    %3456 = vmatprep.subr.mxu0 0.0
    %3457 = vmatpush1.msra.mxu0 %v3419
    %3458 = vmatprep.subr.mxu0 0.0
    %3459 = vmatpush1.msra.mxu0 %v3418
    %3460 = vmatprep.subr.mxu0 0.0
    %3461 = vmatpush1.msra.mxu0 %v3417
    %3462 = vmatprep.subr.mxu0 0.0
    %3463 = vmatpush1.msra.mxu0 %v3416
    %3464 = vmatprep.subr.mxu0 0.0
    %3465 = vmatpush1.msra.mxu0 %v3415
    %3466 = vmatprep.subr.mxu0 0.0
    %3467 = vmatpush1.msra.mxu0 %v3414
    %3468 = vmatprep.subr.mxu0 0.0
    %3469 = vmatpush2.msra.mxu0 0.0
    %3470 = vmatprep.subr.mxu0 0.0
    %3471 = vmatpush2.msra.mxu0 0.0
    %3472 = vmatprep.subr.mxu0 0.0
    %3473 = vmatpush2.msra.mxu0 0.0
    %3474 = vmatprep.subr.mxu0 0.0
    %3475 = vmatpush2.msra.mxu0 0.0
    %3476 = vmatprep.subr.mxu0 0.0
    %3477 = vmatpush2.msra.mxu0 0.0
    %3478 = vmatprep.subr.mxu0 0.0
    %3479 = vmatpush2.msra.mxu0 0.0
    %3480 = vmatprep.subr.mxu0 0.0
    %3481 = vmatpush2.msra.mxu0 0.0
    %3482 = vmatprep.subr.mxu0 0.0
    %3483 = vmatpush2.msra.mxu0 0.0
    %3484 = vmatprep.subr.mxu0 0.0
    %3485 = vmatpush2.msra.mxu0 0.0
    %3486 = vmatprep.subr.mxu0 0.0
    %3487 = vmatpush2.msra.mxu0 0.0
    %3488 = vmatprep.subr.mxu0 0.0
    %3489 = vmatpush2.msra.mxu0 0.0
    %3490 = vmatprep.subr.mxu0 0.0
    %3491 = vmatpush2.msra.mxu0 0.0
    %3492 = vmatprep.subr.mxu0 0.0
    %3493 = vmatpush2.msra.mxu0 0.0
    %3494 = vmatprep.subr.mxu0 0.0
    %3495 = vmatpush2.msra.mxu0 0.0
    %3496 = vmatprep.subr.mxu0 0.0
    %3497 = vmatpush2.msra.mxu0 0.0
    %3498 = vmatprep.subr.mxu0 0.0
    %3499 = vmatpush2.msra.mxu0 0.0
    %3500 = vmatprep.mubr.f32.mxu0 0.0
    %3501 = vmatmul.mubr.f32.gmra.mxu0 %v3434
    %v3502 = vpop.f32.mrf.mxu0
    %v3503 = vadd.f32 %v3431, %v3502
    %v3504 = vpop.f32.mrf.mxu0
    %3505 = vdwg.mxu0
    %v3506 = vxor.u32 %v3503, 2147483648
    %v3507 = vmul.f32 %v3506, 1.442695
    %v3508 = vpow.pop %v3507
    %v3509 = vadd.f32 %v3508, 1.0
    %v3510 = vrcp.pop %v3509
    %v3511 = vmul.f32 1.0, %v3510
    %v3512 = vtanh.pop %v3503
    %v3513 = vmul.f32 %v3511, %v3171
    %3515 = vrot.lane.b32.xlu0 %v3512, 64
    %v3516 = vpop.permute.xlu0 %3515
    %v3518 = vmul.f32 %v3511, %v3516
    %3520 = vrot.lane.b32.xlu0 %v3518, 32
    %v3521 = vpop.permute.xlu0 %3520
    %v3523 = vadd.f32 %v3513, %v3521
    %v3524 = vtanh.pop %v3523
    %3526 = vrot.lane.b32.xlu0 %v3524, 64
    %v3527 = vpop.permute.xlu0 %3526
    %v3529 = vmul.f32 %v3511, %v3527
    %v3530 = vld [vmem:[#allocation11] sm:$0xff]
    %v3531 = vld [vmem:[#allocation11 + $0x8] sm:$0xff]
    %v3532 = vld [vmem:[#allocation11 + $0x10] sm:$0xff]
    %v3533 = vld [vmem:[#allocation11 + $0x18] sm:$0xff]
    %v3534 = vld [vmem:[#allocation11 + $0x20] sm:$0xff]
    %v3535 = vld [vmem:[#allocation11 + $0x28] sm:$0xff]
    %v3536 = vld [vmem:[#allocation11 + $0x30] sm:$0xff]
    %v3537 = vld [vmem:[#allocation11 + $0x38] sm:$0xff]
    %v3538 = vld [vmem:[#allocation11 + $0x40] sm:$0xff]
    %v3539 = vld [vmem:[#allocation11 + $0x48] sm:$0xff]
    %v3540 = vld [vmem:[#allocation11 + $0x50] sm:$0xff]
    %v3541 = vld [vmem:[#allocation11 + $0x58] sm:$0xff]
    %v3542 = vld [vmem:[%s8] sm:$0x1]
    %v3544 = vlaneseq
    %v3545 = vshrl.u32 %v3544, 7
    %v3546 = vsub.s32 0, %v3545
    %v3547 = vrot.slane %v3542, %v3546
    %v3550 = vsel %vm2728, %v3413, 0
    %3552 = vmatprep.subr.mxu0 0.0
    %3553 = vmatpush1.msra.mxu0 0.0
    %3554 = vmatprep.subr.mxu0 0.0
    %3555 = vmatpush1.msra.mxu0 0.0
    %3556 = vmatprep.subr.mxu0 0.0
    %3557 = vmatpush1.msra.mxu0 0.0
    %3558 = vmatprep.subr.mxu0 0.0
    %3559 = vmatpush1.msra.mxu0 0.0
    %3560 = vmatprep.subr.mxu0 0.0
    %3561 = vmatpush1.msra.mxu0 %v3541
    %3562 = vmatprep.subr.mxu0 0.0
    %3563 = vmatpush1.msra.mxu0 %v3540
    %3564 = vmatprep.subr.mxu0 0.0
    %3565 = vmatpush1.msra.mxu0 %v3539
    %3566 = vmatprep.subr.mxu0 0.0
    %3567 = vmatpush1.msra.mxu0 %v3538
    %3568 = vmatprep.subr.mxu0 0.0
    %3569 = vmatpush1.msra.mxu0 %v3537
    %3570 = vmatprep.subr.mxu0 0.0
    %3571 = vmatpush1.msra.mxu0 %v3536
    %3572 = vmatprep.subr.mxu0 0.0
    %3573 = vmatpush1.msra.mxu0 %v3535
    %3574 = vmatprep.subr.mxu0 0.0
    %3575 = vmatpush1.msra.mxu0 %v3534
    %3576 = vmatprep.subr.mxu0 0.0
    %3577 = vmatpush1.msra.mxu0 %v3533
    %3578 = vmatprep.subr.mxu0 0.0
    %3579 = vmatpush1.msra.mxu0 %v3532
    %3580 = vmatprep.subr.mxu0 0.0
    %3581 = vmatpush1.msra.mxu0 %v3531
    %3582 = vmatprep.subr.mxu0 0.0
    %3583 = vmatpush1.msra.mxu0 %v3530
    %3584 = vmatprep.subr.mxu0 0.0
    %3585 = vmatpush2.msra.mxu0 0.0
    %3586 = vmatprep.subr.mxu0 0.0
    %3587 = vmatpush2.msra.mxu0 0.0
    %3588 = vmatprep.subr.mxu0 0.0
    %3589 = vmatpush2.msra.mxu0 0.0
    %3590 = vmatprep.subr.mxu0 0.0
    %3591 = vmatpush2.msra.mxu0 0.0
    %3592 = vmatprep.subr.mxu0 0.0
    %3593 = vmatpush2.msra.mxu0 0.0
    %3594 = vmatprep.subr.mxu0 0.0
    %3595 = vmatpush2.msra.mxu0 0.0
    %3596 = vmatprep.subr.mxu0 0.0
    %3597 = vmatpush2.msra.mxu0 0.0
    %3598 = vmatprep.subr.mxu0 0.0
    %3599 = vmatpush2.msra.mxu0 0.0
    %3600 = vmatprep.subr.mxu0 0.0
    %3601 = vmatpush2.msra.mxu0 0.0
    %3602 = vmatprep.subr.mxu0 0.0
    %3603 = vmatpush2.msra.mxu0 0.0
    %3604 = vmatprep.subr.mxu0 0.0
    %3605 = vmatpush2.msra.mxu0 0.0
    %3606 = vmatprep.subr.mxu0 0.0
    %3607 = vmatpush2.msra.mxu0 0.0
    %3608 = vmatprep.subr.mxu0 0.0
    %3609 = vmatpush2.msra.mxu0 0.0
    %3610 = vmatprep.subr.mxu0 0.0
    %3611 = vmatpush2.msra.mxu0 0.0
    %3612 = vmatprep.subr.mxu0 0.0
    %3613 = vmatpush2.msra.mxu0 0.0
    %3614 = vmatprep.subr.mxu0 0.0
    %3615 = vmatpush2.msra.mxu0 0.0
    %3616 = vmatprep.mubr.f32.mxu0 0.0
    %3617 = vmatmul.mubr.f32.gmra.mxu0 %v3550
    %v3618 = vpop.f32.mrf.mxu0
    %v3619 = vadd.f32 %v3547, %v3618
    %v3620 = vpop.f32.mrf.mxu0
    %3621 = vdwg.mxu0
    %v3622 = vxor.u32 %v3619, 2147483648
    %v3623 = vmul.f32 %v3622, 1.442695
    %v3624 = vpow.pop %v3623
    %v3625 = vadd.f32 %v3624, 1.0
    %v3626 = vrcp.pop %v3625
    %v3627 = vmul.f32 1.0, %v3626
    %v3628 = vtanh.pop %v3619
    %v3629 = vmul.f32 %v3627, %v3287
    %3631 = vrot.lane.b32.xlu0 %v3628, 64
    %v3632 = vpop.permute.xlu0 %3631
    %v3634 = vmul.f32 %v3627, %v3632
    %3636 = vrot.lane.b32.xlu0 %v3634, 32
    %v3637 = vpop.permute.xlu0 %3636
    %v3639 = vadd.f32 %v3629, %v3637
    %v3640 = vtanh.pop %v3639
    %3642 = vrot.lane.b32.xlu0 %v3640, 64
    %v3643 = vpop.permute.xlu0 %3642
    %v3645 = vmul.f32 %v3627, %v3643
    %v3648 = vunpack.c.l.s4 1966171168
    %v3649 = vunpack.c.0.s8 %v3648
    %v3650 = vlaneseq
    %v3651 = vshrl.u32 %v3650, 7
    %v3652 = vsub.s32 %v3649, %v3651
    %v3653 = vrot.slane %v3529, %v3652
    %v3654 = vcombine.high %v3653, %v3653
    %v3656 = vunpack.c.l.s4 1966171168
    %v3657 = vunpack.c.0.s8 %v3656
    %v3658 = vlaneseq
    %v3659 = vshrl.u32 %v3658, 7
    %v3660 = vsub.s32 %v3657, %v3659
    %v3661 = vrot.slane %v3653, %v3660
    %v3663 = vunpack.c.l.s4 1966171168
    %v3664 = vunpack.c.0.s8 %v3663
    %v3665 = vlaneseq
    %v3666 = vshrl.u32 %v3665, 7
    %v3667 = vsub.s32 %v3664, %v3666
    %v3668 = vrot.slane %v3654, %v3667
    %v3669 = vlaneseq
    %v3670 = vshrl.u32 %v3669, 7
    %v3671 = vsub.s32 0, %v3670
    %v3672 = vrot.slane %v3661, %v3671
    %v3673 = vlaneseq
    %v3674 = vshrl.u32 %v3673, 7
    %v3675 = vsub.s32 0, %v3674
    %v3676 = vrot.slane %v3668, %v3675
    %3677 = vrot.lane.b32.xlu0 %v3672, 32
    %v3678 = vpop.permute.xlu0 %3677
    %3679 = vrot.lane.b32.xlu0 %v3676, 32
    %v3680 = vpop.permute.xlu0 %3679
    %3683 = vst.msk [vmem:[#allocation4 + $0x2] sm:$0x1] %vm389, %v3678
    %3684 = vst.msk [vmem:[#allocation4 + $0xa] sm:$0x1] %vm389, %v3680
    %v3687 = vunpack.c.l.s4 1966171168
    %v3688 = vunpack.c.0.s8 %v3687
    %v3689 = vlaneseq
    %v3690 = vshrl.u32 %v3689, 7
    %v3691 = vsub.s32 %v3688, %v3690
    %v3692 = vrot.slane %v3645, %v3691
    %v3693 = vcombine.high %v3692, %v3692
    %v3695 = vunpack.c.l.s4 1966171168
    %v3696 = vunpack.c.0.s8 %v3695
    %v3697 = vlaneseq
    %v3698 = vshrl.u32 %v3697, 7
    %v3699 = vsub.s32 %v3696, %v3698
    %v3700 = vrot.slane %v3692, %v3699
    %v3702 = vunpack.c.l.s4 1966171168
    %v3703 = vunpack.c.0.s8 %v3702
    %v3704 = vlaneseq
    %v3705 = vshrl.u32 %v3704, 7
    %v3706 = vsub.s32 %v3703, %v3705
    %v3707 = vrot.slane %v3693, %v3706
    %v3708 = vlaneseq
    %v3709 = vshrl.u32 %v3708, 7
    %v3710 = vsub.s32 0, %v3709
    %v3711 = vrot.slane %v3700, %v3710
    %v3712 = vlaneseq
    %v3713 = vshrl.u32 %v3712, 7
    %v3714 = vsub.s32 0, %v3713
    %v3715 = vrot.slane %v3707, %v3714
    %3716 = vrot.lane.b32.xlu0 %v3711, 32
    %v3717 = vpop.permute.xlu0 %3716
    %3718 = vrot.lane.b32.xlu0 %v3715, 32
    %v3719 = vpop.permute.xlu0 %3718
    %3722 = vst.msk [vmem:[#allocation5 + $0x5] sm:$0x1] %vm389, %v3717
    %3723 = vst.msk [vmem:[#allocation5 + $0xd] sm:$0x1] %vm389, %v3719
    %v3724 = vld [vmem:[#allocation2 + $0x3] sm:$0x1]
    %v3725 = vld [vmem:[#allocation2 + $0xb] sm:$0x1]
    %v3726 = vld [vmem:[#allocation3 + $0x3] sm:$0x1]
    %v3727 = vld [vmem:[#allocation3 + $0xb] sm:$0x1]
    %v3730 = vrot.slane %v3725, 7
    %v3731 = vsel %vm118, %v3730, %v3724
    %v3735 = vrot.slane %v3727, 7
    %v3736 = vsel %vm118, %v3735, %v3726
    %3737 = vrot.lane.b32.xlu0 %v3736, 32
    %v3738 = vpop.permute.xlu0 %3737
    %3740 = vrot.lane.b32.xlu0 %v3529, 96
    %v3741 = vpop.permute.xlu0 %3740
    %v3743 = vsel %vm2687, %v3731, %v3738
    %v3744 = vsel %vm2689, %v3743, %v3741
    %v3745 = vld [vmem:[#allocation2 + $0x4] sm:$0x1]
    %v3746 = vld [vmem:[#allocation2 + $0xc] sm:$0x1]
    %v3747 = vld [vmem:[#allocation3 + $0x4] sm:$0x1]
    %v3748 = vld [vmem:[#allocation3 + $0xc] sm:$0x1]
    %v3751 = vrot.slane %v3746, 7
    %v3752 = vsel %vm118, %v3751, %v3745
    %v3756 = vrot.slane %v3748, 7
    %v3757 = vsel %vm118, %v3756, %v3747
    %3758 = vrot.lane.b32.xlu0 %v3757, 32
    %v3759 = vpop.permute.xlu0 %3758
    %3761 = vrot.lane.b32.xlu0 %v3645, 96
    %v3762 = vpop.permute.xlu0 %3761
    %v3764 = vsel %vm2687, %v3752, %v3759
    %v3765 = vsel %vm2689, %v3764, %v3762
    %v3766 = vld [vmem:[%s5] sm:$0xff]
    %v3767 = vld [vmem:[%s5 + $0x8] sm:$0xff]
    %v3768 = vld [vmem:[%s5 + $0x10] sm:$0xff]
    %v3769 = vld [vmem:[%s5 + $0x18] sm:$0xff]
    %v3770 = vld [vmem:[%s5 + $0x20] sm:$0xff]
    %v3771 = vld [vmem:[%s5 + $0x28] sm:$0xff]
    %v3772 = vld [vmem:[%s5 + $0x30] sm:$0xff]
    %v3773 = vld [vmem:[%s5 + $0x38] sm:$0xff]
    %v3774 = vld [vmem:[%s5 + $0x40] sm:$0xff]
    %v3775 = vld [vmem:[%s5 + $0x48] sm:$0xff]
    %v3776 = vld [vmem:[%s5 + $0x50] sm:$0xff]
    %v3777 = vld [vmem:[%s5 + $0x58] sm:$0xff]
    %v3778 = vld [vmem:[%s6] sm:$0x1]
    %v3780 = vlaneseq
    %v3781 = vshrl.u32 %v3780, 7
    %v3782 = vsub.s32 0, %v3781
    %v3783 = vrot.slane %v3778, %v3782
    %v3786 = vsel %vm2728, %v3744, 0
    %3788 = vmatprep.subr.mxu0 0.0
    %3789 = vmatpush1.msra.mxu0 0.0
    %3790 = vmatprep.subr.mxu0 0.0
    %3791 = vmatpush1.msra.mxu0 0.0
    %3792 = vmatprep.subr.mxu0 0.0
    %3793 = vmatpush1.msra.mxu0 0.0
    %3794 = vmatprep.subr.mxu0 0.0
    %3795 = vmatpush1.msra.mxu0 0.0
    %3796 = vmatprep.subr.mxu0 0.0
    %3797 = vmatpush1.msra.mxu0 %v3777
    %3798 = vmatprep.subr.mxu0 0.0
    %3799 = vmatpush1.msra.mxu0 %v3776
    %3800 = vmatprep.subr.mxu0 0.0
    %3801 = vmatpush1.msra.mxu0 %v3775
    %3802 = vmatprep.subr.mxu0 0.0
    %3803 = vmatpush1.msra.mxu0 %v3774
    %3804 = vmatprep.subr.mxu0 0.0
    %3805 = vmatpush1.msra.mxu0 %v3773
    %3806 = vmatprep.subr.mxu0 0.0
    %3807 = vmatpush1.msra.mxu0 %v3772
    %3808 = vmatprep.subr.mxu0 0.0
    %3809 = vmatpush1.msra.mxu0 %v3771
    %3810 = vmatprep.subr.mxu0 0.0
    %3811 = vmatpush1.msra.mxu0 %v3770
    %3812 = vmatprep.subr.mxu0 0.0
    %3813 = vmatpush1.msra.mxu0 %v3769
    %3814 = vmatprep.subr.mxu0 0.0
    %3815 = vmatpush1.msra.mxu0 %v3768
    %3816 = vmatprep.subr.mxu0 0.0
    %3817 = vmatpush1.msra.mxu0 %v3767
    %3818 = vmatprep.subr.mxu0 0.0
    %3819 = vmatpush1.msra.mxu0 %v3766
    %3820 = vmatprep.subr.mxu0 0.0
    %3821 = vmatpush2.msra.mxu0 0.0
    %3822 = vmatprep.subr.mxu0 0.0
    %3823 = vmatpush2.msra.mxu0 0.0
    %3824 = vmatprep.subr.mxu0 0.0
    %3825 = vmatpush2.msra.mxu0 0.0
    %3826 = vmatprep.subr.mxu0 0.0
    %3827 = vmatpush2.msra.mxu0 0.0
    %3828 = vmatprep.subr.mxu0 0.0
    %3829 = vmatpush2.msra.mxu0 0.0
    %3830 = vmatprep.subr.mxu0 0.0
    %3831 = vmatpush2.msra.mxu0 0.0
    %3832 = vmatprep.subr.mxu0 0.0
    %3833 = vmatpush2.msra.mxu0 0.0
    %3834 = vmatprep.subr.mxu0 0.0
    %3835 = vmatpush2.msra.mxu0 0.0
    %3836 = vmatprep.subr.mxu0 0.0
    %3837 = vmatpush2.msra.mxu0 0.0
    %3838 = vmatprep.subr.mxu0 0.0
    %3839 = vmatpush2.msra.mxu0 0.0
    %3840 = vmatprep.subr.mxu0 0.0
    %3841 = vmatpush2.msra.mxu0 0.0
    %3842 = vmatprep.subr.mxu0 0.0
    %3843 = vmatpush2.msra.mxu0 0.0
    %3844 = vmatprep.subr.mxu0 0.0
    %3845 = vmatpush2.msra.mxu0 0.0
    %3846 = vmatprep.subr.mxu0 0.0
    %3847 = vmatpush2.msra.mxu0 0.0
    %3848 = vmatprep.subr.mxu0 0.0
    %3849 = vmatpush2.msra.mxu0 0.0
    %3850 = vmatprep.subr.mxu0 0.0
    %3851 = vmatpush2.msra.mxu0 0.0
    %3852 = vmatprep.mubr.f32.mxu0 0.0
    %3853 = vmatmul.mubr.f32.gmra.mxu0 %v3786
    %v3854 = vpop.f32.mrf.mxu0
    %v3855 = vadd.f32 %v3783, %v3854
    %v3856 = vpop.f32.mrf.mxu0
    %3857 = vdwg.mxu0
    %v3858 = vxor.u32 %v3855, 2147483648
    %v3859 = vmul.f32 %v3858, 1.442695
    %v3860 = vpow.pop %v3859
    %v3861 = vadd.f32 %v3860, 1.0
    %v3862 = vrcp.pop %v3861
    %v3863 = vmul.f32 1.0, %v3862
    %v3864 = vtanh.pop %v3855
    %v3865 = vmul.f32 %v3863, %v3523
    %3867 = vrot.lane.b32.xlu0 %v3864, 64
    %v3868 = vpop.permute.xlu0 %3867
    %v3870 = vmul.f32 %v3863, %v3868
    %3872 = vrot.lane.b32.xlu0 %v3870, 32
    %v3873 = vpop.permute.xlu0 %3872
    %v3875 = vadd.f32 %v3865, %v3873
    %v3876 = vtanh.pop %v3875
    %3878 = vrot.lane.b32.xlu0 %v3876, 64
    %v3879 = vpop.permute.xlu0 %3878
    %v3881 = vmul.f32 %v3863, %v3879
    %v3882 = vld [vmem:[#allocation11] sm:$0xff]
    %v3883 = vld [vmem:[#allocation11 + $0x8] sm:$0xff]
    %v3884 = vld [vmem:[#allocation11 + $0x10] sm:$0xff]
    %v3885 = vld [vmem:[#allocation11 + $0x18] sm:$0xff]
    %v3886 = vld [vmem:[#allocation11 + $0x20] sm:$0xff]
    %v3887 = vld [vmem:[#allocation11 + $0x28] sm:$0xff]
    %v3888 = vld [vmem:[#allocation11 + $0x30] sm:$0xff]
    %v3889 = vld [vmem:[#allocation11 + $0x38] sm:$0xff]
    %v3890 = vld [vmem:[#allocation11 + $0x40] sm:$0xff]
    %v3891 = vld [vmem:[#allocation11 + $0x48] sm:$0xff]
    %v3892 = vld [vmem:[#allocation11 + $0x50] sm:$0xff]
    %v3893 = vld [vmem:[#allocation11 + $0x58] sm:$0xff]
    %v3894 = vld [vmem:[%s8] sm:$0x1]
    %v3896 = vlaneseq
    %v3897 = vshrl.u32 %v3896, 7
    %v3898 = vsub.s32 0, %v3897
    %v3899 = vrot.slane %v3894, %v3898
    %v3902 = vsel %vm2728, %v3765, 0
    %3904 = vmatprep.subr.mxu0 0.0
    %3905 = vmatpush1.msra.mxu0 0.0
    %3906 = vmatprep.subr.mxu0 0.0
    %3907 = vmatpush1.msra.mxu0 0.0
    %3908 = vmatprep.subr.mxu0 0.0
    %3909 = vmatpush1.msra.mxu0 0.0
    %3910 = vmatprep.subr.mxu0 0.0
    %3911 = vmatpush1.msra.mxu0 0.0
    %3912 = vmatprep.subr.mxu0 0.0
    %3913 = vmatpush1.msra.mxu0 %v3893
    %3914 = vmatprep.subr.mxu0 0.0
    %3915 = vmatpush1.msra.mxu0 %v3892
    %3916 = vmatprep.subr.mxu0 0.0
    %3917 = vmatpush1.msra.mxu0 %v3891
    %3918 = vmatprep.subr.mxu0 0.0
    %3919 = vmatpush1.msra.mxu0 %v3890
    %3920 = vmatprep.subr.mxu0 0.0
    %3921 = vmatpush1.msra.mxu0 %v3889
    %3922 = vmatprep.subr.mxu0 0.0
    %3923 = vmatpush1.msra.mxu0 %v3888
    %3924 = vmatprep.subr.mxu0 0.0
    %3925 = vmatpush1.msra.mxu0 %v3887
    %3926 = vmatprep.subr.mxu0 0.0
    %3927 = vmatpush1.msra.mxu0 %v3886
    %3928 = vmatprep.subr.mxu0 0.0
    %3929 = vmatpush1.msra.mxu0 %v3885
    %3930 = vmatprep.subr.mxu0 0.0
    %3931 = vmatpush1.msra.mxu0 %v3884
    %3932 = vmatprep.subr.mxu0 0.0
    %3933 = vmatpush1.msra.mxu0 %v3883
    %3934 = vmatprep.subr.mxu0 0.0
    %3935 = vmatpush1.msra.mxu0 %v3882
    %3936 = vmatprep.subr.mxu0 0.0
    %3937 = vmatpush2.msra.mxu0 0.0
    %3938 = vmatprep.subr.mxu0 0.0
    %3939 = vmatpush2.msra.mxu0 0.0
    %3940 = vmatprep.subr.mxu0 0.0
    %3941 = vmatpush2.msra.mxu0 0.0
    %3942 = vmatprep.subr.mxu0 0.0
    %3943 = vmatpush2.msra.mxu0 0.0
    %3944 = vmatprep.subr.mxu0 0.0
    %3945 = vmatpush2.msra.mxu0 0.0
    %3946 = vmatprep.subr.mxu0 0.0
    %3947 = vmatpush2.msra.mxu0 0.0
    %3948 = vmatprep.subr.mxu0 0.0
    %3949 = vmatpush2.msra.mxu0 0.0
    %3950 = vmatprep.subr.mxu0 0.0
    %3951 = vmatpush2.msra.mxu0 0.0
    %3952 = vmatprep.subr.mxu0 0.0
    %3953 = vmatpush2.msra.mxu0 0.0
    %3954 = vmatprep.subr.mxu0 0.0
    %3955 = vmatpush2.msra.mxu0 0.0
    %3956 = vmatprep.subr.mxu0 0.0
    %3957 = vmatpush2.msra.mxu0 0.0
    %3958 = vmatprep.subr.mxu0 0.0
    %3959 = vmatpush2.msra.mxu0 0.0
    %3960 = vmatprep.subr.mxu0 0.0
    %3961 = vmatpush2.msra.mxu0 0.0
    %3962 = vmatprep.subr.mxu0 0.0
    %3963 = vmatpush2.msra.mxu0 0.0
    %3964 = vmatprep.subr.mxu0 0.0
    %3965 = vmatpush2.msra.mxu0 0.0
    %3966 = vmatprep.subr.mxu0 0.0
    %3967 = vmatpush2.msra.mxu0 0.0
    %3968 = vmatprep.mubr.f32.mxu0 0.0
    %3969 = vmatmul.mubr.f32.gmra.mxu0 %v3902
    %v3970 = vpop.f32.mrf.mxu0
    %v3971 = vadd.f32 %v3899, %v3970
    %v3972 = vpop.f32.mrf.mxu0
    %3973 = vdwg.mxu0
    %v3974 = vxor.u32 %v3971, 2147483648
    %v3975 = vmul.f32 %v3974, 1.442695
    %v3976 = vpow.pop %v3975
    %v3977 = vadd.f32 %v3976, 1.0
    %v3978 = vrcp.pop %v3977
    %v3979 = vmul.f32 1.0, %v3978
    %v3980 = vtanh.pop %v3971
    %v3981 = vmul.f32 %v3979, %v3639
    %3983 = vrot.lane.b32.xlu0 %v3980, 64
    %v3984 = vpop.permute.xlu0 %3983
    %v3986 = vmul.f32 %v3979, %v3984
    %3988 = vrot.lane.b32.xlu0 %v3986, 32
    %v3989 = vpop.permute.xlu0 %3988
    %v3991 = vadd.f32 %v3981, %v3989
    %v3992 = vtanh.pop %v3991
    %3994 = vrot.lane.b32.xlu0 %v3992, 64
    %v3995 = vpop.permute.xlu0 %3994
    %v3997 = vmul.f32 %v3979, %v3995
    %v4000 = vunpack.c.l.s4 1966171168
    %v4001 = vunpack.c.0.s8 %v4000
    %v4002 = vlaneseq
    %v4003 = vshrl.u32 %v4002, 7
    %v4004 = vsub.s32 %v4001, %v4003
    %v4005 = vrot.slane %v3881, %v4004
    %v4006 = vcombine.high %v4005, %v4005
    %v4008 = vunpack.c.l.s4 1966171168
    %v4009 = vunpack.c.0.s8 %v4008
    %v4010 = vlaneseq
    %v4011 = vshrl.u32 %v4010, 7
    %v4012 = vsub.s32 %v4009, %v4011
    %v4013 = vrot.slane %v4005, %v4012
    %v4015 = vunpack.c.l.s4 1966171168
    %v4016 = vunpack.c.0.s8 %v4015
    %v4017 = vlaneseq
    %v4018 = vshrl.u32 %v4017, 7
    %v4019 = vsub.s32 %v4016, %v4018
    %v4020 = vrot.slane %v4006, %v4019
    %v4021 = vlaneseq
    %v4022 = vshrl.u32 %v4021, 7
    %v4023 = vsub.s32 0, %v4022
    %v4024 = vrot.slane %v4013, %v4023
    %v4025 = vlaneseq
    %v4026 = vshrl.u32 %v4025, 7
    %v4027 = vsub.s32 0, %v4026
    %v4028 = vrot.slane %v4020, %v4027
    %4029 = vrot.lane.b32.xlu0 %v4024, 32
    %v4030 = vpop.permute.xlu0 %4029
    %4031 = vrot.lane.b32.xlu0 %v4028, 32
    %v4032 = vpop.permute.xlu0 %4031
    %4035 = vst.msk [vmem:[#allocation4 + $0x3] sm:$0x1] %vm389, %v4030
    %4036 = vst.msk [vmem:[#allocation4 + $0xb] sm:$0x1] %vm389, %v4032
    %v4039 = vunpack.c.l.s4 1966171168
    %v4040 = vunpack.c.0.s8 %v4039
    %v4041 = vlaneseq
    %v4042 = vshrl.u32 %v4041, 7
    %v4043 = vsub.s32 %v4040, %v4042
    %v4044 = vrot.slane %v3997, %v4043
    %v4045 = vcombine.high %v4044, %v4044
    %v4047 = vunpack.c.l.s4 1966171168
    %v4048 = vunpack.c.0.s8 %v4047
    %v4049 = vlaneseq
    %v4050 = vshrl.u32 %v4049, 7
    %v4051 = vsub.s32 %v4048, %v4050
    %v4052 = vrot.slane %v4044, %v4051
    %v4054 = vunpack.c.l.s4 1966171168
    %v4055 = vunpack.c.0.s8 %v4054
    %v4056 = vlaneseq
    %v4057 = vshrl.u32 %v4056, 7
    %v4058 = vsub.s32 %v4055, %v4057
    %v4059 = vrot.slane %v4045, %v4058
    %v4060 = vlaneseq
    %v4061 = vshrl.u32 %v4060, 7
    %v4062 = vsub.s32 0, %v4061
    %v4063 = vrot.slane %v4052, %v4062
    %v4064 = vlaneseq
    %v4065 = vshrl.u32 %v4064, 7
    %v4066 = vsub.s32 0, %v4065
    %v4067 = vrot.slane %v4059, %v4066
    %4068 = vrot.lane.b32.xlu0 %v4063, 32
    %v4069 = vpop.permute.xlu0 %4068
    %4070 = vrot.lane.b32.xlu0 %v4067, 32
    %v4071 = vpop.permute.xlu0 %4070
    %4074 = vst.msk [vmem:[#allocation5 + $0x4] sm:$0x1] %vm389, %v4069
    %4075 = vst.msk [vmem:[#allocation5 + $0xc] sm:$0x1] %vm389, %v4071
    %v4076 = vld [vmem:[#allocation2 + $0x4] sm:$0x1]
    %v4077 = vld [vmem:[#allocation2 + $0xc] sm:$0x1]
    %v4078 = vld [vmem:[#allocation3 + $0x4] sm:$0x1]
    %v4079 = vld [vmem:[#allocation3 + $0xc] sm:$0x1]
    %v4082 = vrot.slane %v4077, 7
    %v4083 = vsel %vm118, %v4082, %v4076
    %v4087 = vrot.slane %v4079, 7
    %v4088 = vsel %vm118, %v4087, %v4078
    %4089 = vrot.lane.b32.xlu0 %v4088, 32
    %v4090 = vpop.permute.xlu0 %4089
    %4092 = vrot.lane.b32.xlu0 %v3881, 96
    %v4093 = vpop.permute.xlu0 %4092
    %v4095 = vsel %vm2687, %v4083, %v4090
    %v4096 = vsel %vm2689, %v4095, %v4093
    %v4097 = vld [vmem:[#allocation2 + $0x3] sm:$0x1]
    %v4098 = vld [vmem:[#allocation2 + $0xb] sm:$0x1]
    %v4099 = vld [vmem:[#allocation3 + $0x3] sm:$0x1]
    %v4100 = vld [vmem:[#allocation3 + $0xb] sm:$0x1]
    %v4103 = vrot.slane %v4098, 7
    %v4104 = vsel %vm118, %v4103, %v4097
    %v4108 = vrot.slane %v4100, 7
    %v4109 = vsel %vm118, %v4108, %v4099
    %4110 = vrot.lane.b32.xlu0 %v4109, 32
    %v4111 = vpop.permute.xlu0 %4110
    %4113 = vrot.lane.b32.xlu0 %v3997, 96
    %v4114 = vpop.permute.xlu0 %4113
    %v4116 = vsel %vm2687, %v4104, %v4111
    %v4117 = vsel %vm2689, %v4116, %v4114
    %v4118 = vld [vmem:[%s5] sm:$0xff]
    %v4119 = vld [vmem:[%s5 + $0x8] sm:$0xff]
    %v4120 = vld [vmem:[%s5 + $0x10] sm:$0xff]
    %v4121 = vld [vmem:[%s5 + $0x18] sm:$0xff]
    %v4122 = vld [vmem:[%s5 + $0x20] sm:$0xff]
    %v4123 = vld [vmem:[%s5 + $0x28] sm:$0xff]
    %v4124 = vld [vmem:[%s5 + $0x30] sm:$0xff]
    %v4125 = vld [vmem:[%s5 + $0x38] sm:$0xff]
    %v4126 = vld [vmem:[%s5 + $0x40] sm:$0xff]
    %v4127 = vld [vmem:[%s5 + $0x48] sm:$0xff]
    %v4128 = vld [vmem:[%s5 + $0x50] sm:$0xff]
    %v4129 = vld [vmem:[%s5 + $0x58] sm:$0xff]
    %v4130 = vld [vmem:[%s6] sm:$0x1]
    %v4132 = vlaneseq
    %v4133 = vshrl.u32 %v4132, 7
    %v4134 = vsub.s32 0, %v4133
    %v4135 = vrot.slane %v4130, %v4134
    %v4138 = vsel %vm2728, %v4096, 0
    %4140 = vmatprep.subr.mxu0 0.0
    %4141 = vmatpush1.msra.mxu0 0.0
    %4142 = vmatprep.subr.mxu0 0.0
    %4143 = vmatpush1.msra.mxu0 0.0
    %4144 = vmatprep.subr.mxu0 0.0
    %4145 = vmatpush1.msra.mxu0 0.0
    %4146 = vmatprep.subr.mxu0 0.0
    %4147 = vmatpush1.msra.mxu0 0.0
    %4148 = vmatprep.subr.mxu0 0.0
    %4149 = vmatpush1.msra.mxu0 %v4129
    %4150 = vmatprep.subr.mxu0 0.0
    %4151 = vmatpush1.msra.mxu0 %v4128
    %4152 = vmatprep.subr.mxu0 0.0
    %4153 = vmatpush1.msra.mxu0 %v4127
    %4154 = vmatprep.subr.mxu0 0.0
    %4155 = vmatpush1.msra.mxu0 %v4126
    %4156 = vmatprep.subr.mxu0 0.0
    %4157 = vmatpush1.msra.mxu0 %v4125
    %4158 = vmatprep.subr.mxu0 0.0
    %4159 = vmatpush1.msra.mxu0 %v4124
    %4160 = vmatprep.subr.mxu0 0.0
    %4161 = vmatpush1.msra.mxu0 %v4123
    %4162 = vmatprep.subr.mxu0 0.0
    %4163 = vmatpush1.msra.mxu0 %v4122
    %4164 = vmatprep.subr.mxu0 0.0
    %4165 = vmatpush1.msra.mxu0 %v4121
    %4166 = vmatprep.subr.mxu0 0.0
    %4167 = vmatpush1.msra.mxu0 %v4120
    %4168 = vmatprep.subr.mxu0 0.0
    %4169 = vmatpush1.msra.mxu0 %v4119
    %4170 = vmatprep.subr.mxu0 0.0
    %4171 = vmatpush1.msra.mxu0 %v4118
    %4172 = vmatprep.subr.mxu0 0.0
    %4173 = vmatpush2.msra.mxu0 0.0
    %4174 = vmatprep.subr.mxu0 0.0
    %4175 = vmatpush2.msra.mxu0 0.0
    %4176 = vmatprep.subr.mxu0 0.0
    %4177 = vmatpush2.msra.mxu0 0.0
    %4178 = vmatprep.subr.mxu0 0.0
    %4179 = vmatpush2.msra.mxu0 0.0
    %4180 = vmatprep.subr.mxu0 0.0
    %4181 = vmatpush2.msra.mxu0 0.0
    %4182 = vmatprep.subr.mxu0 0.0
    %4183 = vmatpush2.msra.mxu0 0.0
    %4184 = vmatprep.subr.mxu0 0.0
    %4185 = vmatpush2.msra.mxu0 0.0
    %4186 = vmatprep.subr.mxu0 0.0
    %4187 = vmatpush2.msra.mxu0 0.0
    %4188 = vmatprep.subr.mxu0 0.0
    %4189 = vmatpush2.msra.mxu0 0.0
    %4190 = vmatprep.subr.mxu0 0.0
    %4191 = vmatpush2.msra.mxu0 0.0
    %4192 = vmatprep.subr.mxu0 0.0
    %4193 = vmatpush2.msra.mxu0 0.0
    %4194 = vmatprep.subr.mxu0 0.0
    %4195 = vmatpush2.msra.mxu0 0.0
    %4196 = vmatprep.subr.mxu0 0.0
    %4197 = vmatpush2.msra.mxu0 0.0
    %4198 = vmatprep.subr.mxu0 0.0
    %4199 = vmatpush2.msra.mxu0 0.0
    %4200 = vmatprep.subr.mxu0 0.0
    %4201 = vmatpush2.msra.mxu0 0.0
    %4202 = vmatprep.subr.mxu0 0.0
    %4203 = vmatpush2.msra.mxu0 0.0
    %4204 = vmatprep.mubr.f32.mxu0 0.0
    %4205 = vmatmul.mubr.f32.gmra.mxu0 %v4138
    %v4206 = vpop.f32.mrf.mxu0
    %v4207 = vadd.f32 %v4135, %v4206
    %v4208 = vpop.f32.mrf.mxu0
    %4209 = vdwg.mxu0
    %v4210 = vxor.u32 %v4207, 2147483648
    %v4211 = vmul.f32 %v4210, 1.442695
    %v4212 = vpow.pop %v4211
    %v4213 = vadd.f32 %v4212, 1.0
    %v4214 = vrcp.pop %v4213
    %v4215 = vmul.f32 1.0, %v4214
    %v4216 = vtanh.pop %v4207
    %v4217 = vmul.f32 %v4215, %v3875
    %4219 = vrot.lane.b32.xlu0 %v4216, 64
    %v4220 = vpop.permute.xlu0 %4219
    %v4222 = vmul.f32 %v4215, %v4220
    %4224 = vrot.lane.b32.xlu0 %v4222, 32
    %v4225 = vpop.permute.xlu0 %4224
    %v4227 = vadd.f32 %v4217, %v4225
    %v4228 = vtanh.pop %v4227
    %4230 = vrot.lane.b32.xlu0 %v4228, 64
    %v4231 = vpop.permute.xlu0 %4230
    %v4233 = vmul.f32 %v4215, %v4231
    %v4234 = vld [vmem:[#allocation11] sm:$0xff]
    %v4235 = vld [vmem:[#allocation11 + $0x8] sm:$0xff]
    %v4236 = vld [vmem:[#allocation11 + $0x10] sm:$0xff]
    %v4237 = vld [vmem:[#allocation11 + $0x18] sm:$0xff]
    %v4238 = vld [vmem:[#allocation11 + $0x20] sm:$0xff]
    %v4239 = vld [vmem:[#allocation11 + $0x28] sm:$0xff]
    %v4240 = vld [vmem:[#allocation11 + $0x30] sm:$0xff]
    %v4241 = vld [vmem:[#allocation11 + $0x38] sm:$0xff]
    %v4242 = vld [vmem:[#allocation11 + $0x40] sm:$0xff]
    %v4243 = vld [vmem:[#allocation11 + $0x48] sm:$0xff]
    %v4244 = vld [vmem:[#allocation11 + $0x50] sm:$0xff]
    %v4245 = vld [vmem:[#allocation11 + $0x58] sm:$0xff]
    %v4246 = vld [vmem:[%s8] sm:$0x1]
    %v4248 = vlaneseq
    %v4249 = vshrl.u32 %v4248, 7
    %v4250 = vsub.s32 0, %v4249
    %v4251 = vrot.slane %v4246, %v4250
    %v4254 = vsel %vm2728, %v4117, 0
    %4256 = vmatprep.subr.mxu0 0.0
    %4257 = vmatpush1.msra.mxu0 0.0
    %4258 = vmatprep.subr.mxu0 0.0
    %4259 = vmatpush1.msra.mxu0 0.0
    %4260 = vmatprep.subr.mxu0 0.0
    %4261 = vmatpush1.msra.mxu0 0.0
    %4262 = vmatprep.subr.mxu0 0.0
    %4263 = vmatpush1.msra.mxu0 0.0
    %4264 = vmatprep.subr.mxu0 0.0
    %4265 = vmatpush1.msra.mxu0 %v4245
    %4266 = vmatprep.subr.mxu0 0.0
    %4267 = vmatpush1.msra.mxu0 %v4244
    %4268 = vmatprep.subr.mxu0 0.0
    %4269 = vmatpush1.msra.mxu0 %v4243
    %4270 = vmatprep.subr.mxu0 0.0
    %4271 = vmatpush1.msra.mxu0 %v4242
    %4272 = vmatprep.subr.mxu0 0.0
    %4273 = vmatpush1.msra.mxu0 %v4241
    %4274 = vmatprep.subr.mxu0 0.0
    %4275 = vmatpush1.msra.mxu0 %v4240
    %4276 = vmatprep.subr.mxu0 0.0
    %4277 = vmatpush1.msra.mxu0 %v4239
    %4278 = vmatprep.subr.mxu0 0.0
    %4279 = vmatpush1.msra.mxu0 %v4238
    %4280 = vmatprep.subr.mxu0 0.0
    %4281 = vmatpush1.msra.mxu0 %v4237
    %4282 = vmatprep.subr.mxu0 0.0
    %4283 = vmatpush1.msra.mxu0 %v4236
    %4284 = vmatprep.subr.mxu0 0.0
    %4285 = vmatpush1.msra.mxu0 %v4235
    %4286 = vmatprep.subr.mxu0 0.0
    %4287 = vmatpush1.msra.mxu0 %v4234
    %4288 = vmatprep.subr.mxu0 0.0
    %4289 = vmatpush2.msra.mxu0 0.0
    %4290 = vmatprep.subr.mxu0 0.0
    %4291 = vmatpush2.msra.mxu0 0.0
    %4292 = vmatprep.subr.mxu0 0.0
    %4293 = vmatpush2.msra.mxu0 0.0
    %4294 = vmatprep.subr.mxu0 0.0
    %4295 = vmatpush2.msra.mxu0 0.0
    %4296 = vmatprep.subr.mxu0 0.0
    %4297 = vmatpush2.msra.mxu0 0.0
    %4298 = vmatprep.subr.mxu0 0.0
    %4299 = vmatpush2.msra.mxu0 0.0
    %4300 = vmatprep.subr.mxu0 0.0
    %4301 = vmatpush2.msra.mxu0 0.0
    %4302 = vmatprep.subr.mxu0 0.0
    %4303 = vmatpush2.msra.mxu0 0.0
    %4304 = vmatprep.subr.mxu0 0.0
    %4305 = vmatpush2.msra.mxu0 0.0
    %4306 = vmatprep.subr.mxu0 0.0
    %4307 = vmatpush2.msra.mxu0 0.0
    %4308 = vmatprep.subr.mxu0 0.0
    %4309 = vmatpush2.msra.mxu0 0.0
    %4310 = vmatprep.subr.mxu0 0.0
    %4311 = vmatpush2.msra.mxu0 0.0
    %4312 = vmatprep.subr.mxu0 0.0
    %4313 = vmatpush2.msra.mxu0 0.0
    %4314 = vmatprep.subr.mxu0 0.0
    %4315 = vmatpush2.msra.mxu0 0.0
    %4316 = vmatprep.subr.mxu0 0.0
    %4317 = vmatpush2.msra.mxu0 0.0
    %4318 = vmatprep.subr.mxu0 0.0
    %4319 = vmatpush2.msra.mxu0 0.0
    %4320 = vmatprep.mubr.f32.mxu0 0.0
    %4321 = vmatmul.mubr.f32.gmra.mxu0 %v4254
    %v4322 = vpop.f32.mrf.mxu0
    %v4323 = vadd.f32 %v4251, %v4322
    %v4324 = vpop.f32.mrf.mxu0
    %4325 = vdwg.mxu0
    %v4326 = vxor.u32 %v4323, 2147483648
    %v4327 = vmul.f32 %v4326, 1.442695
    %v4328 = vpow.pop %v4327
    %v4329 = vadd.f32 %v4328, 1.0
    %v4330 = vrcp.pop %v4329
    %v4331 = vmul.f32 1.0, %v4330
    %v4332 = vtanh.pop %v4323
    %v4333 = vmul.f32 %v4331, %v3991
    %4335 = vrot.lane.b32.xlu0 %v4332, 64
    %v4336 = vpop.permute.xlu0 %4335
    %v4338 = vmul.f32 %v4331, %v4336
    %4340 = vrot.lane.b32.xlu0 %v4338, 32
    %v4341 = vpop.permute.xlu0 %4340
    %v4343 = vadd.f32 %v4333, %v4341
    %v4344 = vtanh.pop %v4343
    %4346 = vrot.lane.b32.xlu0 %v4344, 64
    %v4347 = vpop.permute.xlu0 %4346
    %v4349 = vmul.f32 %v4331, %v4347
    %v4352 = vunpack.c.l.s4 1966171168
    %v4353 = vunpack.c.0.s8 %v4352
    %v4354 = vlaneseq
    %v4355 = vshrl.u32 %v4354, 7
    %v4356 = vsub.s32 %v4353, %v4355
    %v4357 = vrot.slane %v4233, %v4356
    %v4358 = vcombine.high %v4357, %v4357
    %v4360 = vunpack.c.l.s4 1966171168
    %v4361 = vunpack.c.0.s8 %v4360
    %v4362 = vlaneseq
    %v4363 = vshrl.u32 %v4362, 7
    %v4364 = vsub.s32 %v4361, %v4363
    %v4365 = vrot.slane %v4357, %v4364
    %v4367 = vunpack.c.l.s4 1966171168
    %v4368 = vunpack.c.0.s8 %v4367
    %v4369 = vlaneseq
    %v4370 = vshrl.u32 %v4369, 7
    %v4371 = vsub.s32 %v4368, %v4370
    %v4372 = vrot.slane %v4358, %v4371
    %v4373 = vlaneseq
    %v4374 = vshrl.u32 %v4373, 7
    %v4375 = vsub.s32 0, %v4374
    %v4376 = vrot.slane %v4365, %v4375
    %v4377 = vlaneseq
    %v4378 = vshrl.u32 %v4377, 7
    %v4379 = vsub.s32 0, %v4378
    %v4380 = vrot.slane %v4372, %v4379
    %4381 = vrot.lane.b32.xlu0 %v4376, 32
    %v4382 = vpop.permute.xlu0 %4381
    %4383 = vrot.lane.b32.xlu0 %v4380, 32
    %v4384 = vpop.permute.xlu0 %4383
    %4387 = vst.msk [vmem:[#allocation4 + $0x4] sm:$0x1] %vm389, %v4382
    %4388 = vst.msk [vmem:[#allocation4 + $0xc] sm:$0x1] %vm389, %v4384
    %v4391 = vunpack.c.l.s4 1966171168
    %v4392 = vunpack.c.0.s8 %v4391
    %v4393 = vlaneseq
    %v4394 = vshrl.u32 %v4393, 7
    %v4395 = vsub.s32 %v4392, %v4394
    %v4396 = vrot.slane %v4349, %v4395
    %v4397 = vcombine.high %v4396, %v4396
    %v4399 = vunpack.c.l.s4 1966171168
    %v4400 = vunpack.c.0.s8 %v4399
    %v4401 = vlaneseq
    %v4402 = vshrl.u32 %v4401, 7
    %v4403 = vsub.s32 %v4400, %v4402
    %v4404 = vrot.slane %v4396, %v4403
    %v4406 = vunpack.c.l.s4 1966171168
    %v4407 = vunpack.c.0.s8 %v4406
    %v4408 = vlaneseq
    %v4409 = vshrl.u32 %v4408, 7
    %v4410 = vsub.s32 %v4407, %v4409
    %v4411 = vrot.slane %v4397, %v4410
    %v4412 = vlaneseq
    %v4413 = vshrl.u32 %v4412, 7
    %v4414 = vsub.s32 0, %v4413
    %v4415 = vrot.slane %v4404, %v4414
    %v4416 = vlaneseq
    %v4417 = vshrl.u32 %v4416, 7
    %v4418 = vsub.s32 0, %v4417
    %v4419 = vrot.slane %v4411, %v4418
    %4420 = vrot.lane.b32.xlu0 %v4415, 32
    %v4421 = vpop.permute.xlu0 %4420
    %4422 = vrot.lane.b32.xlu0 %v4419, 32
    %v4423 = vpop.permute.xlu0 %4422
    %4426 = vst.msk [vmem:[#allocation5 + $0x3] sm:$0x1] %vm389, %v4421
    %4427 = vst.msk [vmem:[#allocation5 + $0xb] sm:$0x1] %vm389, %v4423
    %v4428 = vld [vmem:[#allocation2 + $0x5] sm:$0x1]
    %v4429 = vld [vmem:[#allocation2 + $0xd] sm:$0x1]
    %v4430 = vld [vmem:[#allocation3 + $0x5] sm:$0x1]
    %v4431 = vld [vmem:[#allocation3 + $0xd] sm:$0x1]
    %v4434 = vrot.slane %v4429, 7
    %v4435 = vsel %vm118, %v4434, %v4428
    %v4439 = vrot.slane %v4431, 7
    %v4440 = vsel %vm118, %v4439, %v4430
    %4441 = vrot.lane.b32.xlu0 %v4440, 32
    %v4442 = vpop.permute.xlu0 %4441
    %4444 = vrot.lane.b32.xlu0 %v4233, 96
    %v4445 = vpop.permute.xlu0 %4444
    %v4447 = vsel %vm2687, %v4435, %v4442
    %v4448 = vsel %vm2689, %v4447, %v4445
    %v4449 = vld [vmem:[#allocation2 + $0x2] sm:$0x1]
    %v4450 = vld [vmem:[#allocation2 + $0xa] sm:$0x1]
    %v4451 = vld [vmem:[#allocation3 + $0x2] sm:$0x1]
    %v4452 = vld [vmem:[#allocation3 + $0xa] sm:$0x1]
    %v4455 = vrot.slane %v4450, 7
    %v4456 = vsel %vm118, %v4455, %v4449
    %v4460 = vrot.slane %v4452, 7
    %v4461 = vsel %vm118, %v4460, %v4451
    %4462 = vrot.lane.b32.xlu0 %v4461, 32
    %v4463 = vpop.permute.xlu0 %4462
    %4465 = vrot.lane.b32.xlu0 %v4349, 96
    %v4466 = vpop.permute.xlu0 %4465
    %v4468 = vsel %vm2687, %v4456, %v4463
    %v4469 = vsel %vm2689, %v4468, %v4466
    %v4470 = vld [vmem:[%s5] sm:$0xff]
    %v4471 = vld [vmem:[%s5 + $0x8] sm:$0xff]
    %v4472 = vld [vmem:[%s5 + $0x10] sm:$0xff]
    %v4473 = vld [vmem:[%s5 + $0x18] sm:$0xff]
    %v4474 = vld [vmem:[%s5 + $0x20] sm:$0xff]
    %v4475 = vld [vmem:[%s5 + $0x28] sm:$0xff]
    %v4476 = vld [vmem:[%s5 + $0x30] sm:$0xff]
    %v4477 = vld [vmem:[%s5 + $0x38] sm:$0xff]
    %v4478 = vld [vmem:[%s5 + $0x40] sm:$0xff]
    %v4479 = vld [vmem:[%s5 + $0x48] sm:$0xff]
    %v4480 = vld [vmem:[%s5 + $0x50] sm:$0xff]
    %v4481 = vld [vmem:[%s5 + $0x58] sm:$0xff]
    %v4482 = vld [vmem:[%s6] sm:$0x1]
    %v4484 = vlaneseq
    %v4485 = vshrl.u32 %v4484, 7
    %v4486 = vsub.s32 0, %v4485
    %v4487 = vrot.slane %v4482, %v4486
    %v4490 = vsel %vm2728, %v4448, 0
    %4492 = vmatprep.subr.mxu0 0.0
    %4493 = vmatpush1.msra.mxu0 0.0
    %4494 = vmatprep.subr.mxu0 0.0
    %4495 = vmatpush1.msra.mxu0 0.0
    %4496 = vmatprep.subr.mxu0 0.0
    %4497 = vmatpush1.msra.mxu0 0.0
    %4498 = vmatprep.subr.mxu0 0.0
    %4499 = vmatpush1.msra.mxu0 0.0
    %4500 = vmatprep.subr.mxu0 0.0
    %4501 = vmatpush1.msra.mxu0 %v4481
    %4502 = vmatprep.subr.mxu0 0.0
    %4503 = vmatpush1.msra.mxu0 %v4480
    %4504 = vmatprep.subr.mxu0 0.0
    %4505 = vmatpush1.msra.mxu0 %v4479
    %4506 = vmatprep.subr.mxu0 0.0
    %4507 = vmatpush1.msra.mxu0 %v4478
    %4508 = vmatprep.subr.mxu0 0.0
    %4509 = vmatpush1.msra.mxu0 %v4477
    %4510 = vmatprep.subr.mxu0 0.0
    %4511 = vmatpush1.msra.mxu0 %v4476
    %4512 = vmatprep.subr.mxu0 0.0
    %4513 = vmatpush1.msra.mxu0 %v4475
    %4514 = vmatprep.subr.mxu0 0.0
    %4515 = vmatpush1.msra.mxu0 %v4474
    %4516 = vmatprep.subr.mxu0 0.0
    %4517 = vmatpush1.msra.mxu0 %v4473
    %4518 = vmatprep.subr.mxu0 0.0
    %4519 = vmatpush1.msra.mxu0 %v4472
    %4520 = vmatprep.subr.mxu0 0.0
    %4521 = vmatpush1.msra.mxu0 %v4471
    %4522 = vmatprep.subr.mxu0 0.0
    %4523 = vmatpush1.msra.mxu0 %v4470
    %4524 = vmatprep.subr.mxu0 0.0
    %4525 = vmatpush2.msra.mxu0 0.0
    %4526 = vmatprep.subr.mxu0 0.0
    %4527 = vmatpush2.msra.mxu0 0.0
    %4528 = vmatprep.subr.mxu0 0.0
    %4529 = vmatpush2.msra.mxu0 0.0
    %4530 = vmatprep.subr.mxu0 0.0
    %4531 = vmatpush2.msra.mxu0 0.0
    %4532 = vmatprep.subr.mxu0 0.0
    %4533 = vmatpush2.msra.mxu0 0.0
    %4534 = vmatprep.subr.mxu0 0.0
    %4535 = vmatpush2.msra.mxu0 0.0
    %4536 = vmatprep.subr.mxu0 0.0
    %4537 = vmatpush2.msra.mxu0 0.0
    %4538 = vmatprep.subr.mxu0 0.0
    %4539 = vmatpush2.msra.mxu0 0.0
    %4540 = vmatprep.subr.mxu0 0.0
    %4541 = vmatpush2.msra.mxu0 0.0
    %4542 = vmatprep.subr.mxu0 0.0
    %4543 = vmatpush2.msra.mxu0 0.0
    %4544 = vmatprep.subr.mxu0 0.0
    %4545 = vmatpush2.msra.mxu0 0.0
    %4546 = vmatprep.subr.mxu0 0.0
    %4547 = vmatpush2.msra.mxu0 0.0
    %4548 = vmatprep.subr.mxu0 0.0
    %4549 = vmatpush2.msra.mxu0 0.0
    %4550 = vmatprep.subr.mxu0 0.0
    %4551 = vmatpush2.msra.mxu0 0.0
    %4552 = vmatprep.subr.mxu0 0.0
    %4553 = vmatpush2.msra.mxu0 0.0
    %4554 = vmatprep.subr.mxu0 0.0
    %4555 = vmatpush2.msra.mxu0 0.0
    %4556 = vmatprep.mubr.f32.mxu0 0.0
    %4557 = vmatmul.mubr.f32.gmra.mxu0 %v4490
    %v4558 = vpop.f32.mrf.mxu0
    %v4559 = vadd.f32 %v4487, %v4558
    %v4560 = vpop.f32.mrf.mxu0
    %4561 = vdwg.mxu0
    %v4562 = vxor.u32 %v4559, 2147483648
    %v4563 = vmul.f32 %v4562, 1.442695
    %v4564 = vpow.pop %v4563
    %v4565 = vadd.f32 %v4564, 1.0
    %v4566 = vrcp.pop %v4565
    %v4567 = vmul.f32 1.0, %v4566
    %v4568 = vtanh.pop %v4559
    %v4569 = vmul.f32 %v4567, %v4227
    %4571 = vrot.lane.b32.xlu0 %v4568, 64
    %v4572 = vpop.permute.xlu0 %4571
    %v4574 = vmul.f32 %v4567, %v4572
    %4576 = vrot.lane.b32.xlu0 %v4574, 32
    %v4577 = vpop.permute.xlu0 %4576
    %v4579 = vadd.f32 %v4569, %v4577
    %v4580 = vtanh.pop %v4579
    %4582 = vrot.lane.b32.xlu0 %v4580, 64
    %v4583 = vpop.permute.xlu0 %4582
    %v4585 = vmul.f32 %v4567, %v4583
    %v4586 = vld [vmem:[#allocation11] sm:$0xff]
    %v4587 = vld [vmem:[#allocation11 + $0x8] sm:$0xff]
    %v4588 = vld [vmem:[#allocation11 + $0x10] sm:$0xff]
    %v4589 = vld [vmem:[#allocation11 + $0x18] sm:$0xff]
    %v4590 = vld [vmem:[#allocation11 + $0x20] sm:$0xff]
    %v4591 = vld [vmem:[#allocation11 + $0x28] sm:$0xff]
    %v4592 = vld [vmem:[#allocation11 + $0x30] sm:$0xff]
    %v4593 = vld [vmem:[#allocation11 + $0x38] sm:$0xff]
    %v4594 = vld [vmem:[#allocation11 + $0x40] sm:$0xff]
    %v4595 = vld [vmem:[#allocation11 + $0x48] sm:$0xff]
    %v4596 = vld [vmem:[#allocation11 + $0x50] sm:$0xff]
    %v4597 = vld [vmem:[#allocation11 + $0x58] sm:$0xff]
    %v4598 = vld [vmem:[%s8] sm:$0x1]
    %v4600 = vlaneseq
    %v4601 = vshrl.u32 %v4600, 7
    %v4602 = vsub.s32 0, %v4601
    %v4603 = vrot.slane %v4598, %v4602
    %v4606 = vsel %vm2728, %v4469, 0
    %4608 = vmatprep.subr.mxu0 0.0
    %4609 = vmatpush1.msra.mxu0 0.0
    %4610 = vmatprep.subr.mxu0 0.0
    %4611 = vmatpush1.msra.mxu0 0.0
    %4612 = vmatprep.subr.mxu0 0.0
    %4613 = vmatpush1.msra.mxu0 0.0
    %4614 = vmatprep.subr.mxu0 0.0
    %4615 = vmatpush1.msra.mxu0 0.0
    %4616 = vmatprep.subr.mxu0 0.0
    %4617 = vmatpush1.msra.mxu0 %v4597
    %4618 = vmatprep.subr.mxu0 0.0
    %4619 = vmatpush1.msra.mxu0 %v4596
    %4620 = vmatprep.subr.mxu0 0.0
    %4621 = vmatpush1.msra.mxu0 %v4595
    %4622 = vmatprep.subr.mxu0 0.0
    %4623 = vmatpush1.msra.mxu0 %v4594
    %4624 = vmatprep.subr.mxu0 0.0
    %4625 = vmatpush1.msra.mxu0 %v4593
    %4626 = vmatprep.subr.mxu0 0.0
    %4627 = vmatpush1.msra.mxu0 %v4592
    %4628 = vmatprep.subr.mxu0 0.0
    %4629 = vmatpush1.msra.mxu0 %v4591
    %4630 = vmatprep.subr.mxu0 0.0
    %4631 = vmatpush1.msra.mxu0 %v4590
    %4632 = vmatprep.subr.mxu0 0.0
    %4633 = vmatpush1.msra.mxu0 %v4589
    %4634 = vmatprep.subr.mxu0 0.0
    %4635 = vmatpush1.msra.mxu0 %v4588
    %4636 = vmatprep.subr.mxu0 0.0
    %4637 = vmatpush1.msra.mxu0 %v4587
    %4638 = vmatprep.subr.mxu0 0.0
    %4639 = vmatpush1.msra.mxu0 %v4586
    %4640 = vmatprep.subr.mxu0 0.0
    %4641 = vmatpush2.msra.mxu0 0.0
    %4642 = vmatprep.subr.mxu0 0.0
    %4643 = vmatpush2.msra.mxu0 0.0
    %4644 = vmatprep.subr.mxu0 0.0
    %4645 = vmatpush2.msra.mxu0 0.0
    %4646 = vmatprep.subr.mxu0 0.0
    %4647 = vmatpush2.msra.mxu0 0.0
    %4648 = vmatprep.subr.mxu0 0.0
    %4649 = vmatpush2.msra.mxu0 0.0
    %4650 = vmatprep.subr.mxu0 0.0
    %4651 = vmatpush2.msra.mxu0 0.0
    %4652 = vmatprep.subr.mxu0 0.0
    %4653 = vmatpush2.msra.mxu0 0.0
    %4654 = vmatprep.subr.mxu0 0.0
    %4655 = vmatpush2.msra.mxu0 0.0
    %4656 = vmatprep.subr.mxu0 0.0
    %4657 = vmatpush2.msra.mxu0 0.0
    %4658 = vmatprep.subr.mxu0 0.0
    %4659 = vmatpush2.msra.mxu0 0.0
    %4660 = vmatprep.subr.mxu0 0.0
    %4661 = vmatpush2.msra.mxu0 0.0
    %4662 = vmatprep.subr.mxu0 0.0
    %4663 = vmatpush2.msra.mxu0 0.0
    %4664 = vmatprep.subr.mxu0 0.0
    %4665 = vmatpush2.msra.mxu0 0.0
    %4666 = vmatprep.subr.mxu0 0.0
    %4667 = vmatpush2.msra.mxu0 0.0
    %4668 = vmatprep.subr.mxu0 0.0
    %4669 = vmatpush2.msra.mxu0 0.0
    %4670 = vmatprep.subr.mxu0 0.0
    %4671 = vmatpush2.msra.mxu0 0.0
    %4672 = vmatprep.mubr.f32.mxu0 0.0
    %4673 = vmatmul.mubr.f32.gmra.mxu0 %v4606
    %v4674 = vpop.f32.mrf.mxu0
    %v4675 = vadd.f32 %v4603, %v4674
    %v4676 = vpop.f32.mrf.mxu0
    %4677 = vdwg.mxu0
    %v4678 = vxor.u32 %v4675, 2147483648
    %v4679 = vmul.f32 %v4678, 1.442695
    %v4680 = vpow.pop %v4679
    %v4681 = vadd.f32 %v4680, 1.0
    %v4682 = vrcp.pop %v4681
    %v4683 = vmul.f32 1.0, %v4682
    %v4684 = vtanh.pop %v4675
    %v4685 = vmul.f32 %v4683, %v4343
    %4687 = vrot.lane.b32.xlu0 %v4684, 64
    %v4688 = vpop.permute.xlu0 %4687
    %v4690 = vmul.f32 %v4683, %v4688
    %4692 = vrot.lane.b32.xlu0 %v4690, 32
    %v4693 = vpop.permute.xlu0 %4692
    %v4695 = vadd.f32 %v4685, %v4693
    %v4696 = vtanh.pop %v4695
    %4698 = vrot.lane.b32.xlu0 %v4696, 64
    %v4699 = vpop.permute.xlu0 %4698
    %v4701 = vmul.f32 %v4683, %v4699
    %v4704 = vunpack.c.l.s4 1966171168
    %v4705 = vunpack.c.0.s8 %v4704
    %v4706 = vlaneseq
    %v4707 = vshrl.u32 %v4706, 7
    %v4708 = vsub.s32 %v4705, %v4707
    %v4709 = vrot.slane %v4585, %v4708
    %v4710 = vcombine.high %v4709, %v4709
    %v4712 = vunpack.c.l.s4 1966171168
    %v4713 = vunpack.c.0.s8 %v4712
    %v4714 = vlaneseq
    %v4715 = vshrl.u32 %v4714, 7
    %v4716 = vsub.s32 %v4713, %v4715
    %v4717 = vrot.slane %v4709, %v4716
    %v4719 = vunpack.c.l.s4 1966171168
    %v4720 = vunpack.c.0.s8 %v4719
    %v4721 = vlaneseq
    %v4722 = vshrl.u32 %v4721, 7
    %v4723 = vsub.s32 %v4720, %v4722
    %v4724 = vrot.slane %v4710, %v4723
    %v4725 = vlaneseq
    %v4726 = vshrl.u32 %v4725, 7
    %v4727 = vsub.s32 0, %v4726
    %v4728 = vrot.slane %v4717, %v4727
    %v4729 = vlaneseq
    %v4730 = vshrl.u32 %v4729, 7
    %v4731 = vsub.s32 0, %v4730
    %v4732 = vrot.slane %v4724, %v4731
    %4733 = vrot.lane.b32.xlu0 %v4728, 32
    %v4734 = vpop.permute.xlu0 %4733
    %4735 = vrot.lane.b32.xlu0 %v4732, 32
    %v4736 = vpop.permute.xlu0 %4735
    %4739 = vst.msk [vmem:[#allocation4 + $0x5] sm:$0x1] %vm389, %v4734
    %4740 = vst.msk [vmem:[#allocation4 + $0xd] sm:$0x1] %vm389, %v4736
    %v4743 = vunpack.c.l.s4 1966171168
    %v4744 = vunpack.c.0.s8 %v4743
    %v4745 = vlaneseq
    %v4746 = vshrl.u32 %v4745, 7
    %v4747 = vsub.s32 %v4744, %v4746
    %v4748 = vrot.slane %v4701, %v4747
    %v4749 = vcombine.high %v4748, %v4748
    %v4751 = vunpack.c.l.s4 1966171168
    %v4752 = vunpack.c.0.s8 %v4751
    %v4753 = vlaneseq
    %v4754 = vshrl.u32 %v4753, 7
    %v4755 = vsub.s32 %v4752, %v4754
    %v4756 = vrot.slane %v4748, %v4755
    %v4758 = vunpack.c.l.s4 1966171168
    %v4759 = vunpack.c.0.s8 %v4758
    %v4760 = vlaneseq
    %v4761 = vshrl.u32 %v4760, 7
    %v4762 = vsub.s32 %v4759, %v4761
    %v4763 = vrot.slane %v4749, %v4762
    %v4764 = vlaneseq
    %v4765 = vshrl.u32 %v4764, 7
    %v4766 = vsub.s32 0, %v4765
    %v4767 = vrot.slane %v4756, %v4766
    %v4768 = vlaneseq
    %v4769 = vshrl.u32 %v4768, 7
    %v4770 = vsub.s32 0, %v4769
    %v4771 = vrot.slane %v4763, %v4770
    %4772 = vrot.lane.b32.xlu0 %v4767, 32
    %v4773 = vpop.permute.xlu0 %4772
    %4774 = vrot.lane.b32.xlu0 %v4771, 32
    %v4775 = vpop.permute.xlu0 %4774
    %4778 = vst.msk [vmem:[#allocation5 + $0x2] sm:$0x1] %vm389, %v4773
    %4779 = vst.msk [vmem:[#allocation5 + $0xa] sm:$0x1] %vm389, %v4775
    %v4780 = vld [vmem:[#allocation2 + $0x6] sm:$0x1]
    %v4781 = vld [vmem:[#allocation2 + $0xe] sm:$0x1]
    %v4782 = vld [vmem:[#allocation3 + $0x6] sm:$0x1]
    %v4783 = vld [vmem:[#allocation3 + $0xe] sm:$0x1]
    %v4786 = vrot.slane %v4781, 7
    %v4787 = vsel %vm118, %v4786, %v4780
    %v4791 = vrot.slane %v4783, 7
    %v4792 = vsel %vm118, %v4791, %v4782
    %4793 = vrot.lane.b32.xlu0 %v4792, 32
    %v4794 = vpop.permute.xlu0 %4793
    %4796 = vrot.lane.b32.xlu0 %v4585, 96
    %v4797 = vpop.permute.xlu0 %4796
    %v4799 = vsel %vm2687, %v4787, %v4794
    %v4800 = vsel %vm2689, %v4799, %v4797
    %v4801 = vld [vmem:[#allocation2 + $0x1] sm:$0x1]
    %v4802 = vld [vmem:[#allocation2 + $0x9] sm:$0x1]
    %v4803 = vld [vmem:[#allocation3 + $0x1] sm:$0x1]
    %v4804 = vld [vmem:[#allocation3 + $0x9] sm:$0x1]
    %v4807 = vrot.slane %v4802, 7
    %v4808 = vsel %vm118, %v4807, %v4801
    %v4812 = vrot.slane %v4804, 7
    %v4813 = vsel %vm118, %v4812, %v4803
    %4814 = vrot.lane.b32.xlu0 %v4813, 32
    %v4815 = vpop.permute.xlu0 %4814
    %4817 = vrot.lane.b32.xlu0 %v4701, 96
    %v4818 = vpop.permute.xlu0 %4817
    %v4820 = vsel %vm2687, %v4808, %v4815
    %v4821 = vsel %vm2689, %v4820, %v4818
    %v4822 = vld [vmem:[%s5] sm:$0xff]
    %v4823 = vld [vmem:[%s5 + $0x8] sm:$0xff]
    %v4824 = vld [vmem:[%s5 + $0x10] sm:$0xff]
    %v4825 = vld [vmem:[%s5 + $0x18] sm:$0xff]
    %v4826 = vld [vmem:[%s5 + $0x20] sm:$0xff]
    %v4827 = vld [vmem:[%s5 + $0x28] sm:$0xff]
    %v4828 = vld [vmem:[%s5 + $0x30] sm:$0xff]
    %v4829 = vld [vmem:[%s5 + $0x38] sm:$0xff]
    %v4830 = vld [vmem:[%s5 + $0x40] sm:$0xff]
    %v4831 = vld [vmem:[%s5 + $0x48] sm:$0xff]
    %v4832 = vld [vmem:[%s5 + $0x50] sm:$0xff]
    %v4833 = vld [vmem:[%s5 + $0x58] sm:$0xff]
    %v4834 = vld [vmem:[%s6] sm:$0x1]
    %v4836 = vlaneseq
    %v4837 = vshrl.u32 %v4836, 7
    %v4838 = vsub.s32 0, %v4837
    %v4839 = vrot.slane %v4834, %v4838
    %v4842 = vsel %vm2728, %v4800, 0
    %4844 = vmatprep.subr.mxu0 0.0
    %4845 = vmatpush1.msra.mxu0 0.0
    %4846 = vmatprep.subr.mxu0 0.0
    %4847 = vmatpush1.msra.mxu0 0.0
    %4848 = vmatprep.subr.mxu0 0.0
    %4849 = vmatpush1.msra.mxu0 0.0
    %4850 = vmatprep.subr.mxu0 0.0
    %4851 = vmatpush1.msra.mxu0 0.0
    %4852 = vmatprep.subr.mxu0 0.0
    %4853 = vmatpush1.msra.mxu0 %v4833
    %4854 = vmatprep.subr.mxu0 0.0
    %4855 = vmatpush1.msra.mxu0 %v4832
    %4856 = vmatprep.subr.mxu0 0.0
    %4857 = vmatpush1.msra.mxu0 %v4831
    %4858 = vmatprep.subr.mxu0 0.0
    %4859 = vmatpush1.msra.mxu0 %v4830
    %4860 = vmatprep.subr.mxu0 0.0
    %4861 = vmatpush1.msra.mxu0 %v4829
    %4862 = vmatprep.subr.mxu0 0.0
    %4863 = vmatpush1.msra.mxu0 %v4828
    %4864 = vmatprep.subr.mxu0 0.0
    %4865 = vmatpush1.msra.mxu0 %v4827
    %4866 = vmatprep.subr.mxu0 0.0
    %4867 = vmatpush1.msra.mxu0 %v4826
    %4868 = vmatprep.subr.mxu0 0.0
    %4869 = vmatpush1.msra.mxu0 %v4825
    %4870 = vmatprep.subr.mxu0 0.0
    %4871 = vmatpush1.msra.mxu0 %v4824
    %4872 = vmatprep.subr.mxu0 0.0
    %4873 = vmatpush1.msra.mxu0 %v4823
    %4874 = vmatprep.subr.mxu0 0.0
    %4875 = vmatpush1.msra.mxu0 %v4822
    %4876 = vmatprep.subr.mxu0 0.0
    %4877 = vmatpush2.msra.mxu0 0.0
    %4878 = vmatprep.subr.mxu0 0.0
    %4879 = vmatpush2.msra.mxu0 0.0
    %4880 = vmatprep.subr.mxu0 0.0
    %4881 = vmatpush2.msra.mxu0 0.0
    %4882 = vmatprep.subr.mxu0 0.0
    %4883 = vmatpush2.msra.mxu0 0.0
    %4884 = vmatprep.subr.mxu0 0.0
    %4885 = vmatpush2.msra.mxu0 0.0
    %4886 = vmatprep.subr.mxu0 0.0
    %4887 = vmatpush2.msra.mxu0 0.0
    %4888 = vmatprep.subr.mxu0 0.0
    %4889 = vmatpush2.msra.mxu0 0.0
    %4890 = vmatprep.subr.mxu0 0.0
    %4891 = vmatpush2.msra.mxu0 0.0
    %4892 = vmatprep.subr.mxu0 0.0
    %4893 = vmatpush2.msra.mxu0 0.0
    %4894 = vmatprep.subr.mxu0 0.0
    %4895 = vmatpush2.msra.mxu0 0.0
    %4896 = vmatprep.subr.mxu0 0.0
    %4897 = vmatpush2.msra.mxu0 0.0
    %4898 = vmatprep.subr.mxu0 0.0
    %4899 = vmatpush2.msra.mxu0 0.0
    %4900 = vmatprep.subr.mxu0 0.0
    %4901 = vmatpush2.msra.mxu0 0.0
    %4902 = vmatprep.subr.mxu0 0.0
    %4903 = vmatpush2.msra.mxu0 0.0
    %4904 = vmatprep.subr.mxu0 0.0
    %4905 = vmatpush2.msra.mxu0 0.0
    %4906 = vmatprep.subr.mxu0 0.0
    %4907 = vmatpush2.msra.mxu0 0.0
    %4908 = vmatprep.mubr.f32.mxu0 0.0
    %4909 = vmatmul.mubr.f32.gmra.mxu0 %v4842
    %v4910 = vpop.f32.mrf.mxu0
    %v4911 = vadd.f32 %v4839, %v4910
    %v4912 = vpop.f32.mrf.mxu0
    %4913 = vdwg.mxu0
    %v4914 = vxor.u32 %v4911, 2147483648
    %v4915 = vmul.f32 %v4914, 1.442695
    %v4916 = vpow.pop %v4915
    %v4917 = vadd.f32 %v4916, 1.0
    %v4918 = vrcp.pop %v4917
    %v4919 = vmul.f32 1.0, %v4918
    %v4920 = vtanh.pop %v4911
    %v4921 = vmul.f32 %v4919, %v4579
    %4923 = vrot.lane.b32.xlu0 %v4920, 64
    %v4924 = vpop.permute.xlu0 %4923
    %v4926 = vmul.f32 %v4919, %v4924
    %4928 = vrot.lane.b32.xlu0 %v4926, 32
    %v4929 = vpop.permute.xlu0 %4928
    %v4931 = vadd.f32 %v4921, %v4929
    %v4932 = vtanh.pop %v4931
    %4934 = vrot.lane.b32.xlu0 %v4932, 64
    %v4935 = vpop.permute.xlu0 %4934
    %v4937 = vmul.f32 %v4919, %v4935
    %v4938 = vld [vmem:[#allocation11] sm:$0xff]
    %v4939 = vld [vmem:[#allocation11 + $0x8] sm:$0xff]
    %v4940 = vld [vmem:[#allocation11 + $0x10] sm:$0xff]
    %v4941 = vld [vmem:[#allocation11 + $0x18] sm:$0xff]
    %v4942 = vld [vmem:[#allocation11 + $0x20] sm:$0xff]
    %v4943 = vld [vmem:[#allocation11 + $0x28] sm:$0xff]
    %v4944 = vld [vmem:[#allocation11 + $0x30] sm:$0xff]
    %v4945 = vld [vmem:[#allocation11 + $0x38] sm:$0xff]
    %v4946 = vld [vmem:[#allocation11 + $0x40] sm:$0xff]
    %v4947 = vld [vmem:[#allocation11 + $0x48] sm:$0xff]
    %v4948 = vld [vmem:[#allocation11 + $0x50] sm:$0xff]
    %v4949 = vld [vmem:[#allocation11 + $0x58] sm:$0xff]
    %v4950 = vld [vmem:[%s8] sm:$0x1]
    %v4952 = vlaneseq
    %v4953 = vshrl.u32 %v4952, 7
    %v4954 = vsub.s32 0, %v4953
    %v4955 = vrot.slane %v4950, %v4954
    %v4958 = vsel %vm2728, %v4821, 0
    %4960 = vmatprep.subr.mxu0 0.0
    %4961 = vmatpush1.msra.mxu0 0.0
    %4962 = vmatprep.subr.mxu0 0.0
    %4963 = vmatpush1.msra.mxu0 0.0
    %4964 = vmatprep.subr.mxu0 0.0
    %4965 = vmatpush1.msra.mxu0 0.0
    %4966 = vmatprep.subr.mxu0 0.0
    %4967 = vmatpush1.msra.mxu0 0.0
    %4968 = vmatprep.subr.mxu0 0.0
    %4969 = vmatpush1.msra.mxu0 %v4949
    %4970 = vmatprep.subr.mxu0 0.0
    %4971 = vmatpush1.msra.mxu0 %v4948
    %4972 = vmatprep.subr.mxu0 0.0
    %4973 = vmatpush1.msra.mxu0 %v4947
    %4974 = vmatprep.subr.mxu0 0.0
    %4975 = vmatpush1.msra.mxu0 %v4946
    %4976 = vmatprep.subr.mxu0 0.0
    %4977 = vmatpush1.msra.mxu0 %v4945
    %4978 = vmatprep.subr.mxu0 0.0
    %4979 = vmatpush1.msra.mxu0 %v4944
    %4980 = vmatprep.subr.mxu0 0.0
    %4981 = vmatpush1.msra.mxu0 %v4943
    %4982 = vmatprep.subr.mxu0 0.0
    %4983 = vmatpush1.msra.mxu0 %v4942
    %4984 = vmatprep.subr.mxu0 0.0
    %4985 = vmatpush1.msra.mxu0 %v4941
    %4986 = vmatprep.subr.mxu0 0.0
    %4987 = vmatpush1.msra.mxu0 %v4940
    %4988 = vmatprep.subr.mxu0 0.0
    %4989 = vmatpush1.msra.mxu0 %v4939
    %4990 = vmatprep.subr.mxu0 0.0
    %4991 = vmatpush1.msra.mxu0 %v4938
    %4992 = vmatprep.subr.mxu0 0.0
    %4993 = vmatpush2.msra.mxu0 0.0
    %4994 = vmatprep.subr.mxu0 0.0
    %4995 = vmatpush2.msra.mxu0 0.0
    %4996 = vmatprep.subr.mxu0 0.0
    %4997 = vmatpush2.msra.mxu0 0.0
    %4998 = vmatprep.subr.mxu0 0.0
    %4999 = vmatpush2.msra.mxu0 0.0
    %5000 = vmatprep.subr.mxu0 0.0
    %5001 = vmatpush2.msra.mxu0 0.0
    %5002 = vmatprep.subr.mxu0 0.0
    %5003 = vmatpush2.msra.mxu0 0.0
    %5004 = vmatprep.subr.mxu0 0.0
    %5005 = vmatpush2.msra.mxu0 0.0
    %5006 = vmatprep.subr.mxu0 0.0
    %5007 = vmatpush2.msra.mxu0 0.0
    %5008 = vmatprep.subr.mxu0 0.0
    %5009 = vmatpush2.msra.mxu0 0.0
    %5010 = vmatprep.subr.mxu0 0.0
    %5011 = vmatpush2.msra.mxu0 0.0
    %5012 = vmatprep.subr.mxu0 0.0
    %5013 = vmatpush2.msra.mxu0 0.0
    %5014 = vmatprep.subr.mxu0 0.0
    %5015 = vmatpush2.msra.mxu0 0.0
    %5016 = vmatprep.subr.mxu0 0.0
    %5017 = vmatpush2.msra.mxu0 0.0
    %5018 = vmatprep.subr.mxu0 0.0
    %5019 = vmatpush2.msra.mxu0 0.0
    %5020 = vmatprep.subr.mxu0 0.0
    %5021 = vmatpush2.msra.mxu0 0.0
    %5022 = vmatprep.subr.mxu0 0.0
    %5023 = vmatpush2.msra.mxu0 0.0
    %5024 = vmatprep.mubr.f32.mxu0 0.0
    %5025 = vmatmul.mubr.f32.gmra.mxu0 %v4958
    %v5026 = vpop.f32.mrf.mxu0
    %v5027 = vadd.f32 %v4955, %v5026
    %v5028 = vpop.f32.mrf.mxu0
    %5029 = vdwg.mxu0
    %v5030 = vxor.u32 %v5027, 2147483648
    %v5031 = vmul.f32 %v5030, 1.442695
    %v5032 = vpow.pop %v5031
    %v5033 = vadd.f32 %v5032, 1.0
    %v5034 = vrcp.pop %v5033
    %v5035 = vmul.f32 1.0, %v5034
    %v5036 = vtanh.pop %v5027
    %v5037 = vmul.f32 %v5035, %v4695
    %5039 = vrot.lane.b32.xlu0 %v5036, 64
    %v5040 = vpop.permute.xlu0 %5039
    %v5042 = vmul.f32 %v5035, %v5040
    %5044 = vrot.lane.b32.xlu0 %v5042, 32
    %v5045 = vpop.permute.xlu0 %5044
    %v5047 = vadd.f32 %v5037, %v5045
    %v5048 = vtanh.pop %v5047
    %5050 = vrot.lane.b32.xlu0 %v5048, 64
    %v5051 = vpop.permute.xlu0 %5050
    %v5053 = vmul.f32 %v5035, %v5051
    %v5056 = vunpack.c.l.s4 1966171168
    %v5057 = vunpack.c.0.s8 %v5056
    %v5058 = vlaneseq
    %v5059 = vshrl.u32 %v5058, 7
    %v5060 = vsub.s32 %v5057, %v5059
    %v5061 = vrot.slane %v4937, %v5060
    %v5062 = vcombine.high %v5061, %v5061
    %v5064 = vunpack.c.l.s4 1966171168
    %v5065 = vunpack.c.0.s8 %v5064
    %v5066 = vlaneseq
    %v5067 = vshrl.u32 %v5066, 7
    %v5068 = vsub.s32 %v5065, %v5067
    %v5069 = vrot.slane %v5061, %v5068
    %v5071 = vunpack.c.l.s4 1966171168
    %v5072 = vunpack.c.0.s8 %v5071
    %v5073 = vlaneseq
    %v5074 = vshrl.u32 %v5073, 7
    %v5075 = vsub.s32 %v5072, %v5074
    %v5076 = vrot.slane %v5062, %v5075
    %v5077 = vlaneseq
    %v5078 = vshrl.u32 %v5077, 7
    %v5079 = vsub.s32 0, %v5078
    %v5080 = vrot.slane %v5069, %v5079
    %v5081 = vlaneseq
    %v5082 = vshrl.u32 %v5081, 7
    %v5083 = vsub.s32 0, %v5082
    %v5084 = vrot.slane %v5076, %v5083
    %5085 = vrot.lane.b32.xlu0 %v5080, 32
    %v5086 = vpop.permute.xlu0 %5085
    %5087 = vrot.lane.b32.xlu0 %v5084, 32
    %v5088 = vpop.permute.xlu0 %5087
    %5091 = vst.msk [vmem:[#allocation4 + $0x6] sm:$0x1] %vm389, %v5086
    %5092 = vst.msk [vmem:[#allocation4 + $0xe] sm:$0x1] %vm389, %v5088
    %v5095 = vunpack.c.l.s4 1966171168
    %v5096 = vunpack.c.0.s8 %v5095
    %v5097 = vlaneseq
    %v5098 = vshrl.u32 %v5097, 7
    %v5099 = vsub.s32 %v5096, %v5098
    %v5100 = vrot.slane %v5053, %v5099
    %v5101 = vcombine.high %v5100, %v5100
    %v5103 = vunpack.c.l.s4 1966171168
    %v5104 = vunpack.c.0.s8 %v5103
    %v5105 = vlaneseq
    %v5106 = vshrl.u32 %v5105, 7
    %v5107 = vsub.s32 %v5104, %v5106
    %v5108 = vrot.slane %v5100, %v5107
    %v5110 = vunpack.c.l.s4 1966171168
    %v5111 = vunpack.c.0.s8 %v5110
    %v5112 = vlaneseq
    %v5113 = vshrl.u32 %v5112, 7
    %v5114 = vsub.s32 %v5111, %v5113
    %v5115 = vrot.slane %v5101, %v5114
    %v5116 = vlaneseq
    %v5117 = vshrl.u32 %v5116, 7
    %v5118 = vsub.s32 0, %v5117
    %v5119 = vrot.slane %v5108, %v5118
    %v5120 = vlaneseq
    %v5121 = vshrl.u32 %v5120, 7
    %v5122 = vsub.s32 0, %v5121
    %v5123 = vrot.slane %v5115, %v5122
    %5124 = vrot.lane.b32.xlu0 %v5119, 32
    %v5125 = vpop.permute.xlu0 %5124
    %5126 = vrot.lane.b32.xlu0 %v5123, 32
    %v5127 = vpop.permute.xlu0 %5126
    %5130 = vst.msk [vmem:[#allocation5 + $0x1] sm:$0x1] %vm389, %v5125
    %5131 = vst.msk [vmem:[#allocation5 + $0x9] sm:$0x1] %vm389, %v5127
    %v5132 = vld [vmem:[#allocation2 + $0x7] sm:$0x1]
    %v5133 = vld [vmem:[#allocation2 + $0xf] sm:$0x1]
    %v5134 = vld [vmem:[#allocation3 + $0x7] sm:$0x1]
    %v5135 = vld [vmem:[#allocation3 + $0xf] sm:$0x1]
    %v5138 = vrot.slane %v5133, 7
    %v5139 = vsel %vm118, %v5138, %v5132
    %v5143 = vrot.slane %v5135, 7
    %v5144 = vsel %vm118, %v5143, %v5134
    %5145 = vrot.lane.b32.xlu0 %v5144, 32
    %v5146 = vpop.permute.xlu0 %5145
    %5148 = vrot.lane.b32.xlu0 %v4937, 96
    %v5149 = vpop.permute.xlu0 %5148
    %v5151 = vsel %vm2687, %v5139, %v5146
    %v5152 = vsel %vm2689, %v5151, %v5149
    %v5153 = vld [vmem:[#allocation2] sm:$0x1]
    %v5154 = vld [vmem:[#allocation2 + $0x8] sm:$0x1]
    %v5155 = vld [vmem:[#allocation3] sm:$0x1]
    %v5156 = vld [vmem:[#allocation3 + $0x8] sm:$0x1]
    %v5159 = vrot.slane %v5154, 7
    %v5160 = vsel %vm118, %v5159, %v5153
    %v5164 = vrot.slane %v5156, 7
    %v5165 = vsel %vm118, %v5164, %v5155
    %5166 = vrot.lane.b32.xlu0 %v5165, 32
    %v5167 = vpop.permute.xlu0 %5166
    %5169 = vrot.lane.b32.xlu0 %v5053, 96
    %v5170 = vpop.permute.xlu0 %5169
    %v5172 = vsel %vm2687, %v5160, %v5167
    %v5173 = vsel %vm2689, %v5172, %v5170
    %v5174 = vld [vmem:[%s5] sm:$0xff]
    %v5175 = vld [vmem:[%s5 + $0x8] sm:$0xff]
    %v5176 = vld [vmem:[%s5 + $0x10] sm:$0xff]
    %v5177 = vld [vmem:[%s5 + $0x18] sm:$0xff]
    %v5178 = vld [vmem:[%s5 + $0x20] sm:$0xff]
    %v5179 = vld [vmem:[%s5 + $0x28] sm:$0xff]
    %v5180 = vld [vmem:[%s5 + $0x30] sm:$0xff]
    %v5181 = vld [vmem:[%s5 + $0x38] sm:$0xff]
    %v5182 = vld [vmem:[%s5 + $0x40] sm:$0xff]
    %v5183 = vld [vmem:[%s5 + $0x48] sm:$0xff]
    %v5184 = vld [vmem:[%s5 + $0x50] sm:$0xff]
    %v5185 = vld [vmem:[%s5 + $0x58] sm:$0xff]
    %v5186 = vld [vmem:[%s6] sm:$0x1]
    %v5188 = vlaneseq
    %v5189 = vshrl.u32 %v5188, 7
    %v5190 = vsub.s32 0, %v5189
    %v5191 = vrot.slane %v5186, %v5190
    %v5194 = vsel %vm2728, %v5152, 0
    %5196 = vmatprep.subr.mxu0 0.0
    %5197 = vmatpush1.msra.mxu0 0.0
    %5198 = vmatprep.subr.mxu0 0.0
    %5199 = vmatpush1.msra.mxu0 0.0
    %5200 = vmatprep.subr.mxu0 0.0
    %5201 = vmatpush1.msra.mxu0 0.0
    %5202 = vmatprep.subr.mxu0 0.0
    %5203 = vmatpush1.msra.mxu0 0.0
    %5204 = vmatprep.subr.mxu0 0.0
    %5205 = vmatpush1.msra.mxu0 %v5185
    %5206 = vmatprep.subr.mxu0 0.0
    %5207 = vmatpush1.msra.mxu0 %v5184
    %5208 = vmatprep.subr.mxu0 0.0
    %5209 = vmatpush1.msra.mxu0 %v5183
    %5210 = vmatprep.subr.mxu0 0.0
    %5211 = vmatpush1.msra.mxu0 %v5182
    %5212 = vmatprep.subr.mxu0 0.0
    %5213 = vmatpush1.msra.mxu0 %v5181
    %5214 = vmatprep.subr.mxu0 0.0
    %5215 = vmatpush1.msra.mxu0 %v5180
    %5216 = vmatprep.subr.mxu0 0.0
    %5217 = vmatpush1.msra.mxu0 %v5179
    %5218 = vmatprep.subr.mxu0 0.0
    %5219 = vmatpush1.msra.mxu0 %v5178
    %5220 = vmatprep.subr.mxu0 0.0
    %5221 = vmatpush1.msra.mxu0 %v5177
    %5222 = vmatprep.subr.mxu0 0.0
    %5223 = vmatpush1.msra.mxu0 %v5176
    %5224 = vmatprep.subr.mxu0 0.0
    %5225 = vmatpush1.msra.mxu0 %v5175
    %5226 = vmatprep.subr.mxu0 0.0
    %5227 = vmatpush1.msra.mxu0 %v5174
    %5228 = vmatprep.subr.mxu0 0.0
    %5229 = vmatpush2.msra.mxu0 0.0
    %5230 = vmatprep.subr.mxu0 0.0
    %5231 = vmatpush2.msra.mxu0 0.0
    %5232 = vmatprep.subr.mxu0 0.0
    %5233 = vmatpush2.msra.mxu0 0.0
    %5234 = vmatprep.subr.mxu0 0.0
    %5235 = vmatpush2.msra.mxu0 0.0
    %5236 = vmatprep.subr.mxu0 0.0
    %5237 = vmatpush2.msra.mxu0 0.0
    %5238 = vmatprep.subr.mxu0 0.0
    %5239 = vmatpush2.msra.mxu0 0.0
    %5240 = vmatprep.subr.mxu0 0.0
    %5241 = vmatpush2.msra.mxu0 0.0
    %5242 = vmatprep.subr.mxu0 0.0
    %5243 = vmatpush2.msra.mxu0 0.0
    %5244 = vmatprep.subr.mxu0 0.0
    %5245 = vmatpush2.msra.mxu0 0.0
    %5246 = vmatprep.subr.mxu0 0.0
    %5247 = vmatpush2.msra.mxu0 0.0
    %5248 = vmatprep.subr.mxu0 0.0
    %5249 = vmatpush2.msra.mxu0 0.0
    %5250 = vmatprep.subr.mxu0 0.0
    %5251 = vmatpush2.msra.mxu0 0.0
    %5252 = vmatprep.subr.mxu0 0.0
    %5253 = vmatpush2.msra.mxu0 0.0
    %5254 = vmatprep.subr.mxu0 0.0
    %5255 = vmatpush2.msra.mxu0 0.0
    %5256 = vmatprep.subr.mxu0 0.0
    %5257 = vmatpush2.msra.mxu0 0.0
    %5258 = vmatprep.subr.mxu0 0.0
    %5259 = vmatpush2.msra.mxu0 0.0
    %5260 = vmatprep.mubr.f32.mxu0 0.0
    %5261 = vmatmul.mubr.f32.gmra.mxu0 %v5194
    %v5262 = vpop.f32.mrf.mxu0
    %v5263 = vadd.f32 %v5191, %v5262
    %v5264 = vpop.f32.mrf.mxu0
    %5265 = vdwg.mxu0
    %v5266 = vxor.u32 %v5263, 2147483648
    %v5267 = vmul.f32 %v5266, 1.442695
    %v5268 = vpow.pop %v5267
    %v5269 = vadd.f32 %v5268, 1.0
    %v5270 = vrcp.pop %v5269
    %v5271 = vmul.f32 1.0, %v5270
    %v5272 = vtanh.pop %v5263
    %v5273 = vmul.f32 %v5271, %v4931
    %5275 = vrot.lane.b32.xlu0 %v5272, 64
    %v5276 = vpop.permute.xlu0 %5275
    %v5278 = vmul.f32 %v5271, %v5276
    %5280 = vrot.lane.b32.xlu0 %v5278, 32
    %v5281 = vpop.permute.xlu0 %5280
    %v5283 = vadd.f32 %v5273, %v5281
    %v5284 = vtanh.pop %v5283
    %5286 = vrot.lane.b32.xlu0 %v5284, 64
    %v5287 = vpop.permute.xlu0 %5286
    %v5289 = vmul.f32 %v5271, %v5287
    %v5290 = vld [vmem:[#allocation11] sm:$0xff]
    %v5291 = vld [vmem:[#allocation11 + $0x8] sm:$0xff]
    %v5292 = vld [vmem:[#allocation11 + $0x10] sm:$0xff]
    %v5293 = vld [vmem:[#allocation11 + $0x18] sm:$0xff]
    %v5294 = vld [vmem:[#allocation11 + $0x20] sm:$0xff]
    %v5295 = vld [vmem:[#allocation11 + $0x28] sm:$0xff]
    %v5296 = vld [vmem:[#allocation11 + $0x30] sm:$0xff]
    %v5297 = vld [vmem:[#allocation11 + $0x38] sm:$0xff]
    %v5298 = vld [vmem:[#allocation11 + $0x40] sm:$0xff]
    %v5299 = vld [vmem:[#allocation11 + $0x48] sm:$0xff]
    %v5300 = vld [vmem:[#allocation11 + $0x50] sm:$0xff]
    %v5301 = vld [vmem:[#allocation11 + $0x58] sm:$0xff]
    %v5302 = vld [vmem:[%s8] sm:$0x1]
    %v5304 = vlaneseq
    %v5305 = vshrl.u32 %v5304, 7
    %v5306 = vsub.s32 0, %v5305
    %v5307 = vrot.slane %v5302, %v5306
    %v5310 = vsel %vm2728, %v5173, 0
    %5312 = vmatprep.subr.mxu0 0.0
    %5313 = vmatpush1.msra.mxu0 0.0
    %5314 = vmatprep.subr.mxu0 0.0
    %5315 = vmatpush1.msra.mxu0 0.0
    %5316 = vmatprep.subr.mxu0 0.0
    %5317 = vmatpush1.msra.mxu0 0.0
    %5318 = vmatprep.subr.mxu0 0.0
    %5319 = vmatpush1.msra.mxu0 0.0
    %5320 = vmatprep.subr.mxu0 0.0
    %5321 = vmatpush1.msra.mxu0 %v5301
    %5322 = vmatprep.subr.mxu0 0.0
    %5323 = vmatpush1.msra.mxu0 %v5300
    %5324 = vmatprep.subr.mxu0 0.0
    %5325 = vmatpush1.msra.mxu0 %v5299
    %5326 = vmatprep.subr.mxu0 0.0
    %5327 = vmatpush1.msra.mxu0 %v5298
    %5328 = vmatprep.subr.mxu0 0.0
    %5329 = vmatpush1.msra.mxu0 %v5297
    %5330 = vmatprep.subr.mxu0 0.0
    %5331 = vmatpush1.msra.mxu0 %v5296
    %5332 = vmatprep.subr.mxu0 0.0
    %5333 = vmatpush1.msra.mxu0 %v5295
    %5334 = vmatprep.subr.mxu0 0.0
    %5335 = vmatpush1.msra.mxu0 %v5294
    %5336 = vmatprep.subr.mxu0 0.0
    %5337 = vmatpush1.msra.mxu0 %v5293
    %5338 = vmatprep.subr.mxu0 0.0
    %5339 = vmatpush1.msra.mxu0 %v5292
    %5340 = vmatprep.subr.mxu0 0.0
    %5341 = vmatpush1.msra.mxu0 %v5291
    %5342 = vmatprep.subr.mxu0 0.0
    %5343 = vmatpush1.msra.mxu0 %v5290
    %5344 = vmatprep.subr.mxu0 0.0
    %5345 = vmatpush2.msra.mxu0 0.0
    %5346 = vmatprep.subr.mxu0 0.0
    %5347 = vmatpush2.msra.mxu0 0.0
    %5348 = vmatprep.subr.mxu0 0.0
    %5349 = vmatpush2.msra.mxu0 0.0
    %5350 = vmatprep.subr.mxu0 0.0
    %5351 = vmatpush2.msra.mxu0 0.0
    %5352 = vmatprep.subr.mxu0 0.0
    %5353 = vmatpush2.msra.mxu0 0.0
    %5354 = vmatprep.subr.mxu0 0.0
    %5355 = vmatpush2.msra.mxu0 0.0
    %5356 = vmatprep.subr.mxu0 0.0
    %5357 = vmatpush2.msra.mxu0 0.0
    %5358 = vmatprep.subr.mxu0 0.0
    %5359 = vmatpush2.msra.mxu0 0.0
    %5360 = vmatprep.subr.mxu0 0.0
    %5361 = vmatpush2.msra.mxu0 0.0
    %5362 = vmatprep.subr.mxu0 0.0
    %5363 = vmatpush2.msra.mxu0 0.0
    %5364 = vmatprep.subr.mxu0 0.0
    %5365 = vmatpush2.msra.mxu0 0.0
    %5366 = vmatprep.subr.mxu0 0.0
    %5367 = vmatpush2.msra.mxu0 0.0
    %5368 = vmatprep.subr.mxu0 0.0
    %5369 = vmatpush2.msra.mxu0 0.0
    %5370 = vmatprep.subr.mxu0 0.0
    %5371 = vmatpush2.msra.mxu0 0.0
    %5372 = vmatprep.subr.mxu0 0.0
    %5373 = vmatpush2.msra.mxu0 0.0
    %5374 = vmatprep.subr.mxu0 0.0
    %5375 = vmatpush2.msra.mxu0 0.0
    %5376 = vmatprep.mubr.f32.mxu0 0.0
    %5377 = vmatmul.mubr.f32.gmra.mxu0 %v5310
    %v5378 = vpop.f32.mrf.mxu0
    %v5379 = vadd.f32 %v5307, %v5378
    %v5380 = vpop.f32.mrf.mxu0
    %5381 = vdwg.mxu0
    %v5382 = vxor.u32 %v5379, 2147483648
    %v5383 = vmul.f32 %v5382, 1.442695
    %v5384 = vpow.pop %v5383
    %v5385 = vadd.f32 %v5384, 1.0
    %v5386 = vrcp.pop %v5385
    %v5387 = vmul.f32 1.0, %v5386
    %v5388 = vtanh.pop %v5379
    %v5389 = vmul.f32 %v5387, %v5047
    %5391 = vrot.lane.b32.xlu0 %v5388, 64
    %v5392 = vpop.permute.xlu0 %5391
    %v5394 = vmul.f32 %v5387, %v5392
    %5396 = vrot.lane.b32.xlu0 %v5394, 32
    %v5397 = vpop.permute.xlu0 %5396
    %v5399 = vadd.f32 %v5389, %v5397
    %v5400 = vtanh.pop %v5399
    %5402 = vrot.lane.b32.xlu0 %v5400, 64
    %v5403 = vpop.permute.xlu0 %5402
    %v5405 = vmul.f32 %v5387, %v5403
    %v5408 = vunpack.c.l.s4 1966171168
    %v5409 = vunpack.c.0.s8 %v5408
    %v5410 = vlaneseq
    %v5411 = vshrl.u32 %v5410, 7
    %v5412 = vsub.s32 %v5409, %v5411
    %v5413 = vrot.slane %v5289, %v5412
    %v5414 = vcombine.high %v5413, %v5413
    %v5416 = vunpack.c.l.s4 1966171168
    %v5417 = vunpack.c.0.s8 %v5416
    %v5418 = vlaneseq
    %v5419 = vshrl.u32 %v5418, 7
    %v5420 = vsub.s32 %v5417, %v5419
    %v5421 = vrot.slane %v5413, %v5420
    %v5423 = vunpack.c.l.s4 1966171168
    %v5424 = vunpack.c.0.s8 %v5423
    %v5425 = vlaneseq
    %v5426 = vshrl.u32 %v5425, 7
    %v5427 = vsub.s32 %v5424, %v5426
    %v5428 = vrot.slane %v5414, %v5427
    %v5429 = vlaneseq
    %v5430 = vshrl.u32 %v5429, 7
    %v5431 = vsub.s32 0, %v5430
    %v5432 = vrot.slane %v5421, %v5431
    %v5433 = vlaneseq
    %v5434 = vshrl.u32 %v5433, 7
    %v5435 = vsub.s32 0, %v5434
    %v5436 = vrot.slane %v5428, %v5435
    %5437 = vrot.lane.b32.xlu0 %v5432, 32
    %v5438 = vpop.permute.xlu0 %5437
    %5439 = vrot.lane.b32.xlu0 %v5436, 32
    %v5440 = vpop.permute.xlu0 %5439
    %5443 = vst.msk [vmem:[#allocation4 + $0x7] sm:$0x1] %vm389, %v5438
    %5444 = vst.msk [vmem:[#allocation4 + $0xf] sm:$0x1] %vm389, %v5440
    %v5447 = vunpack.c.l.s4 1966171168
    %v5448 = vunpack.c.0.s8 %v5447
    %v5449 = vlaneseq
    %v5450 = vshrl.u32 %v5449, 7
    %v5451 = vsub.s32 %v5448, %v5450
    %v5452 = vrot.slane %v5405, %v5451
    %v5453 = vcombine.high %v5452, %v5452
    %v5455 = vunpack.c.l.s4 1966171168
    %v5456 = vunpack.c.0.s8 %v5455
    %v5457 = vlaneseq
    %v5458 = vshrl.u32 %v5457, 7
    %v5459 = vsub.s32 %v5456, %v5458
    %v5460 = vrot.slane %v5452, %v5459
    %v5462 = vunpack.c.l.s4 1966171168
    %v5463 = vunpack.c.0.s8 %v5462
    %v5464 = vlaneseq
    %v5465 = vshrl.u32 %v5464, 7
    %v5466 = vsub.s32 %v5463, %v5465
    %v5467 = vrot.slane %v5453, %v5466
    %v5468 = vlaneseq
    %v5469 = vshrl.u32 %v5468, 7
    %v5470 = vsub.s32 0, %v5469
    %v5471 = vrot.slane %v5460, %v5470
    %v5472 = vlaneseq
    %v5473 = vshrl.u32 %v5472, 7
    %v5474 = vsub.s32 0, %v5473
    %v5475 = vrot.slane %v5467, %v5474
    %5476 = vrot.lane.b32.xlu0 %v5471, 32
    %v5477 = vpop.permute.xlu0 %5476
    %5478 = vrot.lane.b32.xlu0 %v5475, 32
    %v5479 = vpop.permute.xlu0 %5478
    %5482 = vst.msk [vmem:[#allocation5] sm:$0x1] %vm389, %v5477
    %5483 = vst.msk [vmem:[#allocation5 + $0x8] sm:$0x1] %vm389, %v5479
    %v5484 = vld [vmem:[#allocation4] sm:$0xff]
    %v5485 = vld [vmem:[#allocation4 + $0x8] sm:$0xff]
    %v5486 = vld [vmem:[#allocation5] sm:$0xff]
    %v5487 = vld [vmem:[#allocation5 + $0x8] sm:$0xff]
    %5490 = vrot.lane.b32.xlu0 %v5486, 32
    %v5491 = vpop.permute.xlu0 %5490
    %5492 = vrot.lane.b32.xlu0 %v5487, 32
    %v5493 = vpop.permute.xlu0 %5492
    %v5496 = vsel %vm2687, %v5484, %v5491
    %v5497 = vsel %vm2687, %v5485, %v5493
    %v5498 = vld [vmem:[%s9] sm:$0xff]
    %v5499 = vld [vmem:[%s9 + $0x8] sm:$0xff]
    %v5500 = vld [vmem:[%s9 + $0x10] sm:$0xff]
    %v5501 = vld [vmem:[%s9 + $0x18] sm:$0xff]
    %v5502 = vld [vmem:[%s9 + $0x20] sm:$0xff]
    %v5503 = vld [vmem:[%s9 + $0x28] sm:$0xff]
    %v5504 = vld [vmem:[%s9 + $0x30] sm:$0xff]
    %v5505 = vld [vmem:[%s9 + $0x38] sm:$0xff]
    %v5506 = vld [vmem:[#allocation12] sm:$0x1]
    %v5508 = vlaneseq
    %v5509 = vshrl.u32 %v5508, 7
    %v5510 = vsub.s32 0, %v5509
    %v5511 = vrot.slane %v5506, %v5510
    %v5514 = vsel %vm2689, %v5496, 0
    %v5517 = vsel %vm2689, %v5497, 0
    %5519 = vmatprep.subr.mxu0 0.0
    %5520 = vmatpush1.msra.mxu0 0.0
    %5521 = vmatprep.subr.mxu0 0.0
    %5522 = vmatpush1.msra.mxu0 0.0
    %5523 = vmatprep.subr.mxu0 0.0
    %5524 = vmatpush1.msra.mxu0 0.0
    %5525 = vmatprep.subr.mxu0 0.0
    %5526 = vmatpush1.msra.mxu0 0.0
    %5527 = vmatprep.subr.mxu0 0.0
    %5528 = vmatpush1.msra.mxu0 0.0
    %5529 = vmatprep.subr.mxu0 0.0
    %5530 = vmatpush1.msra.mxu0 0.0
    %5531 = vmatprep.subr.mxu0 0.0
    %5532 = vmatpush1.msra.mxu0 0.0
    %5533 = vmatprep.subr.mxu0 0.0
    %5534 = vmatpush1.msra.mxu0 0.0
    %5535 = vmatprep.subr.mxu0 0.0
    %5536 = vmatpush1.msra.mxu0 %v5505
    %5537 = vmatprep.subr.mxu0 0.0
    %5538 = vmatpush1.msra.mxu0 %v5504
    %5539 = vmatprep.subr.mxu0 0.0
    %5540 = vmatpush1.msra.mxu0 %v5503
    %5541 = vmatprep.subr.mxu0 0.0
    %5542 = vmatpush1.msra.mxu0 %v5502
    %5543 = vmatprep.subr.mxu0 0.0
    %5544 = vmatpush1.msra.mxu0 %v5501
    %5545 = vmatprep.subr.mxu0 0.0
    %5546 = vmatpush1.msra.mxu0 %v5500
    %5547 = vmatprep.subr.mxu0 0.0
    %5548 = vmatpush1.msra.mxu0 %v5499
    %5549 = vmatprep.subr.mxu0 0.0
    %5550 = vmatpush1.msra.mxu0 %v5498
    %5551 = vmatprep.subr.mxu0 0.0
    %5552 = vmatpush2.msra.mxu0 0.0
    %5553 = vmatprep.subr.mxu0 0.0
    %5554 = vmatpush2.msra.mxu0 0.0
    %5555 = vmatprep.subr.mxu0 0.0
    %5556 = vmatpush2.msra.mxu0 0.0
    %5557 = vmatprep.subr.mxu0 0.0
    %5558 = vmatpush2.msra.mxu0 0.0
    %5559 = vmatprep.subr.mxu0 0.0
    %5560 = vmatpush2.msra.mxu0 0.0
    %5561 = vmatprep.subr.mxu0 0.0
    %5562 = vmatpush2.msra.mxu0 0.0
    %5563 = vmatprep.subr.mxu0 0.0
    %5564 = vmatpush2.msra.mxu0 0.0
    %5565 = vmatprep.subr.mxu0 0.0
    %5566 = vmatpush2.msra.mxu0 0.0
    %5567 = vmatprep.subr.mxu0 0.0
    %5568 = vmatpush2.msra.mxu0 0.0
    %5569 = vmatprep.subr.mxu0 0.0
    %5570 = vmatpush2.msra.mxu0 0.0
    %5571 = vmatprep.subr.mxu0 0.0
    %5572 = vmatpush2.msra.mxu0 0.0
    %5573 = vmatprep.subr.mxu0 0.0
    %5574 = vmatpush2.msra.mxu0 0.0
    %5575 = vmatprep.subr.mxu0 0.0
    %5576 = vmatpush2.msra.mxu0 0.0
    %5577 = vmatprep.subr.mxu0 0.0
    %5578 = vmatpush2.msra.mxu0 0.0
    %5579 = vmatprep.subr.mxu0 0.0
    %5580 = vmatpush2.msra.mxu0 0.0
    %5581 = vmatprep.subr.mxu0 0.0
    %5582 = vmatpush2.msra.mxu0 0.0
    %5583 = vmatprep.mubr.f32.mxu0 0.0
    %5584 = vmatmul.mubr.f32.gmra.mxu0 %v5514
    %v5585 = vpop.f32.mrf.mxu0
    %v5586 = vadd.f32 %v5511, %v5585
    %v5587 = vpop.f32.mrf.mxu0
    %5588 = vmatprep.mubr.f32.mxu0 0.0
    %5589 = vmatmul.mubr.f32.gmra.mxu0 %v5517
    %v5590 = vpop.f32.mrf.mxu0
    %v5591 = vadd.f32 %v5511, %v5590
    %v5592 = vpop.f32.mrf.mxu0
    %5593 = vdwg.mxu0
    %vm5594 = vcmp.gt.f32.partialorder %v5586, 1.0
    %vm5595 = vcmp.gt.f32.partialorder %v5591, 1.0
    %v5596 = vsel %vm5594, 1, 0
    %v5597 = vsel %vm5595, 1, 0
    %v5598 = vcvt.s32.f32 %v5596
    %v5599 = vcvt.s32.f32 %v5597
    %5600 = vst.msk [vmem:[#allocation15] sm:$0xff] %vm2687, %v5598
    %5601 = vst.msk [vmem:[#allocation15 + $0x8] sm:$0xff] %vm2687, %v5599
    %v5602 = vld [vmem:[%s11] sm:$0xff]
    %v5603 = vld [vmem:[%s11 + $0x8] sm:$0xff]
    %v5604 = vld [vmem:[%s11 + $0x10] sm:$0xff]
    %v5605 = vld [vmem:[%s11 + $0x18] sm:$0xff]
    %v5606 = vld [vmem:[#allocation14] sm:$0x1]
    %v5608 = vlaneseq
    %v5609 = vshrl.u32 %v5608, 7
    %v5610 = vsub.s32 0, %v5609
    %v5611 = vrot.slane %v5606, %v5610
    %v5615 = vrot.slane %v5598, 7
    %v5616 = vrot.slane %v5599, 6
    %v5617 = vsel %vm118, %v5616, %v5615
    %v5618 = vsel %vm2687, %v5617, 0
    %5620 = vmatprep.subr.mxu0 0.0
    %5621 = vmatpush1.msra.mxu0 0.0
    %5622 = vmatprep.subr.mxu0 0.0
    %5623 = vmatpush1.msra.mxu0 0.0
    %5624 = vmatprep.subr.mxu0 0.0
    %5625 = vmatpush1.msra.mxu0 0.0
    %5626 = vmatprep.subr.mxu0 0.0
    %5627 = vmatpush1.msra.mxu0 0.0
    %5628 = vmatprep.subr.mxu0 0.0
    %5629 = vmatpush1.msra.mxu0 0.0
    %5630 = vmatprep.subr.mxu0 0.0
    %5631 = vmatpush1.msra.mxu0 0.0
    %5632 = vmatprep.subr.mxu0 0.0
    %5633 = vmatpush1.msra.mxu0 0.0
    %5634 = vmatprep.subr.mxu0 0.0
    %5635 = vmatpush1.msra.mxu0 0.0
    %5636 = vmatprep.subr.mxu0 0.0
    %5637 = vmatpush1.msra.mxu0 0.0
    %5638 = vmatprep.subr.mxu0 0.0
    %5639 = vmatpush1.msra.mxu0 0.0
    %5640 = vmatprep.subr.mxu0 0.0
    %5641 = vmatpush1.msra.mxu0 0.0
    %5642 = vmatprep.subr.mxu0 0.0
    %5643 = vmatpush1.msra.mxu0 0.0
    %5644 = vmatprep.subr.mxu0 0.0
    %5645 = vmatpush1.msra.mxu0 %v5605
    %5646 = vmatprep.subr.mxu0 0.0
    %5647 = vmatpush1.msra.mxu0 %v5604
    %5648 = vmatprep.subr.mxu0 0.0
    %5649 = vmatpush1.msra.mxu0 %v5603
    %5650 = vmatprep.subr.mxu0 0.0
    %5651 = vmatpush1.msra.mxu0 %v5602
    %5652 = vmatprep.subr.mxu0 0.0
    %5653 = vmatpush2.msra.mxu0 0.0
    %5654 = vmatprep.subr.mxu0 0.0
    %5655 = vmatpush2.msra.mxu0 0.0
    %5656 = vmatprep.subr.mxu0 0.0
    %5657 = vmatpush2.msra.mxu0 0.0
    %5658 = vmatprep.subr.mxu0 0.0
    %5659 = vmatpush2.msra.mxu0 0.0
    %5660 = vmatprep.subr.mxu0 0.0
    %5661 = vmatpush2.msra.mxu0 0.0
    %5662 = vmatprep.subr.mxu0 0.0
    %5663 = vmatpush2.msra.mxu0 0.0
    %5664 = vmatprep.subr.mxu0 0.0
    %5665 = vmatpush2.msra.mxu0 0.0
    %5666 = vmatprep.subr.mxu0 0.0
    %5667 = vmatpush2.msra.mxu0 0.0
    %5668 = vmatprep.subr.mxu0 0.0
    %5669 = vmatpush2.msra.mxu0 0.0
    %5670 = vmatprep.subr.mxu0 0.0
    %5671 = vmatpush2.msra.mxu0 0.0
    %5672 = vmatprep.subr.mxu0 0.0
    %5673 = vmatpush2.msra.mxu0 0.0
    %5674 = vmatprep.subr.mxu0 0.0
    %5675 = vmatpush2.msra.mxu0 0.0
    %5676 = vmatprep.subr.mxu0 0.0
    %5677 = vmatpush2.msra.mxu0 0.0
    %5678 = vmatprep.subr.mxu0 0.0
    %5679 = vmatpush2.msra.mxu0 0.0
    %5680 = vmatprep.subr.mxu0 0.0
    %5681 = vmatpush2.msra.mxu0 0.0
    %5682 = vmatprep.subr.mxu0 0.0
    %5683 = vmatpush2.msra.mxu0 0.0
    %5684 = vmatprep.mubr.f32.mxu0 0.0
    %5685 = vmatmul.mubr.f32.gmra.mxu0 %v5618
    %v5686 = vpop.f32.mrf.mxu0
    %v5687 = vadd.f32 %v5611, %v5686
    %v5688 = vpop.f32.mrf.mxu0
    %5689 = vdwg.mxu0
    %vm5690 = vcmask 25600
    %5691 = vst.msk [vmem:[#allocation18] sm:$0x3] %vm5690, %v5687
    %vm5692 = vcmp.gt.f32.partialorder %v5687, 1.0
    %v5693 = vsel %vm5692, 1, 0
    %v5694 = vcvt.s32.f32 %v5693
    %5695 = vst.msk [vmem:[#allocation16] sm:$0x3] %vm5690, %v5694
    // Predicated region
    $region74: #{snn_bilstm_forward.1} parent=1 // pred_check
      _
    $region75: #{snn_bilstm_forward.1} parent=1 // pred_check_branch
      %5697 = sbr.rel (0) target = $region77
    $region76: #{snn_bilstm_forward.1} parent=1 // pred_region
      %s5699 = ssub.s32 256, 256
      %5700 = vsyncadd [#allocation8], %s5699
      %s5701 = sshll.u32 [#allocation15], 4
      %s5702 = int_to_ptr.vmem [resolvable:$true] %s5701
      %5707 = dma.vmem_to_hbm [thread:$0]  %s5702, 256, %s13, [#allocation8], 128, 128, 8
    $region77: #{snn_bilstm_forward.1} parent=1 // pred_fallthru
      _
    // Predicated region
    $region78: #{snn_bilstm_forward.1} parent=1 // pred_check
      _
    $region79: #{snn_bilstm_forward.1} parent=1 // pred_check_branch
      %5709 = sbr.rel (0) target = $region81
    $region80: #{snn_bilstm_forward.1} parent=1 // pred_region
      %s5711 = ssub.s32 32, 32
      %5712 = vsyncadd [#allocation17], %s5711
      %s5714 = sshll.u32 [#allocation16], 4
      %s5715 = int_to_ptr.vmem [resolvable:$true] %s5714
      %5717 = dma.vmem_to_hbm [thread:$0]  %s5715, 32, %s14, [#allocation17]
    $region81: #{snn_bilstm_forward.1} parent=1 // pred_fallthru
      _
    // Predicated region
    $region82: #{snn_bilstm_forward.1} parent=1 // pred_check
      _
    $region83: #{snn_bilstm_forward.1} parent=1 // pred_check_branch
      %5719 = sbr.rel (0) target = $region85
    $region84: #{snn_bilstm_forward.1} parent=1 // pred_region
      %s5721 = ssub.s32 32, 32
      %5722 = vsyncadd [#allocation17], %s5721
      %s5724 = sshll.u32 [#allocation18], 4
      %s5725 = int_to_ptr.vmem [resolvable:$true] %s5724
      %5727 = dma.vmem_to_hbm [thread:$0]  %s5725, 32, %s15, [#allocation17]
    $region85: #{snn_bilstm_forward.1} parent=1 // pred_fallthru
      _
    // Predicated region
    $region86: #{snn_bilstm_forward.1} parent=1 // pred_check
      _
    $region87: #{snn_bilstm_forward.1} parent=1 // pred_check_branch
      %5729 = sbr.rel (0) target = $region89
    $region88: #{snn_bilstm_forward.1} parent=1 // pred_region
      %5730 = dma.done [#allocation8], 256
    $region89: #{snn_bilstm_forward.1} parent=1 // pred_fallthru
      _
    // Predicated region
    $region90: #{snn_bilstm_forward.1} parent=1 // pred_check
      _
    $region91: #{snn_bilstm_forward.1} parent=1 // pred_check_branch
      %5732 = sbr.rel (0) target = $region93
    $region92: #{snn_bilstm_forward.1} parent=1 // pred_region
      %5733 = dma.done [#allocation17], 32
    $region93: #{snn_bilstm_forward.1} parent=1 // pred_fallthru
      _
    // Predicated region
    $region94: #{snn_bilstm_forward.1} parent=1 // pred_check
      _
    $region95: #{snn_bilstm_forward.1} parent=1 // pred_check_branch
      %5735 = sbr.rel (0) target = $region97
    $region96: #{snn_bilstm_forward.1} parent=1 // pred_region
      %5736 = dma.done [#allocation17], 32
    $region97: #{snn_bilstm_forward.1} parent=1 // pred_fallthru
      _
    %5737 = vsyncpa [#allocation7], 1
    %5738 = vsyncpa [#allocation10], 1
    %5739 = vsyncpa [#allocation13], 1
    %5740 = vsyncpa [#allocation8], 1
    %5741 = vsyncpa [#allocation17], 1

</llo_original>
